<compile_context>
chip_gen: v6e
topology: v6e:2x2x1
jax: 0.10.0
libtpu: 0.0.40
codegen_flags: <defaults>
</compile_context>

<pallas_src>
import jax
import jax.numpy as jnp
from jax.experimental import pallas as pl
from jax.experimental.pallas import tpu as pltpu

BN_EPS = 1e-5


def _round_up(x, m):
    return ((x + m - 1) // m) * m


# ---------------- Fused Pallas kernel ----------------

def _make_bottleneck_kernel(n_strips, tile_h):
    TH = tile_h

    def kernel(x_ref, w1_ref, b1_ref, w2f_ref, b2_ref, wcd_ref, bcd_ref,
               o_ref, t1p_ref, slab_ref):
        # x_ref:   (1, H, W, Cin)     bf16  full image, resident across strips
        # w1_ref:  (Cin, P_lane)      bf16  conv1 weight * bn1 scale (lane-padded)
        # b1_ref:  (1, P_lane)        f32
        # w2f_ref: (9*P_lane, P)      bf16  im2col conv2 weight * bn2 scale
        # b2_ref:  (1, P)             f32
        # wcd_ref: (P+Cin, Cout)      bf16  [conv3*s3 ; downsample*sd] stacked
        # bcd_ref: (1, Cout)          f32   b3 + bd
        # o_ref:   (1, TH, W, Cout)   bf16  current row-strip of the output
        # t1p_ref: (TH+2, WP, P_lane) bf16  padded stage-1 activations (scratch)
        # slab_ref:(TH*W, 9*P_lane)   bf16  im2col patch slab (scratch)
        _, H, W, Cin = x_ref.shape
        P_lane = w1_ref.shape[1]
        P = w2f_ref.shape[1]
        Cout = o_ref.shape[3]
        CL, C0 = 7, 8            # left pad column / sublane-aligned interior start
        CR = C0 + W              # right pad column

        i = pl.program_id(1)
        r0 = i * TH
        if TH % 8 == 0:
            r0 = pl.multiple_of(r0, 8)

        w1 = w1_ref[...]
        b1 = b1_ref[...]

        def stage1(row_start, nrows):
            # relu(bn1(conv1(x[rows]))): f32 epilogue, stored bf16.
            xs = x_ref[0, pl.ds(row_start, nrows), :, :].reshape(nrows * W, Cin)
            t = jnp.dot(xs, w1, preferred_element_type=jnp.float32)
            t = jnp.maximum(t + b1, 0.0)
            return t.astype(t1p_ref.dtype).reshape(nrows, W, P_lane)

        # Zero only the two pad columns (conv2 width padding); the interior and
        # halo rows are fully overwritten below, so no full-scratch zeroing.
        zcol = jnp.zeros((TH + 2, 1, P_lane), t1p_ref.dtype)
        t1p_ref[:, CL:CL + 1, :] = zcol
        t1p_ref[:, CR:CR + 1, :] = zcol

        zrow = jnp.zeros((1, W, P_lane), t1p_ref.dtype)

        # Stage 1: exactly ONE matmul per strip (halo rows included).
        if n_strips == 1:
            t1p_ref[1:TH + 1, C0:C0 + W, :] = stage1(r0, TH)
            t1p_ref[0:1, C0:C0 + W, :] = zrow
            t1p_ref[TH + 1:TH + 2, C0:C0 + W, :] = zrow
        else:
            @pl.when(i == 0)
            def _():
                t1p_ref[1:TH + 2, C0:C0 + W, :] = stage1(r0, TH + 1)
                t1p_ref[0:1, C0:C0 + W, :] = zrow

            @pl.when(i == n_strips - 1)
            def _():
                t1p_ref[0:TH + 1, C0:C0 + W, :] = stage1(r0 - 1, TH + 1)
                t1p_ref[TH + 1:TH + 2, C0:C0 + W, :] = zrow

            if n_strips >= 3:
                @pl.when(jnp.logical_and(i > 0, i < n_strips - 1))
                def _():
                    t1p_ref[0:TH + 2, C0:C0 + W, :] = stage1(r0 - 1, TH + 2)

        # conv2 (3x3, pad=1, stride=1) as ONE im2col matmul.  Slab column
        # offsets k*P_lane are multiples of 128 -> lane-aligned dense stores.
        for kh in range(3):
            for kw in range(3):
                k = kh * 3 + kw
                patch = t1p_ref[kh:kh + TH, CL + kw:CL + kw + W, :]
                slab_ref[:, k * P_lane:(k + 1) * P_lane] = patch.reshape(TH * W, P_lane)
        t2 = jnp.dot(slab_ref[...], w2f_ref[...], preferred_element_type=jnp.float32)
        t2 = jnp.maximum(t2 + b2_ref[...], 0.0).astype(wcd_ref.dtype)   # relu(bn2)

        # conv3+bn3 and the downsample 1x1+bn merged into ONE matmul over
        # K = P + Cin; the identity input is the already-resident x strip.
        xs = x_ref[0, pl.ds(r0, TH), :, :].reshape(TH * W, Cin)
        cat = jnp.concatenate([t2, xs], axis=-1)
        out = jnp.dot(cat, wcd_ref[...], preferred_element_type=jnp.float32)
        out = jnp.maximum(out + bcd_ref[...], 0.0)                      # relu(+identity)
        o_ref[0] = out.reshape(TH, W, Cout).astype(o_ref.dtype)

    return kernel


# ---------------- Wrappers ----------------

def _pick_tile_h(H, target):
    """Largest divisor of H <= target, preferring multiples of 8 (sublane-aligned)."""
    divisors = [th for th in range(1, min(target, H) + 1) if H % th == 0]
    aligned = [th for th in divisors if th % 8 == 0]
    return max(aligned) if aligned else max(divisors)


def bottleneck_forward_nhwc(x_nhwc, params, tile_h=32):
    x = x_nhwc.astype(jnp.bfloat16)
    N, H, W, Cin = x.shape
    P = params["w1"].shape[1]
    Cout = params["w3"].shape[1]
    TH = _pick_tile_h(H, tile_h)
    n_strips = H // TH
    P_lane = _round_up(P, 128)        # lane-aligned slab blocks (pays off at P=64)
    WP = _round_up(8 + W + 1, 8)      # padded t1p width; interior starts at col 8

    s1, b1 = params["s1"], params["b1"]
    s2, b2 = params["s2"], params["b2"]
    s3, b3 = params["s3"], params["b3"]
    sd, bd = params["sd"], params["bd"]

    # Fold BN scales into bf16 weights; only bias adds remain in the kernel.
    w1p = jnp.pad(params["w1"] * s1, ((0, 0), (0, P_lane - P))).astype(jnp.bfloat16)
    b1p = jnp.pad(b1, ((0, 0), (0, P_lane - P)))                       # (1, P_lane) f32
    w2s = params["w2"] * s2[0]                                         # (3,3,P,P) HWIO
    w2f = jnp.pad(w2s, ((0, 0), (0, 0), (0, P_lane - P), (0, 0))) \
             .reshape(9 * P_lane, P).astype(jnp.bfloat16)
    wcd = jnp.concatenate([params["w3"] * s3, params["wd"] * sd],
                          axis=0).astype(jnp.bfloat16)                 # (P+Cin, Cout)
    bcd = b3 + bd                                                      # (1, Cout) f32

    def full(a):
        nd = a.ndim
        return pl.BlockSpec(a.shape, lambda n, i, _nd=nd: (0,) * _nd)

    kernel = _make_bottleneck_kernel(n_strips, TH)

    out = pl.pallas_call(
        kernel,
        out_shape=jax.ShapeDtypeStruct((N, H, W, Cout), jnp.bfloat16),
        grid_spec=pltpu.PrefetchScalarGridSpec(
            num_scalar_prefetch=0,
            grid=(N, n_strips),
            in_specs=[
                # full image per batch; index is constant along the strip axis
                # so it is DMA'd once per image and kept resident in VMEM.
                pl.BlockSpec((1, H, W, Cin), lambda n, i: (n, 0, 0, 0)),
                full(w1p), full(b1p), full(w2f), full(b2), full(wcd), full(bcd),
            ],
            out_specs=pl.BlockSpec((1, TH, W, Cout), lambda n, i: (n, i, 0, 0)),
            scratch_shapes=[
                pltpu.VMEM((TH + 2, WP, P_lane), jnp.bfloat16),   # padded stage-1
                pltpu.VMEM((TH * W, 9 * P_lane), jnp.bfloat16),   # im2col slab
            ]),
        compiler_params=pltpu.CompilerParams(
            dimension_semantics=("parallel", "parallel"),         # batch x strips
            # Raise toward 64-96 MiB on v5e/v6e for real channel counts and
            # TH=16-32; keep headroom on v7x (64 MiB VMEM per core).
            vmem_limit_bytes=32 * 1024 * 1024),
    )(x, w1p, b1p, w2f, b2, wcd, bcd)
    return out


def bottleneck_forward(x_nchw, params, tile_h=32):
    # NCHW (PyTorch) boundary wrapper. A full NHWC/bf16 model should call
    # bottleneck_forward_nhwc directly and skip these transposes.
    x = jnp.transpose(x_nchw, (0, 2, 3, 1))
    out = bottleneck_forward_nhwc(x, params, tile_h)
    return jnp.transpose(out, (0, 3, 1, 2))


# ---------------- Deterministic parameter init ----------------

def init_params(key, inplanes, planes):
    expansion = 4
    cout = expansion * planes
    ks = jax.random.split(key, 8)

    def bn_fold(k, c):
        kg, kb, km, kv = jax.random.split(k, 4)
        gamma = 1.0 + 0.1 * jax.random.normal(kg, (c,), jnp.float32)
        beta = 0.1 * jax.random.normal(kb, (c,), jnp.float32)
        mean = 0.1 * jax.random.normal(km, (c,), jnp.float32)
        var = jnp.abs(jax.random.normal(kv, (c,), jnp.float32)) + 0.5
        scale = gamma / jnp.sqrt(var + BN_EPS)
        bias = beta - mean * scale
        return scale.reshape(1, c), bias.reshape(1, c)

    # conv weights stored kernel-ready:
    #   w1: (Cin, P)        == torch conv1.weight[:, :, 0, 0].T
    #   w2: (3, 3, P, P)    == torch conv2.weight HWIO
    #   w3: (P, 4P)         == torch conv3.weight[:, :, 0, 0].T
    #   wd: (Cin, 4P)       == torch downsample[0].weight[:, :, 0, 0].T
    w1 = 0.1 * jax.random.normal(ks[0], (inplanes, planes), jnp.float32)
    w2 = 0.1 * jax.random.normal(ks[1], (3, 3, planes, planes), jnp.float32)
    w3 = 0.1 * jax.random.normal(ks[2], (planes, cout), jnp.float32)
    wd = 0.1 * jax.random.normal(ks[3], (inplanes, cout), jnp.float32)
    s1, b1 = bn_fold(ks[4], planes)
    s2, b2 = bn_fold(ks[5], planes)
    s3, b3 = bn_fold(ks[6], cout)
    sd, bd = bn_fold(ks[7], cout)
    return dict(w1=w1, s1=s1, b1=b1, w2=w2, s2=s2, b2=b2,
                w3=w3, s3=s3, b3=b3, wd=wd, sd=sd, bd=bd)


# ---------------- Pure-JAX reference (same folded-BN / bf16 numerics) ----------------

def reference_forward(x_nchw, p):
    x = jnp.transpose(x_nchw, (0, 2, 3, 1)).astype(jnp.bfloat16)   # NHWC bf16
    dn = ("NHWC", "HWIO", "NHWC")
    w1f = (p["w1"] * p["s1"]).astype(jnp.bfloat16)
    w2f = (p["w2"] * p["s2"][0]).astype(jnp.bfloat16)
    w3f = (p["w3"] * p["s3"]).astype(jnp.bfloat16)
    wdf = (p["wd"] * p["sd"]).astype(jnp.bfloat16)

    def mm(t, w):
        return jnp.einsum("nhwc,cd->nhwd", t, w, preferred_element_type=jnp.float32)

    t = jnp.maximum(mm(x, w1f) + p["b1"][0], 0.0).astype(jnp.bfloat16)
    t = jax.lax.conv_general_dilated(t, w2f, (1, 1), ((1, 1), (1, 1)),
                                     dimension_numbers=dn,
                                     preferred_element_type=jnp.float32)
    t = jnp.maximum(t + p["b2"][0], 0.0).astype(jnp.bfloat16)
    out = jnp.maximum(mm(t, w3f) + mm(x, wdf) + p["b3"][0] + p["bd"][0], 0.0)
    return jnp.transpose(out, (0, 3, 1, 2))


if __name__ == "__main__":
    key = jax.random.PRNGKey(0)
    # (N, Cin, H, W), planes, tile_h
    configs = [
        ((2, 4, 32, 32), 4, 8),   # 4 row-strips: interior + first/last halo paths
        ((1, 4, 8, 8), 4, 8),     # single strip: both halo rows are zero padding
    ]
    for ci, (shape, planes, th) in enumerate(configs):
        kx, kp, key = jax.random.split(key, 3)
        N, Cin, H, W = shape
        x = jax.random.normal(kx, shape, jnp.float32)        # NCHW, like PyTorch
        params = init_params(kp, Cin, planes)

        out = jax.block_until_ready(bottleneck_forward(x, params, tile_h=th))
        ref = jax.block_until_ready(reference_forward(x, params))

        assert out.shape == (N, 4 * planes, H, W)
        assert jnp.allclose(out.astype(jnp.float32), ref, atol=2e-2, rtol=2e-2), \
            f"mismatch vs reference (config {ci})"

    print("KERNEL_OK")
</pallas_src>

<mosaic_0001>
module attributes {stable_mosaic.version = 11 : i64} {
  func.func @kernel(%arg0: i32, %arg1: i32, %arg2: memref<1x32x32x4xbf16, #tpu.memory_space<vmem>>, %arg3: memref<4x128xbf16, #tpu.memory_space<vmem>>, %arg4: memref<1x128xf32, #tpu.memory_space<vmem>>, %arg5: memref<1152x4xbf16, #tpu.memory_space<vmem>>, %arg6: memref<1x4xf32, #tpu.memory_space<vmem>>, %arg7: memref<8x16xbf16, #tpu.memory_space<vmem>>, %arg8: memref<1x16xf32, #tpu.memory_space<vmem>>, %arg9: memref<1x8x32x16xbf16, #tpu.memory_space<vmem>>, %arg10: memref<10x48x128xbf16, #tpu.memory_space<vmem>>, %arg11: memref<256x1152xbf16, #tpu.memory_space<vmem>>) attributes {dimension_semantics = [#tpu.dimension_semantics<parallel>, #tpu.dimension_semantics<parallel>], iteration_bounds = array<i64: 2, 4>, scalar_prefetch = 0 : i64, scratch_operands = 2 : i64, tpu.core_type = #tpu.core_type<tc>, window_params = [{transform_indices = @transform_0, window_bounds = array<i64: 1, 32, 32, 4>}, {pipeline_mode = #tpu.pipeline_mode<synchronous>, transform_indices = @transform_1, window_bounds = array<i64: 4, 128>}, {pipeline_mode = #tpu.pipeline_mode<synchronous>, transform_indices = @transform_2, window_bounds = array<i64: 1, 128>}, {pipeline_mode = #tpu.pipeline_mode<synchronous>, transform_indices = @transform_3, window_bounds = array<i64: 1152, 4>}, {pipeline_mode = #tpu.pipeline_mode<synchronous>, transform_indices = @transform_4, window_bounds = array<i64: 1, 4>}, {pipeline_mode = #tpu.pipeline_mode<synchronous>, transform_indices = @transform_5, window_bounds = array<i64: 8, 16>}, {pipeline_mode = #tpu.pipeline_mode<synchronous>, transform_indices = @transform_6, window_bounds = array<i64: 1, 16>}, {transform_indices = @transform_7, window_bounds = array<i64: 1, 8, 32, 16>}]} {
    %c8_i32 = arith.constant 8 : i32
    %0 = arith.muli %arg1, %c8_i32 : i32
    %1 = tpu.assume_multiple %0, 8 : i32
    %c0 = arith.constant 0 : index
    %c0_0 = arith.constant 0 : index
    %2 = vector.load %arg3[%c0, %c0_0] : memref<4x128xbf16, #tpu.memory_space<vmem>>, vector<4x128xbf16>
    %c0_1 = arith.constant 0 : index
    %c0_2 = arith.constant 0 : index
    %3 = vector.load %arg4[%c0_1, %c0_2] : memref<1x128xf32, #tpu.memory_space<vmem>>, vector<1x128xf32>
    %cst = arith.constant 0.000000e+00 : bf16
    %4 = vector.broadcast %cst : bf16 to vector<10x1x128xbf16>
    %c0_3 = arith.constant 0 : index
    %c7 = arith.constant 7 : index
    %c0_4 = arith.constant 0 : index
    %5 = vector.load %arg10[%c0_3, %c7, %c0_4] : memref<10x48x128xbf16, #tpu.memory_space<vmem>>, vector<10x1x128xbf16>
    tpu.vector_store %arg10[%c0_3, %c7, %c0_4], %4 {strides = array<i32>} : memref<10x48x128xbf16, #tpu.memory_space<vmem>>, vector<10x1x128xbf16>,
    %c0_5 = arith.constant 0 : index
    %c40 = arith.constant 40 : index
    %c0_6 = arith.constant 0 : index
    %6 = vector.load %arg10[%c0_5, %c40, %c0_6] : memref<10x48x128xbf16, #tpu.memory_space<vmem>>, vector<10x1x128xbf16>
    tpu.vector_store %arg10[%c0_5, %c40, %c0_6], %4 {strides = array<i32>} : memref<10x48x128xbf16, #tpu.memory_space<vmem>>, vector<10x1x128xbf16>,
    %cst_7 = arith.constant 0.000000e+00 : bf16
    %7 = vector.broadcast %cst_7 : bf16 to vector<1x32x128xbf16>
    %c0_i32 = arith.constant 0 : i32
    %8 = arith.cmpi eq, %arg1, %c0_i32 : i32
    %9 = arith.extui %8 : i1 to i32
    %c0_i32_8 = arith.constant 0 : i32
    %10 = arith.cmpi ne, %9, %c0_i32_8 : i32
    scf.if %10 {
      %c0_67 = arith.constant 0 : index
      %72 = arith.index_cast %1 : i32 to index
      %c0_68 = arith.constant 0 : index
      %c0_69 = arith.constant 0 : index
      %73 = vector.load %arg2[%c0_67, %72, %c0_68, %c0_69] : memref<1x32x32x4xbf16, #tpu.memory_space<vmem>>, vector<1x9x32x4xbf16>
      %74 = vector.shape_cast %73 : vector<1x9x32x4xbf16> to vector<9x32x4xbf16>
      %75 = vector.shape_cast %74 : vector<9x32x4xbf16> to vector<288x4xbf16>
      %cst_70 = arith.constant dense<0.000000e+00> : vector<288x128xf32>
      %76 = tpu.matmul %75, %2, %cst_70 {dimension_numbers = #tpu.dot_dimension_numbers<[1], [0], [0], [1], [0, 0, 1, 1], [], []>} : vector<288x4xbf16>, vector<4x128xbf16>, vector<288x128xf32> -> vector<288x128xf32>
      %77 = vector.broadcast %3 : vector<1x128xf32> to vector<288x128xf32>
      %78 = arith.addf %76, %77 : vector<288x128xf32>
      %cst_71 = arith.constant 0.000000e+00 : f32
      %79 = vector.broadcast %cst_71 : f32 to vector<288x128xf32>
      %80 = arith.maximumf %78, %79 : vector<288x128xf32>
      %81 = arith.truncf %80 : vector<288x128xf32> to vector<288x128xbf16>
      %82 = vector.shape_cast %81 : vector<288x128xbf16> to vector<9x32x128xbf16>
      %c1_72 = arith.constant 1 : index
      %c8_73 = arith.constant 8 : index
      %c0_74 = arith.constant 0 : index
      %83 = vector.load %arg10[%c1_72, %c8_73, %c0_74] : memref<10x48x128xbf16, #tpu.memory_space<vmem>>, vector<9x32x128xbf16>
      tpu.vector_store %arg10[%c1_72, %c8_73, %c0_74], %82 {strides = array<i32>} : memref<10x48x128xbf16, #tpu.memory_space<vmem>>, vector<9x32x128xbf16>,
      %c0_75 = arith.constant 0 : index
      %c8_76 = arith.constant 8 : index
      %c0_77 = arith.constant 0 : index
      %84 = vector.load %arg10[%c0_75, %c8_76, %c0_77] : memref<10x48x128xbf16, #tpu.memory_space<vmem>>, vector<1x32x128xbf16>
      tpu.vector_store %arg10[%c0_75, %c8_76, %c0_77], %7 {strides = array<i32>} : memref<10x48x128xbf16, #tpu.memory_space<vmem>>, vector<1x32x128xbf16>,
    } else {
    }
    %c3_i32 = arith.constant 3 : i32
    %11 = arith.cmpi eq, %arg1, %c3_i32 : i32
    %12 = arith.extui %11 : i1 to i32
    %c0_i32_9 = arith.constant 0 : i32
    %13 = arith.cmpi ne, %12, %c0_i32_9 : i32
    scf.if %13 {
      %c1_i32 = arith.constant 1 : i32
      %72 = arith.subi %1, %c1_i32 : i32
      %c0_67 = arith.constant 0 : index
      %73 = arith.index_cast %72 : i32 to index
      %c0_68 = arith.constant 0 : index
      %c0_69 = arith.constant 0 : index
      %74 = vector.load %arg2[%c0_67, %73, %c0_68, %c0_69] : memref<1x32x32x4xbf16, #tpu.memory_space<vmem>>, vector<1x9x32x4xbf16>
      %75 = vector.shape_cast %74 : vector<1x9x32x4xbf16> to vector<9x32x4xbf16>
      %76 = vector.shape_cast %75 : vector<9x32x4xbf16> to vector<288x4xbf16>
      %cst_70 = arith.constant dense<0.000000e+00> : vector<288x128xf32>
      %77 = tpu.matmul %76, %2, %cst_70 {dimension_numbers = #tpu.dot_dimension_numbers<[1], [0], [0], [1], [0, 0, 1, 1], [], []>} : vector<288x4xbf16>, vector<4x128xbf16>, vector<288x128xf32> -> vector<288x128xf32>
      %78 = vector.broadcast %3 : vector<1x128xf32> to vector<288x128xf32>
      %79 = arith.addf %77, %78 : vector<288x128xf32>
      %cst_71 = arith.constant 0.000000e+00 : f32
      %80 = vector.broadcast %cst_71 : f32 to vector<288x128xf32>
      %81 = arith.maximumf %79, %80 : vector<288x128xf32>
      %82 = arith.truncf %81 : vector<288x128xf32> to vector<288x128xbf16>
      %83 = vector.shape_cast %82 : vector<288x128xbf16> to vector<9x32x128xbf16>
      %c0_72 = arith.constant 0 : index
      %c8_73 = arith.constant 8 : index
      %c0_74 = arith.constant 0 : index
      %84 = vector.load %arg10[%c0_72, %c8_73, %c0_74] : memref<10x48x128xbf16, #tpu.memory_space<vmem>>, vector<9x32x128xbf16>
      tpu.vector_store %arg10[%c0_72, %c8_73, %c0_74], %83 {strides = array<i32>} : memref<10x48x128xbf16, #tpu.memory_space<vmem>>, vector<9x32x128xbf16>,
      %c9_75 = arith.constant 9 : index
      %c8_76 = arith.constant 8 : index
      %c0_77 = arith.constant 0 : index
      %85 = vector.load %arg10[%c9_75, %c8_76, %c0_77] : memref<10x48x128xbf16, #tpu.memory_space<vmem>>, vector<1x32x128xbf16>
      tpu.vector_store %arg10[%c9_75, %c8_76, %c0_77], %7 {strides = array<i32>} : memref<10x48x128xbf16, #tpu.memory_space<vmem>>, vector<1x32x128xbf16>,
    } else {
    }
    %c0_i32_10 = arith.constant 0 : i32
    %14 = arith.cmpi sgt, %arg1, %c0_i32_10 : i32
    %c3_i32_11 = arith.constant 3 : i32
    %15 = arith.cmpi slt, %arg1, %c3_i32_11 : i32
    %16 = arith.andi %14, %15 : i1
    %17 = arith.extui %16 : i1 to i32
    %c0_i32_12 = arith.constant 0 : i32
    %18 = arith.cmpi ne, %17, %c0_i32_12 : i32
    scf.if %18 {
      %c1_i32 = arith.constant 1 : i32
      %72 = arith.subi %1, %c1_i32 : i32
      %c0_67 = arith.constant 0 : index
      %73 = arith.index_cast %72 : i32 to index
      %c0_68 = arith.constant 0 : index
      %c0_69 = arith.constant 0 : index
      %74 = vector.load %arg2[%c0_67, %73, %c0_68, %c0_69] : memref<1x32x32x4xbf16, #tpu.memory_space<vmem>>, vector<1x10x32x4xbf16>
      %75 = vector.shape_cast %74 : vector<1x10x32x4xbf16> to vector<10x32x4xbf16>
      %76 = vector.shape_cast %75 : vector<10x32x4xbf16> to vector<320x4xbf16>
      %cst_70 = arith.constant dense<0.000000e+00> : vector<320x128xf32>
      %77 = tpu.matmul %76, %2, %cst_70 {dimension_numbers = #tpu.dot_dimension_numbers<[1], [0], [0], [1], [0, 0, 1, 1], [], []>} : vector<320x4xbf16>, vector<4x128xbf16>, vector<320x128xf32> -> vector<320x128xf32>
      %78 = vector.broadcast %3 : vector<1x128xf32> to vector<320x128xf32>
      %79 = arith.addf %77, %78 : vector<320x128xf32>
      %cst_71 = arith.constant 0.000000e+00 : f32
      %80 = vector.broadcast %cst_71 : f32 to vector<320x128xf32>
      %81 = arith.maximumf %79, %80 : vector<320x128xf32>
      %82 = arith.truncf %81 : vector<320x128xf32> to vector<320x128xbf16>
      %83 = vector.shape_cast %82 : vector<320x128xbf16> to vector<10x32x128xbf16>
      %c0_72 = arith.constant 0 : index
      %c8_73 = arith.constant 8 : index
      %c0_74 = arith.constant 0 : index
      %84 = vector.load %arg10[%c0_72, %c8_73, %c0_74] : memref<10x48x128xbf16, #tpu.memory_space<vmem>>, vector<10x32x128xbf16>
      tpu.vector_store %arg10[%c0_72, %c8_73, %c0_74], %83 {strides = array<i32>} : memref<10x48x128xbf16, #tpu.memory_space<vmem>>, vector<10x32x128xbf16>,
    } else {
    }
    %c0_13 = arith.constant 0 : index
    %c7_14 = arith.constant 7 : index
    %c0_15 = arith.constant 0 : index
    %19 = vector.load %arg10[%c0_13, %c7_14, %c0_15] : memref<10x48x128xbf16, #tpu.memory_space<vmem>>, vector<8x32x128xbf16>
    %20 = vector.shape_cast %19 : vector<8x32x128xbf16> to vector<256x128xbf16>
    %c0_16 = arith.constant 0 : index
    %c0_17 = arith.constant 0 : index
    %21 = vector.load %arg11[%c0_16, %c0_17] : memref<256x1152xbf16, #tpu.memory_space<vmem>>, vector<256x128xbf16>
    tpu.vector_store %arg11[%c0_16, %c0_17], %20 {strides = array<i32>} : memref<256x1152xbf16, #tpu.memory_space<vmem>>, vector<256x128xbf16>,
    %c0_18 = arith.constant 0 : index
    %c8 = arith.constant 8 : index
    %c0_19 = arith.constant 0 : index
    %22 = vector.load %arg10[%c0_18, %c8, %c0_19] : memref<10x48x128xbf16, #tpu.memory_space<vmem>>, vector<8x32x128xbf16>
    %23 = vector.shape_cast %22 : vector<8x32x128xbf16> to vector<256x128xbf16>
    %c0_20 = arith.constant 0 : index
    %c128 = arith.constant 128 : index
    %24 = vector.load %arg11[%c0_20, %c128] : memref<256x1152xbf16, #tpu.memory_space<vmem>>, vector<256x128xbf16>
    tpu.vector_store %arg11[%c0_20, %c128], %23 {strides = array<i32>} : memref<256x1152xbf16, #tpu.memory_space<vmem>>, vector<256x128xbf16>,
    %c0_21 = arith.constant 0 : index
    %c9 = arith.constant 9 : index
    %c0_22 = arith.constant 0 : index
    %25 = vector.load %arg10[%c0_21, %c9, %c0_22] : memref<10x48x128xbf16, #tpu.memory_space<vmem>>, vector<8x32x128xbf16>
    %26 = vector.shape_cast %25 : vector<8x32x128xbf16> to vector<256x128xbf16>
    %c0_23 = arith.constant 0 : index
    %c256 = arith.constant 256 : index
    %27 = vector.load %arg11[%c0_23, %c256] : memref<256x1152xbf16, #tpu.memory_space<vmem>>, vector<256x128xbf16>
    tpu.vector_store %arg11[%c0_23, %c256], %26 {strides = array<i32>} : memref<256x1152xbf16, #tpu.memory_space<vmem>>, vector<256x128xbf16>,
    %c1 = arith.constant 1 : index
    %c7_24 = arith.constant 7 : index
    %c0_25 = arith.constant 0 : index
    %28 = vector.load %arg10[%c1, %c7_24, %c0_25] : memref<10x48x128xbf16, #tpu.memory_space<vmem>>, vector<8x32x128xbf16>
    %29 = vector.shape_cast %28 : vector<8x32x128xbf16> to vector<256x128xbf16>
    %c0_26 = arith.constant 0 : index
    %c384 = arith.constant 384 : index
    %30 = vector.load %arg11[%c0_26, %c384] : memref<256x1152xbf16, #tpu.memory_space<vmem>>, vector<256x128xbf16>
    tpu.vector_store %arg11[%c0_26, %c384], %29 {strides = array<i32>} : memref<256x1152xbf16, #tpu.memory_space<vmem>>, vector<256x128xbf16>,
    %c1_27 = arith.constant 1 : index
    %c8_28 = arith.constant 8 : index
    %c0_29 = arith.constant 0 : index
    %31 = vector.load %arg10[%c1_27, %c8_28, %c0_29] : memref<10x48x128xbf16, #tpu.memory_space<vmem>>, vector<8x32x128xbf16>
    %32 = vector.shape_cast %31 : vector<8x32x128xbf16> to vector<256x128xbf16>
    %c0_30 = arith.constant 0 : index
    %c512 = arith.constant 512 : index
    %33 = vector.load %arg11[%c0_30, %c512] : memref<256x1152xbf16, #tpu.memory_space<vmem>>, vector<256x128xbf16>
    tpu.vector_store %arg11[%c0_30, %c512], %32 {strides = array<i32>} : memref<256x1152xbf16, #tpu.memory_space<vmem>>, vector<256x128xbf16>,
    %c1_31 = arith.constant 1 : index
    %c9_32 = arith.constant 9 : index
    %c0_33 = arith.constant 0 : index
    %34 = vector.load %arg10[%c1_31, %c9_32, %c0_33] : memref<10x48x128xbf16, #tpu.memory_space<vmem>>, vector<8x32x128xbf16>
    %35 = vector.shape_cast %34 : vector<8x32x128xbf16> to vector<256x128xbf16>
    %c0_34 = arith.constant 0 : index
    %c640 = arith.constant 640 : index
    %36 = vector.load %arg11[%c0_34, %c640] : memref<256x1152xbf16, #tpu.memory_space<vmem>>, vector<256x128xbf16>
    tpu.vector_store %arg11[%c0_34, %c640], %35 {strides = array<i32>} : memref<256x1152xbf16, #tpu.memory_space<vmem>>, vector<256x128xbf16>,
    %c2 = arith.constant 2 : index
    %c7_35 = arith.constant 7 : index
    %c0_36 = arith.constant 0 : index
    %37 = vector.load %arg10[%c2, %c7_35, %c0_36] : memref<10x48x128xbf16, #tpu.memory_space<vmem>>, vector<8x32x128xbf16>
    %38 = vector.shape_cast %37 : vector<8x32x128xbf16> to vector<256x128xbf16>
    %c0_37 = arith.constant 0 : index
    %c768 = arith.constant 768 : index
    %39 = vector.load %arg11[%c0_37, %c768] : memref<256x1152xbf16, #tpu.memory_space<vmem>>, vector<256x128xbf16>
    tpu.vector_store %arg11[%c0_37, %c768], %38 {strides = array<i32>} : memref<256x1152xbf16, #tpu.memory_space<vmem>>, vector<256x128xbf16>,
    %c2_38 = arith.constant 2 : index
    %c8_39 = arith.constant 8 : index
    %c0_40 = arith.constant 0 : index
    %40 = vector.load %arg10[%c2_38, %c8_39, %c0_40] : memref<10x48x128xbf16, #tpu.memory_space<vmem>>, vector<8x32x128xbf16>
    %41 = vector.shape_cast %40 : vector<8x32x128xbf16> to vector<256x128xbf16>
    %c0_41 = arith.constant 0 : index
    %c896 = arith.constant 896 : index
    %42 = vector.load %arg11[%c0_41, %c896] : memref<256x1152xbf16, #tpu.memory_space<vmem>>, vector<256x128xbf16>
    tpu.vector_store %arg11[%c0_41, %c896], %41 {strides = array<i32>} : memref<256x1152xbf16, #tpu.memory_space<vmem>>, vector<256x128xbf16>,
    %c2_42 = arith.constant 2 : index
    %c9_43 = arith.constant 9 : index
    %c0_44 = arith.constant 0 : index
    %43 = vector.load %arg10[%c2_42, %c9_43, %c0_44] : memref<10x48x128xbf16, #tpu.memory_space<vmem>>, vector<8x32x128xbf16>
    %44 = vector.shape_cast %43 : vector<8x32x128xbf16> to vector<256x128xbf16>
    %c0_45 = arith.constant 0 : index
    %c1024 = arith.constant 1024 : index
    %45 = vector.load %arg11[%c0_45, %c1024] : memref<256x1152xbf16, #tpu.memory_space<vmem>>, vector<256x128xbf16>
    tpu.vector_store %arg11[%c0_45, %c1024], %44 {strides = array<i32>} : memref<256x1152xbf16, #tpu.memory_space<vmem>>, vector<256x128xbf16>,
    %c0_46 = arith.constant 0 : index
    %c0_47 = arith.constant 0 : index
    %46 = vector.load %arg11[%c0_46, %c0_47] : memref<256x1152xbf16, #tpu.memory_space<vmem>>, vector<256x1152xbf16>
    %c0_48 = arith.constant 0 : index
    %c0_49 = arith.constant 0 : index
    %47 = vector.load %arg5[%c0_48, %c0_49] : memref<1152x4xbf16, #tpu.memory_space<vmem>>, vector<1152x4xbf16>
    %cst_50 = arith.constant dense<0.000000e+00> : vector<256x4xf32>
    %48 = tpu.matmul %46, %47, %cst_50 {dimension_numbers = #tpu.dot_dimension_numbers<[1], [0], [0], [1], [0, 0, 1, 1], [], []>} : vector<256x1152xbf16>, vector<1152x4xbf16>, vector<256x4xf32> -> vector<256x4xf32>
    %c0_51 = arith.constant 0 : index
    %c0_52 = arith.constant 0 : index
    %49 = vector.load %arg6[%c0_51, %c0_52] : memref<1x4xf32, #tpu.memory_space<vmem>>, vector<1x4xf32>
    %50 = vector.broadcast %49 : vector<1x4xf32> to vector<256x4xf32>
    %51 = arith.addf %48, %50 : vector<256x4xf32>
    %cst_53 = arith.constant 0.000000e+00 : f32
    %52 = vector.broadcast %cst_53 : f32 to vector<256x4xf32>
    %53 = arith.maximumf %51, %52 : vector<256x4xf32>
    %54 = arith.truncf %53 : vector<256x4xf32> to vector<256x4xbf16>
    %c0_54 = arith.constant 0 : index
    %55 = arith.index_cast %1 : i32 to index
    %c0_55 = arith.constant 0 : index
    %c0_56 = arith.constant 0 : index
    %56 = vector.load %arg2[%c0_54, %55, %c0_55, %c0_56] : memref<1x32x32x4xbf16, #tpu.memory_space<vmem>>, vector<1x8x32x4xbf16>
    %57 = vector.shape_cast %56 : vector<1x8x32x4xbf16> to vector<8x32x4xbf16>
    %58 = vector.shape_cast %57 : vector<8x32x4xbf16> to vector<256x4xbf16>
    %59 = tpu.concatenate %54, %58 in 1 : vector<256x4xbf16>, vector<256x4xbf16> -> vector<256x8xbf16>
    %c0_57 = arith.constant 0 : index
    %c0_58 = arith.constant 0 : index
    %60 = vector.load %arg7[%c0_57, %c0_58] : memref<8x16xbf16, #tpu.memory_space<vmem>>, vector<8x16xbf16>
    %cst_59 = arith.constant dense<0.000000e+00> : vector<256x16xf32>
    %61 = tpu.matmul %59, %60, %cst_59 {dimension_numbers = #tpu.dot_dimension_numbers<[1], [0], [0], [1], [0, 0, 1, 1], [], []>} : vector<256x8xbf16>, vector<8x16xbf16>, vector<256x16xf32> -> vector<256x16xf32>
    %c0_60 = arith.constant 0 : index
    %c0_61 = arith.constant 0 : index
    %62 = vector.load %arg8[%c0_60, %c0_61] : memref<1x16xf32, #tpu.memory_space<vmem>>, vector<1x16xf32>
    %63 = vector.broadcast %62 : vector<1x16xf32> to vector<256x16xf32>
    %64 = arith.addf %61, %63 : vector<256x16xf32>
    %cst_62 = arith.constant 0.000000e+00 : f32
    %65 = vector.broadcast %cst_62 : f32 to vector<256x16xf32>
    %66 = arith.maximumf %64, %65 : vector<256x16xf32>
    %67 = vector.shape_cast %66 : vector<256x16xf32> to vector<8x32x16xf32>
    %68 = arith.truncf %67 : vector<8x32x16xf32> to vector<8x32x16xbf16>
    %c0_63 = arith.constant 0 : index
    %c0_64 = arith.constant 0 : index
    %c0_65 = arith.constant 0 : index
    %c0_66 = arith.constant 0 : index
    %69 = vector.load %arg9[%c0_63, %c0_64, %c0_65, %c0_66] : memref<1x8x32x16xbf16, #tpu.memory_space<vmem>>, vector<1x8x32x16xbf16>
    %70 = vector.shape_cast %69 : vector<1x8x32x16xbf16> to vector<8x32x16xbf16>
    %71 = vector.shape_cast %68 : vector<8x32x16xbf16> to vector<1x8x32x16xbf16>
    tpu.vector_store %arg9[%c0_63, %c0_64, %c0_65, %c0_66], %71 {strides = array<i32>} : memref<1x8x32x16xbf16, #tpu.memory_space<vmem>>, vector<1x8x32x16xbf16>,
    return
  }
  func.func @transform_0(%arg0: i32, %arg1: i32) -> (i32, i32, i32, i32) {
    %c0_i32 = arith.constant 0 : i32
    %c0_i32_0 = arith.constant 0 : i32
    %c0_i32_1 = arith.constant 0 : i32
    %c0_i32_2 = arith.constant 0 : i32
    return %arg0, %c0_i32, %c0_i32_0, %c0_i32_1 : i32, i32, i32, i32
  }
  func.func @transform_1(%arg0: i32, %arg1: i32) -> (i32, i32) {
    %c0_i32 = arith.constant 0 : i32
    %c0_i32_0 = arith.constant 0 : i32
    %c0_i32_1 = arith.constant 0 : i32
    return %c0_i32, %c0_i32_0 : i32, i32
  }
  func.func @transform_2(%arg0: i32, %arg1: i32) -> (i32, i32) {
    %c0_i32 = arith.constant 0 : i32
    %c0_i32_0 = arith.constant 0 : i32
    %c0_i32_1 = arith.constant 0 : i32
    return %c0_i32, %c0_i32_0 : i32, i32
  }
  func.func @transform_3(%arg0: i32, %arg1: i32) -> (i32, i32) {
    %c0_i32 = arith.constant 0 : i32
    %c0_i32_0 = arith.constant 0 : i32
    %c0_i32_1 = arith.constant 0 : i32
    return %c0_i32, %c0_i32_0 : i32, i32
  }
  func.func @transform_4(%arg0: i32, %arg1: i32) -> (i32, i32) {
    %c0_i32 = arith.constant 0 : i32
    %c0_i32_0 = arith.constant 0 : i32
    %c0_i32_1 = arith.constant 0 : i32
    return %c0_i32, %c0_i32_0 : i32, i32
  }
  func.func @transform_5(%arg0: i32, %arg1: i32) -> (i32, i32) {
    %c0_i32 = arith.constant 0 : i32
    %c0_i32_0 = arith.constant 0 : i32
    %c0_i32_1 = arith.constant 0 : i32
    return %c0_i32, %c0_i32_0 : i32, i32
  }
  func.func @transform_6(%arg0: i32, %arg1: i32) -> (i32, i32) {
    %c0_i32 = arith.constant 0 : i32
    %c0_i32_0 = arith.constant 0 : i32
    %c0_i32_1 = arith.constant 0 : i32
    return %c0_i32, %c0_i32_0 : i32, i32
  }
  func.func @transform_7(%arg0: i32, %arg1: i32) -> (i32, i32, i32, i32) {
    %c0_i32 = arith.constant 0 : i32
    %c0_i32_0 = arith.constant 0 : i32
    %c0_i32_1 = arith.constant 0 : i32
    return %arg0, %arg1, %c0_i32, %c0_i32_0 : i32, i32, i32, i32
  }
}

</mosaic_0001>

<llo_original>
// kernel: tpu_custom_call.1
$region0: #{tpu_custom_call.1}
  #allocation0 [shape = 'u32[]', space=smem, size = 0x4, offset = 0x4, fixed_abs, tag = 'smem constant byte address 0x4 - core index']
  #allocation1 [shape = 'u32[144,128]{1,0:T(1,128)}', space=vmem, size = 0x12000, scoped, tag = 'internal scratch']
  #allocation2 [shape = 'bf16[10,48,128]{2,1,0:T(8,128)(2,1)}', space=vmem, size = 0x1e000, scoped, tag = 'scratch operand']
  #allocation3 [shape = 'bf16[256,1152]{1,0:T(8,128)(2,1)}', space=vmem, size = 0x90000, scoped, tag = 'scratch operand']
  %s0 = inlined_call_operand.vmem [shape: bf16[2,32,32,4], index: 0, kind: input, shape index: {}]
  %s1 = inlined_call_operand.vmem [shape: bf16[4,128], index: 1, kind: input, shape index: {}]
  %s2 = inlined_call_operand.vmem [shape: f32[1,128], index: 2, kind: input, shape index: {}]
  %s3 = inlined_call_operand.vmem [shape: bf16[1152,4], index: 3, kind: input, shape index: {}]
  %s4 = inlined_call_operand.vmem [shape: f32[1,4], index: 4, kind: input, shape index: {}]
  %s5 = inlined_call_operand.vmem [shape: bf16[8,16], index: 5, kind: input, shape index: {}]
  %s6 = inlined_call_operand.vmem [shape: f32[1,16], index: 6, kind: input, shape index: {}]
  %s7 = inlined_call_operand.vmem [shape: bf16[2,32,32,16], index: 7, kind: output, shape index: {}]
  %s8 = sld [smem:[#allocation0]]
  $region73: #{tpu_custom_call.1} parent=0
    _
  %s10 = ssub.s32 1, %s8
  %s11 = scalar_select 0, %s10, %s8
  loop: start=0, step=1, limit=10
  $region2: #{tpu_custom_call.1} parent=0 // loop_pre_header
    _
  $region3: #{tpu_custom_call.1} parent=0 // loop_header
    %s13 = sphi 0, %s17
    %p14 = scmp.ge.s32.totalorder %s13, 10
    %s20 = sphi 0, %s32
    %s21 = sphi 0, %s28
    %s22 = sphi 0, %s20
    %s23 = sphi 0, %s21
    %s24 = sphi 0, %s22
    %s25 = sphi 0, %s23
    %s35 = sphi 0, %s37
    %s38 = sphi 0, %s35
    %s39 = sphi 0, %s38
    %s55 = sphi 0, %s39
    %s59 = sphi 0, %s59
    %s61 = sphi 0, %s59
    %s62 = sphi 0, %s61
    %s76 = sphi 0, %s62
    %s80 = sphi 0, %s80
    %s82 = sphi 0, %s80
    %s83 = sphi 0, %s82
    %s97 = sphi 0, %s83
    %s101 = sphi 0, %s101
    %s103 = sphi 0, %s101
    %s104 = sphi 0, %s103
    %s118 = sphi 0, %s104
    %s122 = sphi 0, %s122
    %s124 = sphi 0, %s122
    %s125 = sphi 0, %s124
    %s139 = sphi 0, %s125
    %s143 = sphi 0, %s143
    %s145 = sphi 0, %s143
    %s146 = sphi 0, %s145
    %s160 = sphi 0, %s146
    %s164 = sphi 0, %s164
    %s166 = sphi 0, %s164
    %s167 = sphi 0, %s166
    %s181 = sphi 0, %s167
    %s189 = sphi 0, %s191
    %s192 = sphi 0, %s189
    %s193 = sphi 0, %s192
    %s209 = sphi 0, %s193
  $region4: #{tpu_custom_call.1} parent=0 // loop_header_branch
    %16 = sbr.rel (%p14) target = $region8
  $region5: #{tpu_custom_call.1} parent=0 // loop_body
    %s18 = ssub.s32 %s13, 1
    %s19 = ssub.s32 %s13, 2
    %s26 = sadd.s32 1, %s21
    %p27 = scmp.ge.s32.totalorder %s26, 4
    %s28 = scalar_select %p27, 0, %s26
    %s29 = sadd.s32 1, %s20
    %s30 = scalar_select %p27, %s29, %s20
    %p31 = scmp.ge.s32.totalorder %s30, 2
    %s32 = scalar_select %p31, 0, %s30
    %s33 = ssub.s32 %s20, %s32
    %p34 = scmp.eq.s32.totalorder %s33, 0
    %s36 = sadd.s32 %s35, 1
    %s37 = scalar_select %p34, %s35, %s36
    %p40 = pneg %p34
    %p41 = scmp.eq.s32.totalorder %s13, 7
    %p42 = por %p40, %p41
    %p43 = scmp.ne.s32.totalorder %s35, %s38
    %p44 = scmp.eq.s32.totalorder %s13, 0
    %p45 = por %p43, %p44
    %p46 = scmp.ne.s32.totalorder %s35, %s38
    %p47 = scmp.eq.s32.totalorder %s18, 7
    %p48 = por %p46, %p47
    %p49 = scmp.ne.s32.totalorder %s38, %s39
    %p50 = scmp.eq.s32.totalorder %s18, 0
    %p51 = por %p49, %p50
    %p52 = scmp.ne.s32.totalorder %s38, %s39
    %p53 = scmp.eq.s32.totalorder %s19, 7
    %p54 = por %p52, %p53
    %p56 = scmp.ne.s32.totalorder %s39, %s55
    %p57 = scmp.eq.s32.totalorder %s19, 0
    %p58 = por %p56, %p57
    %s60 = sadd.s32 %s59, 1
    %p63 = scmp.eq.s32.totalorder %s13, 7
    %p64 = scmp.ne.s32.totalorder %s59, %s61
    %p65 = scmp.eq.s32.totalorder %s13, 0
    %p66 = por %p64, %p65
    %p67 = scmp.ne.s32.totalorder %s59, %s61
    %p68 = scmp.eq.s32.totalorder %s18, 7
    %p69 = por %p67, %p68
    %p70 = scmp.ne.s32.totalorder %s61, %s62
    %p71 = scmp.eq.s32.totalorder %s18, 0
    %p72 = por %p70, %p71
    %p73 = scmp.ne.s32.totalorder %s61, %s62
    %p74 = scmp.eq.s32.totalorder %s19, 7
    %p75 = por %p73, %p74
    %p77 = scmp.ne.s32.totalorder %s62, %s76
    %p78 = scmp.eq.s32.totalorder %s19, 0
    %p79 = por %p77, %p78
    %s81 = sadd.s32 %s80, 1
    %p84 = scmp.eq.s32.totalorder %s13, 7
    %p85 = scmp.ne.s32.totalorder %s80, %s82
    %p86 = scmp.eq.s32.totalorder %s13, 0
    %p87 = por %p85, %p86
    %p88 = scmp.ne.s32.totalorder %s80, %s82
    %p89 = scmp.eq.s32.totalorder %s18, 7
    %p90 = por %p88, %p89
    %p91 = scmp.ne.s32.totalorder %s82, %s83
    %p92 = scmp.eq.s32.totalorder %s18, 0
    %p93 = por %p91, %p92
    %p94 = scmp.ne.s32.totalorder %s82, %s83
    %p95 = scmp.eq.s32.totalorder %s19, 7
    %p96 = por %p94, %p95
    %p98 = scmp.ne.s32.totalorder %s83, %s97
    %p99 = scmp.eq.s32.totalorder %s19, 0
    %p100 = por %p98, %p99
    %s102 = sadd.s32 %s101, 1
    %p105 = scmp.eq.s32.totalorder %s13, 7
    %p106 = scmp.ne.s32.totalorder %s101, %s103
    %p107 = scmp.eq.s32.totalorder %s13, 0
    %p108 = por %p106, %p107
    %p109 = scmp.ne.s32.totalorder %s101, %s103
    %p110 = scmp.eq.s32.totalorder %s18, 7
    %p111 = por %p109, %p110
    %p112 = scmp.ne.s32.totalorder %s103, %s104
    %p113 = scmp.eq.s32.totalorder %s18, 0
    %p114 = por %p112, %p113
    %p115 = scmp.ne.s32.totalorder %s103, %s104
    %p116 = scmp.eq.s32.totalorder %s19, 7
    %p117 = por %p115, %p116
    %p119 = scmp.ne.s32.totalorder %s104, %s118
    %p120 = scmp.eq.s32.totalorder %s19, 0
    %p121 = por %p119, %p120
    %s123 = sadd.s32 %s122, 1
    %p126 = scmp.eq.s32.totalorder %s13, 7
    %p127 = scmp.ne.s32.totalorder %s122, %s124
    %p128 = scmp.eq.s32.totalorder %s13, 0
    %p129 = por %p127, %p128
    %p130 = scmp.ne.s32.totalorder %s122, %s124
    %p131 = scmp.eq.s32.totalorder %s18, 7
    %p132 = por %p130, %p131
    %p133 = scmp.ne.s32.totalorder %s124, %s125
    %p134 = scmp.eq.s32.totalorder %s18, 0
    %p135 = por %p133, %p134
    %p136 = scmp.ne.s32.totalorder %s124, %s125
    %p137 = scmp.eq.s32.totalorder %s19, 7
    %p138 = por %p136, %p137
    %p140 = scmp.ne.s32.totalorder %s125, %s139
    %p141 = scmp.eq.s32.totalorder %s19, 0
    %p142 = por %p140, %p141
    %s144 = sadd.s32 %s143, 1
    %p147 = scmp.eq.s32.totalorder %s13, 7
    %p148 = scmp.ne.s32.totalorder %s143, %s145
    %p149 = scmp.eq.s32.totalorder %s13, 0
    %p150 = por %p148, %p149
    %p151 = scmp.ne.s32.totalorder %s143, %s145
    %p152 = scmp.eq.s32.totalorder %s18, 7
    %p153 = por %p151, %p152
    %p154 = scmp.ne.s32.totalorder %s145, %s146
    %p155 = scmp.eq.s32.totalorder %s18, 0
    %p156 = por %p154, %p155
    %p157 = scmp.ne.s32.totalorder %s145, %s146
    %p158 = scmp.eq.s32.totalorder %s19, 7
    %p159 = por %p157, %p158
    %p161 = scmp.ne.s32.totalorder %s146, %s160
    %p162 = scmp.eq.s32.totalorder %s19, 0
    %p163 = por %p161, %p162
    %s165 = sadd.s32 %s164, 1
    %p168 = scmp.eq.s32.totalorder %s13, 7
    %p169 = scmp.ne.s32.totalorder %s164, %s166
    %p170 = scmp.eq.s32.totalorder %s13, 0
    %p171 = por %p169, %p170
    %p172 = scmp.ne.s32.totalorder %s164, %s166
    %p173 = scmp.eq.s32.totalorder %s18, 7
    %p174 = por %p172, %p173
    %p175 = scmp.ne.s32.totalorder %s166, %s167
    %p176 = scmp.eq.s32.totalorder %s18, 0
    %p177 = por %p175, %p176
    %p178 = scmp.ne.s32.totalorder %s166, %s167
    %p179 = scmp.eq.s32.totalorder %s19, 7
    %p180 = por %p178, %p179
    %p182 = scmp.ne.s32.totalorder %s167, %s181
    %p183 = scmp.eq.s32.totalorder %s19, 0
    %p184 = por %p182, %p183
    %s185 = ssub.s32 %s20, %s32
    %s186 = ssub.s32 %s21, %s28
    %s187 = sor.u32 %s185, %s186
    %p188 = scmp.eq.s32.totalorder %s187, 0
    %s190 = sadd.s32 %s189, 1
    %s191 = scalar_select %p188, %s189, %s190
    %p194 = pneg %p188
    %p195 = scmp.eq.s32.totalorder %s13, 7
    %p196 = por %p194, %p195
    %p197 = scmp.ne.s32.totalorder %s189, %s192
    %p198 = scmp.eq.s32.totalorder %s13, 0
    %p199 = por %p197, %p198
    %p200 = scmp.ne.s32.totalorder %s189, %s192
    %p201 = scmp.eq.s32.totalorder %s18, 7
    %p202 = por %p200, %p201
    %p203 = scmp.ne.s32.totalorder %s192, %s193
    %p204 = scmp.eq.s32.totalorder %s18, 0
    %p205 = por %p203, %p204
    %p206 = scmp.ne.s32.totalorder %s192, %s193
    %p207 = scmp.eq.s32.totalorder %s19, 7
    %p208 = por %p206, %p207
    %p210 = scmp.ne.s32.totalorder %s193, %s209
    %p211 = scmp.eq.s32.totalorder %s19, 0
    %p212 = por %p210, %p211
    %p213 = scmp.le.s32.totalorder 1, %s13
    %p214 = scmp.lt.s32.totalorder %s13, 9
    %p215 = pnand %p213, %p214
    %p216 = pneg %p215
    // Predicated region
    $region9: #{tpu_custom_call.1} parent=5 // pred_check
      _
    $region10: #{tpu_custom_call.1} parent=5 // pred_check_branch
      %218 = sbr.rel (%p215) target = $region12
    $region11: #{tpu_custom_call.1} parent=5 // pred_region
      %s219 = ssub.s32 %s13, 1
      // Predicated region
      $region13: #{tpu_custom_call.1} parent=11 // pred_check
        %p220 = pneg %p72
      $region14: #{tpu_custom_call.1} parent=11 // pred_check_branch
        %222 = sbr.rel (%p220) target = $region16
      $region15: #{tpu_custom_call.1} parent=11 // pred_region
        _
      $region16: #{tpu_custom_call.1} parent=11 // pred_fallthru
        _
      // Predicated region
      $region17: #{tpu_custom_call.1} parent=11 // pred_check
        %p223 = pneg %p93
      $region18: #{tpu_custom_call.1} parent=11 // pred_check_branch
        %225 = sbr.rel (%p223) target = $region20
      $region19: #{tpu_custom_call.1} parent=11 // pred_region
        _
      $region20: #{tpu_custom_call.1} parent=11 // pred_fallthru
        _
      // Predicated region
      $region21: #{tpu_custom_call.1} parent=11 // pred_check
        %p226 = pneg %p114
      $region22: #{tpu_custom_call.1} parent=11 // pred_check_branch
        %228 = sbr.rel (%p226) target = $region24
      $region23: #{tpu_custom_call.1} parent=11 // pred_region
        _
      $region24: #{tpu_custom_call.1} parent=11 // pred_fallthru
        _
      // Predicated region
      $region25: #{tpu_custom_call.1} parent=11 // pred_check
        %p229 = pneg %p135
      $region26: #{tpu_custom_call.1} parent=11 // pred_check_branch
        %231 = sbr.rel (%p229) target = $region28
      $region27: #{tpu_custom_call.1} parent=11 // pred_region
        _
      $region28: #{tpu_custom_call.1} parent=11 // pred_fallthru
        _
      // Predicated region
      $region29: #{tpu_custom_call.1} parent=11 // pred_check
        %p232 = pneg %p156
      $region30: #{tpu_custom_call.1} parent=11 // pred_check_branch
        %234 = sbr.rel (%p232) target = $region32
      $region31: #{tpu_custom_call.1} parent=11 // pred_region
        _
      $region32: #{tpu_custom_call.1} parent=11 // pred_fallthru
        _
      // Predicated region
      $region33: #{tpu_custom_call.1} parent=11 // pred_check
        %p235 = pneg %p177
      $region34: #{tpu_custom_call.1} parent=11 // pred_check_branch
        %237 = sbr.rel (%p235) target = $region36
      $region35: #{tpu_custom_call.1} parent=11 // pred_region
        _
      $region36: #{tpu_custom_call.1} parent=11 // pred_fallthru
        _
    $region12: #{tpu_custom_call.1} parent=5 // pred_fallthru
      _
    %p238 = scmp.lt.s32.totalorder %s13, 8
    // Predicated region
    $region37: #{tpu_custom_call.1} parent=5 // pred_check
      %p239 = pneg %p238
    $region38: #{tpu_custom_call.1} parent=5 // pred_check_branch
      %241 = sbr.rel (%p239) target = $region40
    $region39: #{tpu_custom_call.1} parent=5 // pred_region
      // Predicated region
      $region41: #{tpu_custom_call.1} parent=39 // pred_check
        %p242 = pneg %p45
      $region42: #{tpu_custom_call.1} parent=39 // pred_check_branch
        %244 = sbr.rel (%p242) target = $region44
      $region43: #{tpu_custom_call.1} parent=39 // pred_region
        %p245 = scmp.lt.s32.totalorder %s20, 1
        %s246 = scalar_select %p245, %s20, 1
        %s247 = smul.addr %s246, 128
        %s248 = smul.addr %s247, 4
        %s249 = scalar_lea.vmem %s0, %s248
      $region44: #{tpu_custom_call.1} parent=39 // pred_fallthru
        _
    $region40: #{tpu_custom_call.1} parent=5 // pred_fallthru
      _
    %p250 = scmp.le.s32.totalorder 1, %s13
    %p251 = scmp.lt.s32.totalorder %s13, 9
    %p252 = pnand %p250, %p251
    %p253 = pneg %p252
    // Predicated region
    $region45: #{tpu_custom_call.1} parent=5 // pred_check
      _
    $region46: #{tpu_custom_call.1} parent=5 // pred_check_branch
      %255 = sbr.rel (%p252) target = $region48
    $region47: #{tpu_custom_call.1} parent=5 // pred_region
      %s256 = ssub.s32 %s13, 1
      %p257 = scmp.lt.s32.totalorder %s22, 1
      %s258 = scalar_select %p257, %s22, 1
      %s259 = smul.addr %s258, 128
      %s260 = smul.addr %s259, 4
      %s261 = scalar_lea.vmem %s0, %s260
      %p262 = pneg %p51
      %p263 = pneg %p48
      %p264 = pneg %p72
      %p265 = pneg %p69
      %p266 = pneg %p93
      %p267 = pneg %p90
      %p268 = pneg %p114
      %p269 = pneg %p111
      %p270 = pneg %p135
      %p271 = pneg %p132
      %p272 = pneg %p156
      %p273 = pneg %p153
      %p274 = pneg %p177
      %p275 = pneg %p174
      %p276 = pneg %p205
      %p277 = pneg %p202
      %s278 = smul.u32 8, %s23
      %p279 = scmp.lt.s32.totalorder %s22, 1
      %s280 = scalar_select %p279, %s22, 1
      %p281 = scmp.lt.s32.totalorder %s278, 31
      %s282 = scalar_select %p281, %s278, 31
      %s283 = smul.addr %s282, 4
      %s284 = smul.addr %s280, 128
      %s285 = sadd.s32 %s283, %s284
      %s286 = smul.addr %s285, 4
      %s287 = scalar_lea.vmem %s7, %s286
      %p288 = scmp.lt.s32.totalorder %s22, 1
      %s289 = scalar_select %p288, %s22, 1
      %s290 = smul.addr %s289, 128
      %s291 = smul.addr %s290, 4
      %s292 = scalar_lea.vmem %s0, %s291
      %s293 = smul.u32 8, %s23
      %p294 = scmp.lt.s32.totalorder %s22, 1
      %s295 = scalar_select %p294, %s22, 1
      %p296 = scmp.lt.s32.totalorder %s293, 31
      %s297 = scalar_select %p296, %s293, 31
      %s298 = smul.addr %s297, 4
      %s299 = smul.addr %s295, 128
      %s300 = sadd.s32 %s298, %s299
      %s301 = smul.addr %s300, 4
      %s302 = scalar_lea.vmem %s7, %s301
      %s303 = smul.u32 8, %s23
      %s305 = smul.u32 %s23, 8
      %v306 = vld [vmem:[%s1] sm:$0x3]
      %v307 = vld [vmem:[%s2] sm:$0x1]
      %vm308 = vcmask 1043459
      %vm309 = vsmask.f32 7950
      %vm310 = vmand %vm308, %vm309
      %v311 = vld [vmem:[#allocation2] sm:$0x8]
      %v312 = vsel %vm310, 0, %v311
      %313 = vst [vmem:[#allocation2] sm:$0x8] %v312
      %v314 = vld [vmem:[#allocation2 + $0x18] sm:$0x8]
      %v315 = vsel %vm310, 0, %v314
      %316 = vst [vmem:[#allocation2 + $0x18] sm:$0x8] %v315
      %v317 = vld [vmem:[#allocation2 + $0x30] sm:$0x8]
      %v318 = vsel %vm310, 0, %v317
      %319 = vst [vmem:[#allocation2 + $0x30] sm:$0x8] %v318
      %v320 = vld [vmem:[#allocation2 + $0x48] sm:$0x8]
      %v321 = vsel %vm310, 0, %v320
      %322 = vst [vmem:[#allocation2 + $0x48] sm:$0x8] %v321
      %v323 = vld [vmem:[#allocation2 + $0x60] sm:$0x8]
      %v324 = vsel %vm310, 0, %v323
      %325 = vst [vmem:[#allocation2 + $0x60] sm:$0x8] %v324
      %v326 = vld [vmem:[#allocation2 + $0x78] sm:$0x8]
      %v327 = vsel %vm310, 0, %v326
      %328 = vst [vmem:[#allocation2 + $0x78] sm:$0x8] %v327
      %v329 = vld [vmem:[#allocation2 + $0x90] sm:$0x8]
      %v330 = vsel %vm310, 0, %v329
      %331 = vst [vmem:[#allocation2 + $0x90] sm:$0x8] %v330
      %v332 = vld [vmem:[#allocation2 + $0xa8] sm:$0x8]
      %v333 = vsel %vm310, 0, %v332
      %334 = vst [vmem:[#allocation2 + $0xa8] sm:$0x8] %v333
      %v335 = vld [vmem:[#allocation2 + $0xc0] sm:$0x8]
      %v336 = vsel %vm310, 0, %v335
      %337 = vst [vmem:[#allocation2 + $0xc0] sm:$0x8] %v336
      %v338 = vld [vmem:[#allocation2 + $0xd8] sm:$0x8]
      %v339 = vsel %vm310, 0, %v338
      %340 = vst [vmem:[#allocation2 + $0xd8] sm:$0x8] %v339
      %vm341 = vcmask 1040384
      %vm342 = vsmask.f32 256
      %vm343 = vmand %vm341, %vm342
      %v344 = vld [vmem:[#allocation2 + $0x14] sm:$0x1]
      %v345 = vsel %vm343, 0, %v344
      %346 = vst [vmem:[#allocation2 + $0x14] sm:$0x1] %v345
      %v347 = vld [vmem:[#allocation2 + $0x2c] sm:$0x1]
      %v348 = vsel %vm343, 0, %v347
      %349 = vst [vmem:[#allocation2 + $0x2c] sm:$0x1] %v348
      %v350 = vld [vmem:[#allocation2 + $0x44] sm:$0x1]
      %v351 = vsel %vm343, 0, %v350
      %352 = vst [vmem:[#allocation2 + $0x44] sm:$0x1] %v351
      %v353 = vld [vmem:[#allocation2 + $0x5c] sm:$0x1]
      %v354 = vsel %vm343, 0, %v353
      %355 = vst [vmem:[#allocation2 + $0x5c] sm:$0x1] %v354
      %v356 = vld [vmem:[#allocation2 + $0x74] sm:$0x1]
      %v357 = vsel %vm343, 0, %v356
      %358 = vst [vmem:[#allocation2 + $0x74] sm:$0x1] %v357
      %v359 = vld [vmem:[#allocation2 + $0x8c] sm:$0x1]
      %v360 = vsel %vm343, 0, %v359
      %361 = vst [vmem:[#allocation2 + $0x8c] sm:$0x1] %v360
      %v362 = vld [vmem:[#allocation2 + $0xa4] sm:$0x1]
      %v363 = vsel %vm343, 0, %v362
      %364 = vst [vmem:[#allocation2 + $0xa4] sm:$0x1] %v363
      %v365 = vld [vmem:[#allocation2 + $0xbc] sm:$0x1]
      %v366 = vsel %vm343, 0, %v365
      %367 = vst [vmem:[#allocation2 + $0xbc] sm:$0x1] %v366
      %v368 = vld [vmem:[#allocation2 + $0xd4] sm:$0x1]
      %v369 = vsel %vm343, 0, %v368
      %370 = vst [vmem:[#allocation2 + $0xd4] sm:$0x1] %v369
      %v371 = vld [vmem:[#allocation2 + $0xec] sm:$0x1]
      %v372 = vsel %vm343, 0, %v371
      %373 = vst [vmem:[#allocation2 + $0xec] sm:$0x1] %v372
      %p374 = scmp.eq.s32.totalorder %s23, 0
      // Predicated region
      $region49: #{tpu_custom_call.1} parent=47 // pred_check
        %p375 = pneg %p374
      $region50: #{tpu_custom_call.1} parent=47 // pred_check_branch
        %377 = sbr.rel (%p375) target = $region52
      $region51: #{tpu_custom_call.1} parent=47 // pred_region
        %s378 = smul.u32 %s305, 4
        %s379 = smul.addr %s378, 4
        %s380 = scalar_lea.vmem %s292, %s379
        %v381 = vld [vmem:[%s380] sm:$0xf]
        %v382 = vld [vmem:[%s380 + $0x4] sm:$0xf]
        %v383 = vld [vmem:[%s380 + $0x8] sm:$0xf]
        %v384 = vld [vmem:[%s380 + $0xc] sm:$0xf]
        %v385 = vld [vmem:[%s380 + $0x10] sm:$0xf]
        %v386 = vld [vmem:[%s380 + $0x14] sm:$0xf]
        %v387 = vld [vmem:[%s380 + $0x18] sm:$0xf]
        %v388 = vld [vmem:[%s380 + $0x1c] sm:$0xf]
        %v389 = vld [vmem:[%s380 + $0x20] sm:$0xf]
        %v390 = vld [vmem:[%s380 + $0x24] sm:$0xf]
        %v391 = vld [vmem:[%s380 + $0x28] sm:$0xf]
        %v392 = vld [vmem:[%s380 + $0x2c] sm:$0xf]
        %v393 = vld [vmem:[%s380 + $0x30] sm:$0xf]
        %v394 = vld [vmem:[%s380 + $0x34] sm:$0xf]
        %v395 = vld [vmem:[%s380 + $0x38] sm:$0xf]
        %v396 = vld [vmem:[%s380 + $0x3c] sm:$0xf]
        %v397 = vld [vmem:[%s380 + $0x40] sm:$0xf]
        %v398 = vld [vmem:[%s380 + $0x44] sm:$0xf]
        %v399 = vld [vmem:[%s380 + $0x48] sm:$0xf]
        %v400 = vld [vmem:[%s380 + $0x4c] sm:$0xf]
        %v401 = vld [vmem:[%s380 + $0x50] sm:$0xf]
        %v402 = vld [vmem:[%s380 + $0x54] sm:$0xf]
        %v403 = vld [vmem:[%s380 + $0x58] sm:$0xf]
        %v404 = vld [vmem:[%s380 + $0x5c] sm:$0xf]
        %v405 = vld [vmem:[%s380 + $0x60] sm:$0xf]
        %v406 = vld [vmem:[%s380 + $0x64] sm:$0xf]
        %v407 = vld [vmem:[%s380 + $0x68] sm:$0xf]
        %v408 = vld [vmem:[%s380 + $0x6c] sm:$0xf]
        %v409 = vld [vmem:[%s380 + $0x70] sm:$0xf]
        %v410 = vld [vmem:[%s380 + $0x74] sm:$0xf]
        %v411 = vld [vmem:[%s380 + $0x78] sm:$0xf]
        %v412 = vld [vmem:[%s380 + $0x7c] sm:$0xf]
        %v413 = vld [vmem:[%s380 + $0x80] sm:$0xf]
        %v414 = vld [vmem:[%s380 + $0x84] sm:$0xf]
        %v415 = vld [vmem:[%s380 + $0x88] sm:$0xf]
        %v416 = vld [vmem:[%s380 + $0x8c] sm:$0xf]
        %v418 = vlaneseq
        %v419 = vshrl.u32 %v418, 7
        %v420 = vsub.s32 0, %v419
        %v421 = vrot.slane %v307, %v420
        %v459 = vunpack.c.l.b16 %v381
        %v460 = vunpack.c.l.b16 %v382
        %v461 = vunpack.c.l.b16 %v383
        %v462 = vunpack.c.l.b16 %v384
        %v463 = vunpack.c.l.b16 %v385
        %v464 = vunpack.c.l.b16 %v386
        %v465 = vunpack.c.l.b16 %v387
        %v466 = vunpack.c.l.b16 %v388
        %v467 = vunpack.c.l.b16 %v389
        %v468 = vunpack.c.l.b16 %v390
        %v469 = vunpack.c.l.b16 %v391
        %v470 = vunpack.c.l.b16 %v392
        %v471 = vunpack.c.l.b16 %v393
        %v472 = vunpack.c.l.b16 %v394
        %v473 = vunpack.c.l.b16 %v395
        %v474 = vunpack.c.l.b16 %v396
        %v475 = vunpack.c.l.b16 %v397
        %v476 = vunpack.c.l.b16 %v398
        %v477 = vunpack.c.l.b16 %v399
        %v478 = vunpack.c.l.b16 %v400
        %v479 = vunpack.c.l.b16 %v401
        %v480 = vunpack.c.l.b16 %v402
        %v481 = vunpack.c.l.b16 %v403
        %v482 = vunpack.c.l.b16 %v404
        %v483 = vunpack.c.l.b16 %v405
        %v484 = vunpack.c.l.b16 %v406
        %v485 = vunpack.c.l.b16 %v407
        %v486 = vunpack.c.l.b16 %v408
        %v487 = vunpack.c.l.b16 %v409
        %v488 = vunpack.c.l.b16 %v410
        %v489 = vunpack.c.l.b16 %v411
        %v490 = vunpack.c.l.b16 %v412
        %v491 = vunpack.c.l.b16 %v413
        %v492 = vunpack.c.l.b16 %v414
        %v493 = vunpack.c.l.b16 %v415
        %v494 = vunpack.c.l.b16 %v416
        %v495 = vpack.c.b16 %v460, %v459
        %v496 = vpack.c.b16 %v462, %v461
        %v497 = vpack.c.b16 %v464, %v463
        %v498 = vpack.c.b16 %v466, %v465
        %v499 = vpack.c.b16 %v468, %v467
        %v500 = vpack.c.b16 %v470, %v469
        %v501 = vpack.c.b16 %v472, %v471
        %v502 = vpack.c.b16 %v474, %v473
        %v503 = vpack.c.b16 %v476, %v475
        %v504 = vpack.c.b16 %v478, %v477
        %v505 = vpack.c.b16 %v480, %v479
        %v506 = vpack.c.b16 %v482, %v481
        %v507 = vpack.c.b16 %v484, %v483
        %v508 = vpack.c.b16 %v486, %v485
        %v509 = vpack.c.b16 %v488, %v487
        %v510 = vpack.c.b16 %v490, %v489
        %v511 = vpack.c.b16 %v492, %v491
        %v512 = vpack.c.b16 %v494, %v493
        %vm513 = vcmask 31744
        %v515 = vsel %vm513, %v495, 0
        %v518 = vsel %vm513, %v496, 0
        %v521 = vsel %vm513, %v497, 0
        %v524 = vsel %vm513, %v498, 0
        %v527 = vsel %vm513, %v499, 0
        %v530 = vsel %vm513, %v500, 0
        %v533 = vsel %vm513, %v501, 0
        %v536 = vsel %vm513, %v502, 0
        %v539 = vsel %vm513, %v503, 0
        %v542 = vsel %vm513, %v504, 0
        %v545 = vsel %vm513, %v505, 0
        %v548 = vsel %vm513, %v506, 0
        %v551 = vsel %vm513, %v507, 0
        %v554 = vsel %vm513, %v508, 0
        %v557 = vsel %vm513, %v509, 0
        %v560 = vsel %vm513, %v510, 0
        %v563 = vsel %vm513, %v511, 0
        %v566 = vsel %vm513, %v512, 0
        %vm568 = vcmask 1041408
        %v570 = vsel %vm568, %v306, 0
        %572 = vmatprep.subr.bf16.mxu0 0
        %573 = vmatpush1.bf16.msra.mxu0 0
        %574 = vmatprep.subr.bf16.mxu0 0
        %575 = vmatpush1.bf16.msra.mxu0 0
        %576 = vmatprep.subr.bf16.mxu0 0
        %577 = vmatpush1.bf16.msra.mxu0 0
        %578 = vmatprep.subr.bf16.mxu0 0
        %579 = vmatpush1.bf16.msra.mxu0 0
        %580 = vmatprep.subr.bf16.mxu0 0
        %581 = vmatpush1.bf16.msra.mxu0 0
        %582 = vmatprep.subr.bf16.mxu0 0
        %583 = vmatpush1.bf16.msra.mxu0 0
        %584 = vmatprep.subr.bf16.mxu0 0
        %585 = vmatpush1.bf16.msra.mxu0 0
        %586 = vmatprep.subr.bf16.mxu0 0
        %587 = vmatpush1.bf16.msra.mxu0 %v570
        %588 = vmatprep.subr.bf16.mxu0 0
        %589 = vmatpush2.bf16.msra.mxu0 0
        %590 = vmatprep.subr.bf16.mxu0 0
        %591 = vmatpush2.bf16.msra.mxu0 0
        %592 = vmatprep.subr.bf16.mxu0 0
        %593 = vmatpush2.bf16.msra.mxu0 0
        %594 = vmatprep.subr.bf16.mxu0 0
        %595 = vmatpush2.bf16.msra.mxu0 0
        %596 = vmatprep.subr.bf16.mxu0 0
        %597 = vmatpush2.bf16.msra.mxu0 0
        %598 = vmatprep.subr.bf16.mxu0 0
        %599 = vmatpush2.bf16.msra.mxu0 0
        %600 = vmatprep.subr.bf16.mxu0 0
        %601 = vmatpush2.bf16.msra.mxu0 0
        %602 = vmatprep.subr.bf16.mxu0 0
        %603 = vmatpush2.bf16.msra.mxu0 0
        %604 = vmatprep.mubr.bf16.mxu0 0
        %605 = vmatmul.mubr.bf16.gmra.mxu0 %v515
        %v606 = vpop.f32.mrf.mxu0
        %v607 = vadd.f32 %v421, %v606
        %v608 = vpop.f32.mrf.mxu0
        %v609 = vpop.f32.mrf.mxu0
        %v610 = vadd.f32 %v421, %v609
        %v611 = vpop.f32.mrf.mxu0
        %612 = vmatprep.mubr.bf16.mxu0 0
        %613 = vmatmul.mubr.bf16.gmra.mxu0 %v518
        %v614 = vpop.f32.mrf.mxu0
        %v615 = vadd.f32 %v421, %v614
        %v616 = vpop.f32.mrf.mxu0
        %v617 = vpop.f32.mrf.mxu0
        %v618 = vadd.f32 %v421, %v617
        %v619 = vpop.f32.mrf.mxu0
        %620 = vmatprep.mubr.bf16.mxu0 0
        %621 = vmatmul.mubr.bf16.gmra.mxu0 %v521
        %v622 = vpop.f32.mrf.mxu0
        %v623 = vadd.f32 %v421, %v622
        %v624 = vpop.f32.mrf.mxu0
        %v625 = vpop.f32.mrf.mxu0
        %v626 = vadd.f32 %v421, %v625
        %v627 = vpop.f32.mrf.mxu0
        %628 = vmatprep.mubr.bf16.mxu0 0
        %629 = vmatmul.mubr.bf16.gmra.mxu0 %v524
        %v630 = vpop.f32.mrf.mxu0
        %v631 = vadd.f32 %v421, %v630
        %v632 = vpop.f32.mrf.mxu0
        %v633 = vpop.f32.mrf.mxu0
        %v634 = vadd.f32 %v421, %v633
        %v635 = vpop.f32.mrf.mxu0
        %636 = vmatprep.mubr.bf16.mxu0 0
        %637 = vmatmul.mubr.bf16.gmra.mxu0 %v527
        %v638 = vpop.f32.mrf.mxu0
        %v639 = vadd.f32 %v421, %v638
        %v640 = vpop.f32.mrf.mxu0
        %v641 = vpop.f32.mrf.mxu0
        %v642 = vadd.f32 %v421, %v641
        %v643 = vpop.f32.mrf.mxu0
        %644 = vmatprep.mubr.bf16.mxu0 0
        %645 = vmatmul.mubr.bf16.gmra.mxu0 %v530
        %v646 = vpop.f32.mrf.mxu0
        %v647 = vadd.f32 %v421, %v646
        %v648 = vpop.f32.mrf.mxu0
        %v649 = vpop.f32.mrf.mxu0
        %v650 = vadd.f32 %v421, %v649
        %v651 = vpop.f32.mrf.mxu0
        %652 = vmatprep.mubr.bf16.mxu0 0
        %653 = vmatmul.mubr.bf16.gmra.mxu0 %v533
        %v654 = vpop.f32.mrf.mxu0
        %v655 = vadd.f32 %v421, %v654
        %v656 = vpop.f32.mrf.mxu0
        %v657 = vpop.f32.mrf.mxu0
        %v658 = vadd.f32 %v421, %v657
        %v659 = vpop.f32.mrf.mxu0
        %660 = vmatprep.mubr.bf16.mxu0 0
        %661 = vmatmul.mubr.bf16.gmra.mxu0 %v536
        %v662 = vpop.f32.mrf.mxu0
        %v663 = vadd.f32 %v421, %v662
        %v664 = vpop.f32.mrf.mxu0
        %v665 = vpop.f32.mrf.mxu0
        %v666 = vadd.f32 %v421, %v665
        %v667 = vpop.f32.mrf.mxu0
        %668 = vmatprep.mubr.bf16.mxu0 0
        %669 = vmatmul.mubr.bf16.gmra.mxu0 %v539
        %v670 = vpop.f32.mrf.mxu0
        %v671 = vadd.f32 %v421, %v670
        %v672 = vpop.f32.mrf.mxu0
        %v673 = vpop.f32.mrf.mxu0
        %v674 = vadd.f32 %v421, %v673
        %v675 = vpop.f32.mrf.mxu0
        %676 = vmatprep.mubr.bf16.mxu0 0
        %677 = vmatmul.mubr.bf16.gmra.mxu0 %v542
        %v678 = vpop.f32.mrf.mxu0
        %v679 = vadd.f32 %v421, %v678
        %v680 = vpop.f32.mrf.mxu0
        %v681 = vpop.f32.mrf.mxu0
        %v682 = vadd.f32 %v421, %v681
        %v683 = vpop.f32.mrf.mxu0
        %684 = vmatprep.mubr.bf16.mxu0 0
        %685 = vmatmul.mubr.bf16.gmra.mxu0 %v545
        %v686 = vpop.f32.mrf.mxu0
        %v687 = vadd.f32 %v421, %v686
        %v688 = vpop.f32.mrf.mxu0
        %v689 = vpop.f32.mrf.mxu0
        %v690 = vadd.f32 %v421, %v689
        %v691 = vpop.f32.mrf.mxu0
        %692 = vmatprep.mubr.bf16.mxu0 0
        %693 = vmatmul.mubr.bf16.gmra.mxu0 %v548
        %v694 = vpop.f32.mrf.mxu0
        %v695 = vadd.f32 %v421, %v694
        %v696 = vpop.f32.mrf.mxu0
        %v697 = vpop.f32.mrf.mxu0
        %v698 = vadd.f32 %v421, %v697
        %v699 = vpop.f32.mrf.mxu0
        %700 = vmatprep.mubr.bf16.mxu0 0
        %701 = vmatmul.mubr.bf16.gmra.mxu0 %v551
        %v702 = vpop.f32.mrf.mxu0
        %v703 = vadd.f32 %v421, %v702
        %v704 = vpop.f32.mrf.mxu0
        %v705 = vpop.f32.mrf.mxu0
        %v706 = vadd.f32 %v421, %v705
        %v707 = vpop.f32.mrf.mxu0
        %708 = vmatprep.mubr.bf16.mxu0 0
        %709 = vmatmul.mubr.bf16.gmra.mxu0 %v554
        %v710 = vpop.f32.mrf.mxu0
        %v711 = vadd.f32 %v421, %v710
        %v712 = vpop.f32.mrf.mxu0
        %v713 = vpop.f32.mrf.mxu0
        %v714 = vadd.f32 %v421, %v713
        %v715 = vpop.f32.mrf.mxu0
        %716 = vmatprep.mubr.bf16.mxu0 0
        %717 = vmatmul.mubr.bf16.gmra.mxu0 %v557
        %v718 = vpop.f32.mrf.mxu0
        %v719 = vadd.f32 %v421, %v718
        %v720 = vpop.f32.mrf.mxu0
        %v721 = vpop.f32.mrf.mxu0
        %v722 = vadd.f32 %v421, %v721
        %v723 = vpop.f32.mrf.mxu0
        %724 = vmatprep.mubr.bf16.mxu0 0
        %725 = vmatmul.mubr.bf16.gmra.mxu0 %v560
        %v726 = vpop.f32.mrf.mxu0
        %v727 = vadd.f32 %v421, %v726
        %v728 = vpop.f32.mrf.mxu0
        %v729 = vpop.f32.mrf.mxu0
        %v730 = vadd.f32 %v421, %v729
        %v731 = vpop.f32.mrf.mxu0
        %732 = vmatprep.mubr.bf16.mxu0 0
        %733 = vmatmul.mubr.bf16.gmra.mxu0 %v563
        %v734 = vpop.f32.mrf.mxu0
        %v735 = vadd.f32 %v421, %v734
        %v736 = vpop.f32.mrf.mxu0
        %v737 = vpop.f32.mrf.mxu0
        %v738 = vadd.f32 %v421, %v737
        %v739 = vpop.f32.mrf.mxu0
        %740 = vmatprep.mubr.bf16.mxu0 0
        %741 = vmatmul.mubr.bf16.gmra.mxu0 %v566
        %v742 = vpop.f32.mrf.mxu0
        %v743 = vadd.f32 %v421, %v742
        %v744 = vpop.f32.mrf.mxu0
        %v745 = vpop.f32.mrf.mxu0
        %v746 = vadd.f32 %v421, %v745
        %v747 = vpop.f32.mrf.mxu0
        %748 = vdwg.mxu0
        %v749 = vmax.f32 %v607, 0.0
        %v750 = vmax.f32 %v610, 0.0
        %v751 = vmax.f32 %v615, 0.0
        %v752 = vmax.f32 %v618, 0.0
        %v753 = vmax.f32 %v623, 0.0
        %v754 = vmax.f32 %v626, 0.0
        %v755 = vmax.f32 %v631, 0.0
        %v756 = vmax.f32 %v634, 0.0
        %v757 = vmax.f32 %v639, 0.0
        %v758 = vmax.f32 %v642, 0.0
        %v759 = vmax.f32 %v647, 0.0
        %v760 = vmax.f32 %v650, 0.0
        %v761 = vmax.f32 %v655, 0.0
        %v762 = vmax.f32 %v658, 0.0
        %v763 = vmax.f32 %v663, 0.0
        %v764 = vmax.f32 %v666, 0.0
        %v765 = vmax.f32 %v671, 0.0
        %v766 = vmax.f32 %v674, 0.0
        %v767 = vmax.f32 %v679, 0.0
        %v768 = vmax.f32 %v682, 0.0
        %v769 = vmax.f32 %v687, 0.0
        %v770 = vmax.f32 %v690, 0.0
        %v771 = vmax.f32 %v695, 0.0
        %v772 = vmax.f32 %v698, 0.0
        %v773 = vmax.f32 %v703, 0.0
        %v774 = vmax.f32 %v706, 0.0
        %v775 = vmax.f32 %v711, 0.0
        %v776 = vmax.f32 %v714, 0.0
        %v777 = vmax.f32 %v719, 0.0
        %v778 = vmax.f32 %v722, 0.0
        %v779 = vmax.f32 %v727, 0.0
        %v780 = vmax.f32 %v730, 0.0
        %v781 = vmax.f32 %v735, 0.0
        %v782 = vmax.f32 %v738, 0.0
        %v783 = vmax.f32 %v743, 0.0
        %v784 = vmax.f32 %v746, 0.0
        %v785 = vpack.c.bf16 %v750, %v749
        %v786 = vpack.c.bf16 %v752, %v751
        %v787 = vpack.c.bf16 %v754, %v753
        %v788 = vpack.c.bf16 %v756, %v755
        %v789 = vpack.c.bf16 %v758, %v757
        %v790 = vpack.c.bf16 %v760, %v759
        %v791 = vpack.c.bf16 %v762, %v761
        %v792 = vpack.c.bf16 %v764, %v763
        %v793 = vpack.c.bf16 %v766, %v765
        %v794 = vpack.c.bf16 %v768, %v767
        %v795 = vpack.c.bf16 %v770, %v769
        %v796 = vpack.c.bf16 %v772, %v771
        %v797 = vpack.c.bf16 %v774, %v773
        %v798 = vpack.c.bf16 %v776, %v775
        %v799 = vpack.c.bf16 %v778, %v777
        %v800 = vpack.c.bf16 %v780, %v779
        %v801 = vpack.c.bf16 %v782, %v781
        %v802 = vpack.c.bf16 %v784, %v783
        %v821 = vunpack.c.l.b16 %v785
        %v822 = vunpack.c.h.b16 %v785
        %v823 = vunpack.c.l.b16 %v786
        %v824 = vunpack.c.h.b16 %v786
        %v825 = vunpack.c.l.b16 %v787
        %v826 = vunpack.c.h.b16 %v787
        %v827 = vunpack.c.l.b16 %v788
        %v828 = vunpack.c.h.b16 %v788
        %v829 = vunpack.c.l.b16 %v789
        %v830 = vunpack.c.h.b16 %v789
        %v831 = vunpack.c.l.b16 %v790
        %v832 = vunpack.c.h.b16 %v790
        %v833 = vunpack.c.l.b16 %v791
        %v834 = vunpack.c.h.b16 %v791
        %v835 = vunpack.c.l.b16 %v792
        %v836 = vunpack.c.h.b16 %v792
        %v837 = vunpack.c.l.b16 %v793
        %v838 = vunpack.c.h.b16 %v793
        %v839 = vunpack.c.l.b16 %v794
        %v840 = vunpack.c.h.b16 %v794
        %v841 = vunpack.c.l.b16 %v795
        %v842 = vunpack.c.h.b16 %v795
        %v843 = vunpack.c.l.b16 %v796
        %v844 = vunpack.c.h.b16 %v796
        %v845 = vunpack.c.l.b16 %v797
        %v846 = vunpack.c.h.b16 %v797
        %v847 = vunpack.c.l.b16 %v798
        %v848 = vunpack.c.h.b16 %v798
        %v849 = vunpack.c.l.b16 %v799
        %v850 = vunpack.c.h.b16 %v799
        %v851 = vunpack.c.l.b16 %v800
        %v852 = vunpack.c.h.b16 %v800
        %v853 = vunpack.c.l.b16 %v801
        %v854 = vunpack.c.h.b16 %v801
        %v855 = vunpack.c.l.b16 %v802
        %v856 = vunpack.c.h.b16 %v802
        %v857 = vpack.c.b16 %v821, %v821
        %v858 = vpack.c.b16 %v822, %v822
        %v859 = vpack.c.b16 %v823, %v823
        %v860 = vpack.c.b16 %v824, %v824
        %v861 = vpack.c.b16 %v825, %v825
        %v862 = vpack.c.b16 %v826, %v826
        %v863 = vpack.c.b16 %v827, %v827
        %v864 = vpack.c.b16 %v828, %v828
        %v865 = vpack.c.b16 %v829, %v829
        %v866 = vpack.c.b16 %v830, %v830
        %v867 = vpack.c.b16 %v831, %v831
        %v868 = vpack.c.b16 %v832, %v832
        %v869 = vpack.c.b16 %v833, %v833
        %v870 = vpack.c.b16 %v834, %v834
        %v871 = vpack.c.b16 %v835, %v835
        %v872 = vpack.c.b16 %v836, %v836
        %v873 = vpack.c.b16 %v837, %v837
        %v874 = vpack.c.b16 %v838, %v838
        %v875 = vpack.c.b16 %v839, %v839
        %v876 = vpack.c.b16 %v840, %v840
        %v877 = vpack.c.b16 %v841, %v841
        %v878 = vpack.c.b16 %v842, %v842
        %v879 = vpack.c.b16 %v843, %v843
        %v880 = vpack.c.b16 %v844, %v844
        %v881 = vpack.c.b16 %v845, %v845
        %v882 = vpack.c.b16 %v846, %v846
        %v883 = vpack.c.b16 %v847, %v847
        %v884 = vpack.c.b16 %v848, %v848
        %v885 = vpack.c.b16 %v849, %v849
        %v886 = vpack.c.b16 %v850, %v850
        %v887 = vpack.c.b16 %v851, %v851
        %v888 = vpack.c.b16 %v852, %v852
        %v889 = vpack.c.b16 %v853, %v853
        %v890 = vpack.c.b16 %v854, %v854
        %v891 = vpack.c.b16 %v855, %v855
        %v892 = vpack.c.b16 %v856, %v856
        %s929 = scalar_lea.vmem [#allocation2], 24
        %930 = vst [vmem:[%s929 + $0x4] sm:$0xf] %v857
        %931 = vst [vmem:[%s929 + $0x8] sm:$0xf] %v858
        %932 = vst [vmem:[%s929 + $0xc] sm:$0xf] %v859
        %933 = vst [vmem:[%s929 + $0x10] sm:$0xf] %v860
        %934 = vst [vmem:[%s929 + $0x1c] sm:$0xf] %v861
        %935 = vst [vmem:[%s929 + $0x20] sm:$0xf] %v862
        %936 = vst [vmem:[%s929 + $0x24] sm:$0xf] %v863
        %937 = vst [vmem:[%s929 + $0x28] sm:$0xf] %v864
        %938 = vst [vmem:[%s929 + $0x34] sm:$0xf] %v865
        %939 = vst [vmem:[%s929 + $0x38] sm:$0xf] %v866
        %940 = vst [vmem:[%s929 + $0x3c] sm:$0xf] %v867
        %941 = vst [vmem:[%s929 + $0x40] sm:$0xf] %v868
        %942 = vst [vmem:[%s929 + $0x4c] sm:$0xf] %v869
        %943 = vst [vmem:[%s929 + $0x50] sm:$0xf] %v870
        %944 = vst [vmem:[%s929 + $0x54] sm:$0xf] %v871
        %945 = vst [vmem:[%s929 + $0x58] sm:$0xf] %v872
        %946 = vst [vmem:[%s929 + $0x64] sm:$0xf] %v873
        %947 = vst [vmem:[%s929 + $0x68] sm:$0xf] %v874
        %948 = vst [vmem:[%s929 + $0x6c] sm:$0xf] %v875
        %949 = vst [vmem:[%s929 + $0x70] sm:$0xf] %v876
        %950 = vst [vmem:[%s929 + $0x7c] sm:$0xf] %v877
        %951 = vst [vmem:[%s929 + $0x80] sm:$0xf] %v878
        %952 = vst [vmem:[%s929 + $0x84] sm:$0xf] %v879
        %953 = vst [vmem:[%s929 + $0x88] sm:$0xf] %v880
        %954 = vst [vmem:[%s929 + $0x94] sm:$0xf] %v881
        %955 = vst [vmem:[%s929 + $0x98] sm:$0xf] %v882
        %956 = vst [vmem:[%s929 + $0x9c] sm:$0xf] %v883
        %957 = vst [vmem:[%s929 + $0xa0] sm:$0xf] %v884
        %958 = vst [vmem:[%s929 + $0xac] sm:$0xf] %v885
        %959 = vst [vmem:[%s929 + $0xb0] sm:$0xf] %v886
        %960 = vst [vmem:[%s929 + $0xb4] sm:$0xf] %v887
        %961 = vst [vmem:[%s929 + $0xb8] sm:$0xf] %v888
        %962 = vst [vmem:[%s929 + $0xc4] sm:$0xf] %v889
        %963 = vst [vmem:[%s929 + $0xc8] sm:$0xf] %v890
        %964 = vst [vmem:[%s929 + $0xcc] sm:$0xf] %v891
        %965 = vst [vmem:[%s929 + $0xd0] sm:$0xf] %v892
        %966 = vst [vmem:[#allocation2 + $0x4] sm:$0xf] 0
        %967 = vst [vmem:[#allocation2 + $0x8] sm:$0xf] 0
        %968 = vst [vmem:[#allocation2 + $0xc] sm:$0xf] 0
        %969 = vst [vmem:[#allocation2 + $0x10] sm:$0xf] 0
      $region52: #{tpu_custom_call.1} parent=47 // pred_fallthru
        _
      %p970 = scmp.eq.s32.totalorder %s23, 3
      // Predicated region
      $region53: #{tpu_custom_call.1} parent=47 // pred_check
        %p971 = pneg %p970
      $region54: #{tpu_custom_call.1} parent=47 // pred_check_branch
        %973 = sbr.rel (%p971) target = $region56
      $region55: #{tpu_custom_call.1} parent=47 // pred_region
        %s974 = ssub.s32 %s305, 1
        %s975 = smul.u32 %s974, 4
        %s976 = smul.addr %s975, 4
        %s977 = scalar_lea.vmem %s292, %s976
        %v978 = vld [vmem:[%s977] sm:$0xf]
        %v979 = vld [vmem:[%s977 + $0x4] sm:$0xf]
        %v980 = vld [vmem:[%s977 + $0x8] sm:$0xf]
        %v981 = vld [vmem:[%s977 + $0xc] sm:$0xf]
        %v982 = vld [vmem:[%s977 + $0x10] sm:$0xf]
        %v983 = vld [vmem:[%s977 + $0x14] sm:$0xf]
        %v984 = vld [vmem:[%s977 + $0x18] sm:$0xf]
        %v985 = vld [vmem:[%s977 + $0x1c] sm:$0xf]
        %v986 = vld [vmem:[%s977 + $0x20] sm:$0xf]
        %v987 = vld [vmem:[%s977 + $0x24] sm:$0xf]
        %v988 = vld [vmem:[%s977 + $0x28] sm:$0xf]
        %v989 = vld [vmem:[%s977 + $0x2c] sm:$0xf]
        %v990 = vld [vmem:[%s977 + $0x30] sm:$0xf]
        %v991 = vld [vmem:[%s977 + $0x34] sm:$0xf]
        %v992 = vld [vmem:[%s977 + $0x38] sm:$0xf]
        %v993 = vld [vmem:[%s977 + $0x3c] sm:$0xf]
        %v994 = vld [vmem:[%s977 + $0x40] sm:$0xf]
        %v995 = vld [vmem:[%s977 + $0x44] sm:$0xf]
        %v996 = vld [vmem:[%s977 + $0x48] sm:$0xf]
        %v997 = vld [vmem:[%s977 + $0x4c] sm:$0xf]
        %v998 = vld [vmem:[%s977 + $0x50] sm:$0xf]
        %v999 = vld [vmem:[%s977 + $0x54] sm:$0xf]
        %v1000 = vld [vmem:[%s977 + $0x58] sm:$0xf]
        %v1001 = vld [vmem:[%s977 + $0x5c] sm:$0xf]
        %v1002 = vld [vmem:[%s977 + $0x60] sm:$0xf]
        %v1003 = vld [vmem:[%s977 + $0x64] sm:$0xf]
        %v1004 = vld [vmem:[%s977 + $0x68] sm:$0xf]
        %v1005 = vld [vmem:[%s977 + $0x6c] sm:$0xf]
        %v1006 = vld [vmem:[%s977 + $0x70] sm:$0xf]
        %v1007 = vld [vmem:[%s977 + $0x74] sm:$0xf]
        %v1008 = vld [vmem:[%s977 + $0x78] sm:$0xf]
        %v1009 = vld [vmem:[%s977 + $0x7c] sm:$0xf]
        %v1010 = vld [vmem:[%s977 + $0x80] sm:$0xf]
        %v1011 = vld [vmem:[%s977 + $0x84] sm:$0xf]
        %v1012 = vld [vmem:[%s977 + $0x88] sm:$0xf]
        %v1013 = vld [vmem:[%s977 + $0x8c] sm:$0xf]
        %v1015 = vlaneseq
        %v1016 = vshrl.u32 %v1015, 7
        %v1017 = vsub.s32 0, %v1016
        %v1018 = vrot.slane %v307, %v1017
        %v1056 = vunpack.c.l.b16 %v978
        %v1057 = vunpack.c.l.b16 %v979
        %v1058 = vunpack.c.l.b16 %v980
        %v1059 = vunpack.c.l.b16 %v981
        %v1060 = vunpack.c.l.b16 %v982
        %v1061 = vunpack.c.l.b16 %v983
        %v1062 = vunpack.c.l.b16 %v984
        %v1063 = vunpack.c.l.b16 %v985
        %v1064 = vunpack.c.l.b16 %v986
        %v1065 = vunpack.c.l.b16 %v987
        %v1066 = vunpack.c.l.b16 %v988
        %v1067 = vunpack.c.l.b16 %v989
        %v1068 = vunpack.c.l.b16 %v990
        %v1069 = vunpack.c.l.b16 %v991
        %v1070 = vunpack.c.l.b16 %v992
        %v1071 = vunpack.c.l.b16 %v993
        %v1072 = vunpack.c.l.b16 %v994
        %v1073 = vunpack.c.l.b16 %v995
        %v1074 = vunpack.c.l.b16 %v996
        %v1075 = vunpack.c.l.b16 %v997
        %v1076 = vunpack.c.l.b16 %v998
        %v1077 = vunpack.c.l.b16 %v999
        %v1078 = vunpack.c.l.b16 %v1000
        %v1079 = vunpack.c.l.b16 %v1001
        %v1080 = vunpack.c.l.b16 %v1002
        %v1081 = vunpack.c.l.b16 %v1003
        %v1082 = vunpack.c.l.b16 %v1004
        %v1083 = vunpack.c.l.b16 %v1005
        %v1084 = vunpack.c.l.b16 %v1006
        %v1085 = vunpack.c.l.b16 %v1007
        %v1086 = vunpack.c.l.b16 %v1008
        %v1087 = vunpack.c.l.b16 %v1009
        %v1088 = vunpack.c.l.b16 %v1010
        %v1089 = vunpack.c.l.b16 %v1011
        %v1090 = vunpack.c.l.b16 %v1012
        %v1091 = vunpack.c.l.b16 %v1013
        %v1092 = vpack.c.b16 %v1057, %v1056
        %v1093 = vpack.c.b16 %v1059, %v1058
        %v1094 = vpack.c.b16 %v1061, %v1060
        %v1095 = vpack.c.b16 %v1063, %v1062
        %v1096 = vpack.c.b16 %v1065, %v1064
        %v1097 = vpack.c.b16 %v1067, %v1066
        %v1098 = vpack.c.b16 %v1069, %v1068
        %v1099 = vpack.c.b16 %v1071, %v1070
        %v1100 = vpack.c.b16 %v1073, %v1072
        %v1101 = vpack.c.b16 %v1075, %v1074
        %v1102 = vpack.c.b16 %v1077, %v1076
        %v1103 = vpack.c.b16 %v1079, %v1078
        %v1104 = vpack.c.b16 %v1081, %v1080
        %v1105 = vpack.c.b16 %v1083, %v1082
        %v1106 = vpack.c.b16 %v1085, %v1084
        %v1107 = vpack.c.b16 %v1087, %v1086
        %v1108 = vpack.c.b16 %v1089, %v1088
        %v1109 = vpack.c.b16 %v1091, %v1090
        %vm1110 = vcmask 31744
        %v1112 = vsel %vm1110, %v1092, 0
        %v1115 = vsel %vm1110, %v1093, 0
        %v1118 = vsel %vm1110, %v1094, 0
        %v1121 = vsel %vm1110, %v1095, 0
        %v1124 = vsel %vm1110, %v1096, 0
        %v1127 = vsel %vm1110, %v1097, 0
        %v1130 = vsel %vm1110, %v1098, 0
        %v1133 = vsel %vm1110, %v1099, 0
        %v1136 = vsel %vm1110, %v1100, 0
        %v1139 = vsel %vm1110, %v1101, 0
        %v1142 = vsel %vm1110, %v1102, 0
        %v1145 = vsel %vm1110, %v1103, 0
        %v1148 = vsel %vm1110, %v1104, 0
        %v1151 = vsel %vm1110, %v1105, 0
        %v1154 = vsel %vm1110, %v1106, 0
        %v1157 = vsel %vm1110, %v1107, 0
        %v1160 = vsel %vm1110, %v1108, 0
        %v1163 = vsel %vm1110, %v1109, 0
        %vm1165 = vcmask 1041408
        %v1167 = vsel %vm1165, %v306, 0
        %1169 = vmatprep.subr.bf16.mxu0 0
        %1170 = vmatpush1.bf16.msra.mxu0 0
        %1171 = vmatprep.subr.bf16.mxu0 0
        %1172 = vmatpush1.bf16.msra.mxu0 0
        %1173 = vmatprep.subr.bf16.mxu0 0
        %1174 = vmatpush1.bf16.msra.mxu0 0
        %1175 = vmatprep.subr.bf16.mxu0 0
        %1176 = vmatpush1.bf16.msra.mxu0 0
        %1177 = vmatprep.subr.bf16.mxu0 0
        %1178 = vmatpush1.bf16.msra.mxu0 0
        %1179 = vmatprep.subr.bf16.mxu0 0
        %1180 = vmatpush1.bf16.msra.mxu0 0
        %1181 = vmatprep.subr.bf16.mxu0 0
        %1182 = vmatpush1.bf16.msra.mxu0 0
        %1183 = vmatprep.subr.bf16.mxu0 0
        %1184 = vmatpush1.bf16.msra.mxu0 %v1167
        %1185 = vmatprep.subr.bf16.mxu0 0
        %1186 = vmatpush2.bf16.msra.mxu0 0
        %1187 = vmatprep.subr.bf16.mxu0 0
        %1188 = vmatpush2.bf16.msra.mxu0 0
        %1189 = vmatprep.subr.bf16.mxu0 0
        %1190 = vmatpush2.bf16.msra.mxu0 0
        %1191 = vmatprep.subr.bf16.mxu0 0
        %1192 = vmatpush2.bf16.msra.mxu0 0
        %1193 = vmatprep.subr.bf16.mxu0 0
        %1194 = vmatpush2.bf16.msra.mxu0 0
        %1195 = vmatprep.subr.bf16.mxu0 0
        %1196 = vmatpush2.bf16.msra.mxu0 0
        %1197 = vmatprep.subr.bf16.mxu0 0
        %1198 = vmatpush2.bf16.msra.mxu0 0
        %1199 = vmatprep.subr.bf16.mxu0 0
        %1200 = vmatpush2.bf16.msra.mxu0 0
        %1201 = vmatprep.mubr.bf16.mxu0 0
        %1202 = vmatmul.mubr.bf16.gmra.mxu0 %v1112
        %v1203 = vpop.f32.mrf.mxu0
        %v1204 = vadd.f32 %v1018, %v1203
        %v1205 = vpop.f32.mrf.mxu0
        %v1206 = vpop.f32.mrf.mxu0
        %v1207 = vadd.f32 %v1018, %v1206
        %v1208 = vpop.f32.mrf.mxu0
        %1209 = vmatprep.mubr.bf16.mxu0 0
        %1210 = vmatmul.mubr.bf16.gmra.mxu0 %v1115
        %v1211 = vpop.f32.mrf.mxu0
        %v1212 = vadd.f32 %v1018, %v1211
        %v1213 = vpop.f32.mrf.mxu0
        %v1214 = vpop.f32.mrf.mxu0
        %v1215 = vadd.f32 %v1018, %v1214
        %v1216 = vpop.f32.mrf.mxu0
        %1217 = vmatprep.mubr.bf16.mxu0 0
        %1218 = vmatmul.mubr.bf16.gmra.mxu0 %v1118
        %v1219 = vpop.f32.mrf.mxu0
        %v1220 = vadd.f32 %v1018, %v1219
        %v1221 = vpop.f32.mrf.mxu0
        %v1222 = vpop.f32.mrf.mxu0
        %v1223 = vadd.f32 %v1018, %v1222
        %v1224 = vpop.f32.mrf.mxu0
        %1225 = vmatprep.mubr.bf16.mxu0 0
        %1226 = vmatmul.mubr.bf16.gmra.mxu0 %v1121
        %v1227 = vpop.f32.mrf.mxu0
        %v1228 = vadd.f32 %v1018, %v1227
        %v1229 = vpop.f32.mrf.mxu0
        %v1230 = vpop.f32.mrf.mxu0
        %v1231 = vadd.f32 %v1018, %v1230
        %v1232 = vpop.f32.mrf.mxu0
        %1233 = vmatprep.mubr.bf16.mxu0 0
        %1234 = vmatmul.mubr.bf16.gmra.mxu0 %v1124
        %v1235 = vpop.f32.mrf.mxu0
        %v1236 = vadd.f32 %v1018, %v1235
        %v1237 = vpop.f32.mrf.mxu0
        %v1238 = vpop.f32.mrf.mxu0
        %v1239 = vadd.f32 %v1018, %v1238
        %v1240 = vpop.f32.mrf.mxu0
        %1241 = vmatprep.mubr.bf16.mxu0 0
        %1242 = vmatmul.mubr.bf16.gmra.mxu0 %v1127
        %v1243 = vpop.f32.mrf.mxu0
        %v1244 = vadd.f32 %v1018, %v1243
        %v1245 = vpop.f32.mrf.mxu0
        %v1246 = vpop.f32.mrf.mxu0
        %v1247 = vadd.f32 %v1018, %v1246
        %v1248 = vpop.f32.mrf.mxu0
        %1249 = vmatprep.mubr.bf16.mxu0 0
        %1250 = vmatmul.mubr.bf16.gmra.mxu0 %v1130
        %v1251 = vpop.f32.mrf.mxu0
        %v1252 = vadd.f32 %v1018, %v1251
        %v1253 = vpop.f32.mrf.mxu0
        %v1254 = vpop.f32.mrf.mxu0
        %v1255 = vadd.f32 %v1018, %v1254
        %v1256 = vpop.f32.mrf.mxu0
        %1257 = vmatprep.mubr.bf16.mxu0 0
        %1258 = vmatmul.mubr.bf16.gmra.mxu0 %v1133
        %v1259 = vpop.f32.mrf.mxu0
        %v1260 = vadd.f32 %v1018, %v1259
        %v1261 = vpop.f32.mrf.mxu0
        %v1262 = vpop.f32.mrf.mxu0
        %v1263 = vadd.f32 %v1018, %v1262
        %v1264 = vpop.f32.mrf.mxu0
        %1265 = vmatprep.mubr.bf16.mxu0 0
        %1266 = vmatmul.mubr.bf16.gmra.mxu0 %v1136
        %v1267 = vpop.f32.mrf.mxu0
        %v1268 = vadd.f32 %v1018, %v1267
        %v1269 = vpop.f32.mrf.mxu0
        %v1270 = vpop.f32.mrf.mxu0
        %v1271 = vadd.f32 %v1018, %v1270
        %v1272 = vpop.f32.mrf.mxu0
        %1273 = vmatprep.mubr.bf16.mxu0 0
        %1274 = vmatmul.mubr.bf16.gmra.mxu0 %v1139
        %v1275 = vpop.f32.mrf.mxu0
        %v1276 = vadd.f32 %v1018, %v1275
        %v1277 = vpop.f32.mrf.mxu0
        %v1278 = vpop.f32.mrf.mxu0
        %v1279 = vadd.f32 %v1018, %v1278
        %v1280 = vpop.f32.mrf.mxu0
        %1281 = vmatprep.mubr.bf16.mxu0 0
        %1282 = vmatmul.mubr.bf16.gmra.mxu0 %v1142
        %v1283 = vpop.f32.mrf.mxu0
        %v1284 = vadd.f32 %v1018, %v1283
        %v1285 = vpop.f32.mrf.mxu0
        %v1286 = vpop.f32.mrf.mxu0
        %v1287 = vadd.f32 %v1018, %v1286
        %v1288 = vpop.f32.mrf.mxu0
        %1289 = vmatprep.mubr.bf16.mxu0 0
        %1290 = vmatmul.mubr.bf16.gmra.mxu0 %v1145
        %v1291 = vpop.f32.mrf.mxu0
        %v1292 = vadd.f32 %v1018, %v1291
        %v1293 = vpop.f32.mrf.mxu0
        %v1294 = vpop.f32.mrf.mxu0
        %v1295 = vadd.f32 %v1018, %v1294
        %v1296 = vpop.f32.mrf.mxu0
        %1297 = vmatprep.mubr.bf16.mxu0 0
        %1298 = vmatmul.mubr.bf16.gmra.mxu0 %v1148
        %v1299 = vpop.f32.mrf.mxu0
        %v1300 = vadd.f32 %v1018, %v1299
        %v1301 = vpop.f32.mrf.mxu0
        %v1302 = vpop.f32.mrf.mxu0
        %v1303 = vadd.f32 %v1018, %v1302
        %v1304 = vpop.f32.mrf.mxu0
        %1305 = vmatprep.mubr.bf16.mxu0 0
        %1306 = vmatmul.mubr.bf16.gmra.mxu0 %v1151
        %v1307 = vpop.f32.mrf.mxu0
        %v1308 = vadd.f32 %v1018, %v1307
        %v1309 = vpop.f32.mrf.mxu0
        %v1310 = vpop.f32.mrf.mxu0
        %v1311 = vadd.f32 %v1018, %v1310
        %v1312 = vpop.f32.mrf.mxu0
        %1313 = vmatprep.mubr.bf16.mxu0 0
        %1314 = vmatmul.mubr.bf16.gmra.mxu0 %v1154
        %v1315 = vpop.f32.mrf.mxu0
        %v1316 = vadd.f32 %v1018, %v1315
        %v1317 = vpop.f32.mrf.mxu0
        %v1318 = vpop.f32.mrf.mxu0
        %v1319 = vadd.f32 %v1018, %v1318
        %v1320 = vpop.f32.mrf.mxu0
        %1321 = vmatprep.mubr.bf16.mxu0 0
        %1322 = vmatmul.mubr.bf16.gmra.mxu0 %v1157
        %v1323 = vpop.f32.mrf.mxu0
        %v1324 = vadd.f32 %v1018, %v1323
        %v1325 = vpop.f32.mrf.mxu0
        %v1326 = vpop.f32.mrf.mxu0
        %v1327 = vadd.f32 %v1018, %v1326
        %v1328 = vpop.f32.mrf.mxu0
        %1329 = vmatprep.mubr.bf16.mxu0 0
        %1330 = vmatmul.mubr.bf16.gmra.mxu0 %v1160
        %v1331 = vpop.f32.mrf.mxu0
        %v1332 = vadd.f32 %v1018, %v1331
        %v1333 = vpop.f32.mrf.mxu0
        %v1334 = vpop.f32.mrf.mxu0
        %v1335 = vadd.f32 %v1018, %v1334
        %v1336 = vpop.f32.mrf.mxu0
        %1337 = vmatprep.mubr.bf16.mxu0 0
        %1338 = vmatmul.mubr.bf16.gmra.mxu0 %v1163
        %v1339 = vpop.f32.mrf.mxu0
        %v1340 = vadd.f32 %v1018, %v1339
        %v1341 = vpop.f32.mrf.mxu0
        %v1342 = vpop.f32.mrf.mxu0
        %v1343 = vadd.f32 %v1018, %v1342
        %v1344 = vpop.f32.mrf.mxu0
        %1345 = vdwg.mxu0
        %v1346 = vmax.f32 %v1204, 0.0
        %v1347 = vmax.f32 %v1207, 0.0
        %v1348 = vmax.f32 %v1212, 0.0
        %v1349 = vmax.f32 %v1215, 0.0
        %v1350 = vmax.f32 %v1220, 0.0
        %v1351 = vmax.f32 %v1223, 0.0
        %v1352 = vmax.f32 %v1228, 0.0
        %v1353 = vmax.f32 %v1231, 0.0
        %v1354 = vmax.f32 %v1236, 0.0
        %v1355 = vmax.f32 %v1239, 0.0
        %v1356 = vmax.f32 %v1244, 0.0
        %v1357 = vmax.f32 %v1247, 0.0
        %v1358 = vmax.f32 %v1252, 0.0
        %v1359 = vmax.f32 %v1255, 0.0
        %v1360 = vmax.f32 %v1260, 0.0
        %v1361 = vmax.f32 %v1263, 0.0
        %v1362 = vmax.f32 %v1268, 0.0
        %v1363 = vmax.f32 %v1271, 0.0
        %v1364 = vmax.f32 %v1276, 0.0
        %v1365 = vmax.f32 %v1279, 0.0
        %v1366 = vmax.f32 %v1284, 0.0
        %v1367 = vmax.f32 %v1287, 0.0
        %v1368 = vmax.f32 %v1292, 0.0
        %v1369 = vmax.f32 %v1295, 0.0
        %v1370 = vmax.f32 %v1300, 0.0
        %v1371 = vmax.f32 %v1303, 0.0
        %v1372 = vmax.f32 %v1308, 0.0
        %v1373 = vmax.f32 %v1311, 0.0
        %v1374 = vmax.f32 %v1316, 0.0
        %v1375 = vmax.f32 %v1319, 0.0
        %v1376 = vmax.f32 %v1324, 0.0
        %v1377 = vmax.f32 %v1327, 0.0
        %v1378 = vmax.f32 %v1332, 0.0
        %v1379 = vmax.f32 %v1335, 0.0
        %v1380 = vmax.f32 %v1340, 0.0
        %v1381 = vmax.f32 %v1343, 0.0
        %v1382 = vpack.c.bf16 %v1347, %v1346
        %v1383 = vpack.c.bf16 %v1349, %v1348
        %v1384 = vpack.c.bf16 %v1351, %v1350
        %v1385 = vpack.c.bf16 %v1353, %v1352
        %v1386 = vpack.c.bf16 %v1355, %v1354
        %v1387 = vpack.c.bf16 %v1357, %v1356
        %v1388 = vpack.c.bf16 %v1359, %v1358
        %v1389 = vpack.c.bf16 %v1361, %v1360
        %v1390 = vpack.c.bf16 %v1363, %v1362
        %v1391 = vpack.c.bf16 %v1365, %v1364
        %v1392 = vpack.c.bf16 %v1367, %v1366
        %v1393 = vpack.c.bf16 %v1369, %v1368
        %v1394 = vpack.c.bf16 %v1371, %v1370
        %v1395 = vpack.c.bf16 %v1373, %v1372
        %v1396 = vpack.c.bf16 %v1375, %v1374
        %v1397 = vpack.c.bf16 %v1377, %v1376
        %v1398 = vpack.c.bf16 %v1379, %v1378
        %v1399 = vpack.c.bf16 %v1381, %v1380
        %v1418 = vunpack.c.l.b16 %v1382
        %v1419 = vunpack.c.h.b16 %v1382
        %v1420 = vunpack.c.l.b16 %v1383
        %v1421 = vunpack.c.h.b16 %v1383
        %v1422 = vunpack.c.l.b16 %v1384
        %v1423 = vunpack.c.h.b16 %v1384
        %v1424 = vunpack.c.l.b16 %v1385
        %v1425 = vunpack.c.h.b16 %v1385
        %v1426 = vunpack.c.l.b16 %v1386
        %v1427 = vunpack.c.h.b16 %v1386
        %v1428 = vunpack.c.l.b16 %v1387
        %v1429 = vunpack.c.h.b16 %v1387
        %v1430 = vunpack.c.l.b16 %v1388
        %v1431 = vunpack.c.h.b16 %v1388
        %v1432 = vunpack.c.l.b16 %v1389
        %v1433 = vunpack.c.h.b16 %v1389
        %v1434 = vunpack.c.l.b16 %v1390
        %v1435 = vunpack.c.h.b16 %v1390
        %v1436 = vunpack.c.l.b16 %v1391
        %v1437 = vunpack.c.h.b16 %v1391
        %v1438 = vunpack.c.l.b16 %v1392
        %v1439 = vunpack.c.h.b16 %v1392
        %v1440 = vunpack.c.l.b16 %v1393
        %v1441 = vunpack.c.h.b16 %v1393
        %v1442 = vunpack.c.l.b16 %v1394
        %v1443 = vunpack.c.h.b16 %v1394
        %v1444 = vunpack.c.l.b16 %v1395
        %v1445 = vunpack.c.h.b16 %v1395
        %v1446 = vunpack.c.l.b16 %v1396
        %v1447 = vunpack.c.h.b16 %v1396
        %v1448 = vunpack.c.l.b16 %v1397
        %v1449 = vunpack.c.h.b16 %v1397
        %v1450 = vunpack.c.l.b16 %v1398
        %v1451 = vunpack.c.h.b16 %v1398
        %v1452 = vunpack.c.l.b16 %v1399
        %v1453 = vunpack.c.h.b16 %v1399
        %v1454 = vpack.c.b16 %v1418, %v1418
        %v1455 = vpack.c.b16 %v1419, %v1419
        %v1456 = vpack.c.b16 %v1420, %v1420
        %v1457 = vpack.c.b16 %v1421, %v1421
        %v1458 = vpack.c.b16 %v1422, %v1422
        %v1459 = vpack.c.b16 %v1423, %v1423
        %v1460 = vpack.c.b16 %v1424, %v1424
        %v1461 = vpack.c.b16 %v1425, %v1425
        %v1462 = vpack.c.b16 %v1426, %v1426
        %v1463 = vpack.c.b16 %v1427, %v1427
        %v1464 = vpack.c.b16 %v1428, %v1428
        %v1465 = vpack.c.b16 %v1429, %v1429
        %v1466 = vpack.c.b16 %v1430, %v1430
        %v1467 = vpack.c.b16 %v1431, %v1431
        %v1468 = vpack.c.b16 %v1432, %v1432
        %v1469 = vpack.c.b16 %v1433, %v1433
        %v1470 = vpack.c.b16 %v1434, %v1434
        %v1471 = vpack.c.b16 %v1435, %v1435
        %v1472 = vpack.c.b16 %v1436, %v1436
        %v1473 = vpack.c.b16 %v1437, %v1437
        %v1474 = vpack.c.b16 %v1438, %v1438
        %v1475 = vpack.c.b16 %v1439, %v1439
        %v1476 = vpack.c.b16 %v1440, %v1440
        %v1477 = vpack.c.b16 %v1441, %v1441
        %v1478 = vpack.c.b16 %v1442, %v1442
        %v1479 = vpack.c.b16 %v1443, %v1443
        %v1480 = vpack.c.b16 %v1444, %v1444
        %v1481 = vpack.c.b16 %v1445, %v1445
        %v1482 = vpack.c.b16 %v1446, %v1446
        %v1483 = vpack.c.b16 %v1447, %v1447
        %v1484 = vpack.c.b16 %v1448, %v1448
        %v1485 = vpack.c.b16 %v1449, %v1449
        %v1486 = vpack.c.b16 %v1450, %v1450
        %v1487 = vpack.c.b16 %v1451, %v1451
        %v1488 = vpack.c.b16 %v1452, %v1452
        %v1489 = vpack.c.b16 %v1453, %v1453
        %1526 = vst [vmem:[#allocation2 + $0x4] sm:$0xf] %v1454
        %1527 = vst [vmem:[#allocation2 + $0x8] sm:$0xf] %v1455
        %1528 = vst [vmem:[#allocation2 + $0xc] sm:$0xf] %v1456
        %1529 = vst [vmem:[#allocation2 + $0x10] sm:$0xf] %v1457
        %1530 = vst [vmem:[#allocation2 + $0x1c] sm:$0xf] %v1458
        %1531 = vst [vmem:[#allocation2 + $0x20] sm:$0xf] %v1459
        %1532 = vst [vmem:[#allocation2 + $0x24] sm:$0xf] %v1460
        %1533 = vst [vmem:[#allocation2 + $0x28] sm:$0xf] %v1461
        %1534 = vst [vmem:[#allocation2 + $0x34] sm:$0xf] %v1462
        %1535 = vst [vmem:[#allocation2 + $0x38] sm:$0xf] %v1463
        %1536 = vst [vmem:[#allocation2 + $0x3c] sm:$0xf] %v1464
        %1537 = vst [vmem:[#allocation2 + $0x40] sm:$0xf] %v1465
        %1538 = vst [vmem:[#allocation2 + $0x4c] sm:$0xf] %v1466
        %1539 = vst [vmem:[#allocation2 + $0x50] sm:$0xf] %v1467
        %1540 = vst [vmem:[#allocation2 + $0x54] sm:$0xf] %v1468
        %1541 = vst [vmem:[#allocation2 + $0x58] sm:$0xf] %v1469
        %1542 = vst [vmem:[#allocation2 + $0x64] sm:$0xf] %v1470
        %1543 = vst [vmem:[#allocation2 + $0x68] sm:$0xf] %v1471
        %1544 = vst [vmem:[#allocation2 + $0x6c] sm:$0xf] %v1472
        %1545 = vst [vmem:[#allocation2 + $0x70] sm:$0xf] %v1473
        %1546 = vst [vmem:[#allocation2 + $0x7c] sm:$0xf] %v1474
        %1547 = vst [vmem:[#allocation2 + $0x80] sm:$0xf] %v1475
        %1548 = vst [vmem:[#allocation2 + $0x84] sm:$0xf] %v1476
        %1549 = vst [vmem:[#allocation2 + $0x88] sm:$0xf] %v1477
        %1550 = vst [vmem:[#allocation2 + $0x94] sm:$0xf] %v1478
        %1551 = vst [vmem:[#allocation2 + $0x98] sm:$0xf] %v1479
        %1552 = vst [vmem:[#allocation2 + $0x9c] sm:$0xf] %v1480
        %1553 = vst [vmem:[#allocation2 + $0xa0] sm:$0xf] %v1481
        %1554 = vst [vmem:[#allocation2 + $0xac] sm:$0xf] %v1482
        %1555 = vst [vmem:[#allocation2 + $0xb0] sm:$0xf] %v1483
        %1556 = vst [vmem:[#allocation2 + $0xb4] sm:$0xf] %v1484
        %1557 = vst [vmem:[#allocation2 + $0xb8] sm:$0xf] %v1485
        %1558 = vst [vmem:[#allocation2 + $0xc4] sm:$0xf] %v1486
        %1559 = vst [vmem:[#allocation2 + $0xc8] sm:$0xf] %v1487
        %1560 = vst [vmem:[#allocation2 + $0xcc] sm:$0xf] %v1488
        %1561 = vst [vmem:[#allocation2 + $0xd0] sm:$0xf] %v1489
        %s1562 = scalar_lea.vmem [#allocation2], 216
        %1563 = vst [vmem:[%s1562 + $0x4] sm:$0xf] 0
        %1564 = vst [vmem:[%s1562 + $0x8] sm:$0xf] 0
        %1565 = vst [vmem:[%s1562 + $0xc] sm:$0xf] 0
        %1566 = vst [vmem:[%s1562 + $0x10] sm:$0xf] 0
      $region56: #{tpu_custom_call.1} parent=47 // pred_fallthru
        _
      %p1567 = scmp.gt.s32.totalorder %s23, 0
      %p1568 = scmp.lt.s32.totalorder %s23, 3
      %p1569 = pnand %p1567, %p1568
      %p1570 = pneg %p1569
      // Predicated region
      $region57: #{tpu_custom_call.1} parent=47 // pred_check
        _
      $region58: #{tpu_custom_call.1} parent=47 // pred_check_branch
        %1572 = sbr.rel (%p1569) target = $region60
      $region59: #{tpu_custom_call.1} parent=47 // pred_region
        %s1573 = ssub.s32 %s305, 1
        %s1574 = smul.u32 %s1573, 4
        %s1575 = smul.addr %s1574, 4
        %s1576 = scalar_lea.vmem %s292, %s1575
        %v1577 = vld [vmem:[%s1576] sm:$0xf]
        %v1578 = vld [vmem:[%s1576 + $0x4] sm:$0xf]
        %v1579 = vld [vmem:[%s1576 + $0x8] sm:$0xf]
        %v1580 = vld [vmem:[%s1576 + $0xc] sm:$0xf]
        %v1581 = vld [vmem:[%s1576 + $0x10] sm:$0xf]
        %v1582 = vld [vmem:[%s1576 + $0x14] sm:$0xf]
        %v1583 = vld [vmem:[%s1576 + $0x18] sm:$0xf]
        %v1584 = vld [vmem:[%s1576 + $0x1c] sm:$0xf]
        %v1585 = vld [vmem:[%s1576 + $0x20] sm:$0xf]
        %v1586 = vld [vmem:[%s1576 + $0x24] sm:$0xf]
        %v1587 = vld [vmem:[%s1576 + $0x28] sm:$0xf]
        %v1588 = vld [vmem:[%s1576 + $0x2c] sm:$0xf]
        %v1589 = vld [vmem:[%s1576 + $0x30] sm:$0xf]
        %v1590 = vld [vmem:[%s1576 + $0x34] sm:$0xf]
        %v1591 = vld [vmem:[%s1576 + $0x38] sm:$0xf]
        %v1592 = vld [vmem:[%s1576 + $0x3c] sm:$0xf]
        %v1593 = vld [vmem:[%s1576 + $0x40] sm:$0xf]
        %v1594 = vld [vmem:[%s1576 + $0x44] sm:$0xf]
        %v1595 = vld [vmem:[%s1576 + $0x48] sm:$0xf]
        %v1596 = vld [vmem:[%s1576 + $0x4c] sm:$0xf]
        %v1597 = vld [vmem:[%s1576 + $0x50] sm:$0xf]
        %v1598 = vld [vmem:[%s1576 + $0x54] sm:$0xf]
        %v1599 = vld [vmem:[%s1576 + $0x58] sm:$0xf]
        %v1600 = vld [vmem:[%s1576 + $0x5c] sm:$0xf]
        %v1601 = vld [vmem:[%s1576 + $0x60] sm:$0xf]
        %v1602 = vld [vmem:[%s1576 + $0x64] sm:$0xf]
        %v1603 = vld [vmem:[%s1576 + $0x68] sm:$0xf]
        %v1604 = vld [vmem:[%s1576 + $0x6c] sm:$0xf]
        %v1605 = vld [vmem:[%s1576 + $0x70] sm:$0xf]
        %v1606 = vld [vmem:[%s1576 + $0x74] sm:$0xf]
        %v1607 = vld [vmem:[%s1576 + $0x78] sm:$0xf]
        %v1608 = vld [vmem:[%s1576 + $0x7c] sm:$0xf]
        %v1609 = vld [vmem:[%s1576 + $0x80] sm:$0xf]
        %v1610 = vld [vmem:[%s1576 + $0x84] sm:$0xf]
        %v1611 = vld [vmem:[%s1576 + $0x88] sm:$0xf]
        %v1612 = vld [vmem:[%s1576 + $0x8c] sm:$0xf]
        %v1613 = vld [vmem:[%s1576 + $0x90] sm:$0xf]
        %v1614 = vld [vmem:[%s1576 + $0x94] sm:$0xf]
        %v1615 = vld [vmem:[%s1576 + $0x98] sm:$0xf]
        %v1616 = vld [vmem:[%s1576 + $0x9c] sm:$0xf]
        %v1618 = vlaneseq
        %v1619 = vshrl.u32 %v1618, 7
        %v1620 = vsub.s32 0, %v1619
        %v1621 = vrot.slane %v307, %v1620
        %v1663 = vunpack.c.l.b16 %v1577
        %v1664 = vunpack.c.l.b16 %v1578
        %v1665 = vunpack.c.l.b16 %v1579
        %v1666 = vunpack.c.l.b16 %v1580
        %v1667 = vunpack.c.l.b16 %v1581
        %v1668 = vunpack.c.l.b16 %v1582
        %v1669 = vunpack.c.l.b16 %v1583
        %v1670 = vunpack.c.l.b16 %v1584
        %v1671 = vunpack.c.l.b16 %v1585
        %v1672 = vunpack.c.l.b16 %v1586
        %v1673 = vunpack.c.l.b16 %v1587
        %v1674 = vunpack.c.l.b16 %v1588
        %v1675 = vunpack.c.l.b16 %v1589
        %v1676 = vunpack.c.l.b16 %v1590
        %v1677 = vunpack.c.l.b16 %v1591
        %v1678 = vunpack.c.l.b16 %v1592
        %v1679 = vunpack.c.l.b16 %v1593
        %v1680 = vunpack.c.l.b16 %v1594
        %v1681 = vunpack.c.l.b16 %v1595
        %v1682 = vunpack.c.l.b16 %v1596
        %v1683 = vunpack.c.l.b16 %v1597
        %v1684 = vunpack.c.l.b16 %v1598
        %v1685 = vunpack.c.l.b16 %v1599
        %v1686 = vunpack.c.l.b16 %v1600
        %v1687 = vunpack.c.l.b16 %v1601
        %v1688 = vunpack.c.l.b16 %v1602
        %v1689 = vunpack.c.l.b16 %v1603
        %v1690 = vunpack.c.l.b16 %v1604
        %v1691 = vunpack.c.l.b16 %v1605
        %v1692 = vunpack.c.l.b16 %v1606
        %v1693 = vunpack.c.l.b16 %v1607
        %v1694 = vunpack.c.l.b16 %v1608
        %v1695 = vunpack.c.l.b16 %v1609
        %v1696 = vunpack.c.l.b16 %v1610
        %v1697 = vunpack.c.l.b16 %v1611
        %v1698 = vunpack.c.l.b16 %v1612
        %v1699 = vunpack.c.l.b16 %v1613
        %v1700 = vunpack.c.l.b16 %v1614
        %v1701 = vunpack.c.l.b16 %v1615
        %v1702 = vunpack.c.l.b16 %v1616
        %v1703 = vpack.c.b16 %v1664, %v1663
        %v1704 = vpack.c.b16 %v1666, %v1665
        %v1705 = vpack.c.b16 %v1668, %v1667
        %v1706 = vpack.c.b16 %v1670, %v1669
        %v1707 = vpack.c.b16 %v1672, %v1671
        %v1708 = vpack.c.b16 %v1674, %v1673
        %v1709 = vpack.c.b16 %v1676, %v1675
        %v1710 = vpack.c.b16 %v1678, %v1677
        %v1711 = vpack.c.b16 %v1680, %v1679
        %v1712 = vpack.c.b16 %v1682, %v1681
        %v1713 = vpack.c.b16 %v1684, %v1683
        %v1714 = vpack.c.b16 %v1686, %v1685
        %v1715 = vpack.c.b16 %v1688, %v1687
        %v1716 = vpack.c.b16 %v1690, %v1689
        %v1717 = vpack.c.b16 %v1692, %v1691
        %v1718 = vpack.c.b16 %v1694, %v1693
        %v1719 = vpack.c.b16 %v1696, %v1695
        %v1720 = vpack.c.b16 %v1698, %v1697
        %v1721 = vpack.c.b16 %v1700, %v1699
        %v1722 = vpack.c.b16 %v1702, %v1701
        %vm1723 = vcmask 31744
        %v1725 = vsel %vm1723, %v1703, 0
        %v1728 = vsel %vm1723, %v1704, 0
        %v1731 = vsel %vm1723, %v1705, 0
        %v1734 = vsel %vm1723, %v1706, 0
        %v1737 = vsel %vm1723, %v1707, 0
        %v1740 = vsel %vm1723, %v1708, 0
        %v1743 = vsel %vm1723, %v1709, 0
        %v1746 = vsel %vm1723, %v1710, 0
        %v1749 = vsel %vm1723, %v1711, 0
        %v1752 = vsel %vm1723, %v1712, 0
        %v1755 = vsel %vm1723, %v1713, 0
        %v1758 = vsel %vm1723, %v1714, 0
        %v1761 = vsel %vm1723, %v1715, 0
        %v1764 = vsel %vm1723, %v1716, 0
        %v1767 = vsel %vm1723, %v1717, 0
        %v1770 = vsel %vm1723, %v1718, 0
        %v1773 = vsel %vm1723, %v1719, 0
        %v1776 = vsel %vm1723, %v1720, 0
        %v1779 = vsel %vm1723, %v1721, 0
        %v1782 = vsel %vm1723, %v1722, 0
        %vm1784 = vcmask 1041408
        %v1786 = vsel %vm1784, %v306, 0
        %1788 = vmatprep.subr.bf16.mxu0 0
        %1789 = vmatpush1.bf16.msra.mxu0 0
        %1790 = vmatprep.subr.bf16.mxu0 0
        %1791 = vmatpush1.bf16.msra.mxu0 0
        %1792 = vmatprep.subr.bf16.mxu0 0
        %1793 = vmatpush1.bf16.msra.mxu0 0
        %1794 = vmatprep.subr.bf16.mxu0 0
        %1795 = vmatpush1.bf16.msra.mxu0 0
        %1796 = vmatprep.subr.bf16.mxu0 0
        %1797 = vmatpush1.bf16.msra.mxu0 0
        %1798 = vmatprep.subr.bf16.mxu0 0
        %1799 = vmatpush1.bf16.msra.mxu0 0
        %1800 = vmatprep.subr.bf16.mxu0 0
        %1801 = vmatpush1.bf16.msra.mxu0 0
        %1802 = vmatprep.subr.bf16.mxu0 0
        %1803 = vmatpush1.bf16.msra.mxu0 %v1786
        %1804 = vmatprep.subr.bf16.mxu0 0
        %1805 = vmatpush2.bf16.msra.mxu0 0
        %1806 = vmatprep.subr.bf16.mxu0 0
        %1807 = vmatpush2.bf16.msra.mxu0 0
        %1808 = vmatprep.subr.bf16.mxu0 0
        %1809 = vmatpush2.bf16.msra.mxu0 0
        %1810 = vmatprep.subr.bf16.mxu0 0
        %1811 = vmatpush2.bf16.msra.mxu0 0
        %1812 = vmatprep.subr.bf16.mxu0 0
        %1813 = vmatpush2.bf16.msra.mxu0 0
        %1814 = vmatprep.subr.bf16.mxu0 0
        %1815 = vmatpush2.bf16.msra.mxu0 0
        %1816 = vmatprep.subr.bf16.mxu0 0
        %1817 = vmatpush2.bf16.msra.mxu0 0
        %1818 = vmatprep.subr.bf16.mxu0 0
        %1819 = vmatpush2.bf16.msra.mxu0 0
        %1820 = vmatprep.mubr.bf16.mxu0 0
        %1821 = vmatmul.mubr.bf16.gmra.mxu0 %v1725
        %v1822 = vpop.f32.mrf.mxu0
        %v1823 = vadd.f32 %v1621, %v1822
        %v1824 = vpop.f32.mrf.mxu0
        %v1825 = vpop.f32.mrf.mxu0
        %v1826 = vadd.f32 %v1621, %v1825
        %v1827 = vpop.f32.mrf.mxu0
        %1828 = vmatprep.mubr.bf16.mxu0 0
        %1829 = vmatmul.mubr.bf16.gmra.mxu0 %v1728
        %v1830 = vpop.f32.mrf.mxu0
        %v1831 = vadd.f32 %v1621, %v1830
        %v1832 = vpop.f32.mrf.mxu0
        %v1833 = vpop.f32.mrf.mxu0
        %v1834 = vadd.f32 %v1621, %v1833
        %v1835 = vpop.f32.mrf.mxu0
        %1836 = vmatprep.mubr.bf16.mxu0 0
        %1837 = vmatmul.mubr.bf16.gmra.mxu0 %v1731
        %v1838 = vpop.f32.mrf.mxu0
        %v1839 = vadd.f32 %v1621, %v1838
        %v1840 = vpop.f32.mrf.mxu0
        %v1841 = vpop.f32.mrf.mxu0
        %v1842 = vadd.f32 %v1621, %v1841
        %v1843 = vpop.f32.mrf.mxu0
        %1844 = vmatprep.mubr.bf16.mxu0 0
        %1845 = vmatmul.mubr.bf16.gmra.mxu0 %v1734
        %v1846 = vpop.f32.mrf.mxu0
        %v1847 = vadd.f32 %v1621, %v1846
        %v1848 = vpop.f32.mrf.mxu0
        %v1849 = vpop.f32.mrf.mxu0
        %v1850 = vadd.f32 %v1621, %v1849
        %v1851 = vpop.f32.mrf.mxu0
        %1852 = vmatprep.mubr.bf16.mxu0 0
        %1853 = vmatmul.mubr.bf16.gmra.mxu0 %v1737
        %v1854 = vpop.f32.mrf.mxu0
        %v1855 = vadd.f32 %v1621, %v1854
        %v1856 = vpop.f32.mrf.mxu0
        %v1857 = vpop.f32.mrf.mxu0
        %v1858 = vadd.f32 %v1621, %v1857
        %v1859 = vpop.f32.mrf.mxu0
        %1860 = vmatprep.mubr.bf16.mxu0 0
        %1861 = vmatmul.mubr.bf16.gmra.mxu0 %v1740
        %v1862 = vpop.f32.mrf.mxu0
        %v1863 = vadd.f32 %v1621, %v1862
        %v1864 = vpop.f32.mrf.mxu0
        %v1865 = vpop.f32.mrf.mxu0
        %v1866 = vadd.f32 %v1621, %v1865
        %v1867 = vpop.f32.mrf.mxu0
        %1868 = vmatprep.mubr.bf16.mxu0 0
        %1869 = vmatmul.mubr.bf16.gmra.mxu0 %v1743
        %v1870 = vpop.f32.mrf.mxu0
        %v1871 = vadd.f32 %v1621, %v1870
        %v1872 = vpop.f32.mrf.mxu0
        %v1873 = vpop.f32.mrf.mxu0
        %v1874 = vadd.f32 %v1621, %v1873
        %v1875 = vpop.f32.mrf.mxu0
        %1876 = vmatprep.mubr.bf16.mxu0 0
        %1877 = vmatmul.mubr.bf16.gmra.mxu0 %v1746
        %v1878 = vpop.f32.mrf.mxu0
        %v1879 = vadd.f32 %v1621, %v1878
        %v1880 = vpop.f32.mrf.mxu0
        %v1881 = vpop.f32.mrf.mxu0
        %v1882 = vadd.f32 %v1621, %v1881
        %v1883 = vpop.f32.mrf.mxu0
        %1884 = vmatprep.mubr.bf16.mxu0 0
        %1885 = vmatmul.mubr.bf16.gmra.mxu0 %v1749
        %v1886 = vpop.f32.mrf.mxu0
        %v1887 = vadd.f32 %v1621, %v1886
        %v1888 = vpop.f32.mrf.mxu0
        %v1889 = vpop.f32.mrf.mxu0
        %v1890 = vadd.f32 %v1621, %v1889
        %v1891 = vpop.f32.mrf.mxu0
        %1892 = vmatprep.mubr.bf16.mxu0 0
        %1893 = vmatmul.mubr.bf16.gmra.mxu0 %v1752
        %v1894 = vpop.f32.mrf.mxu0
        %v1895 = vadd.f32 %v1621, %v1894
        %v1896 = vpop.f32.mrf.mxu0
        %v1897 = vpop.f32.mrf.mxu0
        %v1898 = vadd.f32 %v1621, %v1897
        %v1899 = vpop.f32.mrf.mxu0
        %1900 = vmatprep.mubr.bf16.mxu0 0
        %1901 = vmatmul.mubr.bf16.gmra.mxu0 %v1755
        %v1902 = vpop.f32.mrf.mxu0
        %v1903 = vadd.f32 %v1621, %v1902
        %v1904 = vpop.f32.mrf.mxu0
        %v1905 = vpop.f32.mrf.mxu0
        %v1906 = vadd.f32 %v1621, %v1905
        %v1907 = vpop.f32.mrf.mxu0
        %1908 = vmatprep.mubr.bf16.mxu0 0
        %1909 = vmatmul.mubr.bf16.gmra.mxu0 %v1758
        %v1910 = vpop.f32.mrf.mxu0
        %v1911 = vadd.f32 %v1621, %v1910
        %v1912 = vpop.f32.mrf.mxu0
        %v1913 = vpop.f32.mrf.mxu0
        %v1914 = vadd.f32 %v1621, %v1913
        %v1915 = vpop.f32.mrf.mxu0
        %1916 = vmatprep.mubr.bf16.mxu0 0
        %1917 = vmatmul.mubr.bf16.gmra.mxu0 %v1761
        %v1918 = vpop.f32.mrf.mxu0
        %v1919 = vadd.f32 %v1621, %v1918
        %v1920 = vpop.f32.mrf.mxu0
        %v1921 = vpop.f32.mrf.mxu0
        %v1922 = vadd.f32 %v1621, %v1921
        %v1923 = vpop.f32.mrf.mxu0
        %1924 = vmatprep.mubr.bf16.mxu0 0
        %1925 = vmatmul.mubr.bf16.gmra.mxu0 %v1764
        %v1926 = vpop.f32.mrf.mxu0
        %v1927 = vadd.f32 %v1621, %v1926
        %v1928 = vpop.f32.mrf.mxu0
        %v1929 = vpop.f32.mrf.mxu0
        %v1930 = vadd.f32 %v1621, %v1929
        %v1931 = vpop.f32.mrf.mxu0
        %1932 = vmatprep.mubr.bf16.mxu0 0
        %1933 = vmatmul.mubr.bf16.gmra.mxu0 %v1767
        %v1934 = vpop.f32.mrf.mxu0
        %v1935 = vadd.f32 %v1621, %v1934
        %v1936 = vpop.f32.mrf.mxu0
        %v1937 = vpop.f32.mrf.mxu0
        %v1938 = vadd.f32 %v1621, %v1937
        %v1939 = vpop.f32.mrf.mxu0
        %1940 = vmatprep.mubr.bf16.mxu0 0
        %1941 = vmatmul.mubr.bf16.gmra.mxu0 %v1770
        %v1942 = vpop.f32.mrf.mxu0
        %v1943 = vadd.f32 %v1621, %v1942
        %v1944 = vpop.f32.mrf.mxu0
        %v1945 = vpop.f32.mrf.mxu0
        %v1946 = vadd.f32 %v1621, %v1945
        %v1947 = vpop.f32.mrf.mxu0
        %1948 = vmatprep.mubr.bf16.mxu0 0
        %1949 = vmatmul.mubr.bf16.gmra.mxu0 %v1773
        %v1950 = vpop.f32.mrf.mxu0
        %v1951 = vadd.f32 %v1621, %v1950
        %v1952 = vpop.f32.mrf.mxu0
        %v1953 = vpop.f32.mrf.mxu0
        %v1954 = vadd.f32 %v1621, %v1953
        %v1955 = vpop.f32.mrf.mxu0
        %1956 = vmatprep.mubr.bf16.mxu0 0
        %1957 = vmatmul.mubr.bf16.gmra.mxu0 %v1776
        %v1958 = vpop.f32.mrf.mxu0
        %v1959 = vadd.f32 %v1621, %v1958
        %v1960 = vpop.f32.mrf.mxu0
        %v1961 = vpop.f32.mrf.mxu0
        %v1962 = vadd.f32 %v1621, %v1961
        %v1963 = vpop.f32.mrf.mxu0
        %1964 = vmatprep.mubr.bf16.mxu0 0
        %1965 = vmatmul.mubr.bf16.gmra.mxu0 %v1779
        %v1966 = vpop.f32.mrf.mxu0
        %v1967 = vadd.f32 %v1621, %v1966
        %v1968 = vpop.f32.mrf.mxu0
        %v1969 = vpop.f32.mrf.mxu0
        %v1970 = vadd.f32 %v1621, %v1969
        %v1971 = vpop.f32.mrf.mxu0
        %1972 = vmatprep.mubr.bf16.mxu0 0
        %1973 = vmatmul.mubr.bf16.gmra.mxu0 %v1782
        %v1974 = vpop.f32.mrf.mxu0
        %v1975 = vadd.f32 %v1621, %v1974
        %v1976 = vpop.f32.mrf.mxu0
        %v1977 = vpop.f32.mrf.mxu0
        %v1978 = vadd.f32 %v1621, %v1977
        %v1979 = vpop.f32.mrf.mxu0
        %1980 = vdwg.mxu0
        %v1981 = vmax.f32 %v1823, 0.0
        %v1982 = vmax.f32 %v1826, 0.0
        %v1983 = vmax.f32 %v1831, 0.0
        %v1984 = vmax.f32 %v1834, 0.0
        %v1985 = vmax.f32 %v1839, 0.0
        %v1986 = vmax.f32 %v1842, 0.0
        %v1987 = vmax.f32 %v1847, 0.0
        %v1988 = vmax.f32 %v1850, 0.0
        %v1989 = vmax.f32 %v1855, 0.0
        %v1990 = vmax.f32 %v1858, 0.0
        %v1991 = vmax.f32 %v1863, 0.0
        %v1992 = vmax.f32 %v1866, 0.0
        %v1993 = vmax.f32 %v1871, 0.0
        %v1994 = vmax.f32 %v1874, 0.0
        %v1995 = vmax.f32 %v1879, 0.0
        %v1996 = vmax.f32 %v1882, 0.0
        %v1997 = vmax.f32 %v1887, 0.0
        %v1998 = vmax.f32 %v1890, 0.0
        %v1999 = vmax.f32 %v1895, 0.0
        %v2000 = vmax.f32 %v1898, 0.0
        %v2001 = vmax.f32 %v1903, 0.0
        %v2002 = vmax.f32 %v1906, 0.0
        %v2003 = vmax.f32 %v1911, 0.0
        %v2004 = vmax.f32 %v1914, 0.0
        %v2005 = vmax.f32 %v1919, 0.0
        %v2006 = vmax.f32 %v1922, 0.0
        %v2007 = vmax.f32 %v1927, 0.0
        %v2008 = vmax.f32 %v1930, 0.0
        %v2009 = vmax.f32 %v1935, 0.0
        %v2010 = vmax.f32 %v1938, 0.0
        %v2011 = vmax.f32 %v1943, 0.0
        %v2012 = vmax.f32 %v1946, 0.0
        %v2013 = vmax.f32 %v1951, 0.0
        %v2014 = vmax.f32 %v1954, 0.0
        %v2015 = vmax.f32 %v1959, 0.0
        %v2016 = vmax.f32 %v1962, 0.0
        %v2017 = vmax.f32 %v1967, 0.0
        %v2018 = vmax.f32 %v1970, 0.0
        %v2019 = vmax.f32 %v1975, 0.0
        %v2020 = vmax.f32 %v1978, 0.0
        %v2021 = vpack.c.bf16 %v1982, %v1981
        %v2022 = vpack.c.bf16 %v1984, %v1983
        %v2023 = vpack.c.bf16 %v1986, %v1985
        %v2024 = vpack.c.bf16 %v1988, %v1987
        %v2025 = vpack.c.bf16 %v1990, %v1989
        %v2026 = vpack.c.bf16 %v1992, %v1991
        %v2027 = vpack.c.bf16 %v1994, %v1993
        %v2028 = vpack.c.bf16 %v1996, %v1995
        %v2029 = vpack.c.bf16 %v1998, %v1997
        %v2030 = vpack.c.bf16 %v2000, %v1999
        %v2031 = vpack.c.bf16 %v2002, %v2001
        %v2032 = vpack.c.bf16 %v2004, %v2003
        %v2033 = vpack.c.bf16 %v2006, %v2005
        %v2034 = vpack.c.bf16 %v2008, %v2007
        %v2035 = vpack.c.bf16 %v2010, %v2009
        %v2036 = vpack.c.bf16 %v2012, %v2011
        %v2037 = vpack.c.bf16 %v2014, %v2013
        %v2038 = vpack.c.bf16 %v2016, %v2015
        %v2039 = vpack.c.bf16 %v2018, %v2017
        %v2040 = vpack.c.bf16 %v2020, %v2019
        %v2061 = vunpack.c.l.b16 %v2021
        %v2062 = vunpack.c.h.b16 %v2021
        %v2063 = vunpack.c.l.b16 %v2022
        %v2064 = vunpack.c.h.b16 %v2022
        %v2065 = vunpack.c.l.b16 %v2023
        %v2066 = vunpack.c.h.b16 %v2023
        %v2067 = vunpack.c.l.b16 %v2024
        %v2068 = vunpack.c.h.b16 %v2024
        %v2069 = vunpack.c.l.b16 %v2025
        %v2070 = vunpack.c.h.b16 %v2025
        %v2071 = vunpack.c.l.b16 %v2026
        %v2072 = vunpack.c.h.b16 %v2026
        %v2073 = vunpack.c.l.b16 %v2027
        %v2074 = vunpack.c.h.b16 %v2027
        %v2075 = vunpack.c.l.b16 %v2028
        %v2076 = vunpack.c.h.b16 %v2028
        %v2077 = vunpack.c.l.b16 %v2029
        %v2078 = vunpack.c.h.b16 %v2029
        %v2079 = vunpack.c.l.b16 %v2030
        %v2080 = vunpack.c.h.b16 %v2030
        %v2081 = vunpack.c.l.b16 %v2031
        %v2082 = vunpack.c.h.b16 %v2031
        %v2083 = vunpack.c.l.b16 %v2032
        %v2084 = vunpack.c.h.b16 %v2032
        %v2085 = vunpack.c.l.b16 %v2033
        %v2086 = vunpack.c.h.b16 %v2033
        %v2087 = vunpack.c.l.b16 %v2034
        %v2088 = vunpack.c.h.b16 %v2034
        %v2089 = vunpack.c.l.b16 %v2035
        %v2090 = vunpack.c.h.b16 %v2035
        %v2091 = vunpack.c.l.b16 %v2036
        %v2092 = vunpack.c.h.b16 %v2036
        %v2093 = vunpack.c.l.b16 %v2037
        %v2094 = vunpack.c.h.b16 %v2037
        %v2095 = vunpack.c.l.b16 %v2038
        %v2096 = vunpack.c.h.b16 %v2038
        %v2097 = vunpack.c.l.b16 %v2039
        %v2098 = vunpack.c.h.b16 %v2039
        %v2099 = vunpack.c.l.b16 %v2040
        %v2100 = vunpack.c.h.b16 %v2040
        %v2101 = vpack.c.b16 %v2061, %v2061
        %v2102 = vpack.c.b16 %v2062, %v2062
        %v2103 = vpack.c.b16 %v2063, %v2063
        %v2104 = vpack.c.b16 %v2064, %v2064
        %v2105 = vpack.c.b16 %v2065, %v2065
        %v2106 = vpack.c.b16 %v2066, %v2066
        %v2107 = vpack.c.b16 %v2067, %v2067
        %v2108 = vpack.c.b16 %v2068, %v2068
        %v2109 = vpack.c.b16 %v2069, %v2069
        %v2110 = vpack.c.b16 %v2070, %v2070
        %v2111 = vpack.c.b16 %v2071, %v2071
        %v2112 = vpack.c.b16 %v2072, %v2072
        %v2113 = vpack.c.b16 %v2073, %v2073
        %v2114 = vpack.c.b16 %v2074, %v2074
        %v2115 = vpack.c.b16 %v2075, %v2075
        %v2116 = vpack.c.b16 %v2076, %v2076
        %v2117 = vpack.c.b16 %v2077, %v2077
        %v2118 = vpack.c.b16 %v2078, %v2078
        %v2119 = vpack.c.b16 %v2079, %v2079
        %v2120 = vpack.c.b16 %v2080, %v2080
        %v2121 = vpack.c.b16 %v2081, %v2081
        %v2122 = vpack.c.b16 %v2082, %v2082
        %v2123 = vpack.c.b16 %v2083, %v2083
        %v2124 = vpack.c.b16 %v2084, %v2084
        %v2125 = vpack.c.b16 %v2085, %v2085
        %v2126 = vpack.c.b16 %v2086, %v2086
        %v2127 = vpack.c.b16 %v2087, %v2087
        %v2128 = vpack.c.b16 %v2088, %v2088
        %v2129 = vpack.c.b16 %v2089, %v2089
        %v2130 = vpack.c.b16 %v2090, %v2090
        %v2131 = vpack.c.b16 %v2091, %v2091
        %v2132 = vpack.c.b16 %v2092, %v2092
        %v2133 = vpack.c.b16 %v2093, %v2093
        %v2134 = vpack.c.b16 %v2094, %v2094
        %v2135 = vpack.c.b16 %v2095, %v2095
        %v2136 = vpack.c.b16 %v2096, %v2096
        %v2137 = vpack.c.b16 %v2097, %v2097
        %v2138 = vpack.c.b16 %v2098, %v2098
        %v2139 = vpack.c.b16 %v2099, %v2099
        %v2140 = vpack.c.b16 %v2100, %v2100
        %2181 = vst [vmem:[#allocation2 + $0x4] sm:$0xf] %v2101
        %2182 = vst [vmem:[#allocation2 + $0x8] sm:$0xf] %v2102
        %2183 = vst [vmem:[#allocation2 + $0xc] sm:$0xf] %v2103
        %2184 = vst [vmem:[#allocation2 + $0x10] sm:$0xf] %v2104
        %2185 = vst [vmem:[#allocation2 + $0x1c] sm:$0xf] %v2105
        %2186 = vst [vmem:[#allocation2 + $0x20] sm:$0xf] %v2106
        %2187 = vst [vmem:[#allocation2 + $0x24] sm:$0xf] %v2107
        %2188 = vst [vmem:[#allocation2 + $0x28] sm:$0xf] %v2108
        %2189 = vst [vmem:[#allocation2 + $0x34] sm:$0xf] %v2109
        %2190 = vst [vmem:[#allocation2 + $0x38] sm:$0xf] %v2110
        %2191 = vst [vmem:[#allocation2 + $0x3c] sm:$0xf] %v2111
        %2192 = vst [vmem:[#allocation2 + $0x40] sm:$0xf] %v2112
        %2193 = vst [vmem:[#allocation2 + $0x4c] sm:$0xf] %v2113
        %2194 = vst [vmem:[#allocation2 + $0x50] sm:$0xf] %v2114
        %2195 = vst [vmem:[#allocation2 + $0x54] sm:$0xf] %v2115
        %2196 = vst [vmem:[#allocation2 + $0x58] sm:$0xf] %v2116
        %2197 = vst [vmem:[#allocation2 + $0x64] sm:$0xf] %v2117
        %2198 = vst [vmem:[#allocation2 + $0x68] sm:$0xf] %v2118
        %2199 = vst [vmem:[#allocation2 + $0x6c] sm:$0xf] %v2119
        %2200 = vst [vmem:[#allocation2 + $0x70] sm:$0xf] %v2120
        %2201 = vst [vmem:[#allocation2 + $0x7c] sm:$0xf] %v2121
        %2202 = vst [vmem:[#allocation2 + $0x80] sm:$0xf] %v2122
        %2203 = vst [vmem:[#allocation2 + $0x84] sm:$0xf] %v2123
        %2204 = vst [vmem:[#allocation2 + $0x88] sm:$0xf] %v2124
        %2205 = vst [vmem:[#allocation2 + $0x94] sm:$0xf] %v2125
        %2206 = vst [vmem:[#allocation2 + $0x98] sm:$0xf] %v2126
        %2207 = vst [vmem:[#allocation2 + $0x9c] sm:$0xf] %v2127
        %2208 = vst [vmem:[#allocation2 + $0xa0] sm:$0xf] %v2128
        %2209 = vst [vmem:[#allocation2 + $0xac] sm:$0xf] %v2129
        %2210 = vst [vmem:[#allocation2 + $0xb0] sm:$0xf] %v2130
        %2211 = vst [vmem:[#allocation2 + $0xb4] sm:$0xf] %v2131
        %2212 = vst [vmem:[#allocation2 + $0xb8] sm:$0xf] %v2132
        %2213 = vst [vmem:[#allocation2 + $0xc4] sm:$0xf] %v2133
        %2214 = vst [vmem:[#allocation2 + $0xc8] sm:$0xf] %v2134
        %2215 = vst [vmem:[#allocation2 + $0xcc] sm:$0xf] %v2135
        %2216 = vst [vmem:[#allocation2 + $0xd0] sm:$0xf] %v2136
        %2217 = vst [vmem:[#allocation2 + $0xdc] sm:$0xf] %v2137
        %2218 = vst [vmem:[#allocation2 + $0xe0] sm:$0xf] %v2138
        %2219 = vst [vmem:[#allocation2 + $0xe4] sm:$0xf] %v2139
        %2220 = vst [vmem:[#allocation2 + $0xe8] sm:$0xf] %v2140
      $region60: #{tpu_custom_call.1} parent=47 // pred_fallthru
        _
      %v2221 = vld [vmem:[#allocation2] sm:$0x8]
      %v2222 = vld [vmem:[#allocation2 + $0x4] sm:$0xf]
      %v2223 = vld [vmem:[#allocation2 + $0x8] sm:$0xf]
      %v2224 = vld [vmem:[#allocation2 + $0xc] sm:$0xf]
      %v2225 = vld [vmem:[#allocation2 + $0x10] sm:$0xf]
      %v2226 = vld [vmem:[#allocation2 + $0x18] sm:$0x8]
      %v2227 = vld [vmem:[#allocation2 + $0x1c] sm:$0xf]
      %v2228 = vld [vmem:[#allocation2 + $0x20] sm:$0xf]
      %v2229 = vld [vmem:[#allocation2 + $0x24] sm:$0xf]
      %v2230 = vld [vmem:[#allocation2 + $0x28] sm:$0xf]
      %v2231 = vld [vmem:[#allocation2 + $0x30] sm:$0x8]
      %v2232 = vld [vmem:[#allocation2 + $0x34] sm:$0xf]
      %v2233 = vld [vmem:[#allocation2 + $0x38] sm:$0xf]
      %v2234 = vld [vmem:[#allocation2 + $0x3c] sm:$0xf]
      %v2235 = vld [vmem:[#allocation2 + $0x40] sm:$0xf]
      %v2236 = vld [vmem:[#allocation2 + $0x48] sm:$0x8]
      %v2237 = vld [vmem:[#allocation2 + $0x4c] sm:$0xf]
      %v2238 = vld [vmem:[#allocation2 + $0x50] sm:$0xf]
      %v2239 = vld [vmem:[#allocation2 + $0x54] sm:$0xf]
      %v2240 = vld [vmem:[#allocation2 + $0x58] sm:$0xf]
      %v2241 = vld [vmem:[#allocation2 + $0x60] sm:$0x8]
      %v2242 = vld [vmem:[#allocation2 + $0x64] sm:$0xf]
      %v2243 = vld [vmem:[#allocation2 + $0x68] sm:$0xf]
      %v2244 = vld [vmem:[#allocation2 + $0x6c] sm:$0xf]
      %v2245 = vld [vmem:[#allocation2 + $0x70] sm:$0xf]
      %v2246 = vld [vmem:[#allocation2 + $0x78] sm:$0x8]
      %v2247 = vld [vmem:[#allocation2 + $0x7c] sm:$0xf]
      %v2248 = vld [vmem:[#allocation2 + $0x80] sm:$0xf]
      %v2249 = vld [vmem:[#allocation2 + $0x84] sm:$0xf]
      %v2250 = vld [vmem:[#allocation2 + $0x88] sm:$0xf]
      %v2251 = vld [vmem:[#allocation2 + $0x90] sm:$0x8]
      %v2252 = vld [vmem:[#allocation2 + $0x94] sm:$0xf]
      %v2253 = vld [vmem:[#allocation2 + $0x98] sm:$0xf]
      %v2254 = vld [vmem:[#allocation2 + $0x9c] sm:$0xf]
      %v2255 = vld [vmem:[#allocation2 + $0xa0] sm:$0xf]
      %v2256 = vld [vmem:[#allocation2 + $0xa8] sm:$0x8]
      %v2257 = vld [vmem:[#allocation2 + $0xac] sm:$0xf]
      %v2258 = vld [vmem:[#allocation2 + $0xb0] sm:$0xf]
      %v2259 = vld [vmem:[#allocation2 + $0xb4] sm:$0xf]
      %v2260 = vld [vmem:[#allocation2 + $0xb8] sm:$0xf]
      %vm2261 = vsmask.f32 4368
      %vm2262 = vmor %vm342, %vm2261
      %v2264 = vshrl.u32 %v2221, 16
      %v2266 = vrot.slane %v2264, 7
      %v2267 = vrot.slane %v2266, 4
      %v2269 = vshrl.u32 %v2222, 16
      %v2271 = vrot.slane %v2269, 7
      %v2272 = vshll.u32 %v2222, 16
      %v2274 = vor.u32 %v2271, %v2272
      %v2275 = vsel %vm2262, %v2267, %v2274
      %v2276 = vrot.slane %v2271, 4
      %v2278 = vshrl.u32 %v2223, 16
      %v2280 = vrot.slane %v2278, 7
      %v2281 = vshll.u32 %v2223, 16
      %v2283 = vor.u32 %v2280, %v2281
      %v2284 = vsel %vm2262, %v2276, %v2283
      %v2285 = vrot.slane %v2280, 4
      %v2287 = vshrl.u32 %v2224, 16
      %v2289 = vrot.slane %v2287, 7
      %v2290 = vshll.u32 %v2224, 16
      %v2292 = vor.u32 %v2289, %v2290
      %v2293 = vsel %vm2262, %v2285, %v2292
      %v2294 = vrot.slane %v2289, 4
      %v2296 = vshrl.u32 %v2225, 16
      %v2298 = vrot.slane %v2296, 7
      %v2299 = vshll.u32 %v2225, 16
      %v2301 = vor.u32 %v2298, %v2299
      %v2302 = vsel %vm2262, %v2294, %v2301
      %v2304 = vshrl.u32 %v2226, 16
      %v2306 = vrot.slane %v2304, 7
      %v2307 = vrot.slane %v2306, 4
      %v2309 = vshrl.u32 %v2227, 16
      %v2311 = vrot.slane %v2309, 7
      %v2312 = vshll.u32 %v2227, 16
      %v2314 = vor.u32 %v2311, %v2312
      %v2315 = vsel %vm2262, %v2307, %v2314
      %v2316 = vrot.slane %v2311, 4
      %v2318 = vshrl.u32 %v2228, 16
      %v2320 = vrot.slane %v2318, 7
      %v2321 = vshll.u32 %v2228, 16
      %v2323 = vor.u32 %v2320, %v2321
      %v2324 = vsel %vm2262, %v2316, %v2323
      %v2325 = vrot.slane %v2320, 4
      %v2327 = vshrl.u32 %v2229, 16
      %v2329 = vrot.slane %v2327, 7
      %v2330 = vshll.u32 %v2229, 16
      %v2332 = vor.u32 %v2329, %v2330
      %v2333 = vsel %vm2262, %v2325, %v2332
      %v2334 = vrot.slane %v2329, 4
      %v2336 = vshrl.u32 %v2230, 16
      %v2338 = vrot.slane %v2336, 7
      %v2339 = vshll.u32 %v2230, 16
      %v2341 = vor.u32 %v2338, %v2339
      %v2342 = vsel %vm2262, %v2334, %v2341
      %v2344 = vshrl.u32 %v2231, 16
      %v2346 = vrot.slane %v2344, 7
      %v2347 = vrot.slane %v2346, 4
      %v2349 = vshrl.u32 %v2232, 16
      %v2351 = vrot.slane %v2349, 7
      %v2352 = vshll.u32 %v2232, 16
      %v2354 = vor.u32 %v2351, %v2352
      %v2355 = vsel %vm2262, %v2347, %v2354
      %v2356 = vrot.slane %v2351, 4
      %v2358 = vshrl.u32 %v2233, 16
      %v2360 = vrot.slane %v2358, 7
      %v2361 = vshll.u32 %v2233, 16
      %v2363 = vor.u32 %v2360, %v2361
      %v2364 = vsel %vm2262, %v2356, %v2363
      %v2365 = vrot.slane %v2360, 4
      %v2367 = vshrl.u32 %v2234, 16
      %v2369 = vrot.slane %v2367, 7
      %v2370 = vshll.u32 %v2234, 16
      %v2372 = vor.u32 %v2369, %v2370
      %v2373 = vsel %vm2262, %v2365, %v2372
      %v2374 = vrot.slane %v2369, 4
      %v2376 = vshrl.u32 %v2235, 16
      %v2378 = vrot.slane %v2376, 7
      %v2379 = vshll.u32 %v2235, 16
      %v2381 = vor.u32 %v2378, %v2379
      %v2382 = vsel %vm2262, %v2374, %v2381
      %v2384 = vshrl.u32 %v2236, 16
      %v2386 = vrot.slane %v2384, 7
      %v2387 = vrot.slane %v2386, 4
      %v2389 = vshrl.u32 %v2237, 16
      %v2391 = vrot.slane %v2389, 7
      %v2392 = vshll.u32 %v2237, 16
      %v2394 = vor.u32 %v2391, %v2392
      %v2395 = vsel %vm2262, %v2387, %v2394
      %v2396 = vrot.slane %v2391, 4
      %v2398 = vshrl.u32 %v2238, 16
      %v2400 = vrot.slane %v2398, 7
      %v2401 = vshll.u32 %v2238, 16
      %v2403 = vor.u32 %v2400, %v2401
      %v2404 = vsel %vm2262, %v2396, %v2403
      %v2405 = vrot.slane %v2400, 4
      %v2407 = vshrl.u32 %v2239, 16
      %v2409 = vrot.slane %v2407, 7
      %v2410 = vshll.u32 %v2239, 16
      %v2412 = vor.u32 %v2409, %v2410
      %v2413 = vsel %vm2262, %v2405, %v2412
      %v2414 = vrot.slane %v2409, 4
      %v2416 = vshrl.u32 %v2240, 16
      %v2418 = vrot.slane %v2416, 7
      %v2419 = vshll.u32 %v2240, 16
      %v2421 = vor.u32 %v2418, %v2419
      %v2422 = vsel %vm2262, %v2414, %v2421
      %v2424 = vshrl.u32 %v2241, 16
      %v2426 = vrot.slane %v2424, 7
      %v2427 = vrot.slane %v2426, 4
      %v2429 = vshrl.u32 %v2242, 16
      %v2431 = vrot.slane %v2429, 7
      %v2432 = vshll.u32 %v2242, 16
      %v2434 = vor.u32 %v2431, %v2432
      %v2435 = vsel %vm2262, %v2427, %v2434
      %v2436 = vrot.slane %v2431, 4
      %v2438 = vshrl.u32 %v2243, 16
      %v2440 = vrot.slane %v2438, 7
      %v2441 = vshll.u32 %v2243, 16
      %v2443 = vor.u32 %v2440, %v2441
      %v2444 = vsel %vm2262, %v2436, %v2443
      %v2445 = vrot.slane %v2440, 4
      %v2447 = vshrl.u32 %v2244, 16
      %v2449 = vrot.slane %v2447, 7
      %v2450 = vshll.u32 %v2244, 16
      %v2452 = vor.u32 %v2449, %v2450
      %v2453 = vsel %vm2262, %v2445, %v2452
      %v2454 = vrot.slane %v2449, 4
      %v2456 = vshrl.u32 %v2245, 16
      %v2458 = vrot.slane %v2456, 7
      %v2459 = vshll.u32 %v2245, 16
      %v2461 = vor.u32 %v2458, %v2459
      %v2462 = vsel %vm2262, %v2454, %v2461
      %v2464 = vshrl.u32 %v2246, 16
      %v2466 = vrot.slane %v2464, 7
      %v2467 = vrot.slane %v2466, 4
      %v2469 = vshrl.u32 %v2247, 16
      %v2471 = vrot.slane %v2469, 7
      %v2472 = vshll.u32 %v2247, 16
      %v2474 = vor.u32 %v2471, %v2472
      %v2475 = vsel %vm2262, %v2467, %v2474
      %v2476 = vrot.slane %v2471, 4
      %v2478 = vshrl.u32 %v2248, 16
      %v2480 = vrot.slane %v2478, 7
      %v2481 = vshll.u32 %v2248, 16
      %v2483 = vor.u32 %v2480, %v2481
      %v2484 = vsel %vm2262, %v2476, %v2483
      %v2485 = vrot.slane %v2480, 4
      %v2487 = vshrl.u32 %v2249, 16
      %v2489 = vrot.slane %v2487, 7
      %v2490 = vshll.u32 %v2249, 16
      %v2492 = vor.u32 %v2489, %v2490
      %v2493 = vsel %vm2262, %v2485, %v2492
      %v2494 = vrot.slane %v2489, 4
      %v2496 = vshrl.u32 %v2250, 16
      %v2498 = vrot.slane %v2496, 7
      %v2499 = vshll.u32 %v2250, 16
      %v2501 = vor.u32 %v2498, %v2499
      %v2502 = vsel %vm2262, %v2494, %v2501
      %v2504 = vshrl.u32 %v2251, 16
      %v2506 = vrot.slane %v2504, 7
      %v2507 = vrot.slane %v2506, 4
      %v2509 = vshrl.u32 %v2252, 16
      %v2511 = vrot.slane %v2509, 7
      %v2512 = vshll.u32 %v2252, 16
      %v2514 = vor.u32 %v2511, %v2512
      %v2515 = vsel %vm2262, %v2507, %v2514
      %v2516 = vrot.slane %v2511, 4
      %v2518 = vshrl.u32 %v2253, 16
      %v2520 = vrot.slane %v2518, 7
      %v2521 = vshll.u32 %v2253, 16
      %v2523 = vor.u32 %v2520, %v2521
      %v2524 = vsel %vm2262, %v2516, %v2523
      %v2525 = vrot.slane %v2520, 4
      %v2527 = vshrl.u32 %v2254, 16
      %v2529 = vrot.slane %v2527, 7
      %v2530 = vshll.u32 %v2254, 16
      %v2532 = vor.u32 %v2529, %v2530
      %v2533 = vsel %vm2262, %v2525, %v2532
      %v2534 = vrot.slane %v2529, 4
      %v2536 = vshrl.u32 %v2255, 16
      %v2538 = vrot.slane %v2536, 7
      %v2539 = vshll.u32 %v2255, 16
      %v2541 = vor.u32 %v2538, %v2539
      %v2542 = vsel %vm2262, %v2534, %v2541
      %v2544 = vshrl.u32 %v2256, 16
      %v2546 = vrot.slane %v2544, 7
      %v2547 = vrot.slane %v2546, 4
      %v2549 = vshrl.u32 %v2257, 16
      %v2551 = vrot.slane %v2549, 7
      %v2552 = vshll.u32 %v2257, 16
      %v2554 = vor.u32 %v2551, %v2552
      %v2555 = vsel %vm2262, %v2547, %v2554
      %v2556 = vrot.slane %v2551, 4
      %v2558 = vshrl.u32 %v2258, 16
      %v2560 = vrot.slane %v2558, 7
      %v2561 = vshll.u32 %v2258, 16
      %v2563 = vor.u32 %v2560, %v2561
      %v2564 = vsel %vm2262, %v2556, %v2563
      %v2565 = vrot.slane %v2560, 4
      %v2567 = vshrl.u32 %v2259, 16
      %v2569 = vrot.slane %v2567, 7
      %v2570 = vshll.u32 %v2259, 16
      %v2572 = vor.u32 %v2569, %v2570
      %v2573 = vsel %vm2262, %v2565, %v2572
      %v2574 = vrot.slane %v2569, 4
      %v2576 = vshrl.u32 %v2260, 16
      %v2578 = vrot.slane %v2576, 7
      %v2579 = vshll.u32 %v2260, 16
      %v2581 = vor.u32 %v2578, %v2579
      %v2582 = vsel %vm2262, %v2574, %v2581
      %2615 = vst [vmem:[#allocation3] sm:$0xf] %v2275
      %2616 = vst [vmem:[#allocation3 + $0x24] sm:$0xf] %v2284
      %2617 = vst [vmem:[#allocation3 + $0x48] sm:$0xf] %v2293
      %2618 = vst [vmem:[#allocation3 + $0x6c] sm:$0xf] %v2302
      %2619 = vst [vmem:[#allocation3 + $0x90] sm:$0xf] %v2315
      %2620 = vst [vmem:[#allocation3 + $0xb4] sm:$0xf] %v2324
      %2621 = vst [vmem:[#allocation3 + $0xd8] sm:$0xf] %v2333
      %2622 = vst [vmem:[#allocation3 + $0xfc] sm:$0xf] %v2342
      %2623 = vst [vmem:[#allocation3 + $0x120] sm:$0xf] %v2355
      %2624 = vst [vmem:[#allocation3 + $0x144] sm:$0xf] %v2364
      %2625 = vst [vmem:[#allocation3 + $0x168] sm:$0xf] %v2373
      %2626 = vst [vmem:[#allocation3 + $0x18c] sm:$0xf] %v2382
      %2627 = vst [vmem:[#allocation3 + $0x1b0] sm:$0xf] %v2395
      %2628 = vst [vmem:[#allocation3 + $0x1d4] sm:$0xf] %v2404
      %2629 = vst [vmem:[#allocation3 + $0x1f8] sm:$0xf] %v2413
      %2630 = vst [vmem:[#allocation3 + $0x21c] sm:$0xf] %v2422
      %2631 = vst [vmem:[#allocation3 + $0x240] sm:$0xf] %v2435
      %2632 = vst [vmem:[#allocation3 + $0x264] sm:$0xf] %v2444
      %2633 = vst [vmem:[#allocation3 + $0x288] sm:$0xf] %v2453
      %2634 = vst [vmem:[#allocation3 + $0x2ac] sm:$0xf] %v2462
      %2635 = vst [vmem:[#allocation3 + $0x2d0] sm:$0xf] %v2475
      %2636 = vst [vmem:[#allocation3 + $0x2f4] sm:$0xf] %v2484
      %2637 = vst [vmem:[#allocation3 + $0x318] sm:$0xf] %v2493
      %2638 = vst [vmem:[#allocation3 + $0x33c] sm:$0xf] %v2502
      %2639 = vst [vmem:[#allocation3 + $0x360] sm:$0xf] %v2515
      %2640 = vst [vmem:[#allocation3 + $0x384] sm:$0xf] %v2524
      %2641 = vst [vmem:[#allocation3 + $0x3a8] sm:$0xf] %v2533
      %2642 = vst [vmem:[#allocation3 + $0x3cc] sm:$0xf] %v2542
      %2643 = vst [vmem:[#allocation3 + $0x3f0] sm:$0xf] %v2555
      %2644 = vst [vmem:[#allocation3 + $0x414] sm:$0xf] %v2564
      %2645 = vst [vmem:[#allocation3 + $0x438] sm:$0xf] %v2573
      %2646 = vst [vmem:[#allocation3 + $0x45c] sm:$0xf] %v2582
      %v2647 = vld [vmem:[#allocation2 + $0x4] sm:$0xf]
      %v2648 = vld [vmem:[#allocation2 + $0x8] sm:$0xf]
      %v2649 = vld [vmem:[#allocation2 + $0xc] sm:$0xf]
      %v2650 = vld [vmem:[#allocation2 + $0x10] sm:$0xf]
      %v2651 = vld [vmem:[#allocation2 + $0x1c] sm:$0xf]
      %v2652 = vld [vmem:[#allocation2 + $0x20] sm:$0xf]
      %v2653 = vld [vmem:[#allocation2 + $0x24] sm:$0xf]
      %v2654 = vld [vmem:[#allocation2 + $0x28] sm:$0xf]
      %v2655 = vld [vmem:[#allocation2 + $0x34] sm:$0xf]
      %v2656 = vld [vmem:[#allocation2 + $0x38] sm:$0xf]
      %v2657 = vld [vmem:[#allocation2 + $0x3c] sm:$0xf]
      %v2658 = vld [vmem:[#allocation2 + $0x40] sm:$0xf]
      %v2659 = vld [vmem:[#allocation2 + $0x4c] sm:$0xf]
      %v2660 = vld [vmem:[#allocation2 + $0x50] sm:$0xf]
      %v2661 = vld [vmem:[#allocation2 + $0x54] sm:$0xf]
      %v2662 = vld [vmem:[#allocation2 + $0x58] sm:$0xf]
      %v2663 = vld [vmem:[#allocation2 + $0x64] sm:$0xf]
      %v2664 = vld [vmem:[#allocation2 + $0x68] sm:$0xf]
      %v2665 = vld [vmem:[#allocation2 + $0x6c] sm:$0xf]
      %v2666 = vld [vmem:[#allocation2 + $0x70] sm:$0xf]
      %v2667 = vld [vmem:[#allocation2 + $0x7c] sm:$0xf]
      %v2668 = vld [vmem:[#allocation2 + $0x80] sm:$0xf]
      %v2669 = vld [vmem:[#allocation2 + $0x84] sm:$0xf]
      %v2670 = vld [vmem:[#allocation2 + $0x88] sm:$0xf]
      %v2671 = vld [vmem:[#allocation2 + $0x94] sm:$0xf]
      %v2672 = vld [vmem:[#allocation2 + $0x98] sm:$0xf]
      %v2673 = vld [vmem:[#allocation2 + $0x9c] sm:$0xf]
      %v2674 = vld [vmem:[#allocation2 + $0xa0] sm:$0xf]
      %v2675 = vld [vmem:[#allocation2 + $0xac] sm:$0xf]
      %v2676 = vld [vmem:[#allocation2 + $0xb0] sm:$0xf]
      %v2677 = vld [vmem:[#allocation2 + $0xb4] sm:$0xf]
      %v2678 = vld [vmem:[#allocation2 + $0xb8] sm:$0xf]
      %2679 = vst [vmem:[#allocation3 + $0x4] sm:$0xf] %v2647
      %2680 = vst [vmem:[#allocation3 + $0x28] sm:$0xf] %v2648
      %2681 = vst [vmem:[#allocation3 + $0x4c] sm:$0xf] %v2649
      %2682 = vst [vmem:[#allocation3 + $0x70] sm:$0xf] %v2650
      %2683 = vst [vmem:[#allocation3 + $0x94] sm:$0xf] %v2651
      %2684 = vst [vmem:[#allocation3 + $0xb8] sm:$0xf] %v2652
      %2685 = vst [vmem:[#allocation3 + $0xdc] sm:$0xf] %v2653
      %2686 = vst [vmem:[#allocation3 + $0x100] sm:$0xf] %v2654
      %2687 = vst [vmem:[#allocation3 + $0x124] sm:$0xf] %v2655
      %2688 = vst [vmem:[#allocation3 + $0x148] sm:$0xf] %v2656
      %2689 = vst [vmem:[#allocation3 + $0x16c] sm:$0xf] %v2657
      %2690 = vst [vmem:[#allocation3 + $0x190] sm:$0xf] %v2658
      %2691 = vst [vmem:[#allocation3 + $0x1b4] sm:$0xf] %v2659
      %2692 = vst [vmem:[#allocation3 + $0x1d8] sm:$0xf] %v2660
      %2693 = vst [vmem:[#allocation3 + $0x1fc] sm:$0xf] %v2661
      %2694 = vst [vmem:[#allocation3 + $0x220] sm:$0xf] %v2662
      %2695 = vst [vmem:[#allocation3 + $0x244] sm:$0xf] %v2663
      %2696 = vst [vmem:[#allocation3 + $0x268] sm:$0xf] %v2664
      %2697 = vst [vmem:[#allocation3 + $0x28c] sm:$0xf] %v2665
      %2698 = vst [vmem:[#allocation3 + $0x2b0] sm:$0xf] %v2666
      %2699 = vst [vmem:[#allocation3 + $0x2d4] sm:$0xf] %v2667
      %2700 = vst [vmem:[#allocation3 + $0x2f8] sm:$0xf] %v2668
      %2701 = vst [vmem:[#allocation3 + $0x31c] sm:$0xf] %v2669
      %2702 = vst [vmem:[#allocation3 + $0x340] sm:$0xf] %v2670
      %2703 = vst [vmem:[#allocation3 + $0x364] sm:$0xf] %v2671
      %2704 = vst [vmem:[#allocation3 + $0x388] sm:$0xf] %v2672
      %2705 = vst [vmem:[#allocation3 + $0x3ac] sm:$0xf] %v2673
      %2706 = vst [vmem:[#allocation3 + $0x3d0] sm:$0xf] %v2674
      %2707 = vst [vmem:[#allocation3 + $0x3f4] sm:$0xf] %v2675
      %2708 = vst [vmem:[#allocation3 + $0x418] sm:$0xf] %v2676
      %2709 = vst [vmem:[#allocation3 + $0x43c] sm:$0xf] %v2677
      %2710 = vst [vmem:[#allocation3 + $0x460] sm:$0xf] %v2678
      %v2711 = vld [vmem:[#allocation2 + $0x4] sm:$0xf]
      %v2712 = vld [vmem:[#allocation2 + $0x8] sm:$0xf]
      %v2713 = vld [vmem:[#allocation2 + $0xc] sm:$0xf]
      %v2714 = vld [vmem:[#allocation2 + $0x10] sm:$0xf]
      %v2715 = vld [vmem:[#allocation2 + $0x14] sm:$0x1]
      %v2716 = vld [vmem:[#allocation2 + $0x1c] sm:$0xf]
      %v2717 = vld [vmem:[#allocation2 + $0x20] sm:$0xf]
      %v2718 = vld [vmem:[#allocation2 + $0x24] sm:$0xf]
      %v2719 = vld [vmem:[#allocation2 + $0x28] sm:$0xf]
      %v2720 = vld [vmem:[#allocation2 + $0x2c] sm:$0x1]
      %v2721 = vld [vmem:[#allocation2 + $0x34] sm:$0xf]
      %v2722 = vld [vmem:[#allocation2 + $0x38] sm:$0xf]
      %v2723 = vld [vmem:[#allocation2 + $0x3c] sm:$0xf]
      %v2724 = vld [vmem:[#allocation2 + $0x40] sm:$0xf]
      %v2725 = vld [vmem:[#allocation2 + $0x44] sm:$0x1]
      %v2726 = vld [vmem:[#allocation2 + $0x4c] sm:$0xf]
      %v2727 = vld [vmem:[#allocation2 + $0x50] sm:$0xf]
      %v2728 = vld [vmem:[#allocation2 + $0x54] sm:$0xf]
      %v2729 = vld [vmem:[#allocation2 + $0x58] sm:$0xf]
      %v2730 = vld [vmem:[#allocation2 + $0x5c] sm:$0x1]
      %v2731 = vld [vmem:[#allocation2 + $0x64] sm:$0xf]
      %v2732 = vld [vmem:[#allocation2 + $0x68] sm:$0xf]
      %v2733 = vld [vmem:[#allocation2 + $0x6c] sm:$0xf]
      %v2734 = vld [vmem:[#allocation2 + $0x70] sm:$0xf]
      %v2735 = vld [vmem:[#allocation2 + $0x74] sm:$0x1]
      %v2736 = vld [vmem:[#allocation2 + $0x7c] sm:$0xf]
      %v2737 = vld [vmem:[#allocation2 + $0x80] sm:$0xf]
      %v2738 = vld [vmem:[#allocation2 + $0x84] sm:$0xf]
      %v2739 = vld [vmem:[#allocation2 + $0x88] sm:$0xf]
      %v2740 = vld [vmem:[#allocation2 + $0x8c] sm:$0x1]
      %v2741 = vld [vmem:[#allocation2 + $0x94] sm:$0xf]
      %v2742 = vld [vmem:[#allocation2 + $0x98] sm:$0xf]
      %v2743 = vld [vmem:[#allocation2 + $0x9c] sm:$0xf]
      %v2744 = vld [vmem:[#allocation2 + $0xa0] sm:$0xf]
      %v2745 = vld [vmem:[#allocation2 + $0xa4] sm:$0x1]
      %v2746 = vld [vmem:[#allocation2 + $0xac] sm:$0xf]
      %v2747 = vld [vmem:[#allocation2 + $0xb0] sm:$0xf]
      %v2748 = vld [vmem:[#allocation2 + $0xb4] sm:$0xf]
      %v2749 = vld [vmem:[#allocation2 + $0xb8] sm:$0xf]
      %v2750 = vld [vmem:[#allocation2 + $0xbc] sm:$0x1]
      %vm2751 = vsmask.f32 3328
      %vm2752 = vsmask.f32 7440
      %vm2753 = vmor %vm2751, %vm2752
      %v2755 = vshrl.u32 %v2711, 16
      %v2757 = vrot.slane %v2755, 4
      %v2758 = vshll.u32 %v2711, 16
      %v2760 = vrot.slane %v2758, 5
      %v2761 = vor.u32 %v2757, %v2760
      %v2762 = vrot.slane %v2761, 4
      %v2764 = vshll.u32 %v2712, 16
      %v2766 = vrot.slane %v2764, 5
      %v2767 = vsel %vm2753, %v2762, %v2766
      %v2768 = vshrl.u32 %v2712, 16
      %v2770 = vrot.slane %v2768, 4
      %v2771 = vor.u32 %v2770, %v2766
      %v2772 = vrot.slane %v2771, 4
      %v2774 = vshll.u32 %v2713, 16
      %v2776 = vrot.slane %v2774, 5
      %v2777 = vsel %vm2753, %v2772, %v2776
      %v2778 = vshrl.u32 %v2713, 16
      %v2780 = vrot.slane %v2778, 4
      %v2781 = vor.u32 %v2780, %v2776
      %v2782 = vrot.slane %v2781, 4
      %v2784 = vshll.u32 %v2714, 16
      %v2786 = vrot.slane %v2784, 5
      %v2787 = vsel %vm2753, %v2782, %v2786
      %v2788 = vshrl.u32 %v2714, 16
      %v2790 = vrot.slane %v2788, 4
      %v2791 = vor.u32 %v2790, %v2786
      %v2792 = vrot.slane %v2791, 4
      %v2794 = vshll.u32 %v2715, 16
      %v2796 = vrot.slane %v2794, 5
      %v2797 = vsel %vm2753, %v2792, %v2796
      %v2799 = vshrl.u32 %v2716, 16
      %v2801 = vrot.slane %v2799, 4
      %v2802 = vshll.u32 %v2716, 16
      %v2804 = vrot.slane %v2802, 5
      %v2805 = vor.u32 %v2801, %v2804
      %v2806 = vrot.slane %v2805, 4
      %v2808 = vshll.u32 %v2717, 16
      %v2810 = vrot.slane %v2808, 5
      %v2811 = vsel %vm2753, %v2806, %v2810
      %v2812 = vshrl.u32 %v2717, 16
      %v2814 = vrot.slane %v2812, 4
      %v2815 = vor.u32 %v2814, %v2810
      %v2816 = vrot.slane %v2815, 4
      %v2818 = vshll.u32 %v2718, 16
      %v2820 = vrot.slane %v2818, 5
      %v2821 = vsel %vm2753, %v2816, %v2820
      %v2822 = vshrl.u32 %v2718, 16
      %v2824 = vrot.slane %v2822, 4
      %v2825 = vor.u32 %v2824, %v2820
      %v2826 = vrot.slane %v2825, 4
      %v2828 = vshll.u32 %v2719, 16
      %v2830 = vrot.slane %v2828, 5
      %v2831 = vsel %vm2753, %v2826, %v2830
      %v2832 = vshrl.u32 %v2719, 16
      %v2834 = vrot.slane %v2832, 4
      %v2835 = vor.u32 %v2834, %v2830
      %v2836 = vrot.slane %v2835, 4
      %v2838 = vshll.u32 %v2720, 16
      %v2840 = vrot.slane %v2838, 5
      %v2841 = vsel %vm2753, %v2836, %v2840
      %v2843 = vshrl.u32 %v2721, 16
      %v2845 = vrot.slane %v2843, 4
      %v2846 = vshll.u32 %v2721, 16
      %v2848 = vrot.slane %v2846, 5
      %v2849 = vor.u32 %v2845, %v2848
      %v2850 = vrot.slane %v2849, 4
      %v2852 = vshll.u32 %v2722, 16
      %v2854 = vrot.slane %v2852, 5
      %v2855 = vsel %vm2753, %v2850, %v2854
      %v2856 = vshrl.u32 %v2722, 16
      %v2858 = vrot.slane %v2856, 4
      %v2859 = vor.u32 %v2858, %v2854
      %v2860 = vrot.slane %v2859, 4
      %v2862 = vshll.u32 %v2723, 16
      %v2864 = vrot.slane %v2862, 5
      %v2865 = vsel %vm2753, %v2860, %v2864
      %v2866 = vshrl.u32 %v2723, 16
      %v2868 = vrot.slane %v2866, 4
      %v2869 = vor.u32 %v2868, %v2864
      %v2870 = vrot.slane %v2869, 4
      %v2872 = vshll.u32 %v2724, 16
      %v2874 = vrot.slane %v2872, 5
      %v2875 = vsel %vm2753, %v2870, %v2874
      %v2876 = vshrl.u32 %v2724, 16
      %v2878 = vrot.slane %v2876, 4
      %v2879 = vor.u32 %v2878, %v2874
      %v2880 = vrot.slane %v2879, 4
      %v2882 = vshll.u32 %v2725, 16
      %v2884 = vrot.slane %v2882, 5
      %v2885 = vsel %vm2753, %v2880, %v2884
      %v2887 = vshrl.u32 %v2726, 16
      %v2889 = vrot.slane %v2887, 4
      %v2890 = vshll.u32 %v2726, 16
      %v2892 = vrot.slane %v2890, 5
      %v2893 = vor.u32 %v2889, %v2892
      %v2894 = vrot.slane %v2893, 4
      %v2896 = vshll.u32 %v2727, 16
      %v2898 = vrot.slane %v2896, 5
      %v2899 = vsel %vm2753, %v2894, %v2898
      %v2900 = vshrl.u32 %v2727, 16
      %v2902 = vrot.slane %v2900, 4
      %v2903 = vor.u32 %v2902, %v2898
      %v2904 = vrot.slane %v2903, 4
      %v2906 = vshll.u32 %v2728, 16
      %v2908 = vrot.slane %v2906, 5
      %v2909 = vsel %vm2753, %v2904, %v2908
      %v2910 = vshrl.u32 %v2728, 16
      %v2912 = vrot.slane %v2910, 4
      %v2913 = vor.u32 %v2912, %v2908
      %v2914 = vrot.slane %v2913, 4
      %v2916 = vshll.u32 %v2729, 16
      %v2918 = vrot.slane %v2916, 5
      %v2919 = vsel %vm2753, %v2914, %v2918
      %v2920 = vshrl.u32 %v2729, 16
      %v2922 = vrot.slane %v2920, 4
      %v2923 = vor.u32 %v2922, %v2918
      %v2924 = vrot.slane %v2923, 4
      %v2926 = vshll.u32 %v2730, 16
      %v2928 = vrot.slane %v2926, 5
      %v2929 = vsel %vm2753, %v2924, %v2928
      %v2931 = vshrl.u32 %v2731, 16
      %v2933 = vrot.slane %v2931, 4
      %v2934 = vshll.u32 %v2731, 16
      %v2936 = vrot.slane %v2934, 5
      %v2937 = vor.u32 %v2933, %v2936
      %v2938 = vrot.slane %v2937, 4
      %v2940 = vshll.u32 %v2732, 16
      %v2942 = vrot.slane %v2940, 5
      %v2943 = vsel %vm2753, %v2938, %v2942
      %v2944 = vshrl.u32 %v2732, 16
      %v2946 = vrot.slane %v2944, 4
      %v2947 = vor.u32 %v2946, %v2942
      %v2948 = vrot.slane %v2947, 4
      %v2950 = vshll.u32 %v2733, 16
      %v2952 = vrot.slane %v2950, 5
      %v2953 = vsel %vm2753, %v2948, %v2952
      %v2954 = vshrl.u32 %v2733, 16
      %v2956 = vrot.slane %v2954, 4
      %v2957 = vor.u32 %v2956, %v2952
      %v2958 = vrot.slane %v2957, 4
      %v2960 = vshll.u32 %v2734, 16
      %v2962 = vrot.slane %v2960, 5
      %v2963 = vsel %vm2753, %v2958, %v2962
      %v2964 = vshrl.u32 %v2734, 16
      %v2966 = vrot.slane %v2964, 4
      %v2967 = vor.u32 %v2966, %v2962
      %v2968 = vrot.slane %v2967, 4
      %v2970 = vshll.u32 %v2735, 16
      %v2972 = vrot.slane %v2970, 5
      %v2973 = vsel %vm2753, %v2968, %v2972
      %v2975 = vshrl.u32 %v2736, 16
      %v2977 = vrot.slane %v2975, 4
      %v2978 = vshll.u32 %v2736, 16
      %v2980 = vrot.slane %v2978, 5
      %v2981 = vor.u32 %v2977, %v2980
      %v2982 = vrot.slane %v2981, 4
      %v2984 = vshll.u32 %v2737, 16
      %v2986 = vrot.slane %v2984, 5
      %v2987 = vsel %vm2753, %v2982, %v2986
      %v2988 = vshrl.u32 %v2737, 16
      %v2990 = vrot.slane %v2988, 4
      %v2991 = vor.u32 %v2990, %v2986
      %v2992 = vrot.slane %v2991, 4
      %v2994 = vshll.u32 %v2738, 16
      %v2996 = vrot.slane %v2994, 5
      %v2997 = vsel %vm2753, %v2992, %v2996
      %v2998 = vshrl.u32 %v2738, 16
      %v3000 = vrot.slane %v2998, 4
      %v3001 = vor.u32 %v3000, %v2996
      %v3002 = vrot.slane %v3001, 4
      %v3004 = vshll.u32 %v2739, 16
      %v3006 = vrot.slane %v3004, 5
      %v3007 = vsel %vm2753, %v3002, %v3006
      %v3008 = vshrl.u32 %v2739, 16
      %v3010 = vrot.slane %v3008, 4
      %v3011 = vor.u32 %v3010, %v3006
      %v3012 = vrot.slane %v3011, 4
      %v3014 = vshll.u32 %v2740, 16
      %v3016 = vrot.slane %v3014, 5
      %v3017 = vsel %vm2753, %v3012, %v3016
      %v3019 = vshrl.u32 %v2741, 16
      %v3021 = vrot.slane %v3019, 4
      %v3022 = vshll.u32 %v2741, 16
      %v3024 = vrot.slane %v3022, 5
      %v3025 = vor.u32 %v3021, %v3024
      %v3026 = vrot.slane %v3025, 4
      %v3028 = vshll.u32 %v2742, 16
      %v3030 = vrot.slane %v3028, 5
      %v3031 = vsel %vm2753, %v3026, %v3030
      %v3032 = vshrl.u32 %v2742, 16
      %v3034 = vrot.slane %v3032, 4
      %v3035 = vor.u32 %v3034, %v3030
      %v3036 = vrot.slane %v3035, 4
      %v3038 = vshll.u32 %v2743, 16
      %v3040 = vrot.slane %v3038, 5
      %v3041 = vsel %vm2753, %v3036, %v3040
      %v3042 = vshrl.u32 %v2743, 16
      %v3044 = vrot.slane %v3042, 4
      %v3045 = vor.u32 %v3044, %v3040
      %v3046 = vrot.slane %v3045, 4
      %v3048 = vshll.u32 %v2744, 16
      %v3050 = vrot.slane %v3048, 5
      %v3051 = vsel %vm2753, %v3046, %v3050
      %v3052 = vshrl.u32 %v2744, 16
      %v3054 = vrot.slane %v3052, 4
      %v3055 = vor.u32 %v3054, %v3050
      %v3056 = vrot.slane %v3055, 4
      %v3058 = vshll.u32 %v2745, 16
      %v3060 = vrot.slane %v3058, 5
      %v3061 = vsel %vm2753, %v3056, %v3060
      %v3063 = vshrl.u32 %v2746, 16
      %v3065 = vrot.slane %v3063, 4
      %v3066 = vshll.u32 %v2746, 16
      %v3068 = vrot.slane %v3066, 5
      %v3069 = vor.u32 %v3065, %v3068
      %v3070 = vrot.slane %v3069, 4
      %v3072 = vshll.u32 %v2747, 16
      %v3074 = vrot.slane %v3072, 5
      %v3075 = vsel %vm2753, %v3070, %v3074
      %v3076 = vshrl.u32 %v2747, 16
      %v3078 = vrot.slane %v3076, 4
      %v3079 = vor.u32 %v3078, %v3074
      %v3080 = vrot.slane %v3079, 4
      %v3082 = vshll.u32 %v2748, 16
      %v3084 = vrot.slane %v3082, 5
      %v3085 = vsel %vm2753, %v3080, %v3084
      %v3086 = vshrl.u32 %v2748, 16
      %v3088 = vrot.slane %v3086, 4
      %v3089 = vor.u32 %v3088, %v3084
      %v3090 = vrot.slane %v3089, 4
      %v3092 = vshll.u32 %v2749, 16
      %v3094 = vrot.slane %v3092, 5
      %v3095 = vsel %vm2753, %v3090, %v3094
      %v3096 = vshrl.u32 %v2749, 16
      %v3098 = vrot.slane %v3096, 4
      %v3099 = vor.u32 %v3098, %v3094
      %v3100 = vrot.slane %v3099, 4
      %v3102 = vshll.u32 %v2750, 16
      %v3104 = vrot.slane %v3102, 5
      %v3105 = vsel %vm2753, %v3100, %v3104
      %3138 = vst [vmem:[#allocation3 + $0x8] sm:$0xf] %v2767
      %3139 = vst [vmem:[#allocation3 + $0x2c] sm:$0xf] %v2777
      %3140 = vst [vmem:[#allocation3 + $0x50] sm:$0xf] %v2787
      %3141 = vst [vmem:[#allocation3 + $0x74] sm:$0xf] %v2797
      %3142 = vst [vmem:[#allocation3 + $0x98] sm:$0xf] %v2811
      %3143 = vst [vmem:[#allocation3 + $0xbc] sm:$0xf] %v2821
      %3144 = vst [vmem:[#allocation3 + $0xe0] sm:$0xf] %v2831
      %3145 = vst [vmem:[#allocation3 + $0x104] sm:$0xf] %v2841
      %3146 = vst [vmem:[#allocation3 + $0x128] sm:$0xf] %v2855
      %3147 = vst [vmem:[#allocation3 + $0x14c] sm:$0xf] %v2865
      %3148 = vst [vmem:[#allocation3 + $0x170] sm:$0xf] %v2875
      %3149 = vst [vmem:[#allocation3 + $0x194] sm:$0xf] %v2885
      %3150 = vst [vmem:[#allocation3 + $0x1b8] sm:$0xf] %v2899
      %3151 = vst [vmem:[#allocation3 + $0x1dc] sm:$0xf] %v2909
      %3152 = vst [vmem:[#allocation3 + $0x200] sm:$0xf] %v2919
      %3153 = vst [vmem:[#allocation3 + $0x224] sm:$0xf] %v2929
      %3154 = vst [vmem:[#allocation3 + $0x248] sm:$0xf] %v2943
      %3155 = vst [vmem:[#allocation3 + $0x26c] sm:$0xf] %v2953
      %3156 = vst [vmem:[#allocation3 + $0x290] sm:$0xf] %v2963
      %3157 = vst [vmem:[#allocation3 + $0x2b4] sm:$0xf] %v2973
      %3158 = vst [vmem:[#allocation3 + $0x2d8] sm:$0xf] %v2987
      %3159 = vst [vmem:[#allocation3 + $0x2fc] sm:$0xf] %v2997
      %3160 = vst [vmem:[#allocation3 + $0x320] sm:$0xf] %v3007
      %3161 = vst [vmem:[#allocation3 + $0x344] sm:$0xf] %v3017
      %3162 = vst [vmem:[#allocation3 + $0x368] sm:$0xf] %v3031
      %3163 = vst [vmem:[#allocation3 + $0x38c] sm:$0xf] %v3041
      %3164 = vst [vmem:[#allocation3 + $0x3b0] sm:$0xf] %v3051
      %3165 = vst [vmem:[#allocation3 + $0x3d4] sm:$0xf] %v3061
      %3166 = vst [vmem:[#allocation3 + $0x3f8] sm:$0xf] %v3075
      %3167 = vst [vmem:[#allocation3 + $0x41c] sm:$0xf] %v3085
      %3168 = vst [vmem:[#allocation3 + $0x440] sm:$0xf] %v3095
      %3169 = vst [vmem:[#allocation3 + $0x464] sm:$0xf] %v3105
      %s3170 = scalar_lea.vmem [#allocation2], 24
      %v3171 = vld [vmem:[%s3170] sm:$0x8]
      %v3172 = vld [vmem:[%s3170 + $0x4] sm:$0xf]
      %v3173 = vld [vmem:[%s3170 + $0x8] sm:$0xf]
      %v3174 = vld [vmem:[%s3170 + $0xc] sm:$0xf]
      %v3175 = vld [vmem:[%s3170 + $0x10] sm:$0xf]
      %v3176 = vld [vmem:[%s3170 + $0x18] sm:$0x8]
      %v3177 = vld [vmem:[%s3170 + $0x1c] sm:$0xf]
      %v3178 = vld [vmem:[%s3170 + $0x20] sm:$0xf]
      %v3179 = vld [vmem:[%s3170 + $0x24] sm:$0xf]
      %v3180 = vld [vmem:[%s3170 + $0x28] sm:$0xf]
      %v3181 = vld [vmem:[%s3170 + $0x30] sm:$0x8]
      %v3182 = vld [vmem:[%s3170 + $0x34] sm:$0xf]
      %v3183 = vld [vmem:[%s3170 + $0x38] sm:$0xf]
      %v3184 = vld [vmem:[%s3170 + $0x3c] sm:$0xf]
      %v3185 = vld [vmem:[%s3170 + $0x40] sm:$0xf]
      %v3186 = vld [vmem:[%s3170 + $0x48] sm:$0x8]
      %v3187 = vld [vmem:[%s3170 + $0x4c] sm:$0xf]
      %v3188 = vld [vmem:[%s3170 + $0x50] sm:$0xf]
      %v3189 = vld [vmem:[%s3170 + $0x54] sm:$0xf]
      %v3190 = vld [vmem:[%s3170 + $0x58] sm:$0xf]
      %v3191 = vld [vmem:[%s3170 + $0x60] sm:$0x8]
      %v3192 = vld [vmem:[%s3170 + $0x64] sm:$0xf]
      %v3193 = vld [vmem:[%s3170 + $0x68] sm:$0xf]
      %v3194 = vld [vmem:[%s3170 + $0x6c] sm:$0xf]
      %v3195 = vld [vmem:[%s3170 + $0x70] sm:$0xf]
      %v3196 = vld [vmem:[%s3170 + $0x78] sm:$0x8]
      %v3197 = vld [vmem:[%s3170 + $0x7c] sm:$0xf]
      %v3198 = vld [vmem:[%s3170 + $0x80] sm:$0xf]
      %v3199 = vld [vmem:[%s3170 + $0x84] sm:$0xf]
      %v3200 = vld [vmem:[%s3170 + $0x88] sm:$0xf]
      %v3201 = vld [vmem:[%s3170 + $0x90] sm:$0x8]
      %v3202 = vld [vmem:[%s3170 + $0x94] sm:$0xf]
      %v3203 = vld [vmem:[%s3170 + $0x98] sm:$0xf]
      %v3204 = vld [vmem:[%s3170 + $0x9c] sm:$0xf]
      %v3205 = vld [vmem:[%s3170 + $0xa0] sm:$0xf]
      %v3206 = vld [vmem:[%s3170 + $0xa8] sm:$0x8]
      %v3207 = vld [vmem:[%s3170 + $0xac] sm:$0xf]
      %v3208 = vld [vmem:[%s3170 + $0xb0] sm:$0xf]
      %v3209 = vld [vmem:[%s3170 + $0xb4] sm:$0xf]
      %v3210 = vld [vmem:[%s3170 + $0xb8] sm:$0xf]
      %v3212 = vshrl.u32 %v3171, 16
      %v3214 = vrot.slane %v3212, 7
      %v3215 = vrot.slane %v3214, 4
      %v3217 = vshrl.u32 %v3172, 16
      %v3219 = vrot.slane %v3217, 7
      %v3220 = vshll.u32 %v3172, 16
      %v3222 = vor.u32 %v3219, %v3220
      %v3223 = vsel %vm2262, %v3215, %v3222
      %v3224 = vrot.slane %v3219, 4
      %v3226 = vshrl.u32 %v3173, 16
      %v3228 = vrot.slane %v3226, 7
      %v3229 = vshll.u32 %v3173, 16
      %v3231 = vor.u32 %v3228, %v3229
      %v3232 = vsel %vm2262, %v3224, %v3231
      %v3233 = vrot.slane %v3228, 4
      %v3235 = vshrl.u32 %v3174, 16
      %v3237 = vrot.slane %v3235, 7
      %v3238 = vshll.u32 %v3174, 16
      %v3240 = vor.u32 %v3237, %v3238
      %v3241 = vsel %vm2262, %v3233, %v3240
      %v3242 = vrot.slane %v3237, 4
      %v3244 = vshrl.u32 %v3175, 16
      %v3246 = vrot.slane %v3244, 7
      %v3247 = vshll.u32 %v3175, 16
      %v3249 = vor.u32 %v3246, %v3247
      %v3250 = vsel %vm2262, %v3242, %v3249
      %v3252 = vshrl.u32 %v3176, 16
      %v3254 = vrot.slane %v3252, 7
      %v3255 = vrot.slane %v3254, 4
      %v3257 = vshrl.u32 %v3177, 16
      %v3259 = vrot.slane %v3257, 7
      %v3260 = vshll.u32 %v3177, 16
      %v3262 = vor.u32 %v3259, %v3260
      %v3263 = vsel %vm2262, %v3255, %v3262
      %v3264 = vrot.slane %v3259, 4
      %v3266 = vshrl.u32 %v3178, 16
      %v3268 = vrot.slane %v3266, 7
      %v3269 = vshll.u32 %v3178, 16
      %v3271 = vor.u32 %v3268, %v3269
      %v3272 = vsel %vm2262, %v3264, %v3271
      %v3273 = vrot.slane %v3268, 4
      %v3275 = vshrl.u32 %v3179, 16
      %v3277 = vrot.slane %v3275, 7
      %v3278 = vshll.u32 %v3179, 16
      %v3280 = vor.u32 %v3277, %v3278
      %v3281 = vsel %vm2262, %v3273, %v3280
      %v3282 = vrot.slane %v3277, 4
      %v3284 = vshrl.u32 %v3180, 16
      %v3286 = vrot.slane %v3284, 7
      %v3287 = vshll.u32 %v3180, 16
      %v3289 = vor.u32 %v3286, %v3287
      %v3290 = vsel %vm2262, %v3282, %v3289
      %v3292 = vshrl.u32 %v3181, 16
      %v3294 = vrot.slane %v3292, 7
      %v3295 = vrot.slane %v3294, 4
      %v3297 = vshrl.u32 %v3182, 16
      %v3299 = vrot.slane %v3297, 7
      %v3300 = vshll.u32 %v3182, 16
      %v3302 = vor.u32 %v3299, %v3300
      %v3303 = vsel %vm2262, %v3295, %v3302
      %v3304 = vrot.slane %v3299, 4
      %v3306 = vshrl.u32 %v3183, 16
      %v3308 = vrot.slane %v3306, 7
      %v3309 = vshll.u32 %v3183, 16
      %v3311 = vor.u32 %v3308, %v3309
      %v3312 = vsel %vm2262, %v3304, %v3311
      %v3313 = vrot.slane %v3308, 4
      %v3315 = vshrl.u32 %v3184, 16
      %v3317 = vrot.slane %v3315, 7
      %v3318 = vshll.u32 %v3184, 16
      %v3320 = vor.u32 %v3317, %v3318
      %v3321 = vsel %vm2262, %v3313, %v3320
      %v3322 = vrot.slane %v3317, 4
      %v3324 = vshrl.u32 %v3185, 16
      %v3326 = vrot.slane %v3324, 7
      %v3327 = vshll.u32 %v3185, 16
      %v3329 = vor.u32 %v3326, %v3327
      %v3330 = vsel %vm2262, %v3322, %v3329
      %v3332 = vshrl.u32 %v3186, 16
      %v3334 = vrot.slane %v3332, 7
      %v3335 = vrot.slane %v3334, 4
      %v3337 = vshrl.u32 %v3187, 16
      %v3339 = vrot.slane %v3337, 7
      %v3340 = vshll.u32 %v3187, 16
      %v3342 = vor.u32 %v3339, %v3340
      %v3343 = vsel %vm2262, %v3335, %v3342
      %v3344 = vrot.slane %v3339, 4
      %v3346 = vshrl.u32 %v3188, 16
      %v3348 = vrot.slane %v3346, 7
      %v3349 = vshll.u32 %v3188, 16
      %v3351 = vor.u32 %v3348, %v3349
      %v3352 = vsel %vm2262, %v3344, %v3351
      %v3353 = vrot.slane %v3348, 4
      %v3355 = vshrl.u32 %v3189, 16
      %v3357 = vrot.slane %v3355, 7
      %v3358 = vshll.u32 %v3189, 16
      %v3360 = vor.u32 %v3357, %v3358
      %v3361 = vsel %vm2262, %v3353, %v3360
      %v3362 = vrot.slane %v3357, 4
      %v3364 = vshrl.u32 %v3190, 16
      %v3366 = vrot.slane %v3364, 7
      %v3367 = vshll.u32 %v3190, 16
      %v3369 = vor.u32 %v3366, %v3367
      %v3370 = vsel %vm2262, %v3362, %v3369
      %v3372 = vshrl.u32 %v3191, 16
      %v3374 = vrot.slane %v3372, 7
      %v3375 = vrot.slane %v3374, 4
      %v3377 = vshrl.u32 %v3192, 16
      %v3379 = vrot.slane %v3377, 7
      %v3380 = vshll.u32 %v3192, 16
      %v3382 = vor.u32 %v3379, %v3380
      %v3383 = vsel %vm2262, %v3375, %v3382
      %v3384 = vrot.slane %v3379, 4
      %v3386 = vshrl.u32 %v3193, 16
      %v3388 = vrot.slane %v3386, 7
      %v3389 = vshll.u32 %v3193, 16
      %v3391 = vor.u32 %v3388, %v3389
      %v3392 = vsel %vm2262, %v3384, %v3391
      %v3393 = vrot.slane %v3388, 4
      %v3395 = vshrl.u32 %v3194, 16
      %v3397 = vrot.slane %v3395, 7
      %v3398 = vshll.u32 %v3194, 16
      %v3400 = vor.u32 %v3397, %v3398
      %v3401 = vsel %vm2262, %v3393, %v3400
      %v3402 = vrot.slane %v3397, 4
      %v3404 = vshrl.u32 %v3195, 16
      %v3406 = vrot.slane %v3404, 7
      %v3407 = vshll.u32 %v3195, 16
      %v3409 = vor.u32 %v3406, %v3407
      %v3410 = vsel %vm2262, %v3402, %v3409
      %v3412 = vshrl.u32 %v3196, 16
      %v3414 = vrot.slane %v3412, 7
      %v3415 = vrot.slane %v3414, 4
      %v3417 = vshrl.u32 %v3197, 16
      %v3419 = vrot.slane %v3417, 7
      %v3420 = vshll.u32 %v3197, 16
      %v3422 = vor.u32 %v3419, %v3420
      %v3423 = vsel %vm2262, %v3415, %v3422
      %v3424 = vrot.slane %v3419, 4
      %v3426 = vshrl.u32 %v3198, 16
      %v3428 = vrot.slane %v3426, 7
      %v3429 = vshll.u32 %v3198, 16
      %v3431 = vor.u32 %v3428, %v3429
      %v3432 = vsel %vm2262, %v3424, %v3431
      %v3433 = vrot.slane %v3428, 4
      %v3435 = vshrl.u32 %v3199, 16
      %v3437 = vrot.slane %v3435, 7
      %v3438 = vshll.u32 %v3199, 16
      %v3440 = vor.u32 %v3437, %v3438
      %v3441 = vsel %vm2262, %v3433, %v3440
      %v3442 = vrot.slane %v3437, 4
      %v3444 = vshrl.u32 %v3200, 16
      %v3446 = vrot.slane %v3444, 7
      %v3447 = vshll.u32 %v3200, 16
      %v3449 = vor.u32 %v3446, %v3447
      %v3450 = vsel %vm2262, %v3442, %v3449
      %v3452 = vshrl.u32 %v3201, 16
      %v3454 = vrot.slane %v3452, 7
      %v3455 = vrot.slane %v3454, 4
      %v3457 = vshrl.u32 %v3202, 16
      %v3459 = vrot.slane %v3457, 7
      %v3460 = vshll.u32 %v3202, 16
      %v3462 = vor.u32 %v3459, %v3460
      %v3463 = vsel %vm2262, %v3455, %v3462
      %v3464 = vrot.slane %v3459, 4
      %v3466 = vshrl.u32 %v3203, 16
      %v3468 = vrot.slane %v3466, 7
      %v3469 = vshll.u32 %v3203, 16
      %v3471 = vor.u32 %v3468, %v3469
      %v3472 = vsel %vm2262, %v3464, %v3471
      %v3473 = vrot.slane %v3468, 4
      %v3475 = vshrl.u32 %v3204, 16
      %v3477 = vrot.slane %v3475, 7
      %v3478 = vshll.u32 %v3204, 16
      %v3480 = vor.u32 %v3477, %v3478
      %v3481 = vsel %vm2262, %v3473, %v3480
      %v3482 = vrot.slane %v3477, 4
      %v3484 = vshrl.u32 %v3205, 16
      %v3486 = vrot.slane %v3484, 7
      %v3487 = vshll.u32 %v3205, 16
      %v3489 = vor.u32 %v3486, %v3487
      %v3490 = vsel %vm2262, %v3482, %v3489
      %v3492 = vshrl.u32 %v3206, 16
      %v3494 = vrot.slane %v3492, 7
      %v3495 = vrot.slane %v3494, 4
      %v3497 = vshrl.u32 %v3207, 16
      %v3499 = vrot.slane %v3497, 7
      %v3500 = vshll.u32 %v3207, 16
      %v3502 = vor.u32 %v3499, %v3500
      %v3503 = vsel %vm2262, %v3495, %v3502
      %v3504 = vrot.slane %v3499, 4
      %v3506 = vshrl.u32 %v3208, 16
      %v3508 = vrot.slane %v3506, 7
      %v3509 = vshll.u32 %v3208, 16
      %v3511 = vor.u32 %v3508, %v3509
      %v3512 = vsel %vm2262, %v3504, %v3511
      %v3513 = vrot.slane %v3508, 4
      %v3515 = vshrl.u32 %v3209, 16
      %v3517 = vrot.slane %v3515, 7
      %v3518 = vshll.u32 %v3209, 16
      %v3520 = vor.u32 %v3517, %v3518
      %v3521 = vsel %vm2262, %v3513, %v3520
      %v3522 = vrot.slane %v3517, 4
      %v3524 = vshrl.u32 %v3210, 16
      %v3526 = vrot.slane %v3524, 7
      %v3527 = vshll.u32 %v3210, 16
      %v3529 = vor.u32 %v3526, %v3527
      %v3530 = vsel %vm2262, %v3522, %v3529
      %3563 = vst [vmem:[#allocation3 + $0xc] sm:$0xf] %v3223
      %3564 = vst [vmem:[#allocation3 + $0x30] sm:$0xf] %v3232
      %3565 = vst [vmem:[#allocation3 + $0x54] sm:$0xf] %v3241
      %3566 = vst [vmem:[#allocation3 + $0x78] sm:$0xf] %v3250
      %3567 = vst [vmem:[#allocation3 + $0x9c] sm:$0xf] %v3263
      %3568 = vst [vmem:[#allocation3 + $0xc0] sm:$0xf] %v3272
      %3569 = vst [vmem:[#allocation3 + $0xe4] sm:$0xf] %v3281
      %3570 = vst [vmem:[#allocation3 + $0x108] sm:$0xf] %v3290
      %3571 = vst [vmem:[#allocation3 + $0x12c] sm:$0xf] %v3303
      %3572 = vst [vmem:[#allocation3 + $0x150] sm:$0xf] %v3312
      %3573 = vst [vmem:[#allocation3 + $0x174] sm:$0xf] %v3321
      %3574 = vst [vmem:[#allocation3 + $0x198] sm:$0xf] %v3330
      %3575 = vst [vmem:[#allocation3 + $0x1bc] sm:$0xf] %v3343
      %3576 = vst [vmem:[#allocation3 + $0x1e0] sm:$0xf] %v3352
      %3577 = vst [vmem:[#allocation3 + $0x204] sm:$0xf] %v3361
      %3578 = vst [vmem:[#allocation3 + $0x228] sm:$0xf] %v3370
      %3579 = vst [vmem:[#allocation3 + $0x24c] sm:$0xf] %v3383
      %3580 = vst [vmem:[#allocation3 + $0x270] sm:$0xf] %v3392
      %3581 = vst [vmem:[#allocation3 + $0x294] sm:$0xf] %v3401
      %3582 = vst [vmem:[#allocation3 + $0x2b8] sm:$0xf] %v3410
      %3583 = vst [vmem:[#allocation3 + $0x2dc] sm:$0xf] %v3423
      %3584 = vst [vmem:[#allocation3 + $0x300] sm:$0xf] %v3432
      %3585 = vst [vmem:[#allocation3 + $0x324] sm:$0xf] %v3441
      %3586 = vst [vmem:[#allocation3 + $0x348] sm:$0xf] %v3450
      %3587 = vst [vmem:[#allocation3 + $0x36c] sm:$0xf] %v3463
      %3588 = vst [vmem:[#allocation3 + $0x390] sm:$0xf] %v3472
      %3589 = vst [vmem:[#allocation3 + $0x3b4] sm:$0xf] %v3481
      %3590 = vst [vmem:[#allocation3 + $0x3d8] sm:$0xf] %v3490
      %3591 = vst [vmem:[#allocation3 + $0x3fc] sm:$0xf] %v3503
      %3592 = vst [vmem:[#allocation3 + $0x420] sm:$0xf] %v3512
      %3593 = vst [vmem:[#allocation3 + $0x444] sm:$0xf] %v3521
      %3594 = vst [vmem:[#allocation3 + $0x468] sm:$0xf] %v3530
      %v3595 = vld [vmem:[%s3170 + $0x4] sm:$0xf]
      %v3596 = vld [vmem:[%s3170 + $0x8] sm:$0xf]
      %v3597 = vld [vmem:[%s3170 + $0xc] sm:$0xf]
      %v3598 = vld [vmem:[%s3170 + $0x10] sm:$0xf]
      %v3599 = vld [vmem:[%s3170 + $0x1c] sm:$0xf]
      %v3600 = vld [vmem:[%s3170 + $0x20] sm:$0xf]
      %v3601 = vld [vmem:[%s3170 + $0x24] sm:$0xf]
      %v3602 = vld [vmem:[%s3170 + $0x28] sm:$0xf]
      %v3603 = vld [vmem:[%s3170 + $0x34] sm:$0xf]
      %v3604 = vld [vmem:[%s3170 + $0x38] sm:$0xf]
      %v3605 = vld [vmem:[%s3170 + $0x3c] sm:$0xf]
      %v3606 = vld [vmem:[%s3170 + $0x40] sm:$0xf]
      %v3607 = vld [vmem:[%s3170 + $0x4c] sm:$0xf]
      %v3608 = vld [vmem:[%s3170 + $0x50] sm:$0xf]
      %v3609 = vld [vmem:[%s3170 + $0x54] sm:$0xf]
      %v3610 = vld [vmem:[%s3170 + $0x58] sm:$0xf]
      %v3611 = vld [vmem:[%s3170 + $0x64] sm:$0xf]
      %v3612 = vld [vmem:[%s3170 + $0x68] sm:$0xf]
      %v3613 = vld [vmem:[%s3170 + $0x6c] sm:$0xf]
      %v3614 = vld [vmem:[%s3170 + $0x70] sm:$0xf]
      %v3615 = vld [vmem:[%s3170 + $0x7c] sm:$0xf]
      %v3616 = vld [vmem:[%s3170 + $0x80] sm:$0xf]
      %v3617 = vld [vmem:[%s3170 + $0x84] sm:$0xf]
      %v3618 = vld [vmem:[%s3170 + $0x88] sm:$0xf]
      %v3619 = vld [vmem:[%s3170 + $0x94] sm:$0xf]
      %v3620 = vld [vmem:[%s3170 + $0x98] sm:$0xf]
      %v3621 = vld [vmem:[%s3170 + $0x9c] sm:$0xf]
      %v3622 = vld [vmem:[%s3170 + $0xa0] sm:$0xf]
      %v3623 = vld [vmem:[%s3170 + $0xac] sm:$0xf]
      %v3624 = vld [vmem:[%s3170 + $0xb0] sm:$0xf]
      %v3625 = vld [vmem:[%s3170 + $0xb4] sm:$0xf]
      %v3626 = vld [vmem:[%s3170 + $0xb8] sm:$0xf]
      %3627 = vst [vmem:[#allocation3 + $0x10] sm:$0xf] %v3595
      %3628 = vst [vmem:[#allocation3 + $0x34] sm:$0xf] %v3596
      %3629 = vst [vmem:[#allocation3 + $0x58] sm:$0xf] %v3597
      %3630 = vst [vmem:[#allocation3 + $0x7c] sm:$0xf] %v3598
      %3631 = vst [vmem:[#allocation3 + $0xa0] sm:$0xf] %v3599
      %3632 = vst [vmem:[#allocation3 + $0xc4] sm:$0xf] %v3600
      %3633 = vst [vmem:[#allocation3 + $0xe8] sm:$0xf] %v3601
      %3634 = vst [vmem:[#allocation3 + $0x10c] sm:$0xf] %v3602
      %3635 = vst [vmem:[#allocation3 + $0x130] sm:$0xf] %v3603
      %3636 = vst [vmem:[#allocation3 + $0x154] sm:$0xf] %v3604
      %3637 = vst [vmem:[#allocation3 + $0x178] sm:$0xf] %v3605
      %3638 = vst [vmem:[#allocation3 + $0x19c] sm:$0xf] %v3606
      %3639 = vst [vmem:[#allocation3 + $0x1c0] sm:$0xf] %v3607
      %3640 = vst [vmem:[#allocation3 + $0x1e4] sm:$0xf] %v3608
      %3641 = vst [vmem:[#allocation3 + $0x208] sm:$0xf] %v3609
      %3642 = vst [vmem:[#allocation3 + $0x22c] sm:$0xf] %v3610
      %3643 = vst [vmem:[#allocation3 + $0x250] sm:$0xf] %v3611
      %3644 = vst [vmem:[#allocation3 + $0x274] sm:$0xf] %v3612
      %3645 = vst [vmem:[#allocation3 + $0x298] sm:$0xf] %v3613
      %3646 = vst [vmem:[#allocation3 + $0x2bc] sm:$0xf] %v3614
      %3647 = vst [vmem:[#allocation3 + $0x2e0] sm:$0xf] %v3615
      %3648 = vst [vmem:[#allocation3 + $0x304] sm:$0xf] %v3616
      %3649 = vst [vmem:[#allocation3 + $0x328] sm:$0xf] %v3617
      %3650 = vst [vmem:[#allocation3 + $0x34c] sm:$0xf] %v3618
      %3651 = vst [vmem:[#allocation3 + $0x370] sm:$0xf] %v3619
      %3652 = vst [vmem:[#allocation3 + $0x394] sm:$0xf] %v3620
      %3653 = vst [vmem:[#allocation3 + $0x3b8] sm:$0xf] %v3621
      %3654 = vst [vmem:[#allocation3 + $0x3dc] sm:$0xf] %v3622
      %3655 = vst [vmem:[#allocation3 + $0x400] sm:$0xf] %v3623
      %3656 = vst [vmem:[#allocation3 + $0x424] sm:$0xf] %v3624
      %3657 = vst [vmem:[#allocation3 + $0x448] sm:$0xf] %v3625
      %3658 = vst [vmem:[#allocation3 + $0x46c] sm:$0xf] %v3626
      %v3659 = vld [vmem:[%s3170 + $0x4] sm:$0xf]
      %v3660 = vld [vmem:[%s3170 + $0x8] sm:$0xf]
      %v3661 = vld [vmem:[%s3170 + $0xc] sm:$0xf]
      %v3662 = vld [vmem:[%s3170 + $0x10] sm:$0xf]
      %v3663 = vld [vmem:[%s3170 + $0x14] sm:$0x1]
      %v3664 = vld [vmem:[%s3170 + $0x1c] sm:$0xf]
      %v3665 = vld [vmem:[%s3170 + $0x20] sm:$0xf]
      %v3666 = vld [vmem:[%s3170 + $0x24] sm:$0xf]
      %v3667 = vld [vmem:[%s3170 + $0x28] sm:$0xf]
      %v3668 = vld [vmem:[%s3170 + $0x2c] sm:$0x1]
      %v3669 = vld [vmem:[%s3170 + $0x34] sm:$0xf]
      %v3670 = vld [vmem:[%s3170 + $0x38] sm:$0xf]
      %v3671 = vld [vmem:[%s3170 + $0x3c] sm:$0xf]
      %v3672 = vld [vmem:[%s3170 + $0x40] sm:$0xf]
      %v3673 = vld [vmem:[%s3170 + $0x44] sm:$0x1]
      %v3674 = vld [vmem:[%s3170 + $0x4c] sm:$0xf]
      %v3675 = vld [vmem:[%s3170 + $0x50] sm:$0xf]
      %v3676 = vld [vmem:[%s3170 + $0x54] sm:$0xf]
      %v3677 = vld [vmem:[%s3170 + $0x58] sm:$0xf]
      %v3678 = vld [vmem:[%s3170 + $0x5c] sm:$0x1]
      %v3679 = vld [vmem:[%s3170 + $0x64] sm:$0xf]
      %v3680 = vld [vmem:[%s3170 + $0x68] sm:$0xf]
      %v3681 = vld [vmem:[%s3170 + $0x6c] sm:$0xf]
      %v3682 = vld [vmem:[%s3170 + $0x70] sm:$0xf]
      %v3683 = vld [vmem:[%s3170 + $0x74] sm:$0x1]
      %v3684 = vld [vmem:[%s3170 + $0x7c] sm:$0xf]
      %v3685 = vld [vmem:[%s3170 + $0x80] sm:$0xf]
      %v3686 = vld [vmem:[%s3170 + $0x84] sm:$0xf]
      %v3687 = vld [vmem:[%s3170 + $0x88] sm:$0xf]
      %v3688 = vld [vmem:[%s3170 + $0x8c] sm:$0x1]
      %v3689 = vld [vmem:[%s3170 + $0x94] sm:$0xf]
      %v3690 = vld [vmem:[%s3170 + $0x98] sm:$0xf]
      %v3691 = vld [vmem:[%s3170 + $0x9c] sm:$0xf]
      %v3692 = vld [vmem:[%s3170 + $0xa0] sm:$0xf]
      %v3693 = vld [vmem:[%s3170 + $0xa4] sm:$0x1]
      %v3694 = vld [vmem:[%s3170 + $0xac] sm:$0xf]
      %v3695 = vld [vmem:[%s3170 + $0xb0] sm:$0xf]
      %v3696 = vld [vmem:[%s3170 + $0xb4] sm:$0xf]
      %v3697 = vld [vmem:[%s3170 + $0xb8] sm:$0xf]
      %v3698 = vld [vmem:[%s3170 + $0xbc] sm:$0x1]
      %v3700 = vshrl.u32 %v3659, 16
      %v3702 = vrot.slane %v3700, 4
      %v3703 = vshll.u32 %v3659, 16
      %v3705 = vrot.slane %v3703, 5
      %v3706 = vor.u32 %v3702, %v3705
      %v3707 = vrot.slane %v3706, 4
      %v3709 = vshll.u32 %v3660, 16
      %v3711 = vrot.slane %v3709, 5
      %v3712 = vsel %vm2753, %v3707, %v3711
      %v3713 = vshrl.u32 %v3660, 16
      %v3715 = vrot.slane %v3713, 4
      %v3716 = vor.u32 %v3715, %v3711
      %v3717 = vrot.slane %v3716, 4
      %v3719 = vshll.u32 %v3661, 16
      %v3721 = vrot.slane %v3719, 5
      %v3722 = vsel %vm2753, %v3717, %v3721
      %v3723 = vshrl.u32 %v3661, 16
      %v3725 = vrot.slane %v3723, 4
      %v3726 = vor.u32 %v3725, %v3721
      %v3727 = vrot.slane %v3726, 4
      %v3729 = vshll.u32 %v3662, 16
      %v3731 = vrot.slane %v3729, 5
      %v3732 = vsel %vm2753, %v3727, %v3731
      %v3733 = vshrl.u32 %v3662, 16
      %v3735 = vrot.slane %v3733, 4
      %v3736 = vor.u32 %v3735, %v3731
      %v3737 = vrot.slane %v3736, 4
      %v3739 = vshll.u32 %v3663, 16
      %v3741 = vrot.slane %v3739, 5
      %v3742 = vsel %vm2753, %v3737, %v3741
      %v3744 = vshrl.u32 %v3664, 16
      %v3746 = vrot.slane %v3744, 4
      %v3747 = vshll.u32 %v3664, 16
      %v3749 = vrot.slane %v3747, 5
      %v3750 = vor.u32 %v3746, %v3749
      %v3751 = vrot.slane %v3750, 4
      %v3753 = vshll.u32 %v3665, 16
      %v3755 = vrot.slane %v3753, 5
      %v3756 = vsel %vm2753, %v3751, %v3755
      %v3757 = vshrl.u32 %v3665, 16
      %v3759 = vrot.slane %v3757, 4
      %v3760 = vor.u32 %v3759, %v3755
      %v3761 = vrot.slane %v3760, 4
      %v3763 = vshll.u32 %v3666, 16
      %v3765 = vrot.slane %v3763, 5
      %v3766 = vsel %vm2753, %v3761, %v3765
      %v3767 = vshrl.u32 %v3666, 16
      %v3769 = vrot.slane %v3767, 4
      %v3770 = vor.u32 %v3769, %v3765
      %v3771 = vrot.slane %v3770, 4
      %v3773 = vshll.u32 %v3667, 16
      %v3775 = vrot.slane %v3773, 5
      %v3776 = vsel %vm2753, %v3771, %v3775
      %v3777 = vshrl.u32 %v3667, 16
      %v3779 = vrot.slane %v3777, 4
      %v3780 = vor.u32 %v3779, %v3775
      %v3781 = vrot.slane %v3780, 4
      %v3783 = vshll.u32 %v3668, 16
      %v3785 = vrot.slane %v3783, 5
      %v3786 = vsel %vm2753, %v3781, %v3785
      %v3788 = vshrl.u32 %v3669, 16
      %v3790 = vrot.slane %v3788, 4
      %v3791 = vshll.u32 %v3669, 16
      %v3793 = vrot.slane %v3791, 5
      %v3794 = vor.u32 %v3790, %v3793
      %v3795 = vrot.slane %v3794, 4
      %v3797 = vshll.u32 %v3670, 16
      %v3799 = vrot.slane %v3797, 5
      %v3800 = vsel %vm2753, %v3795, %v3799
      %v3801 = vshrl.u32 %v3670, 16
      %v3803 = vrot.slane %v3801, 4
      %v3804 = vor.u32 %v3803, %v3799
      %v3805 = vrot.slane %v3804, 4
      %v3807 = vshll.u32 %v3671, 16
      %v3809 = vrot.slane %v3807, 5
      %v3810 = vsel %vm2753, %v3805, %v3809
      %v3811 = vshrl.u32 %v3671, 16
      %v3813 = vrot.slane %v3811, 4
      %v3814 = vor.u32 %v3813, %v3809
      %v3815 = vrot.slane %v3814, 4
      %v3817 = vshll.u32 %v3672, 16
      %v3819 = vrot.slane %v3817, 5
      %v3820 = vsel %vm2753, %v3815, %v3819
      %v3821 = vshrl.u32 %v3672, 16
      %v3823 = vrot.slane %v3821, 4
      %v3824 = vor.u32 %v3823, %v3819
      %v3825 = vrot.slane %v3824, 4
      %v3827 = vshll.u32 %v3673, 16
      %v3829 = vrot.slane %v3827, 5
      %v3830 = vsel %vm2753, %v3825, %v3829
      %v3832 = vshrl.u32 %v3674, 16
      %v3834 = vrot.slane %v3832, 4
      %v3835 = vshll.u32 %v3674, 16
      %v3837 = vrot.slane %v3835, 5
      %v3838 = vor.u32 %v3834, %v3837
      %v3839 = vrot.slane %v3838, 4
      %v3841 = vshll.u32 %v3675, 16
      %v3843 = vrot.slane %v3841, 5
      %v3844 = vsel %vm2753, %v3839, %v3843
      %v3845 = vshrl.u32 %v3675, 16
      %v3847 = vrot.slane %v3845, 4
      %v3848 = vor.u32 %v3847, %v3843
      %v3849 = vrot.slane %v3848, 4
      %v3851 = vshll.u32 %v3676, 16
      %v3853 = vrot.slane %v3851, 5
      %v3854 = vsel %vm2753, %v3849, %v3853
      %v3855 = vshrl.u32 %v3676, 16
      %v3857 = vrot.slane %v3855, 4
      %v3858 = vor.u32 %v3857, %v3853
      %v3859 = vrot.slane %v3858, 4
      %v3861 = vshll.u32 %v3677, 16
      %v3863 = vrot.slane %v3861, 5
      %v3864 = vsel %vm2753, %v3859, %v3863
      %v3865 = vshrl.u32 %v3677, 16
      %v3867 = vrot.slane %v3865, 4
      %v3868 = vor.u32 %v3867, %v3863
      %v3869 = vrot.slane %v3868, 4
      %v3871 = vshll.u32 %v3678, 16
      %v3873 = vrot.slane %v3871, 5
      %v3874 = vsel %vm2753, %v3869, %v3873
      %v3876 = vshrl.u32 %v3679, 16
      %v3878 = vrot.slane %v3876, 4
      %v3879 = vshll.u32 %v3679, 16
      %v3881 = vrot.slane %v3879, 5
      %v3882 = vor.u32 %v3878, %v3881
      %v3883 = vrot.slane %v3882, 4
      %v3885 = vshll.u32 %v3680, 16
      %v3887 = vrot.slane %v3885, 5
      %v3888 = vsel %vm2753, %v3883, %v3887
      %v3889 = vshrl.u32 %v3680, 16
      %v3891 = vrot.slane %v3889, 4
      %v3892 = vor.u32 %v3891, %v3887
      %v3893 = vrot.slane %v3892, 4
      %v3895 = vshll.u32 %v3681, 16
      %v3897 = vrot.slane %v3895, 5
      %v3898 = vsel %vm2753, %v3893, %v3897
      %v3899 = vshrl.u32 %v3681, 16
      %v3901 = vrot.slane %v3899, 4
      %v3902 = vor.u32 %v3901, %v3897
      %v3903 = vrot.slane %v3902, 4
      %v3905 = vshll.u32 %v3682, 16
      %v3907 = vrot.slane %v3905, 5
      %v3908 = vsel %vm2753, %v3903, %v3907
      %v3909 = vshrl.u32 %v3682, 16
      %v3911 = vrot.slane %v3909, 4
      %v3912 = vor.u32 %v3911, %v3907
      %v3913 = vrot.slane %v3912, 4
      %v3915 = vshll.u32 %v3683, 16
      %v3917 = vrot.slane %v3915, 5
      %v3918 = vsel %vm2753, %v3913, %v3917
      %v3920 = vshrl.u32 %v3684, 16
      %v3922 = vrot.slane %v3920, 4
      %v3923 = vshll.u32 %v3684, 16
      %v3925 = vrot.slane %v3923, 5
      %v3926 = vor.u32 %v3922, %v3925
      %v3927 = vrot.slane %v3926, 4
      %v3929 = vshll.u32 %v3685, 16
      %v3931 = vrot.slane %v3929, 5
      %v3932 = vsel %vm2753, %v3927, %v3931
      %v3933 = vshrl.u32 %v3685, 16
      %v3935 = vrot.slane %v3933, 4
      %v3936 = vor.u32 %v3935, %v3931
      %v3937 = vrot.slane %v3936, 4
      %v3939 = vshll.u32 %v3686, 16
      %v3941 = vrot.slane %v3939, 5
      %v3942 = vsel %vm2753, %v3937, %v3941
      %v3943 = vshrl.u32 %v3686, 16
      %v3945 = vrot.slane %v3943, 4
      %v3946 = vor.u32 %v3945, %v3941
      %v3947 = vrot.slane %v3946, 4
      %v3949 = vshll.u32 %v3687, 16
      %v3951 = vrot.slane %v3949, 5
      %v3952 = vsel %vm2753, %v3947, %v3951
      %v3953 = vshrl.u32 %v3687, 16
      %v3955 = vrot.slane %v3953, 4
      %v3956 = vor.u32 %v3955, %v3951
      %v3957 = vrot.slane %v3956, 4
      %v3959 = vshll.u32 %v3688, 16
      %v3961 = vrot.slane %v3959, 5
      %v3962 = vsel %vm2753, %v3957, %v3961
      %v3964 = vshrl.u32 %v3689, 16
      %v3966 = vrot.slane %v3964, 4
      %v3967 = vshll.u32 %v3689, 16
      %v3969 = vrot.slane %v3967, 5
      %v3970 = vor.u32 %v3966, %v3969
      %v3971 = vrot.slane %v3970, 4
      %v3973 = vshll.u32 %v3690, 16
      %v3975 = vrot.slane %v3973, 5
      %v3976 = vsel %vm2753, %v3971, %v3975
      %v3977 = vshrl.u32 %v3690, 16
      %v3979 = vrot.slane %v3977, 4
      %v3980 = vor.u32 %v3979, %v3975
      %v3981 = vrot.slane %v3980, 4
      %v3983 = vshll.u32 %v3691, 16
      %v3985 = vrot.slane %v3983, 5
      %v3986 = vsel %vm2753, %v3981, %v3985
      %v3987 = vshrl.u32 %v3691, 16
      %v3989 = vrot.slane %v3987, 4
      %v3990 = vor.u32 %v3989, %v3985
      %v3991 = vrot.slane %v3990, 4
      %v3993 = vshll.u32 %v3692, 16
      %v3995 = vrot.slane %v3993, 5
      %v3996 = vsel %vm2753, %v3991, %v3995
      %v3997 = vshrl.u32 %v3692, 16
      %v3999 = vrot.slane %v3997, 4
      %v4000 = vor.u32 %v3999, %v3995
      %v4001 = vrot.slane %v4000, 4
      %v4003 = vshll.u32 %v3693, 16
      %v4005 = vrot.slane %v4003, 5
      %v4006 = vsel %vm2753, %v4001, %v4005
      %v4008 = vshrl.u32 %v3694, 16
      %v4010 = vrot.slane %v4008, 4
      %v4011 = vshll.u32 %v3694, 16
      %v4013 = vrot.slane %v4011, 5
      %v4014 = vor.u32 %v4010, %v4013
      %v4015 = vrot.slane %v4014, 4
      %v4017 = vshll.u32 %v3695, 16
      %v4019 = vrot.slane %v4017, 5
      %v4020 = vsel %vm2753, %v4015, %v4019
      %v4021 = vshrl.u32 %v3695, 16
      %v4023 = vrot.slane %v4021, 4
      %v4024 = vor.u32 %v4023, %v4019
      %v4025 = vrot.slane %v4024, 4
      %v4027 = vshll.u32 %v3696, 16
      %v4029 = vrot.slane %v4027, 5
      %v4030 = vsel %vm2753, %v4025, %v4029
      %v4031 = vshrl.u32 %v3696, 16
      %v4033 = vrot.slane %v4031, 4
      %v4034 = vor.u32 %v4033, %v4029
      %v4035 = vrot.slane %v4034, 4
      %v4037 = vshll.u32 %v3697, 16
      %v4039 = vrot.slane %v4037, 5
      %v4040 = vsel %vm2753, %v4035, %v4039
      %v4041 = vshrl.u32 %v3697, 16
      %v4043 = vrot.slane %v4041, 4
      %v4044 = vor.u32 %v4043, %v4039
      %v4045 = vrot.slane %v4044, 4
      %v4047 = vshll.u32 %v3698, 16
      %v4049 = vrot.slane %v4047, 5
      %v4050 = vsel %vm2753, %v4045, %v4049
      %4083 = vst [vmem:[#allocation3 + $0x14] sm:$0xf] %v3712
      %4084 = vst [vmem:[#allocation3 + $0x38] sm:$0xf] %v3722
      %4085 = vst [vmem:[#allocation3 + $0x5c] sm:$0xf] %v3732
      %4086 = vst [vmem:[#allocation3 + $0x80] sm:$0xf] %v3742
      %4087 = vst [vmem:[#allocation3 + $0xa4] sm:$0xf] %v3756
      %4088 = vst [vmem:[#allocation3 + $0xc8] sm:$0xf] %v3766
      %4089 = vst [vmem:[#allocation3 + $0xec] sm:$0xf] %v3776
      %4090 = vst [vmem:[#allocation3 + $0x110] sm:$0xf] %v3786
      %4091 = vst [vmem:[#allocation3 + $0x134] sm:$0xf] %v3800
      %4092 = vst [vmem:[#allocation3 + $0x158] sm:$0xf] %v3810
      %4093 = vst [vmem:[#allocation3 + $0x17c] sm:$0xf] %v3820
      %4094 = vst [vmem:[#allocation3 + $0x1a0] sm:$0xf] %v3830
      %4095 = vst [vmem:[#allocation3 + $0x1c4] sm:$0xf] %v3844
      %4096 = vst [vmem:[#allocation3 + $0x1e8] sm:$0xf] %v3854
      %4097 = vst [vmem:[#allocation3 + $0x20c] sm:$0xf] %v3864
      %4098 = vst [vmem:[#allocation3 + $0x230] sm:$0xf] %v3874
      %4099 = vst [vmem:[#allocation3 + $0x254] sm:$0xf] %v3888
      %4100 = vst [vmem:[#allocation3 + $0x278] sm:$0xf] %v3898
      %4101 = vst [vmem:[#allocation3 + $0x29c] sm:$0xf] %v3908
      %4102 = vst [vmem:[#allocation3 + $0x2c0] sm:$0xf] %v3918
      %4103 = vst [vmem:[#allocation3 + $0x2e4] sm:$0xf] %v3932
      %4104 = vst [vmem:[#allocation3 + $0x308] sm:$0xf] %v3942
      %4105 = vst [vmem:[#allocation3 + $0x32c] sm:$0xf] %v3952
      %4106 = vst [vmem:[#allocation3 + $0x350] sm:$0xf] %v3962
      %4107 = vst [vmem:[#allocation3 + $0x374] sm:$0xf] %v3976
      %4108 = vst [vmem:[#allocation3 + $0x398] sm:$0xf] %v3986
      %4109 = vst [vmem:[#allocation3 + $0x3bc] sm:$0xf] %v3996
      %4110 = vst [vmem:[#allocation3 + $0x3e0] sm:$0xf] %v4006
      %4111 = vst [vmem:[#allocation3 + $0x404] sm:$0xf] %v4020
      %4112 = vst [vmem:[#allocation3 + $0x428] sm:$0xf] %v4030
      %4113 = vst [vmem:[#allocation3 + $0x44c] sm:$0xf] %v4040
      %4114 = vst [vmem:[#allocation3 + $0x470] sm:$0xf] %v4050
      %s4115 = scalar_lea.vmem [#allocation2], 48
      %v4116 = vld [vmem:[%s4115] sm:$0x8]
      %v4117 = vld [vmem:[%s4115 + $0x4] sm:$0xf]
      %v4118 = vld [vmem:[%s4115 + $0x8] sm:$0xf]
      %v4119 = vld [vmem:[%s4115 + $0xc] sm:$0xf]
      %v4120 = vld [vmem:[%s4115 + $0x10] sm:$0xf]
      %v4121 = vld [vmem:[%s4115 + $0x18] sm:$0x8]
      %v4122 = vld [vmem:[%s4115 + $0x1c] sm:$0xf]
      %v4123 = vld [vmem:[%s4115 + $0x20] sm:$0xf]
      %v4124 = vld [vmem:[%s4115 + $0x24] sm:$0xf]
      %v4125 = vld [vmem:[%s4115 + $0x28] sm:$0xf]
      %v4126 = vld [vmem:[%s4115 + $0x30] sm:$0x8]
      %v4127 = vld [vmem:[%s4115 + $0x34] sm:$0xf]
      %v4128 = vld [vmem:[%s4115 + $0x38] sm:$0xf]
      %v4129 = vld [vmem:[%s4115 + $0x3c] sm:$0xf]
      %v4130 = vld [vmem:[%s4115 + $0x40] sm:$0xf]
      %v4131 = vld [vmem:[%s4115 + $0x48] sm:$0x8]
      %v4132 = vld [vmem:[%s4115 + $0x4c] sm:$0xf]
      %v4133 = vld [vmem:[%s4115 + $0x50] sm:$0xf]
      %v4134 = vld [vmem:[%s4115 + $0x54] sm:$0xf]
      %v4135 = vld [vmem:[%s4115 + $0x58] sm:$0xf]
      %v4136 = vld [vmem:[%s4115 + $0x60] sm:$0x8]
      %v4137 = vld [vmem:[%s4115 + $0x64] sm:$0xf]
      %v4138 = vld [vmem:[%s4115 + $0x68] sm:$0xf]
      %v4139 = vld [vmem:[%s4115 + $0x6c] sm:$0xf]
      %v4140 = vld [vmem:[%s4115 + $0x70] sm:$0xf]
      %v4141 = vld [vmem:[%s4115 + $0x78] sm:$0x8]
      %v4142 = vld [vmem:[%s4115 + $0x7c] sm:$0xf]
      %v4143 = vld [vmem:[%s4115 + $0x80] sm:$0xf]
      %v4144 = vld [vmem:[%s4115 + $0x84] sm:$0xf]
      %v4145 = vld [vmem:[%s4115 + $0x88] sm:$0xf]
      %v4146 = vld [vmem:[%s4115 + $0x90] sm:$0x8]
      %v4147 = vld [vmem:[%s4115 + $0x94] sm:$0xf]
      %v4148 = vld [vmem:[%s4115 + $0x98] sm:$0xf]
      %v4149 = vld [vmem:[%s4115 + $0x9c] sm:$0xf]
      %v4150 = vld [vmem:[%s4115 + $0xa0] sm:$0xf]
      %v4151 = vld [vmem:[%s4115 + $0xa8] sm:$0x8]
      %v4152 = vld [vmem:[%s4115 + $0xac] sm:$0xf]
      %v4153 = vld [vmem:[%s4115 + $0xb0] sm:$0xf]
      %v4154 = vld [vmem:[%s4115 + $0xb4] sm:$0xf]
      %v4155 = vld [vmem:[%s4115 + $0xb8] sm:$0xf]
      %v4157 = vshrl.u32 %v4116, 16
      %v4159 = vrot.slane %v4157, 7
      %v4160 = vrot.slane %v4159, 4
      %v4162 = vshrl.u32 %v4117, 16
      %v4164 = vrot.slane %v4162, 7
      %v4165 = vshll.u32 %v4117, 16
      %v4167 = vor.u32 %v4164, %v4165
      %v4168 = vsel %vm2262, %v4160, %v4167
      %v4169 = vrot.slane %v4164, 4
      %v4171 = vshrl.u32 %v4118, 16
      %v4173 = vrot.slane %v4171, 7
      %v4174 = vshll.u32 %v4118, 16
      %v4176 = vor.u32 %v4173, %v4174
      %v4177 = vsel %vm2262, %v4169, %v4176
      %v4178 = vrot.slane %v4173, 4
      %v4180 = vshrl.u32 %v4119, 16
      %v4182 = vrot.slane %v4180, 7
      %v4183 = vshll.u32 %v4119, 16
      %v4185 = vor.u32 %v4182, %v4183
      %v4186 = vsel %vm2262, %v4178, %v4185
      %v4187 = vrot.slane %v4182, 4
      %v4189 = vshrl.u32 %v4120, 16
      %v4191 = vrot.slane %v4189, 7
      %v4192 = vshll.u32 %v4120, 16
      %v4194 = vor.u32 %v4191, %v4192
      %v4195 = vsel %vm2262, %v4187, %v4194
      %v4197 = vshrl.u32 %v4121, 16
      %v4199 = vrot.slane %v4197, 7
      %v4200 = vrot.slane %v4199, 4
      %v4202 = vshrl.u32 %v4122, 16
      %v4204 = vrot.slane %v4202, 7
      %v4205 = vshll.u32 %v4122, 16
      %v4207 = vor.u32 %v4204, %v4205
      %v4208 = vsel %vm2262, %v4200, %v4207
      %v4209 = vrot.slane %v4204, 4
      %v4211 = vshrl.u32 %v4123, 16
      %v4213 = vrot.slane %v4211, 7
      %v4214 = vshll.u32 %v4123, 16
      %v4216 = vor.u32 %v4213, %v4214
      %v4217 = vsel %vm2262, %v4209, %v4216
      %v4218 = vrot.slane %v4213, 4
      %v4220 = vshrl.u32 %v4124, 16
      %v4222 = vrot.slane %v4220, 7
      %v4223 = vshll.u32 %v4124, 16
      %v4225 = vor.u32 %v4222, %v4223
      %v4226 = vsel %vm2262, %v4218, %v4225
      %v4227 = vrot.slane %v4222, 4
      %v4229 = vshrl.u32 %v4125, 16
      %v4231 = vrot.slane %v4229, 7
      %v4232 = vshll.u32 %v4125, 16
      %v4234 = vor.u32 %v4231, %v4232
      %v4235 = vsel %vm2262, %v4227, %v4234
      %v4237 = vshrl.u32 %v4126, 16
      %v4239 = vrot.slane %v4237, 7
      %v4240 = vrot.slane %v4239, 4
      %v4242 = vshrl.u32 %v4127, 16
      %v4244 = vrot.slane %v4242, 7
      %v4245 = vshll.u32 %v4127, 16
      %v4247 = vor.u32 %v4244, %v4245
      %v4248 = vsel %vm2262, %v4240, %v4247
      %v4249 = vrot.slane %v4244, 4
      %v4251 = vshrl.u32 %v4128, 16
      %v4253 = vrot.slane %v4251, 7
      %v4254 = vshll.u32 %v4128, 16
      %v4256 = vor.u32 %v4253, %v4254
      %v4257 = vsel %vm2262, %v4249, %v4256
      %v4258 = vrot.slane %v4253, 4
      %v4260 = vshrl.u32 %v4129, 16
      %v4262 = vrot.slane %v4260, 7
      %v4263 = vshll.u32 %v4129, 16
      %v4265 = vor.u32 %v4262, %v4263
      %v4266 = vsel %vm2262, %v4258, %v4265
      %v4267 = vrot.slane %v4262, 4
      %v4269 = vshrl.u32 %v4130, 16
      %v4271 = vrot.slane %v4269, 7
      %v4272 = vshll.u32 %v4130, 16
      %v4274 = vor.u32 %v4271, %v4272
      %v4275 = vsel %vm2262, %v4267, %v4274
      %v4277 = vshrl.u32 %v4131, 16
      %v4279 = vrot.slane %v4277, 7
      %v4280 = vrot.slane %v4279, 4
      %v4282 = vshrl.u32 %v4132, 16
      %v4284 = vrot.slane %v4282, 7
      %v4285 = vshll.u32 %v4132, 16
      %v4287 = vor.u32 %v4284, %v4285
      %v4288 = vsel %vm2262, %v4280, %v4287
      %v4289 = vrot.slane %v4284, 4
      %v4291 = vshrl.u32 %v4133, 16
      %v4293 = vrot.slane %v4291, 7
      %v4294 = vshll.u32 %v4133, 16
      %v4296 = vor.u32 %v4293, %v4294
      %v4297 = vsel %vm2262, %v4289, %v4296
      %v4298 = vrot.slane %v4293, 4
      %v4300 = vshrl.u32 %v4134, 16
      %v4302 = vrot.slane %v4300, 7
      %v4303 = vshll.u32 %v4134, 16
      %v4305 = vor.u32 %v4302, %v4303
      %v4306 = vsel %vm2262, %v4298, %v4305
      %v4307 = vrot.slane %v4302, 4
      %v4309 = vshrl.u32 %v4135, 16
      %v4311 = vrot.slane %v4309, 7
      %v4312 = vshll.u32 %v4135, 16
      %v4314 = vor.u32 %v4311, %v4312
      %v4315 = vsel %vm2262, %v4307, %v4314
      %v4317 = vshrl.u32 %v4136, 16
      %v4319 = vrot.slane %v4317, 7
      %v4320 = vrot.slane %v4319, 4
      %v4322 = vshrl.u32 %v4137, 16
      %v4324 = vrot.slane %v4322, 7
      %v4325 = vshll.u32 %v4137, 16
      %v4327 = vor.u32 %v4324, %v4325
      %v4328 = vsel %vm2262, %v4320, %v4327
      %v4329 = vrot.slane %v4324, 4
      %v4331 = vshrl.u32 %v4138, 16
      %v4333 = vrot.slane %v4331, 7
      %v4334 = vshll.u32 %v4138, 16
      %v4336 = vor.u32 %v4333, %v4334
      %v4337 = vsel %vm2262, %v4329, %v4336
      %v4338 = vrot.slane %v4333, 4
      %v4340 = vshrl.u32 %v4139, 16
      %v4342 = vrot.slane %v4340, 7
      %v4343 = vshll.u32 %v4139, 16
      %v4345 = vor.u32 %v4342, %v4343
      %v4346 = vsel %vm2262, %v4338, %v4345
      %v4347 = vrot.slane %v4342, 4
      %v4349 = vshrl.u32 %v4140, 16
      %v4351 = vrot.slane %v4349, 7
      %v4352 = vshll.u32 %v4140, 16
      %v4354 = vor.u32 %v4351, %v4352
      %v4355 = vsel %vm2262, %v4347, %v4354
      %v4357 = vshrl.u32 %v4141, 16
      %v4359 = vrot.slane %v4357, 7
      %v4360 = vrot.slane %v4359, 4
      %v4362 = vshrl.u32 %v4142, 16
      %v4364 = vrot.slane %v4362, 7
      %v4365 = vshll.u32 %v4142, 16
      %v4367 = vor.u32 %v4364, %v4365
      %v4368 = vsel %vm2262, %v4360, %v4367
      %v4369 = vrot.slane %v4364, 4
      %v4371 = vshrl.u32 %v4143, 16
      %v4373 = vrot.slane %v4371, 7
      %v4374 = vshll.u32 %v4143, 16
      %v4376 = vor.u32 %v4373, %v4374
      %v4377 = vsel %vm2262, %v4369, %v4376
      %v4378 = vrot.slane %v4373, 4
      %v4380 = vshrl.u32 %v4144, 16
      %v4382 = vrot.slane %v4380, 7
      %v4383 = vshll.u32 %v4144, 16
      %v4385 = vor.u32 %v4382, %v4383
      %v4386 = vsel %vm2262, %v4378, %v4385
      %v4387 = vrot.slane %v4382, 4
      %v4389 = vshrl.u32 %v4145, 16
      %v4391 = vrot.slane %v4389, 7
      %v4392 = vshll.u32 %v4145, 16
      %v4394 = vor.u32 %v4391, %v4392
      %v4395 = vsel %vm2262, %v4387, %v4394
      %v4397 = vshrl.u32 %v4146, 16
      %v4399 = vrot.slane %v4397, 7
      %v4400 = vrot.slane %v4399, 4
      %v4402 = vshrl.u32 %v4147, 16
      %v4404 = vrot.slane %v4402, 7
      %v4405 = vshll.u32 %v4147, 16
      %v4407 = vor.u32 %v4404, %v4405
      %v4408 = vsel %vm2262, %v4400, %v4407
      %v4409 = vrot.slane %v4404, 4
      %v4411 = vshrl.u32 %v4148, 16
      %v4413 = vrot.slane %v4411, 7
      %v4414 = vshll.u32 %v4148, 16
      %v4416 = vor.u32 %v4413, %v4414
      %v4417 = vsel %vm2262, %v4409, %v4416
      %v4418 = vrot.slane %v4413, 4
      %v4420 = vshrl.u32 %v4149, 16
      %v4422 = vrot.slane %v4420, 7
      %v4423 = vshll.u32 %v4149, 16
      %v4425 = vor.u32 %v4422, %v4423
      %v4426 = vsel %vm2262, %v4418, %v4425
      %v4427 = vrot.slane %v4422, 4
      %v4429 = vshrl.u32 %v4150, 16
      %v4431 = vrot.slane %v4429, 7
      %v4432 = vshll.u32 %v4150, 16
      %v4434 = vor.u32 %v4431, %v4432
      %v4435 = vsel %vm2262, %v4427, %v4434
      %v4437 = vshrl.u32 %v4151, 16
      %v4439 = vrot.slane %v4437, 7
      %v4440 = vrot.slane %v4439, 4
      %v4442 = vshrl.u32 %v4152, 16
      %v4444 = vrot.slane %v4442, 7
      %v4445 = vshll.u32 %v4152, 16
      %v4447 = vor.u32 %v4444, %v4445
      %v4448 = vsel %vm2262, %v4440, %v4447
      %v4449 = vrot.slane %v4444, 4
      %v4451 = vshrl.u32 %v4153, 16
      %v4453 = vrot.slane %v4451, 7
      %v4454 = vshll.u32 %v4153, 16
      %v4456 = vor.u32 %v4453, %v4454
      %v4457 = vsel %vm2262, %v4449, %v4456
      %v4458 = vrot.slane %v4453, 4
      %v4460 = vshrl.u32 %v4154, 16
      %v4462 = vrot.slane %v4460, 7
      %v4463 = vshll.u32 %v4154, 16
      %v4465 = vor.u32 %v4462, %v4463
      %v4466 = vsel %vm2262, %v4458, %v4465
      %v4467 = vrot.slane %v4462, 4
      %v4469 = vshrl.u32 %v4155, 16
      %v4471 = vrot.slane %v4469, 7
      %v4472 = vshll.u32 %v4155, 16
      %v4474 = vor.u32 %v4471, %v4472
      %v4475 = vsel %vm2262, %v4467, %v4474
      %4508 = vst [vmem:[#allocation3 + $0x18] sm:$0xf] %v4168
      %4509 = vst [vmem:[#allocation3 + $0x3c] sm:$0xf] %v4177
      %4510 = vst [vmem:[#allocation3 + $0x60] sm:$0xf] %v4186
      %4511 = vst [vmem:[#allocation3 + $0x84] sm:$0xf] %v4195
      %4512 = vst [vmem:[#allocation3 + $0xa8] sm:$0xf] %v4208
      %4513 = vst [vmem:[#allocation3 + $0xcc] sm:$0xf] %v4217
      %4514 = vst [vmem:[#allocation3 + $0xf0] sm:$0xf] %v4226
      %4515 = vst [vmem:[#allocation3 + $0x114] sm:$0xf] %v4235
      %4516 = vst [vmem:[#allocation3 + $0x138] sm:$0xf] %v4248
      %4517 = vst [vmem:[#allocation3 + $0x15c] sm:$0xf] %v4257
      %4518 = vst [vmem:[#allocation3 + $0x180] sm:$0xf] %v4266
      %4519 = vst [vmem:[#allocation3 + $0x1a4] sm:$0xf] %v4275
      %4520 = vst [vmem:[#allocation3 + $0x1c8] sm:$0xf] %v4288
      %4521 = vst [vmem:[#allocation3 + $0x1ec] sm:$0xf] %v4297
      %4522 = vst [vmem:[#allocation3 + $0x210] sm:$0xf] %v4306
      %4523 = vst [vmem:[#allocation3 + $0x234] sm:$0xf] %v4315
      %4524 = vst [vmem:[#allocation3 + $0x258] sm:$0xf] %v4328
      %4525 = vst [vmem:[#allocation3 + $0x27c] sm:$0xf] %v4337
      %4526 = vst [vmem:[#allocation3 + $0x2a0] sm:$0xf] %v4346
      %4527 = vst [vmem:[#allocation3 + $0x2c4] sm:$0xf] %v4355
      %4528 = vst [vmem:[#allocation3 + $0x2e8] sm:$0xf] %v4368
      %4529 = vst [vmem:[#allocation3 + $0x30c] sm:$0xf] %v4377
      %4530 = vst [vmem:[#allocation3 + $0x330] sm:$0xf] %v4386
      %4531 = vst [vmem:[#allocation3 + $0x354] sm:$0xf] %v4395
      %4532 = vst [vmem:[#allocation3 + $0x378] sm:$0xf] %v4408
      %4533 = vst [vmem:[#allocation3 + $0x39c] sm:$0xf] %v4417
      %4534 = vst [vmem:[#allocation3 + $0x3c0] sm:$0xf] %v4426
      %4535 = vst [vmem:[#allocation3 + $0x3e4] sm:$0xf] %v4435
      %4536 = vst [vmem:[#allocation3 + $0x408] sm:$0xf] %v4448
      %4537 = vst [vmem:[#allocation3 + $0x42c] sm:$0xf] %v4457
      %4538 = vst [vmem:[#allocation3 + $0x450] sm:$0xf] %v4466
      %4539 = vst [vmem:[#allocation3 + $0x474] sm:$0xf] %v4475
      %v4540 = vld [vmem:[%s4115 + $0x4] sm:$0xf]
      %v4541 = vld [vmem:[%s4115 + $0x8] sm:$0xf]
      %v4542 = vld [vmem:[%s4115 + $0xc] sm:$0xf]
      %v4543 = vld [vmem:[%s4115 + $0x10] sm:$0xf]
      %v4544 = vld [vmem:[%s4115 + $0x1c] sm:$0xf]
      %v4545 = vld [vmem:[%s4115 + $0x20] sm:$0xf]
      %v4546 = vld [vmem:[%s4115 + $0x24] sm:$0xf]
      %v4547 = vld [vmem:[%s4115 + $0x28] sm:$0xf]
      %v4548 = vld [vmem:[%s4115 + $0x34] sm:$0xf]
      %v4549 = vld [vmem:[%s4115 + $0x38] sm:$0xf]
      %v4550 = vld [vmem:[%s4115 + $0x3c] sm:$0xf]
      %v4551 = vld [vmem:[%s4115 + $0x40] sm:$0xf]
      %v4552 = vld [vmem:[%s4115 + $0x4c] sm:$0xf]
      %v4553 = vld [vmem:[%s4115 + $0x50] sm:$0xf]
      %v4554 = vld [vmem:[%s4115 + $0x54] sm:$0xf]
      %v4555 = vld [vmem:[%s4115 + $0x58] sm:$0xf]
      %v4556 = vld [vmem:[%s4115 + $0x64] sm:$0xf]
      %v4557 = vld [vmem:[%s4115 + $0x68] sm:$0xf]
      %v4558 = vld [vmem:[%s4115 + $0x6c] sm:$0xf]
      %v4559 = vld [vmem:[%s4115 + $0x70] sm:$0xf]
      %v4560 = vld [vmem:[%s4115 + $0x7c] sm:$0xf]
      %v4561 = vld [vmem:[%s4115 + $0x80] sm:$0xf]
      %v4562 = vld [vmem:[%s4115 + $0x84] sm:$0xf]
      %v4563 = vld [vmem:[%s4115 + $0x88] sm:$0xf]
      %v4564 = vld [vmem:[%s4115 + $0x94] sm:$0xf]
      %v4565 = vld [vmem:[%s4115 + $0x98] sm:$0xf]
      %v4566 = vld [vmem:[%s4115 + $0x9c] sm:$0xf]
      %v4567 = vld [vmem:[%s4115 + $0xa0] sm:$0xf]
      %v4568 = vld [vmem:[%s4115 + $0xac] sm:$0xf]
      %v4569 = vld [vmem:[%s4115 + $0xb0] sm:$0xf]
      %v4570 = vld [vmem:[%s4115 + $0xb4] sm:$0xf]
      %v4571 = vld [vmem:[%s4115 + $0xb8] sm:$0xf]
      %4572 = vst [vmem:[#allocation3 + $0x1c] sm:$0xf] %v4540
      %4573 = vst [vmem:[#allocation3 + $0x40] sm:$0xf] %v4541
      %4574 = vst [vmem:[#allocation3 + $0x64] sm:$0xf] %v4542
      %4575 = vst [vmem:[#allocation3 + $0x88] sm:$0xf] %v4543
      %4576 = vst [vmem:[#allocation3 + $0xac] sm:$0xf] %v4544
      %4577 = vst [vmem:[#allocation3 + $0xd0] sm:$0xf] %v4545
      %4578 = vst [vmem:[#allocation3 + $0xf4] sm:$0xf] %v4546
      %4579 = vst [vmem:[#allocation3 + $0x118] sm:$0xf] %v4547
      %4580 = vst [vmem:[#allocation3 + $0x13c] sm:$0xf] %v4548
      %4581 = vst [vmem:[#allocation3 + $0x160] sm:$0xf] %v4549
      %4582 = vst [vmem:[#allocation3 + $0x184] sm:$0xf] %v4550
      %4583 = vst [vmem:[#allocation3 + $0x1a8] sm:$0xf] %v4551
      %4584 = vst [vmem:[#allocation3 + $0x1cc] sm:$0xf] %v4552
      %4585 = vst [vmem:[#allocation3 + $0x1f0] sm:$0xf] %v4553
      %4586 = vst [vmem:[#allocation3 + $0x214] sm:$0xf] %v4554
      %4587 = vst [vmem:[#allocation3 + $0x238] sm:$0xf] %v4555
      %4588 = vst [vmem:[#allocation3 + $0x25c] sm:$0xf] %v4556
      %4589 = vst [vmem:[#allocation3 + $0x280] sm:$0xf] %v4557
      %4590 = vst [vmem:[#allocation3 + $0x2a4] sm:$0xf] %v4558
      %4591 = vst [vmem:[#allocation3 + $0x2c8] sm:$0xf] %v4559
      %4592 = vst [vmem:[#allocation3 + $0x2ec] sm:$0xf] %v4560
      %4593 = vst [vmem:[#allocation3 + $0x310] sm:$0xf] %v4561
      %4594 = vst [vmem:[#allocation3 + $0x334] sm:$0xf] %v4562
      %4595 = vst [vmem:[#allocation3 + $0x358] sm:$0xf] %v4563
      %4596 = vst [vmem:[#allocation3 + $0x37c] sm:$0xf] %v4564
      %4597 = vst [vmem:[#allocation3 + $0x3a0] sm:$0xf] %v4565
      %4598 = vst [vmem:[#allocation3 + $0x3c4] sm:$0xf] %v4566
      %4599 = vst [vmem:[#allocation3 + $0x3e8] sm:$0xf] %v4567
      %4600 = vst [vmem:[#allocation3 + $0x40c] sm:$0xf] %v4568
      %4601 = vst [vmem:[#allocation3 + $0x430] sm:$0xf] %v4569
      %4602 = vst [vmem:[#allocation3 + $0x454] sm:$0xf] %v4570
      %4603 = vst [vmem:[#allocation3 + $0x478] sm:$0xf] %v4571
      %v4604 = vld [vmem:[%s4115 + $0x4] sm:$0xf]
      %v4605 = vld [vmem:[%s4115 + $0x8] sm:$0xf]
      %v4606 = vld [vmem:[%s4115 + $0xc] sm:$0xf]
      %v4607 = vld [vmem:[%s4115 + $0x10] sm:$0xf]
      %v4608 = vld [vmem:[%s4115 + $0x14] sm:$0x1]
      %v4609 = vld [vmem:[%s4115 + $0x1c] sm:$0xf]
      %v4610 = vld [vmem:[%s4115 + $0x20] sm:$0xf]
      %v4611 = vld [vmem:[%s4115 + $0x24] sm:$0xf]
      %v4612 = vld [vmem:[%s4115 + $0x28] sm:$0xf]
      %v4613 = vld [vmem:[%s4115 + $0x2c] sm:$0x1]
      %v4614 = vld [vmem:[%s4115 + $0x34] sm:$0xf]
      %v4615 = vld [vmem:[%s4115 + $0x38] sm:$0xf]
      %v4616 = vld [vmem:[%s4115 + $0x3c] sm:$0xf]
      %v4617 = vld [vmem:[%s4115 + $0x40] sm:$0xf]
      %v4618 = vld [vmem:[%s4115 + $0x44] sm:$0x1]
      %v4619 = vld [vmem:[%s4115 + $0x4c] sm:$0xf]
      %v4620 = vld [vmem:[%s4115 + $0x50] sm:$0xf]
      %v4621 = vld [vmem:[%s4115 + $0x54] sm:$0xf]
      %v4622 = vld [vmem:[%s4115 + $0x58] sm:$0xf]
      %v4623 = vld [vmem:[%s4115 + $0x5c] sm:$0x1]
      %v4624 = vld [vmem:[%s4115 + $0x64] sm:$0xf]
      %v4625 = vld [vmem:[%s4115 + $0x68] sm:$0xf]
      %v4626 = vld [vmem:[%s4115 + $0x6c] sm:$0xf]
      %v4627 = vld [vmem:[%s4115 + $0x70] sm:$0xf]
      %v4628 = vld [vmem:[%s4115 + $0x74] sm:$0x1]
      %v4629 = vld [vmem:[%s4115 + $0x7c] sm:$0xf]
      %v4630 = vld [vmem:[%s4115 + $0x80] sm:$0xf]
      %v4631 = vld [vmem:[%s4115 + $0x84] sm:$0xf]
      %v4632 = vld [vmem:[%s4115 + $0x88] sm:$0xf]
      %v4633 = vld [vmem:[%s4115 + $0x8c] sm:$0x1]
      %v4634 = vld [vmem:[%s4115 + $0x94] sm:$0xf]
      %v4635 = vld [vmem:[%s4115 + $0x98] sm:$0xf]
      %v4636 = vld [vmem:[%s4115 + $0x9c] sm:$0xf]
      %v4637 = vld [vmem:[%s4115 + $0xa0] sm:$0xf]
      %v4638 = vld [vmem:[%s4115 + $0xa4] sm:$0x1]
      %v4639 = vld [vmem:[%s4115 + $0xac] sm:$0xf]
      %v4640 = vld [vmem:[%s4115 + $0xb0] sm:$0xf]
      %v4641 = vld [vmem:[%s4115 + $0xb4] sm:$0xf]
      %v4642 = vld [vmem:[%s4115 + $0xb8] sm:$0xf]
      %v4643 = vld [vmem:[%s4115 + $0xbc] sm:$0x1]
      %v4645 = vshrl.u32 %v4604, 16
      %v4647 = vrot.slane %v4645, 4
      %v4648 = vshll.u32 %v4604, 16
      %v4650 = vrot.slane %v4648, 5
      %v4651 = vor.u32 %v4647, %v4650
      %v4652 = vrot.slane %v4651, 4
      %v4654 = vshll.u32 %v4605, 16
      %v4656 = vrot.slane %v4654, 5
      %v4657 = vsel %vm2753, %v4652, %v4656
      %v4658 = vshrl.u32 %v4605, 16
      %v4660 = vrot.slane %v4658, 4
      %v4661 = vor.u32 %v4660, %v4656
      %v4662 = vrot.slane %v4661, 4
      %v4664 = vshll.u32 %v4606, 16
      %v4666 = vrot.slane %v4664, 5
      %v4667 = vsel %vm2753, %v4662, %v4666
      %v4668 = vshrl.u32 %v4606, 16
      %v4670 = vrot.slane %v4668, 4
      %v4671 = vor.u32 %v4670, %v4666
      %v4672 = vrot.slane %v4671, 4
      %v4674 = vshll.u32 %v4607, 16
      %v4676 = vrot.slane %v4674, 5
      %v4677 = vsel %vm2753, %v4672, %v4676
      %v4678 = vshrl.u32 %v4607, 16
      %v4680 = vrot.slane %v4678, 4
      %v4681 = vor.u32 %v4680, %v4676
      %v4682 = vrot.slane %v4681, 4
      %v4684 = vshll.u32 %v4608, 16
      %v4686 = vrot.slane %v4684, 5
      %v4687 = vsel %vm2753, %v4682, %v4686
      %v4689 = vshrl.u32 %v4609, 16
      %v4691 = vrot.slane %v4689, 4
      %v4692 = vshll.u32 %v4609, 16
      %v4694 = vrot.slane %v4692, 5
      %v4695 = vor.u32 %v4691, %v4694
      %v4696 = vrot.slane %v4695, 4
      %v4698 = vshll.u32 %v4610, 16
      %v4700 = vrot.slane %v4698, 5
      %v4701 = vsel %vm2753, %v4696, %v4700
      %v4702 = vshrl.u32 %v4610, 16
      %v4704 = vrot.slane %v4702, 4
      %v4705 = vor.u32 %v4704, %v4700
      %v4706 = vrot.slane %v4705, 4
      %v4708 = vshll.u32 %v4611, 16
      %v4710 = vrot.slane %v4708, 5
      %v4711 = vsel %vm2753, %v4706, %v4710
      %v4712 = vshrl.u32 %v4611, 16
      %v4714 = vrot.slane %v4712, 4
      %v4715 = vor.u32 %v4714, %v4710
      %v4716 = vrot.slane %v4715, 4
      %v4718 = vshll.u32 %v4612, 16
      %v4720 = vrot.slane %v4718, 5
      %v4721 = vsel %vm2753, %v4716, %v4720
      %v4722 = vshrl.u32 %v4612, 16
      %v4724 = vrot.slane %v4722, 4
      %v4725 = vor.u32 %v4724, %v4720
      %v4726 = vrot.slane %v4725, 4
      %v4728 = vshll.u32 %v4613, 16
      %v4730 = vrot.slane %v4728, 5
      %v4731 = vsel %vm2753, %v4726, %v4730
      %v4733 = vshrl.u32 %v4614, 16
      %v4735 = vrot.slane %v4733, 4
      %v4736 = vshll.u32 %v4614, 16
      %v4738 = vrot.slane %v4736, 5
      %v4739 = vor.u32 %v4735, %v4738
      %v4740 = vrot.slane %v4739, 4
      %v4742 = vshll.u32 %v4615, 16
      %v4744 = vrot.slane %v4742, 5
      %v4745 = vsel %vm2753, %v4740, %v4744
      %v4746 = vshrl.u32 %v4615, 16
      %v4748 = vrot.slane %v4746, 4
      %v4749 = vor.u32 %v4748, %v4744
      %v4750 = vrot.slane %v4749, 4
      %v4752 = vshll.u32 %v4616, 16
      %v4754 = vrot.slane %v4752, 5
      %v4755 = vsel %vm2753, %v4750, %v4754
      %v4756 = vshrl.u32 %v4616, 16
      %v4758 = vrot.slane %v4756, 4
      %v4759 = vor.u32 %v4758, %v4754
      %v4760 = vrot.slane %v4759, 4
      %v4762 = vshll.u32 %v4617, 16
      %v4764 = vrot.slane %v4762, 5
      %v4765 = vsel %vm2753, %v4760, %v4764
      %v4766 = vshrl.u32 %v4617, 16
      %v4768 = vrot.slane %v4766, 4
      %v4769 = vor.u32 %v4768, %v4764
      %v4770 = vrot.slane %v4769, 4
      %v4772 = vshll.u32 %v4618, 16
      %v4774 = vrot.slane %v4772, 5
      %v4775 = vsel %vm2753, %v4770, %v4774
      %v4777 = vshrl.u32 %v4619, 16
      %v4779 = vrot.slane %v4777, 4
      %v4780 = vshll.u32 %v4619, 16
      %v4782 = vrot.slane %v4780, 5
      %v4783 = vor.u32 %v4779, %v4782
      %v4784 = vrot.slane %v4783, 4
      %v4786 = vshll.u32 %v4620, 16
      %v4788 = vrot.slane %v4786, 5
      %v4789 = vsel %vm2753, %v4784, %v4788
      %v4790 = vshrl.u32 %v4620, 16
      %v4792 = vrot.slane %v4790, 4
      %v4793 = vor.u32 %v4792, %v4788
      %v4794 = vrot.slane %v4793, 4
      %v4796 = vshll.u32 %v4621, 16
      %v4798 = vrot.slane %v4796, 5
      %v4799 = vsel %vm2753, %v4794, %v4798
      %v4800 = vshrl.u32 %v4621, 16
      %v4802 = vrot.slane %v4800, 4
      %v4803 = vor.u32 %v4802, %v4798
      %v4804 = vrot.slane %v4803, 4
      %v4806 = vshll.u32 %v4622, 16
      %v4808 = vrot.slane %v4806, 5
      %v4809 = vsel %vm2753, %v4804, %v4808
      %v4810 = vshrl.u32 %v4622, 16
      %v4812 = vrot.slane %v4810, 4
      %v4813 = vor.u32 %v4812, %v4808
      %v4814 = vrot.slane %v4813, 4
      %v4816 = vshll.u32 %v4623, 16
      %v4818 = vrot.slane %v4816, 5
      %v4819 = vsel %vm2753, %v4814, %v4818
      %v4821 = vshrl.u32 %v4624, 16
      %v4823 = vrot.slane %v4821, 4
      %v4824 = vshll.u32 %v4624, 16
      %v4826 = vrot.slane %v4824, 5
      %v4827 = vor.u32 %v4823, %v4826
      %v4828 = vrot.slane %v4827, 4
      %v4830 = vshll.u32 %v4625, 16
      %v4832 = vrot.slane %v4830, 5
      %v4833 = vsel %vm2753, %v4828, %v4832
      %v4834 = vshrl.u32 %v4625, 16
      %v4836 = vrot.slane %v4834, 4
      %v4837 = vor.u32 %v4836, %v4832
      %v4838 = vrot.slane %v4837, 4
      %v4840 = vshll.u32 %v4626, 16
      %v4842 = vrot.slane %v4840, 5
      %v4843 = vsel %vm2753, %v4838, %v4842
      %v4844 = vshrl.u32 %v4626, 16
      %v4846 = vrot.slane %v4844, 4
      %v4847 = vor.u32 %v4846, %v4842
      %v4848 = vrot.slane %v4847, 4
      %v4850 = vshll.u32 %v4627, 16
      %v4852 = vrot.slane %v4850, 5
      %v4853 = vsel %vm2753, %v4848, %v4852
      %v4854 = vshrl.u32 %v4627, 16
      %v4856 = vrot.slane %v4854, 4
      %v4857 = vor.u32 %v4856, %v4852
      %v4858 = vrot.slane %v4857, 4
      %v4860 = vshll.u32 %v4628, 16
      %v4862 = vrot.slane %v4860, 5
      %v4863 = vsel %vm2753, %v4858, %v4862
      %v4865 = vshrl.u32 %v4629, 16
      %v4867 = vrot.slane %v4865, 4
      %v4868 = vshll.u32 %v4629, 16
      %v4870 = vrot.slane %v4868, 5
      %v4871 = vor.u32 %v4867, %v4870
      %v4872 = vrot.slane %v4871, 4
      %v4874 = vshll.u32 %v4630, 16
      %v4876 = vrot.slane %v4874, 5
      %v4877 = vsel %vm2753, %v4872, %v4876
      %v4878 = vshrl.u32 %v4630, 16
      %v4880 = vrot.slane %v4878, 4
      %v4881 = vor.u32 %v4880, %v4876
      %v4882 = vrot.slane %v4881, 4
      %v4884 = vshll.u32 %v4631, 16
      %v4886 = vrot.slane %v4884, 5
      %v4887 = vsel %vm2753, %v4882, %v4886
      %v4888 = vshrl.u32 %v4631, 16
      %v4890 = vrot.slane %v4888, 4
      %v4891 = vor.u32 %v4890, %v4886
      %v4892 = vrot.slane %v4891, 4
      %v4894 = vshll.u32 %v4632, 16
      %v4896 = vrot.slane %v4894, 5
      %v4897 = vsel %vm2753, %v4892, %v4896
      %v4898 = vshrl.u32 %v4632, 16
      %v4900 = vrot.slane %v4898, 4
      %v4901 = vor.u32 %v4900, %v4896
      %v4902 = vrot.slane %v4901, 4
      %v4904 = vshll.u32 %v4633, 16
      %v4906 = vrot.slane %v4904, 5
      %v4907 = vsel %vm2753, %v4902, %v4906
      %v4909 = vshrl.u32 %v4634, 16
      %v4911 = vrot.slane %v4909, 4
      %v4912 = vshll.u32 %v4634, 16
      %v4914 = vrot.slane %v4912, 5
      %v4915 = vor.u32 %v4911, %v4914
      %v4916 = vrot.slane %v4915, 4
      %v4918 = vshll.u32 %v4635, 16
      %v4920 = vrot.slane %v4918, 5
      %v4921 = vsel %vm2753, %v4916, %v4920
      %v4922 = vshrl.u32 %v4635, 16
      %v4924 = vrot.slane %v4922, 4
      %v4925 = vor.u32 %v4924, %v4920
      %v4926 = vrot.slane %v4925, 4
      %v4928 = vshll.u32 %v4636, 16
      %v4930 = vrot.slane %v4928, 5
      %v4931 = vsel %vm2753, %v4926, %v4930
      %v4932 = vshrl.u32 %v4636, 16
      %v4934 = vrot.slane %v4932, 4
      %v4935 = vor.u32 %v4934, %v4930
      %v4936 = vrot.slane %v4935, 4
      %v4938 = vshll.u32 %v4637, 16
      %v4940 = vrot.slane %v4938, 5
      %v4941 = vsel %vm2753, %v4936, %v4940
      %v4942 = vshrl.u32 %v4637, 16
      %v4944 = vrot.slane %v4942, 4
      %v4945 = vor.u32 %v4944, %v4940
      %v4946 = vrot.slane %v4945, 4
      %v4948 = vshll.u32 %v4638, 16
      %v4950 = vrot.slane %v4948, 5
      %v4951 = vsel %vm2753, %v4946, %v4950
      %v4953 = vshrl.u32 %v4639, 16
      %v4955 = vrot.slane %v4953, 4
      %v4956 = vshll.u32 %v4639, 16
      %v4958 = vrot.slane %v4956, 5
      %v4959 = vor.u32 %v4955, %v4958
      %v4960 = vrot.slane %v4959, 4
      %v4962 = vshll.u32 %v4640, 16
      %v4964 = vrot.slane %v4962, 5
      %v4965 = vsel %vm2753, %v4960, %v4964
      %v4966 = vshrl.u32 %v4640, 16
      %v4968 = vrot.slane %v4966, 4
      %v4969 = vor.u32 %v4968, %v4964
      %v4970 = vrot.slane %v4969, 4
      %v4972 = vshll.u32 %v4641, 16
      %v4974 = vrot.slane %v4972, 5
      %v4975 = vsel %vm2753, %v4970, %v4974
      %v4976 = vshrl.u32 %v4641, 16
      %v4978 = vrot.slane %v4976, 4
      %v4979 = vor.u32 %v4978, %v4974
      %v4980 = vrot.slane %v4979, 4
      %v4982 = vshll.u32 %v4642, 16
      %v4984 = vrot.slane %v4982, 5
      %v4985 = vsel %vm2753, %v4980, %v4984
      %v4986 = vshrl.u32 %v4642, 16
      %v4988 = vrot.slane %v4986, 4
      %v4989 = vor.u32 %v4988, %v4984
      %v4990 = vrot.slane %v4989, 4
      %v4992 = vshll.u32 %v4643, 16
      %v4994 = vrot.slane %v4992, 5
      %v4995 = vsel %vm2753, %v4990, %v4994
      %5028 = vst [vmem:[#allocation3 + $0x20] sm:$0xf] %v4657
      %5029 = vst [vmem:[#allocation3 + $0x44] sm:$0xf] %v4667
      %5030 = vst [vmem:[#allocation3 + $0x68] sm:$0xf] %v4677
      %5031 = vst [vmem:[#allocation3 + $0x8c] sm:$0xf] %v4687
      %5032 = vst [vmem:[#allocation3 + $0xb0] sm:$0xf] %v4701
      %5033 = vst [vmem:[#allocation3 + $0xd4] sm:$0xf] %v4711
      %5034 = vst [vmem:[#allocation3 + $0xf8] sm:$0xf] %v4721
      %5035 = vst [vmem:[#allocation3 + $0x11c] sm:$0xf] %v4731
      %5036 = vst [vmem:[#allocation3 + $0x140] sm:$0xf] %v4745
      %5037 = vst [vmem:[#allocation3 + $0x164] sm:$0xf] %v4755
      %5038 = vst [vmem:[#allocation3 + $0x188] sm:$0xf] %v4765
      %5039 = vst [vmem:[#allocation3 + $0x1ac] sm:$0xf] %v4775
      %5040 = vst [vmem:[#allocation3 + $0x1d0] sm:$0xf] %v4789
      %5041 = vst [vmem:[#allocation3 + $0x1f4] sm:$0xf] %v4799
      %5042 = vst [vmem:[#allocation3 + $0x218] sm:$0xf] %v4809
      %5043 = vst [vmem:[#allocation3 + $0x23c] sm:$0xf] %v4819
      %5044 = vst [vmem:[#allocation3 + $0x260] sm:$0xf] %v4833
      %5045 = vst [vmem:[#allocation3 + $0x284] sm:$0xf] %v4843
      %5046 = vst [vmem:[#allocation3 + $0x2a8] sm:$0xf] %v4853
      %5047 = vst [vmem:[#allocation3 + $0x2cc] sm:$0xf] %v4863
      %5048 = vst [vmem:[#allocation3 + $0x2f0] sm:$0xf] %v4877
      %5049 = vst [vmem:[#allocation3 + $0x314] sm:$0xf] %v4887
      %5050 = vst [vmem:[#allocation3 + $0x338] sm:$0xf] %v4897
      %5051 = vst [vmem:[#allocation3 + $0x35c] sm:$0xf] %v4907
      %5052 = vst [vmem:[#allocation3 + $0x380] sm:$0xf] %v4921
      %5053 = vst [vmem:[#allocation3 + $0x3a4] sm:$0xf] %v4931
      %5054 = vst [vmem:[#allocation3 + $0x3c8] sm:$0xf] %v4941
      %5055 = vst [vmem:[#allocation3 + $0x3ec] sm:$0xf] %v4951
      %5056 = vst [vmem:[#allocation3 + $0x410] sm:$0xf] %v4965
      %5057 = vst [vmem:[#allocation3 + $0x434] sm:$0xf] %v4975
      %5058 = vst [vmem:[#allocation3 + $0x458] sm:$0xf] %v4985
      %5059 = vst [vmem:[#allocation3 + $0x47c] sm:$0xf] %v4995
      %v5060 = vld [vmem:[#allocation3] sm:$0xff]
      %v5061 = vld [vmem:[#allocation3 + $0x8] sm:$0xff]
      %v5062 = vld [vmem:[#allocation3 + $0x10] sm:$0xff]
      %v5063 = vld [vmem:[#allocation3 + $0x18] sm:$0xff]
      %v5064 = vld [vmem:[#allocation3 + $0x20] sm:$0xf]
      %v5065 = vld [vmem:[#allocation3 + $0x24] sm:$0xff]
      %v5066 = vld [vmem:[#allocation3 + $0x2c] sm:$0xff]
      %v5067 = vld [vmem:[#allocation3 + $0x34] sm:$0xff]
      %v5068 = vld [vmem:[#allocation3 + $0x3c] sm:$0xff]
      %v5069 = vld [vmem:[#allocation3 + $0x44] sm:$0xf]
      %v5070 = vld [vmem:[#allocation3 + $0x48] sm:$0xff]
      %v5071 = vld [vmem:[#allocation3 + $0x50] sm:$0xff]
      %v5072 = vld [vmem:[#allocation3 + $0x58] sm:$0xff]
      %v5073 = vld [vmem:[#allocation3 + $0x60] sm:$0xff]
      %v5074 = vld [vmem:[#allocation3 + $0x68] sm:$0xf]
      %v5075 = vld [vmem:[#allocation3 + $0x6c] sm:$0xff]
      %v5076 = vld [vmem:[#allocation3 + $0x74] sm:$0xff]
      %v5077 = vld [vmem:[#allocation3 + $0x7c] sm:$0xff]
      %v5078 = vld [vmem:[#allocation3 + $0x84] sm:$0xff]
      %v5079 = vld [vmem:[#allocation3 + $0x8c] sm:$0xf]
      %v5080 = vld [vmem:[#allocation3 + $0x90] sm:$0xff]
      %v5081 = vld [vmem:[#allocation3 + $0x98] sm:$0xff]
      %v5082 = vld [vmem:[#allocation3 + $0xa0] sm:$0xff]
      %v5083 = vld [vmem:[#allocation3 + $0xa8] sm:$0xff]
      %v5084 = vld [vmem:[#allocation3 + $0xb0] sm:$0xf]
      %v5085 = vld [vmem:[#allocation3 + $0xb4] sm:$0xff]
      %v5086 = vld [vmem:[#allocation3 + $0xbc] sm:$0xff]
      %v5087 = vld [vmem:[#allocation3 + $0xc4] sm:$0xff]
      %v5088 = vld [vmem:[#allocation3 + $0xcc] sm:$0xff]
      %v5089 = vld [vmem:[#allocation3 + $0xd4] sm:$0xf]
      %v5090 = vld [vmem:[#allocation3 + $0xd8] sm:$0xff]
      %v5091 = vld [vmem:[#allocation3 + $0xe0] sm:$0xff]
      %v5092 = vld [vmem:[#allocation3 + $0xe8] sm:$0xff]
      %v5093 = vld [vmem:[#allocation3 + $0xf0] sm:$0xff]
      %v5094 = vld [vmem:[#allocation3 + $0xf8] sm:$0xf]
      %v5095 = vld [vmem:[#allocation3 + $0xfc] sm:$0xff]
      %v5096 = vld [vmem:[#allocation3 + $0x104] sm:$0xff]
      %v5097 = vld [vmem:[#allocation3 + $0x10c] sm:$0xff]
      %v5098 = vld [vmem:[#allocation3 + $0x114] sm:$0xff]
      %v5099 = vld [vmem:[#allocation3 + $0x11c] sm:$0xf]
      %v5100 = vld [vmem:[#allocation3 + $0x120] sm:$0xff]
      %v5101 = vld [vmem:[#allocation3 + $0x128] sm:$0xff]
      %v5102 = vld [vmem:[#allocation3 + $0x130] sm:$0xff]
      %v5103 = vld [vmem:[#allocation3 + $0x138] sm:$0xff]
      %v5104 = vld [vmem:[#allocation3 + $0x140] sm:$0xf]
      %v5105 = vld [vmem:[#allocation3 + $0x144] sm:$0xff]
      %v5106 = vld [vmem:[#allocation3 + $0x14c] sm:$0xff]
      %v5107 = vld [vmem:[#allocation3 + $0x154] sm:$0xff]
      %v5108 = vld [vmem:[#allocation3 + $0x15c] sm:$0xff]
      %v5109 = vld [vmem:[#allocation3 + $0x164] sm:$0xf]
      %v5110 = vld [vmem:[#allocation3 + $0x168] sm:$0xff]
      %v5111 = vld [vmem:[#allocation3 + $0x170] sm:$0xff]
      %v5112 = vld [vmem:[#allocation3 + $0x178] sm:$0xff]
      %v5113 = vld [vmem:[#allocation3 + $0x180] sm:$0xff]
      %v5114 = vld [vmem:[#allocation3 + $0x188] sm:$0xf]
      %v5115 = vld [vmem:[#allocation3 + $0x18c] sm:$0xff]
      %v5116 = vld [vmem:[#allocation3 + $0x194] sm:$0xff]
      %v5117 = vld [vmem:[#allocation3 + $0x19c] sm:$0xff]
      %v5118 = vld [vmem:[#allocation3 + $0x1a4] sm:$0xff]
      %v5119 = vld [vmem:[#allocation3 + $0x1ac] sm:$0xf]
      %v5120 = vld [vmem:[#allocation3 + $0x1b0] sm:$0xff]
      %v5121 = vld [vmem:[#allocation3 + $0x1b8] sm:$0xff]
      %v5122 = vld [vmem:[#allocation3 + $0x1c0] sm:$0xff]
      %v5123 = vld [vmem:[#allocation3 + $0x1c8] sm:$0xff]
      %v5124 = vld [vmem:[#allocation3 + $0x1d0] sm:$0xf]
      %v5125 = vld [vmem:[#allocation3 + $0x1d4] sm:$0xff]
      %v5126 = vld [vmem:[#allocation3 + $0x1dc] sm:$0xff]
      %v5127 = vld [vmem:[#allocation3 + $0x1e4] sm:$0xff]
      %v5128 = vld [vmem:[#allocation3 + $0x1ec] sm:$0xff]
      %v5129 = vld [vmem:[#allocation3 + $0x1f4] sm:$0xf]
      %v5130 = vld [vmem:[#allocation3 + $0x1f8] sm:$0xff]
      %v5131 = vld [vmem:[#allocation3 + $0x200] sm:$0xff]
      %v5132 = vld [vmem:[#allocation3 + $0x208] sm:$0xff]
      %v5133 = vld [vmem:[#allocation3 + $0x210] sm:$0xff]
      %v5134 = vld [vmem:[#allocation3 + $0x218] sm:$0xf]
      %v5135 = vld [vmem:[#allocation3 + $0x21c] sm:$0xff]
      %v5136 = vld [vmem:[#allocation3 + $0x224] sm:$0xff]
      %v5137 = vld [vmem:[#allocation3 + $0x22c] sm:$0xff]
      %v5138 = vld [vmem:[#allocation3 + $0x234] sm:$0xff]
      %v5139 = vld [vmem:[#allocation3 + $0x23c] sm:$0xf]
      %v5140 = vld [vmem:[#allocation3 + $0x240] sm:$0xff]
      %v5141 = vld [vmem:[#allocation3 + $0x248] sm:$0xff]
      %v5142 = vld [vmem:[#allocation3 + $0x250] sm:$0xff]
      %v5143 = vld [vmem:[#allocation3 + $0x258] sm:$0xff]
      %v5144 = vld [vmem:[#allocation3 + $0x260] sm:$0xf]
      %v5145 = vld [vmem:[#allocation3 + $0x264] sm:$0xff]
      %v5146 = vld [vmem:[#allocation3 + $0x26c] sm:$0xff]
      %v5147 = vld [vmem:[#allocation3 + $0x274] sm:$0xff]
      %v5148 = vld [vmem:[#allocation3 + $0x27c] sm:$0xff]
      %v5149 = vld [vmem:[#allocation3 + $0x284] sm:$0xf]
      %v5150 = vld [vmem:[#allocation3 + $0x288] sm:$0xff]
      %v5151 = vld [vmem:[#allocation3 + $0x290] sm:$0xff]
      %v5152 = vld [vmem:[#allocation3 + $0x298] sm:$0xff]
      %v5153 = vld [vmem:[#allocation3 + $0x2a0] sm:$0xff]
      %v5154 = vld [vmem:[#allocation3 + $0x2a8] sm:$0xf]
      %v5155 = vld [vmem:[#allocation3 + $0x2ac] sm:$0xff]
      %v5156 = vld [vmem:[#allocation3 + $0x2b4] sm:$0xff]
      %v5157 = vld [vmem:[#allocation3 + $0x2bc] sm:$0xff]
      %v5158 = vld [vmem:[#allocation3 + $0x2c4] sm:$0xff]
      %v5159 = vld [vmem:[#allocation3 + $0x2cc] sm:$0xf]
      %v5160 = vld [vmem:[#allocation3 + $0x2d0] sm:$0xff]
      %v5161 = vld [vmem:[#allocation3 + $0x2d8] sm:$0xff]
      %v5162 = vld [vmem:[#allocation3 + $0x2e0] sm:$0xff]
      %v5163 = vld [vmem:[#allocation3 + $0x2e8] sm:$0xff]
      %v5164 = vld [vmem:[#allocation3 + $0x2f0] sm:$0xf]
      %v5165 = vld [vmem:[#allocation3 + $0x2f4] sm:$0xff]
      %v5166 = vld [vmem:[#allocation3 + $0x2fc] sm:$0xff]
      %v5167 = vld [vmem:[#allocation3 + $0x304] sm:$0xff]
      %v5168 = vld [vmem:[#allocation3 + $0x30c] sm:$0xff]
      %v5169 = vld [vmem:[#allocation3 + $0x314] sm:$0xf]
      %v5170 = vld [vmem:[#allocation3 + $0x318] sm:$0xff]
      %v5171 = vld [vmem:[#allocation3 + $0x320] sm:$0xff]
      %v5172 = vld [vmem:[#allocation3 + $0x328] sm:$0xff]
      %v5173 = vld [vmem:[#allocation3 + $0x330] sm:$0xff]
      %v5174 = vld [vmem:[#allocation3 + $0x338] sm:$0xf]
      %v5175 = vld [vmem:[#allocation3 + $0x33c] sm:$0xff]
      %v5176 = vld [vmem:[#allocation3 + $0x344] sm:$0xff]
      %v5177 = vld [vmem:[#allocation3 + $0x34c] sm:$0xff]
      %v5178 = vld [vmem:[#allocation3 + $0x354] sm:$0xff]
      %v5179 = vld [vmem:[#allocation3 + $0x35c] sm:$0xf]
      %v5180 = vld [vmem:[#allocation3 + $0x360] sm:$0xff]
      %v5181 = vld [vmem:[#allocation3 + $0x368] sm:$0xff]
      %v5182 = vld [vmem:[#allocation3 + $0x370] sm:$0xff]
      %v5183 = vld [vmem:[#allocation3 + $0x378] sm:$0xff]
      %v5184 = vld [vmem:[#allocation3 + $0x380] sm:$0xf]
      %v5185 = vld [vmem:[#allocation3 + $0x384] sm:$0xff]
      %v5186 = vld [vmem:[#allocation3 + $0x38c] sm:$0xff]
      %v5187 = vld [vmem:[#allocation3 + $0x394] sm:$0xff]
      %v5188 = vld [vmem:[#allocation3 + $0x39c] sm:$0xff]
      %v5189 = vld [vmem:[#allocation3 + $0x3a4] sm:$0xf]
      %v5190 = vld [vmem:[#allocation3 + $0x3a8] sm:$0xff]
      %v5191 = vld [vmem:[#allocation3 + $0x3b0] sm:$0xff]
      %v5192 = vld [vmem:[#allocation3 + $0x3b8] sm:$0xff]
      %v5193 = vld [vmem:[#allocation3 + $0x3c0] sm:$0xff]
      %v5194 = vld [vmem:[#allocation3 + $0x3c8] sm:$0xf]
      %v5195 = vld [vmem:[#allocation3 + $0x3cc] sm:$0xff]
      %v5196 = vld [vmem:[#allocation3 + $0x3d4] sm:$0xff]
      %v5197 = vld [vmem:[#allocation3 + $0x3dc] sm:$0xff]
      %v5198 = vld [vmem:[#allocation3 + $0x3e4] sm:$0xff]
      %v5199 = vld [vmem:[#allocation3 + $0x3ec] sm:$0xf]
      %v5200 = vld [vmem:[#allocation3 + $0x3f0] sm:$0xff]
      %v5201 = vld [vmem:[#allocation3 + $0x3f8] sm:$0xff]
      %v5202 = vld [vmem:[#allocation3 + $0x400] sm:$0xff]
      %v5203 = vld [vmem:[#allocation3 + $0x408] sm:$0xff]
      %v5204 = vld [vmem:[#allocation3 + $0x410] sm:$0xf]
      %v5205 = vld [vmem:[#allocation3 + $0x414] sm:$0xff]
      %v5206 = vld [vmem:[#allocation3 + $0x41c] sm:$0xff]
      %v5207 = vld [vmem:[#allocation3 + $0x424] sm:$0xff]
      %v5208 = vld [vmem:[#allocation3 + $0x42c] sm:$0xff]
      %v5209 = vld [vmem:[#allocation3 + $0x434] sm:$0xf]
      %v5210 = vld [vmem:[#allocation3 + $0x438] sm:$0xff]
      %v5211 = vld [vmem:[#allocation3 + $0x440] sm:$0xff]
      %v5212 = vld [vmem:[#allocation3 + $0x448] sm:$0xff]
      %v5213 = vld [vmem:[#allocation3 + $0x450] sm:$0xff]
      %v5214 = vld [vmem:[#allocation3 + $0x458] sm:$0xf]
      %v5215 = vld [vmem:[#allocation3 + $0x45c] sm:$0xff]
      %v5216 = vld [vmem:[#allocation3 + $0x464] sm:$0xff]
      %v5217 = vld [vmem:[#allocation3 + $0x46c] sm:$0xff]
      %v5218 = vld [vmem:[#allocation3 + $0x474] sm:$0xff]
      %v5219 = vld [vmem:[#allocation3 + $0x47c] sm:$0xf]
      %v5220 = vld [vmem:[%s3] sm:$0xf]
      %v5221 = vld [vmem:[%s3 + $0x4] sm:$0xf]
      %v5222 = vld [vmem:[%s3 + $0x8] sm:$0xf]
      %v5223 = vld [vmem:[%s3 + $0xc] sm:$0xf]
      %v5224 = vld [vmem:[%s3 + $0x10] sm:$0xf]
      %v5225 = vld [vmem:[%s3 + $0x14] sm:$0xf]
      %v5226 = vld [vmem:[%s3 + $0x18] sm:$0xf]
      %v5227 = vld [vmem:[%s3 + $0x1c] sm:$0xf]
      %v5228 = vld [vmem:[%s3 + $0x20] sm:$0xf]
      %v5229 = vld [vmem:[%s3 + $0x24] sm:$0xf]
      %v5230 = vld [vmem:[%s3 + $0x28] sm:$0xf]
      %v5231 = vld [vmem:[%s3 + $0x2c] sm:$0xf]
      %v5232 = vld [vmem:[%s3 + $0x30] sm:$0xf]
      %v5233 = vld [vmem:[%s3 + $0x34] sm:$0xf]
      %v5234 = vld [vmem:[%s3 + $0x38] sm:$0xf]
      %v5235 = vld [vmem:[%s3 + $0x3c] sm:$0xf]
      %v5236 = vld [vmem:[%s3 + $0x40] sm:$0xf]
      %v5237 = vld [vmem:[%s3 + $0x44] sm:$0xf]
      %v5238 = vld [vmem:[%s3 + $0x48] sm:$0xf]
      %v5239 = vld [vmem:[%s3 + $0x4c] sm:$0xf]
      %v5240 = vld [vmem:[%s3 + $0x50] sm:$0xf]
      %v5241 = vld [vmem:[%s3 + $0x54] sm:$0xf]
      %v5242 = vld [vmem:[%s3 + $0x58] sm:$0xf]
      %v5243 = vld [vmem:[%s3 + $0x5c] sm:$0xf]
      %v5244 = vld [vmem:[%s3 + $0x60] sm:$0xf]
      %v5245 = vld [vmem:[%s3 + $0x64] sm:$0xf]
      %v5246 = vld [vmem:[%s3 + $0x68] sm:$0xf]
      %v5247 = vld [vmem:[%s3 + $0x6c] sm:$0xf]
      %v5248 = vld [vmem:[%s3 + $0x70] sm:$0xf]
      %v5249 = vld [vmem:[%s3 + $0x74] sm:$0xf]
      %v5250 = vld [vmem:[%s3 + $0x78] sm:$0xf]
      %v5251 = vld [vmem:[%s3 + $0x7c] sm:$0xf]
      %v5252 = vld [vmem:[%s3 + $0x80] sm:$0xf]
      %v5253 = vld [vmem:[%s3 + $0x84] sm:$0xf]
      %v5254 = vld [vmem:[%s3 + $0x88] sm:$0xf]
      %v5255 = vld [vmem:[%s3 + $0x8c] sm:$0xf]
      %v5256 = vld [vmem:[%s3 + $0x90] sm:$0xf]
      %v5257 = vld [vmem:[%s3 + $0x94] sm:$0xf]
      %v5258 = vld [vmem:[%s3 + $0x98] sm:$0xf]
      %v5259 = vld [vmem:[%s3 + $0x9c] sm:$0xf]
      %v5260 = vld [vmem:[%s3 + $0xa0] sm:$0xf]
      %v5261 = vld [vmem:[%s3 + $0xa4] sm:$0xf]
      %v5262 = vld [vmem:[%s3 + $0xa8] sm:$0xf]
      %v5263 = vld [vmem:[%s3 + $0xac] sm:$0xf]
      %v5264 = vld [vmem:[%s3 + $0xb0] sm:$0xf]
      %v5265 = vld [vmem:[%s3 + $0xb4] sm:$0xf]
      %v5266 = vld [vmem:[%s3 + $0xb8] sm:$0xf]
      %v5267 = vld [vmem:[%s3 + $0xbc] sm:$0xf]
      %v5268 = vld [vmem:[%s3 + $0xc0] sm:$0xf]
      %v5269 = vld [vmem:[%s3 + $0xc4] sm:$0xf]
      %v5270 = vld [vmem:[%s3 + $0xc8] sm:$0xf]
      %v5271 = vld [vmem:[%s3 + $0xcc] sm:$0xf]
      %v5272 = vld [vmem:[%s3 + $0xd0] sm:$0xf]
      %v5273 = vld [vmem:[%s3 + $0xd4] sm:$0xf]
      %v5274 = vld [vmem:[%s3 + $0xd8] sm:$0xf]
      %v5275 = vld [vmem:[%s3 + $0xdc] sm:$0xf]
      %v5276 = vld [vmem:[%s3 + $0xe0] sm:$0xf]
      %v5277 = vld [vmem:[%s3 + $0xe4] sm:$0xf]
      %v5278 = vld [vmem:[%s3 + $0xe8] sm:$0xf]
      %v5279 = vld [vmem:[%s3 + $0xec] sm:$0xf]
      %v5280 = vld [vmem:[%s3 + $0xf0] sm:$0xf]
      %v5281 = vld [vmem:[%s3 + $0xf4] sm:$0xf]
      %v5282 = vld [vmem:[%s3 + $0xf8] sm:$0xf]
      %v5283 = vld [vmem:[%s3 + $0xfc] sm:$0xf]
      %v5284 = vld [vmem:[%s3 + $0x100] sm:$0xf]
      %v5285 = vld [vmem:[%s3 + $0x104] sm:$0xf]
      %v5286 = vld [vmem:[%s3 + $0x108] sm:$0xf]
      %v5287 = vld [vmem:[%s3 + $0x10c] sm:$0xf]
      %v5288 = vld [vmem:[%s3 + $0x110] sm:$0xf]
      %v5289 = vld [vmem:[%s3 + $0x114] sm:$0xf]
      %v5290 = vld [vmem:[%s3 + $0x118] sm:$0xf]
      %v5291 = vld [vmem:[%s3 + $0x11c] sm:$0xf]
      %v5292 = vld [vmem:[%s3 + $0x120] sm:$0xf]
      %v5293 = vld [vmem:[%s3 + $0x124] sm:$0xf]
      %v5294 = vld [vmem:[%s3 + $0x128] sm:$0xf]
      %v5295 = vld [vmem:[%s3 + $0x12c] sm:$0xf]
      %v5296 = vld [vmem:[%s3 + $0x130] sm:$0xf]
      %v5297 = vld [vmem:[%s3 + $0x134] sm:$0xf]
      %v5298 = vld [vmem:[%s3 + $0x138] sm:$0xf]
      %v5299 = vld [vmem:[%s3 + $0x13c] sm:$0xf]
      %v5300 = vld [vmem:[%s3 + $0x140] sm:$0xf]
      %v5301 = vld [vmem:[%s3 + $0x144] sm:$0xf]
      %v5302 = vld [vmem:[%s3 + $0x148] sm:$0xf]
      %v5303 = vld [vmem:[%s3 + $0x14c] sm:$0xf]
      %v5304 = vld [vmem:[%s3 + $0x150] sm:$0xf]
      %v5305 = vld [vmem:[%s3 + $0x154] sm:$0xf]
      %v5306 = vld [vmem:[%s3 + $0x158] sm:$0xf]
      %v5307 = vld [vmem:[%s3 + $0x15c] sm:$0xf]
      %v5308 = vld [vmem:[%s3 + $0x160] sm:$0xf]
      %v5309 = vld [vmem:[%s3 + $0x164] sm:$0xf]
      %v5310 = vld [vmem:[%s3 + $0x168] sm:$0xf]
      %v5311 = vld [vmem:[%s3 + $0x16c] sm:$0xf]
      %v5312 = vld [vmem:[%s3 + $0x170] sm:$0xf]
      %v5313 = vld [vmem:[%s3 + $0x174] sm:$0xf]
      %v5314 = vld [vmem:[%s3 + $0x178] sm:$0xf]
      %v5315 = vld [vmem:[%s3 + $0x17c] sm:$0xf]
      %v5316 = vld [vmem:[%s3 + $0x180] sm:$0xf]
      %v5317 = vld [vmem:[%s3 + $0x184] sm:$0xf]
      %v5318 = vld [vmem:[%s3 + $0x188] sm:$0xf]
      %v5319 = vld [vmem:[%s3 + $0x18c] sm:$0xf]
      %v5320 = vld [vmem:[%s3 + $0x190] sm:$0xf]
      %v5321 = vld [vmem:[%s3 + $0x194] sm:$0xf]
      %v5322 = vld [vmem:[%s3 + $0x198] sm:$0xf]
      %v5323 = vld [vmem:[%s3 + $0x19c] sm:$0xf]
      %v5324 = vld [vmem:[%s3 + $0x1a0] sm:$0xf]
      %v5325 = vld [vmem:[%s3 + $0x1a4] sm:$0xf]
      %v5326 = vld [vmem:[%s3 + $0x1a8] sm:$0xf]
      %v5327 = vld [vmem:[%s3 + $0x1ac] sm:$0xf]
      %v5328 = vld [vmem:[%s3 + $0x1b0] sm:$0xf]
      %v5329 = vld [vmem:[%s3 + $0x1b4] sm:$0xf]
      %v5330 = vld [vmem:[%s3 + $0x1b8] sm:$0xf]
      %v5331 = vld [vmem:[%s3 + $0x1bc] sm:$0xf]
      %v5332 = vld [vmem:[%s3 + $0x1c0] sm:$0xf]
      %v5333 = vld [vmem:[%s3 + $0x1c4] sm:$0xf]
      %v5334 = vld [vmem:[%s3 + $0x1c8] sm:$0xf]
      %v5335 = vld [vmem:[%s3 + $0x1cc] sm:$0xf]
      %v5336 = vld [vmem:[%s3 + $0x1d0] sm:$0xf]
      %v5337 = vld [vmem:[%s3 + $0x1d4] sm:$0xf]
      %v5338 = vld [vmem:[%s3 + $0x1d8] sm:$0xf]
      %v5339 = vld [vmem:[%s3 + $0x1dc] sm:$0xf]
      %v5340 = vld [vmem:[%s3 + $0x1e0] sm:$0xf]
      %v5341 = vld [vmem:[%s3 + $0x1e4] sm:$0xf]
      %v5342 = vld [vmem:[%s3 + $0x1e8] sm:$0xf]
      %v5343 = vld [vmem:[%s3 + $0x1ec] sm:$0xf]
      %v5344 = vld [vmem:[%s3 + $0x1f0] sm:$0xf]
      %v5345 = vld [vmem:[%s3 + $0x1f4] sm:$0xf]
      %v5346 = vld [vmem:[%s3 + $0x1f8] sm:$0xf]
      %v5347 = vld [vmem:[%s3 + $0x1fc] sm:$0xf]
      %v5348 = vld [vmem:[%s3 + $0x200] sm:$0xf]
      %v5349 = vld [vmem:[%s3 + $0x204] sm:$0xf]
      %v5350 = vld [vmem:[%s3 + $0x208] sm:$0xf]
      %v5351 = vld [vmem:[%s3 + $0x20c] sm:$0xf]
      %v5352 = vld [vmem:[%s3 + $0x210] sm:$0xf]
      %v5353 = vld [vmem:[%s3 + $0x214] sm:$0xf]
      %v5354 = vld [vmem:[%s3 + $0x218] sm:$0xf]
      %v5355 = vld [vmem:[%s3 + $0x21c] sm:$0xf]
      %v5356 = vld [vmem:[%s3 + $0x220] sm:$0xf]
      %v5357 = vld [vmem:[%s3 + $0x224] sm:$0xf]
      %v5358 = vld [vmem:[%s3 + $0x228] sm:$0xf]
      %v5359 = vld [vmem:[%s3 + $0x22c] sm:$0xf]
      %v5360 = vld [vmem:[%s3 + $0x230] sm:$0xf]
      %v5361 = vld [vmem:[%s3 + $0x234] sm:$0xf]
      %v5362 = vld [vmem:[%s3 + $0x238] sm:$0xf]
      %v5363 = vld [vmem:[%s3 + $0x23c] sm:$0xf]
      %v5364 = vld [vmem:[%s4] sm:$0x1]
      %v5366 = vlaneseq
      %v5367 = vshrl.u32 %v5366, 7
      %v5368 = vsub.s32 0, %v5367
      %v5369 = vrot.slane %v5364, %v5368
      %v5531 = vunpack.c.l.b16 %v5060
      %v5532 = vunpack.c.h.b16 %v5060
      %v5533 = vunpack.c.l.b16 %v5061
      %v5534 = vunpack.c.h.b16 %v5061
      %v5535 = vunpack.c.l.b16 %v5062
      %v5536 = vunpack.c.h.b16 %v5062
      %v5537 = vunpack.c.l.b16 %v5063
      %v5538 = vunpack.c.h.b16 %v5063
      %v5539 = vunpack.c.l.b16 %v5064
      %v5540 = vunpack.c.l.b16 %v5065
      %v5541 = vunpack.c.h.b16 %v5065
      %v5542 = vunpack.c.l.b16 %v5066
      %v5543 = vunpack.c.h.b16 %v5066
      %v5544 = vunpack.c.l.b16 %v5067
      %v5545 = vunpack.c.h.b16 %v5067
      %v5546 = vunpack.c.l.b16 %v5068
      %v5547 = vunpack.c.h.b16 %v5068
      %v5548 = vunpack.c.l.b16 %v5069
      %v5549 = vunpack.c.l.b16 %v5070
      %v5550 = vunpack.c.h.b16 %v5070
      %v5551 = vunpack.c.l.b16 %v5071
      %v5552 = vunpack.c.h.b16 %v5071
      %v5553 = vunpack.c.l.b16 %v5072
      %v5554 = vunpack.c.h.b16 %v5072
      %v5555 = vunpack.c.l.b16 %v5073
      %v5556 = vunpack.c.h.b16 %v5073
      %v5557 = vunpack.c.l.b16 %v5074
      %v5558 = vunpack.c.l.b16 %v5075
      %v5559 = vunpack.c.h.b16 %v5075
      %v5560 = vunpack.c.l.b16 %v5076
      %v5561 = vunpack.c.h.b16 %v5076
      %v5562 = vunpack.c.l.b16 %v5077
      %v5563 = vunpack.c.h.b16 %v5077
      %v5564 = vunpack.c.l.b16 %v5078
      %v5565 = vunpack.c.h.b16 %v5078
      %v5566 = vunpack.c.l.b16 %v5079
      %v5567 = vunpack.c.l.b16 %v5080
      %v5568 = vunpack.c.h.b16 %v5080
      %v5569 = vunpack.c.l.b16 %v5081
      %v5570 = vunpack.c.h.b16 %v5081
      %v5571 = vunpack.c.l.b16 %v5082
      %v5572 = vunpack.c.h.b16 %v5082
      %v5573 = vunpack.c.l.b16 %v5083
      %v5574 = vunpack.c.h.b16 %v5083
      %v5575 = vunpack.c.l.b16 %v5084
      %v5576 = vunpack.c.l.b16 %v5085
      %v5577 = vunpack.c.h.b16 %v5085
      %v5578 = vunpack.c.l.b16 %v5086
      %v5579 = vunpack.c.h.b16 %v5086
      %v5580 = vunpack.c.l.b16 %v5087
      %v5581 = vunpack.c.h.b16 %v5087
      %v5582 = vunpack.c.l.b16 %v5088
      %v5583 = vunpack.c.h.b16 %v5088
      %v5584 = vunpack.c.l.b16 %v5089
      %v5585 = vunpack.c.l.b16 %v5090
      %v5586 = vunpack.c.h.b16 %v5090
      %v5587 = vunpack.c.l.b16 %v5091
      %v5588 = vunpack.c.h.b16 %v5091
      %v5589 = vunpack.c.l.b16 %v5092
      %v5590 = vunpack.c.h.b16 %v5092
      %v5591 = vunpack.c.l.b16 %v5093
      %v5592 = vunpack.c.h.b16 %v5093
      %v5593 = vunpack.c.l.b16 %v5094
      %v5594 = vunpack.c.l.b16 %v5095
      %v5595 = vunpack.c.h.b16 %v5095
      %v5596 = vunpack.c.l.b16 %v5096
      %v5597 = vunpack.c.h.b16 %v5096
      %v5598 = vunpack.c.l.b16 %v5097
      %v5599 = vunpack.c.h.b16 %v5097
      %v5600 = vunpack.c.l.b16 %v5098
      %v5601 = vunpack.c.h.b16 %v5098
      %v5602 = vunpack.c.l.b16 %v5099
      %v5603 = vunpack.c.l.b16 %v5100
      %v5604 = vunpack.c.h.b16 %v5100
      %v5605 = vunpack.c.l.b16 %v5101
      %v5606 = vunpack.c.h.b16 %v5101
      %v5607 = vunpack.c.l.b16 %v5102
      %v5608 = vunpack.c.h.b16 %v5102
      %v5609 = vunpack.c.l.b16 %v5103
      %v5610 = vunpack.c.h.b16 %v5103
      %v5611 = vunpack.c.l.b16 %v5104
      %v5612 = vunpack.c.l.b16 %v5105
      %v5613 = vunpack.c.h.b16 %v5105
      %v5614 = vunpack.c.l.b16 %v5106
      %v5615 = vunpack.c.h.b16 %v5106
      %v5616 = vunpack.c.l.b16 %v5107
      %v5617 = vunpack.c.h.b16 %v5107
      %v5618 = vunpack.c.l.b16 %v5108
      %v5619 = vunpack.c.h.b16 %v5108
      %v5620 = vunpack.c.l.b16 %v5109
      %v5621 = vunpack.c.l.b16 %v5110
      %v5622 = vunpack.c.h.b16 %v5110
      %v5623 = vunpack.c.l.b16 %v5111
      %v5624 = vunpack.c.h.b16 %v5111
      %v5625 = vunpack.c.l.b16 %v5112
      %v5626 = vunpack.c.h.b16 %v5112
      %v5627 = vunpack.c.l.b16 %v5113
      %v5628 = vunpack.c.h.b16 %v5113
      %v5629 = vunpack.c.l.b16 %v5114
      %v5630 = vunpack.c.l.b16 %v5115
      %v5631 = vunpack.c.h.b16 %v5115
      %v5632 = vunpack.c.l.b16 %v5116
      %v5633 = vunpack.c.h.b16 %v5116
      %v5634 = vunpack.c.l.b16 %v5117
      %v5635 = vunpack.c.h.b16 %v5117
      %v5636 = vunpack.c.l.b16 %v5118
      %v5637 = vunpack.c.h.b16 %v5118
      %v5638 = vunpack.c.l.b16 %v5119
      %v5639 = vunpack.c.l.b16 %v5120
      %v5640 = vunpack.c.h.b16 %v5120
      %v5641 = vunpack.c.l.b16 %v5121
      %v5642 = vunpack.c.h.b16 %v5121
      %v5643 = vunpack.c.l.b16 %v5122
      %v5644 = vunpack.c.h.b16 %v5122
      %v5645 = vunpack.c.l.b16 %v5123
      %v5646 = vunpack.c.h.b16 %v5123
      %v5647 = vunpack.c.l.b16 %v5124
      %v5648 = vunpack.c.l.b16 %v5125
      %v5649 = vunpack.c.h.b16 %v5125
      %v5650 = vunpack.c.l.b16 %v5126
      %v5651 = vunpack.c.h.b16 %v5126
      %v5652 = vunpack.c.l.b16 %v5127
      %v5653 = vunpack.c.h.b16 %v5127
      %v5654 = vunpack.c.l.b16 %v5128
      %v5655 = vunpack.c.h.b16 %v5128
      %v5656 = vunpack.c.l.b16 %v5129
      %v5657 = vunpack.c.l.b16 %v5130
      %v5658 = vunpack.c.h.b16 %v5130
      %v5659 = vunpack.c.l.b16 %v5131
      %v5660 = vunpack.c.h.b16 %v5131
      %v5661 = vunpack.c.l.b16 %v5132
      %v5662 = vunpack.c.h.b16 %v5132
      %v5663 = vunpack.c.l.b16 %v5133
      %v5664 = vunpack.c.h.b16 %v5133
      %v5665 = vunpack.c.l.b16 %v5134
      %v5666 = vunpack.c.l.b16 %v5135
      %v5667 = vunpack.c.h.b16 %v5135
      %v5668 = vunpack.c.l.b16 %v5136
      %v5669 = vunpack.c.h.b16 %v5136
      %v5670 = vunpack.c.l.b16 %v5137
      %v5671 = vunpack.c.h.b16 %v5137
      %v5672 = vunpack.c.l.b16 %v5138
      %v5673 = vunpack.c.h.b16 %v5138
      %v5674 = vunpack.c.l.b16 %v5139
      %v5675 = vunpack.c.l.b16 %v5140
      %v5676 = vunpack.c.h.b16 %v5140
      %v5677 = vunpack.c.l.b16 %v5141
      %v5678 = vunpack.c.h.b16 %v5141
      %v5679 = vunpack.c.l.b16 %v5142
      %v5680 = vunpack.c.h.b16 %v5142
      %v5681 = vunpack.c.l.b16 %v5143
      %v5682 = vunpack.c.h.b16 %v5143
      %v5683 = vunpack.c.l.b16 %v5144
      %v5684 = vunpack.c.l.b16 %v5145
      %v5685 = vunpack.c.h.b16 %v5145
      %v5686 = vunpack.c.l.b16 %v5146
      %v5687 = vunpack.c.h.b16 %v5146
      %v5688 = vunpack.c.l.b16 %v5147
      %v5689 = vunpack.c.h.b16 %v5147
      %v5690 = vunpack.c.l.b16 %v5148
      %v5691 = vunpack.c.h.b16 %v5148
      %v5692 = vunpack.c.l.b16 %v5149
      %v5693 = vunpack.c.l.b16 %v5150
      %v5694 = vunpack.c.h.b16 %v5150
      %v5695 = vunpack.c.l.b16 %v5151
      %v5696 = vunpack.c.h.b16 %v5151
      %v5697 = vunpack.c.l.b16 %v5152
      %v5698 = vunpack.c.h.b16 %v5152
      %v5699 = vunpack.c.l.b16 %v5153
      %v5700 = vunpack.c.h.b16 %v5153
      %v5701 = vunpack.c.l.b16 %v5154
      %v5702 = vunpack.c.l.b16 %v5155
      %v5703 = vunpack.c.h.b16 %v5155
      %v5704 = vunpack.c.l.b16 %v5156
      %v5705 = vunpack.c.h.b16 %v5156
      %v5706 = vunpack.c.l.b16 %v5157
      %v5707 = vunpack.c.h.b16 %v5157
      %v5708 = vunpack.c.l.b16 %v5158
      %v5709 = vunpack.c.h.b16 %v5158
      %v5710 = vunpack.c.l.b16 %v5159
      %v5711 = vunpack.c.l.b16 %v5160
      %v5712 = vunpack.c.h.b16 %v5160
      %v5713 = vunpack.c.l.b16 %v5161
      %v5714 = vunpack.c.h.b16 %v5161
      %v5715 = vunpack.c.l.b16 %v5162
      %v5716 = vunpack.c.h.b16 %v5162
      %v5717 = vunpack.c.l.b16 %v5163
      %v5718 = vunpack.c.h.b16 %v5163
      %v5719 = vunpack.c.l.b16 %v5164
      %v5720 = vunpack.c.l.b16 %v5165
      %v5721 = vunpack.c.h.b16 %v5165
      %v5722 = vunpack.c.l.b16 %v5166
      %v5723 = vunpack.c.h.b16 %v5166
      %v5724 = vunpack.c.l.b16 %v5167
      %v5725 = vunpack.c.h.b16 %v5167
      %v5726 = vunpack.c.l.b16 %v5168
      %v5727 = vunpack.c.h.b16 %v5168
      %v5728 = vunpack.c.l.b16 %v5169
      %v5729 = vunpack.c.l.b16 %v5170
      %v5730 = vunpack.c.h.b16 %v5170
      %v5731 = vunpack.c.l.b16 %v5171
      %v5732 = vunpack.c.h.b16 %v5171
      %v5733 = vunpack.c.l.b16 %v5172
      %v5734 = vunpack.c.h.b16 %v5172
      %v5735 = vunpack.c.l.b16 %v5173
      %v5736 = vunpack.c.h.b16 %v5173
      %v5737 = vunpack.c.l.b16 %v5174
      %v5738 = vunpack.c.l.b16 %v5175
      %v5739 = vunpack.c.h.b16 %v5175
      %v5740 = vunpack.c.l.b16 %v5176
      %v5741 = vunpack.c.h.b16 %v5176
      %v5742 = vunpack.c.l.b16 %v5177
      %v5743 = vunpack.c.h.b16 %v5177
      %v5744 = vunpack.c.l.b16 %v5178
      %v5745 = vunpack.c.h.b16 %v5178
      %v5746 = vunpack.c.l.b16 %v5179
      %v5747 = vunpack.c.l.b16 %v5180
      %v5748 = vunpack.c.h.b16 %v5180
      %v5749 = vunpack.c.l.b16 %v5181
      %v5750 = vunpack.c.h.b16 %v5181
      %v5751 = vunpack.c.l.b16 %v5182
      %v5752 = vunpack.c.h.b16 %v5182
      %v5753 = vunpack.c.l.b16 %v5183
      %v5754 = vunpack.c.h.b16 %v5183
      %v5755 = vunpack.c.l.b16 %v5184
      %v5756 = vunpack.c.l.b16 %v5185
      %v5757 = vunpack.c.h.b16 %v5185
      %v5758 = vunpack.c.l.b16 %v5186
      %v5759 = vunpack.c.h.b16 %v5186
      %v5760 = vunpack.c.l.b16 %v5187
      %v5761 = vunpack.c.h.b16 %v5187
      %v5762 = vunpack.c.l.b16 %v5188
      %v5763 = vunpack.c.h.b16 %v5188
      %v5764 = vunpack.c.l.b16 %v5189
      %v5765 = vunpack.c.l.b16 %v5190
      %v5766 = vunpack.c.h.b16 %v5190
      %v5767 = vunpack.c.l.b16 %v5191
      %v5768 = vunpack.c.h.b16 %v5191
      %v5769 = vunpack.c.l.b16 %v5192
      %v5770 = vunpack.c.h.b16 %v5192
      %v5771 = vunpack.c.l.b16 %v5193
      %v5772 = vunpack.c.h.b16 %v5193
      %v5773 = vunpack.c.l.b16 %v5194
      %v5774 = vunpack.c.l.b16 %v5195
      %v5775 = vunpack.c.h.b16 %v5195
      %v5776 = vunpack.c.l.b16 %v5196
      %v5777 = vunpack.c.h.b16 %v5196
      %v5778 = vunpack.c.l.b16 %v5197
      %v5779 = vunpack.c.h.b16 %v5197
      %v5780 = vunpack.c.l.b16 %v5198
      %v5781 = vunpack.c.h.b16 %v5198
      %v5782 = vunpack.c.l.b16 %v5199
      %v5783 = vunpack.c.l.b16 %v5200
      %v5784 = vunpack.c.h.b16 %v5200
      %v5785 = vunpack.c.l.b16 %v5201
      %v5786 = vunpack.c.h.b16 %v5201
      %v5787 = vunpack.c.l.b16 %v5202
      %v5788 = vunpack.c.h.b16 %v5202
      %v5789 = vunpack.c.l.b16 %v5203
      %v5790 = vunpack.c.h.b16 %v5203
      %v5791 = vunpack.c.l.b16 %v5204
      %v5792 = vunpack.c.l.b16 %v5205
      %v5793 = vunpack.c.h.b16 %v5205
      %v5794 = vunpack.c.l.b16 %v5206
      %v5795 = vunpack.c.h.b16 %v5206
      %v5796 = vunpack.c.l.b16 %v5207
      %v5797 = vunpack.c.h.b16 %v5207
      %v5798 = vunpack.c.l.b16 %v5208
      %v5799 = vunpack.c.h.b16 %v5208
      %v5800 = vunpack.c.l.b16 %v5209
      %v5801 = vunpack.c.l.b16 %v5210
      %v5802 = vunpack.c.h.b16 %v5210
      %v5803 = vunpack.c.l.b16 %v5211
      %v5804 = vunpack.c.h.b16 %v5211
      %v5805 = vunpack.c.l.b16 %v5212
      %v5806 = vunpack.c.h.b16 %v5212
      %v5807 = vunpack.c.l.b16 %v5213
      %v5808 = vunpack.c.h.b16 %v5213
      %v5809 = vunpack.c.l.b16 %v5214
      %v5810 = vunpack.c.l.b16 %v5215
      %v5811 = vunpack.c.h.b16 %v5215
      %v5812 = vunpack.c.l.b16 %v5216
      %v5813 = vunpack.c.h.b16 %v5216
      %v5814 = vunpack.c.l.b16 %v5217
      %v5815 = vunpack.c.h.b16 %v5217
      %v5816 = vunpack.c.l.b16 %v5218
      %v5817 = vunpack.c.h.b16 %v5218
      %v5818 = vunpack.c.l.b16 %v5219
      %v5819 = vpack.c.b16 %v5540, %v5531
      %v5820 = vpack.c.b16 %v5541, %v5532
      %v5821 = vpack.c.b16 %v5542, %v5533
      %v5822 = vpack.c.b16 %v5543, %v5534
      %v5823 = vpack.c.b16 %v5544, %v5535
      %v5824 = vpack.c.b16 %v5545, %v5536
      %v5825 = vpack.c.b16 %v5546, %v5537
      %v5826 = vpack.c.b16 %v5547, %v5538
      %v5827 = vpack.c.b16 %v5548, %v5539
      %v5828 = vpack.c.b16 %v5558, %v5549
      %v5829 = vpack.c.b16 %v5559, %v5550
      %v5830 = vpack.c.b16 %v5560, %v5551
      %v5831 = vpack.c.b16 %v5561, %v5552
      %v5832 = vpack.c.b16 %v5562, %v5553
      %v5833 = vpack.c.b16 %v5563, %v5554
      %v5834 = vpack.c.b16 %v5564, %v5555
      %v5835 = vpack.c.b16 %v5565, %v5556
      %v5836 = vpack.c.b16 %v5566, %v5557
      %v5837 = vpack.c.b16 %v5576, %v5567
      %v5838 = vpack.c.b16 %v5577, %v5568
      %v5839 = vpack.c.b16 %v5578, %v5569
      %v5840 = vpack.c.b16 %v5579, %v5570
      %v5841 = vpack.c.b16 %v5580, %v5571
      %v5842 = vpack.c.b16 %v5581, %v5572
      %v5843 = vpack.c.b16 %v5582, %v5573
      %v5844 = vpack.c.b16 %v5583, %v5574
      %v5845 = vpack.c.b16 %v5584, %v5575
      %v5846 = vpack.c.b16 %v5594, %v5585
      %v5847 = vpack.c.b16 %v5595, %v5586
      %v5848 = vpack.c.b16 %v5596, %v5587
      %v5849 = vpack.c.b16 %v5597, %v5588
      %v5850 = vpack.c.b16 %v5598, %v5589
      %v5851 = vpack.c.b16 %v5599, %v5590
      %v5852 = vpack.c.b16 %v5600, %v5591
      %v5853 = vpack.c.b16 %v5601, %v5592
      %v5854 = vpack.c.b16 %v5602, %v5593
      %v5855 = vpack.c.b16 %v5612, %v5603
      %v5856 = vpack.c.b16 %v5613, %v5604
      %v5857 = vpack.c.b16 %v5614, %v5605
      %v5858 = vpack.c.b16 %v5615, %v5606
      %v5859 = vpack.c.b16 %v5616, %v5607
      %v5860 = vpack.c.b16 %v5617, %v5608
      %v5861 = vpack.c.b16 %v5618, %v5609
      %v5862 = vpack.c.b16 %v5619, %v5610
      %v5863 = vpack.c.b16 %v5620, %v5611
      %v5864 = vpack.c.b16 %v5630, %v5621
      %v5865 = vpack.c.b16 %v5631, %v5622
      %v5866 = vpack.c.b16 %v5632, %v5623
      %v5867 = vpack.c.b16 %v5633, %v5624
      %v5868 = vpack.c.b16 %v5634, %v5625
      %v5869 = vpack.c.b16 %v5635, %v5626
      %v5870 = vpack.c.b16 %v5636, %v5627
      %v5871 = vpack.c.b16 %v5637, %v5628
      %v5872 = vpack.c.b16 %v5638, %v5629
      %v5873 = vpack.c.b16 %v5648, %v5639
      %v5874 = vpack.c.b16 %v5649, %v5640
      %v5875 = vpack.c.b16 %v5650, %v5641
      %v5876 = vpack.c.b16 %v5651, %v5642
      %v5877 = vpack.c.b16 %v5652, %v5643
      %v5878 = vpack.c.b16 %v5653, %v5644
      %v5879 = vpack.c.b16 %v5654, %v5645
      %v5880 = vpack.c.b16 %v5655, %v5646
      %v5881 = vpack.c.b16 %v5656, %v5647
      %v5882 = vpack.c.b16 %v5666, %v5657
      %v5883 = vpack.c.b16 %v5667, %v5658
      %v5884 = vpack.c.b16 %v5668, %v5659
      %v5885 = vpack.c.b16 %v5669, %v5660
      %v5886 = vpack.c.b16 %v5670, %v5661
      %v5887 = vpack.c.b16 %v5671, %v5662
      %v5888 = vpack.c.b16 %v5672, %v5663
      %v5889 = vpack.c.b16 %v5673, %v5664
      %v5890 = vpack.c.b16 %v5674, %v5665
      %v5891 = vpack.c.b16 %v5684, %v5675
      %v5892 = vpack.c.b16 %v5685, %v5676
      %v5893 = vpack.c.b16 %v5686, %v5677
      %v5894 = vpack.c.b16 %v5687, %v5678
      %v5895 = vpack.c.b16 %v5688, %v5679
      %v5896 = vpack.c.b16 %v5689, %v5680
      %v5897 = vpack.c.b16 %v5690, %v5681
      %v5898 = vpack.c.b16 %v5691, %v5682
      %v5899 = vpack.c.b16 %v5692, %v5683
      %v5900 = vpack.c.b16 %v5702, %v5693
      %v5901 = vpack.c.b16 %v5703, %v5694
      %v5902 = vpack.c.b16 %v5704, %v5695
      %v5903 = vpack.c.b16 %v5705, %v5696
      %v5904 = vpack.c.b16 %v5706, %v5697
      %v5905 = vpack.c.b16 %v5707, %v5698
      %v5906 = vpack.c.b16 %v5708, %v5699
      %v5907 = vpack.c.b16 %v5709, %v5700
      %v5908 = vpack.c.b16 %v5710, %v5701
      %v5909 = vpack.c.b16 %v5720, %v5711
      %v5910 = vpack.c.b16 %v5721, %v5712
      %v5911 = vpack.c.b16 %v5722, %v5713
      %v5912 = vpack.c.b16 %v5723, %v5714
      %v5913 = vpack.c.b16 %v5724, %v5715
      %v5914 = vpack.c.b16 %v5725, %v5716
      %v5915 = vpack.c.b16 %v5726, %v5717
      %v5916 = vpack.c.b16 %v5727, %v5718
      %v5917 = vpack.c.b16 %v5728, %v5719
      %v5918 = vpack.c.b16 %v5738, %v5729
      %v5919 = vpack.c.b16 %v5739, %v5730
      %v5920 = vpack.c.b16 %v5740, %v5731
      %v5921 = vpack.c.b16 %v5741, %v5732
      %v5922 = vpack.c.b16 %v5742, %v5733
      %v5923 = vpack.c.b16 %v5743, %v5734
      %v5924 = vpack.c.b16 %v5744, %v5735
      %v5925 = vpack.c.b16 %v5745, %v5736
      %v5926 = vpack.c.b16 %v5746, %v5737
      %v5927 = vpack.c.b16 %v5756, %v5747
      %v5928 = vpack.c.b16 %v5757, %v5748
      %v5929 = vpack.c.b16 %v5758, %v5749
      %v5930 = vpack.c.b16 %v5759, %v5750
      %v5931 = vpack.c.b16 %v5760, %v5751
      %v5932 = vpack.c.b16 %v5761, %v5752
      %v5933 = vpack.c.b16 %v5762, %v5753
      %v5934 = vpack.c.b16 %v5763, %v5754
      %v5935 = vpack.c.b16 %v5764, %v5755
      %v5936 = vpack.c.b16 %v5774, %v5765
      %v5937 = vpack.c.b16 %v5775, %v5766
      %v5938 = vpack.c.b16 %v5776, %v5767
      %v5939 = vpack.c.b16 %v5777, %v5768
      %v5940 = vpack.c.b16 %v5778, %v5769
      %v5941 = vpack.c.b16 %v5779, %v5770
      %v5942 = vpack.c.b16 %v5780, %v5771
      %v5943 = vpack.c.b16 %v5781, %v5772
      %v5944 = vpack.c.b16 %v5782, %v5773
      %v5945 = vpack.c.b16 %v5792, %v5783
      %v5946 = vpack.c.b16 %v5793, %v5784
      %v5947 = vpack.c.b16 %v5794, %v5785
      %v5948 = vpack.c.b16 %v5795, %v5786
      %v5949 = vpack.c.b16 %v5796, %v5787
      %v5950 = vpack.c.b16 %v5797, %v5788
      %v5951 = vpack.c.b16 %v5798, %v5789
      %v5952 = vpack.c.b16 %v5799, %v5790
      %v5953 = vpack.c.b16 %v5800, %v5791
      %v5954 = vpack.c.b16 %v5810, %v5801
      %v5955 = vpack.c.b16 %v5811, %v5802
      %v5956 = vpack.c.b16 %v5812, %v5803
      %v5957 = vpack.c.b16 %v5813, %v5804
      %v5958 = vpack.c.b16 %v5814, %v5805
      %v5959 = vpack.c.b16 %v5815, %v5806
      %v5960 = vpack.c.b16 %v5816, %v5807
      %v5961 = vpack.c.b16 %v5817, %v5808
      %v5962 = vpack.c.b16 %v5818, %v5809
      %v6251 = vunpack.c.l.b16 %v5220
      %v6252 = vunpack.c.l.b16 %v5221
      %v6253 = vunpack.c.l.b16 %v5222
      %v6254 = vunpack.c.l.b16 %v5223
      %v6255 = vunpack.c.l.b16 %v5224
      %v6256 = vunpack.c.l.b16 %v5225
      %v6257 = vunpack.c.l.b16 %v5226
      %v6258 = vunpack.c.l.b16 %v5227
      %v6259 = vunpack.c.l.b16 %v5228
      %v6260 = vunpack.c.l.b16 %v5229
      %v6261 = vunpack.c.l.b16 %v5230
      %v6262 = vunpack.c.l.b16 %v5231
      %v6263 = vunpack.c.l.b16 %v5232
      %v6264 = vunpack.c.l.b16 %v5233
      %v6265 = vunpack.c.l.b16 %v5234
      %v6266 = vunpack.c.l.b16 %v5235
      %v6267 = vunpack.c.l.b16 %v5236
      %v6268 = vunpack.c.l.b16 %v5237
      %v6269 = vunpack.c.l.b16 %v5238
      %v6270 = vunpack.c.l.b16 %v5239
      %v6271 = vunpack.c.l.b16 %v5240
      %v6272 = vunpack.c.l.b16 %v5241
      %v6273 = vunpack.c.l.b16 %v5242
      %v6274 = vunpack.c.l.b16 %v5243
      %v6275 = vunpack.c.l.b16 %v5244
      %v6276 = vunpack.c.l.b16 %v5245
      %v6277 = vunpack.c.l.b16 %v5246
      %v6278 = vunpack.c.l.b16 %v5247
      %v6279 = vunpack.c.l.b16 %v5248
      %v6280 = vunpack.c.l.b16 %v5249
      %v6281 = vunpack.c.l.b16 %v5250
      %v6282 = vunpack.c.l.b16 %v5251
      %v6283 = vunpack.c.l.b16 %v5252
      %v6284 = vunpack.c.l.b16 %v5253
      %v6285 = vunpack.c.l.b16 %v5254
      %v6286 = vunpack.c.l.b16 %v5255
      %v6287 = vunpack.c.l.b16 %v5256
      %v6288 = vunpack.c.l.b16 %v5257
      %v6289 = vunpack.c.l.b16 %v5258
      %v6290 = vunpack.c.l.b16 %v5259
      %v6291 = vunpack.c.l.b16 %v5260
      %v6292 = vunpack.c.l.b16 %v5261
      %v6293 = vunpack.c.l.b16 %v5262
      %v6294 = vunpack.c.l.b16 %v5263
      %v6295 = vunpack.c.l.b16 %v5264
      %v6296 = vunpack.c.l.b16 %v5265
      %v6297 = vunpack.c.l.b16 %v5266
      %v6298 = vunpack.c.l.b16 %v5267
      %v6299 = vunpack.c.l.b16 %v5268
      %v6300 = vunpack.c.l.b16 %v5269
      %v6301 = vunpack.c.l.b16 %v5270
      %v6302 = vunpack.c.l.b16 %v5271
      %v6303 = vunpack.c.l.b16 %v5272
      %v6304 = vunpack.c.l.b16 %v5273
      %v6305 = vunpack.c.l.b16 %v5274
      %v6306 = vunpack.c.l.b16 %v5275
      %v6307 = vunpack.c.l.b16 %v5276
      %v6308 = vunpack.c.l.b16 %v5277
      %v6309 = vunpack.c.l.b16 %v5278
      %v6310 = vunpack.c.l.b16 %v5279
      %v6311 = vunpack.c.l.b16 %v5280
      %v6312 = vunpack.c.l.b16 %v5281
      %v6313 = vunpack.c.l.b16 %v5282
      %v6314 = vunpack.c.l.b16 %v5283
      %v6315 = vunpack.c.l.b16 %v5284
      %v6316 = vunpack.c.l.b16 %v5285
      %v6317 = vunpack.c.l.b16 %v5286
      %v6318 = vunpack.c.l.b16 %v5287
      %v6319 = vunpack.c.l.b16 %v5288
      %v6320 = vunpack.c.l.b16 %v5289
      %v6321 = vunpack.c.l.b16 %v5290
      %v6322 = vunpack.c.l.b16 %v5291
      %v6323 = vunpack.c.l.b16 %v5292
      %v6324 = vunpack.c.l.b16 %v5293
      %v6325 = vunpack.c.l.b16 %v5294
      %v6326 = vunpack.c.l.b16 %v5295
      %v6327 = vunpack.c.l.b16 %v5296
      %v6328 = vunpack.c.l.b16 %v5297
      %v6329 = vunpack.c.l.b16 %v5298
      %v6330 = vunpack.c.l.b16 %v5299
      %v6331 = vunpack.c.l.b16 %v5300
      %v6332 = vunpack.c.l.b16 %v5301
      %v6333 = vunpack.c.l.b16 %v5302
      %v6334 = vunpack.c.l.b16 %v5303
      %v6335 = vunpack.c.l.b16 %v5304
      %v6336 = vunpack.c.l.b16 %v5305
      %v6337 = vunpack.c.l.b16 %v5306
      %v6338 = vunpack.c.l.b16 %v5307
      %v6339 = vunpack.c.l.b16 %v5308
      %v6340 = vunpack.c.l.b16 %v5309
      %v6341 = vunpack.c.l.b16 %v5310
      %v6342 = vunpack.c.l.b16 %v5311
      %v6343 = vunpack.c.l.b16 %v5312
      %v6344 = vunpack.c.l.b16 %v5313
      %v6345 = vunpack.c.l.b16 %v5314
      %v6346 = vunpack.c.l.b16 %v5315
      %v6347 = vunpack.c.l.b16 %v5316
      %v6348 = vunpack.c.l.b16 %v5317
      %v6349 = vunpack.c.l.b16 %v5318
      %v6350 = vunpack.c.l.b16 %v5319
      %v6351 = vunpack.c.l.b16 %v5320
      %v6352 = vunpack.c.l.b16 %v5321
      %v6353 = vunpack.c.l.b16 %v5322
      %v6354 = vunpack.c.l.b16 %v5323
      %v6355 = vunpack.c.l.b16 %v5324
      %v6356 = vunpack.c.l.b16 %v5325
      %v6357 = vunpack.c.l.b16 %v5326
      %v6358 = vunpack.c.l.b16 %v5327
      %v6359 = vunpack.c.l.b16 %v5328
      %v6360 = vunpack.c.l.b16 %v5329
      %v6361 = vunpack.c.l.b16 %v5330
      %v6362 = vunpack.c.l.b16 %v5331
      %v6363 = vunpack.c.l.b16 %v5332
      %v6364 = vunpack.c.l.b16 %v5333
      %v6365 = vunpack.c.l.b16 %v5334
      %v6366 = vunpack.c.l.b16 %v5335
      %v6367 = vunpack.c.l.b16 %v5336
      %v6368 = vunpack.c.l.b16 %v5337
      %v6369 = vunpack.c.l.b16 %v5338
      %v6370 = vunpack.c.l.b16 %v5339
      %v6371 = vunpack.c.l.b16 %v5340
      %v6372 = vunpack.c.l.b16 %v5341
      %v6373 = vunpack.c.l.b16 %v5342
      %v6374 = vunpack.c.l.b16 %v5343
      %v6375 = vunpack.c.l.b16 %v5344
      %v6376 = vunpack.c.l.b16 %v5345
      %v6377 = vunpack.c.l.b16 %v5346
      %v6378 = vunpack.c.l.b16 %v5347
      %v6379 = vunpack.c.l.b16 %v5348
      %v6380 = vunpack.c.l.b16 %v5349
      %v6381 = vunpack.c.l.b16 %v5350
      %v6382 = vunpack.c.l.b16 %v5351
      %v6383 = vunpack.c.l.b16 %v5352
      %v6384 = vunpack.c.l.b16 %v5353
      %v6385 = vunpack.c.l.b16 %v5354
      %v6386 = vunpack.c.l.b16 %v5355
      %v6387 = vunpack.c.l.b16 %v5356
      %v6388 = vunpack.c.l.b16 %v5357
      %v6389 = vunpack.c.l.b16 %v5358
      %v6390 = vunpack.c.l.b16 %v5359
      %v6391 = vunpack.c.l.b16 %v5360
      %v6392 = vunpack.c.l.b16 %v5361
      %v6393 = vunpack.c.l.b16 %v5362
      %v6394 = vunpack.c.l.b16 %v5363
      %v6395 = vpack.c.b16 %v6252, %v6251
      %v6396 = vpack.c.b16 %v6254, %v6253
      %v6397 = vpack.c.b16 %v6256, %v6255
      %v6398 = vpack.c.b16 %v6258, %v6257
      %v6399 = vpack.c.b16 %v6260, %v6259
      %v6400 = vpack.c.b16 %v6262, %v6261
      %v6401 = vpack.c.b16 %v6264, %v6263
      %v6402 = vpack.c.b16 %v6266, %v6265
      %v6403 = vpack.c.b16 %v6268, %v6267
      %v6404 = vpack.c.b16 %v6270, %v6269
      %v6405 = vpack.c.b16 %v6272, %v6271
      %v6406 = vpack.c.b16 %v6274, %v6273
      %v6407 = vpack.c.b16 %v6276, %v6275
      %v6408 = vpack.c.b16 %v6278, %v6277
      %v6409 = vpack.c.b16 %v6280, %v6279
      %v6410 = vpack.c.b16 %v6282, %v6281
      %v6411 = vpack.c.b16 %v6284, %v6283
      %v6412 = vpack.c.b16 %v6286, %v6285
      %v6413 = vpack.c.b16 %v6288, %v6287
      %v6414 = vpack.c.b16 %v6290, %v6289
      %v6415 = vpack.c.b16 %v6292, %v6291
      %v6416 = vpack.c.b16 %v6294, %v6293
      %v6417 = vpack.c.b16 %v6296, %v6295
      %v6418 = vpack.c.b16 %v6298, %v6297
      %v6419 = vpack.c.b16 %v6300, %v6299
      %v6420 = vpack.c.b16 %v6302, %v6301
      %v6421 = vpack.c.b16 %v6304, %v6303
      %v6422 = vpack.c.b16 %v6306, %v6305
      %v6423 = vpack.c.b16 %v6308, %v6307
      %v6424 = vpack.c.b16 %v6310, %v6309
      %v6425 = vpack.c.b16 %v6312, %v6311
      %v6426 = vpack.c.b16 %v6314, %v6313
      %v6427 = vpack.c.b16 %v6316, %v6315
      %v6428 = vpack.c.b16 %v6318, %v6317
      %v6429 = vpack.c.b16 %v6320, %v6319
      %v6430 = vpack.c.b16 %v6322, %v6321
      %v6431 = vpack.c.b16 %v6324, %v6323
      %v6432 = vpack.c.b16 %v6326, %v6325
      %v6433 = vpack.c.b16 %v6328, %v6327
      %v6434 = vpack.c.b16 %v6330, %v6329
      %v6435 = vpack.c.b16 %v6332, %v6331
      %v6436 = vpack.c.b16 %v6334, %v6333
      %v6437 = vpack.c.b16 %v6336, %v6335
      %v6438 = vpack.c.b16 %v6338, %v6337
      %v6439 = vpack.c.b16 %v6340, %v6339
      %v6440 = vpack.c.b16 %v6342, %v6341
      %v6441 = vpack.c.b16 %v6344, %v6343
      %v6442 = vpack.c.b16 %v6346, %v6345
      %v6443 = vpack.c.b16 %v6348, %v6347
      %v6444 = vpack.c.b16 %v6350, %v6349
      %v6445 = vpack.c.b16 %v6352, %v6351
      %v6446 = vpack.c.b16 %v6354, %v6353
      %v6447 = vpack.c.b16 %v6356, %v6355
      %v6448 = vpack.c.b16 %v6358, %v6357
      %v6449 = vpack.c.b16 %v6360, %v6359
      %v6450 = vpack.c.b16 %v6362, %v6361
      %v6451 = vpack.c.b16 %v6364, %v6363
      %v6452 = vpack.c.b16 %v6366, %v6365
      %v6453 = vpack.c.b16 %v6368, %v6367
      %v6454 = vpack.c.b16 %v6370, %v6369
      %v6455 = vpack.c.b16 %v6372, %v6371
      %v6456 = vpack.c.b16 %v6374, %v6373
      %v6457 = vpack.c.b16 %v6376, %v6375
      %v6458 = vpack.c.b16 %v6378, %v6377
      %v6459 = vpack.c.b16 %v6380, %v6379
      %v6460 = vpack.c.b16 %v6382, %v6381
      %v6461 = vpack.c.b16 %v6384, %v6383
      %v6462 = vpack.c.b16 %v6386, %v6385
      %v6463 = vpack.c.b16 %v6388, %v6387
      %v6464 = vpack.c.b16 %v6390, %v6389
      %v6465 = vpack.c.b16 %v6392, %v6391
      %v6466 = vpack.c.b16 %v6394, %v6393
      %6539 = vmatprep.subr.bf16.mxu0 0
      %6540 = vmatpush1.bf16.msra.mxu0 %v6402
      %6541 = vmatprep.subr.bf16.mxu0 0
      %6542 = vmatpush1.bf16.msra.mxu0 %v6401
      %6543 = vmatprep.subr.bf16.mxu0 0
      %6544 = vmatpush1.bf16.msra.mxu0 %v6400
      %6545 = vmatprep.subr.bf16.mxu0 0
      %6546 = vmatpush1.bf16.msra.mxu0 %v6399
      %6547 = vmatprep.subr.bf16.mxu0 0
      %6548 = vmatpush1.bf16.msra.mxu0 %v6398
      %6549 = vmatprep.subr.bf16.mxu0 0
      %6550 = vmatpush1.bf16.msra.mxu0 %v6397
      %6551 = vmatprep.subr.bf16.mxu0 0
      %6552 = vmatpush1.bf16.msra.mxu0 %v6396
      %6553 = vmatprep.subr.bf16.mxu0 0
      %6554 = vmatpush1.bf16.msra.mxu0 %v6395
      %6555 = vmatprep.subr.bf16.mxu0 0
      %6556 = vmatpush2.bf16.msra.mxu0 %v6410
      %6557 = vmatprep.subr.bf16.mxu0 0
      %6558 = vmatpush2.bf16.msra.mxu0 %v6409
      %6559 = vmatprep.subr.bf16.mxu0 0
      %6560 = vmatpush2.bf16.msra.mxu0 %v6408
      %6561 = vmatprep.subr.bf16.mxu0 0
      %6562 = vmatpush2.bf16.msra.mxu0 %v6407
      %6563 = vmatprep.subr.bf16.mxu0 0
      %6564 = vmatpush2.bf16.msra.mxu0 %v6406
      %6565 = vmatprep.subr.bf16.mxu0 0
      %6566 = vmatpush2.bf16.msra.mxu0 %v6405
      %6567 = vmatprep.subr.bf16.mxu0 0
      %6568 = vmatpush2.bf16.msra.mxu0 %v6404
      %6569 = vmatprep.subr.bf16.mxu0 0
      %6570 = vmatpush2.bf16.msra.mxu0 %v6403
      %6571 = vmatprep.mubr.bf16.mxu0 %v5820
      %6572 = vmatmul.mubr.bf16.gmra.mxu0 %v5819
      %v6573 = vpop.f32.mrf.mxu0
      %v6574 = vadd.f32 %v5369, %v6573
      %v6575 = vpop.f32.mrf.mxu0
      %v6576 = vpop.f32.mrf.mxu0
      %v6577 = vadd.f32 %v5369, %v6576
      %v6578 = vpop.f32.mrf.mxu0
      %6579 = vmatprep.mubr.bf16.mxu0 %v5829
      %6580 = vmatmul.mubr.bf16.gmra.mxu0 %v5828
      %v6581 = vpop.f32.mrf.mxu0
      %v6582 = vadd.f32 %v5369, %v6581
      %v6583 = vpop.f32.mrf.mxu0
      %v6584 = vpop.f32.mrf.mxu0
      %v6585 = vadd.f32 %v5369, %v6584
      %v6586 = vpop.f32.mrf.mxu0
      %6587 = vmatprep.mubr.bf16.mxu0 %v5838
      %6588 = vmatmul.mubr.bf16.gmra.mxu0 %v5837
      %v6589 = vpop.f32.mrf.mxu0
      %v6590 = vadd.f32 %v5369, %v6589
      %v6591 = vpop.f32.mrf.mxu0
      %v6592 = vpop.f32.mrf.mxu0
      %v6593 = vadd.f32 %v5369, %v6592
      %v6594 = vpop.f32.mrf.mxu0
      %6595 = vmatprep.mubr.bf16.mxu0 %v5847
      %6596 = vmatmul.mubr.bf16.gmra.mxu0 %v5846
      %v6597 = vpop.f32.mrf.mxu0
      %v6598 = vadd.f32 %v5369, %v6597
      %v6599 = vpop.f32.mrf.mxu0
      %v6600 = vpop.f32.mrf.mxu0
      %v6601 = vadd.f32 %v5369, %v6600
      %v6602 = vpop.f32.mrf.mxu0
      %6603 = vmatprep.mubr.bf16.mxu0 %v5856
      %6604 = vmatmul.mubr.bf16.gmra.mxu0 %v5855
      %v6605 = vpop.f32.mrf.mxu0
      %v6606 = vadd.f32 %v5369, %v6605
      %v6607 = vpop.f32.mrf.mxu0
      %v6608 = vpop.f32.mrf.mxu0
      %v6609 = vadd.f32 %v5369, %v6608
      %v6610 = vpop.f32.mrf.mxu0
      %6611 = vmatprep.mubr.bf16.mxu0 %v5865
      %6612 = vmatmul.mubr.bf16.gmra.mxu0 %v5864
      %v6613 = vpop.f32.mrf.mxu0
      %v6614 = vadd.f32 %v5369, %v6613
      %v6615 = vpop.f32.mrf.mxu0
      %v6616 = vpop.f32.mrf.mxu0
      %v6617 = vadd.f32 %v5369, %v6616
      %v6618 = vpop.f32.mrf.mxu0
      %6619 = vmatprep.mubr.bf16.mxu0 %v5874
      %6620 = vmatmul.mubr.bf16.gmra.mxu0 %v5873
      %v6621 = vpop.f32.mrf.mxu0
      %v6622 = vadd.f32 %v5369, %v6621
      %v6623 = vpop.f32.mrf.mxu0
      %v6624 = vpop.f32.mrf.mxu0
      %v6625 = vadd.f32 %v5369, %v6624
      %v6626 = vpop.f32.mrf.mxu0
      %6627 = vmatprep.mubr.bf16.mxu0 %v5883
      %6628 = vmatmul.mubr.bf16.gmra.mxu0 %v5882
      %v6629 = vpop.f32.mrf.mxu0
      %v6630 = vadd.f32 %v5369, %v6629
      %v6631 = vpop.f32.mrf.mxu0
      %v6632 = vpop.f32.mrf.mxu0
      %v6633 = vadd.f32 %v5369, %v6632
      %v6634 = vpop.f32.mrf.mxu0
      %6635 = vmatprep.mubr.bf16.mxu0 %v5892
      %6636 = vmatmul.mubr.bf16.gmra.mxu0 %v5891
      %v6637 = vpop.f32.mrf.mxu0
      %v6638 = vadd.f32 %v5369, %v6637
      %v6639 = vpop.f32.mrf.mxu0
      %v6640 = vpop.f32.mrf.mxu0
      %v6641 = vadd.f32 %v5369, %v6640
      %v6642 = vpop.f32.mrf.mxu0
      %6643 = vmatprep.mubr.bf16.mxu0 %v5901
      %6644 = vmatmul.mubr.bf16.gmra.mxu0 %v5900
      %v6645 = vpop.f32.mrf.mxu0
      %v6646 = vadd.f32 %v5369, %v6645
      %v6647 = vpop.f32.mrf.mxu0
      %v6648 = vpop.f32.mrf.mxu0
      %v6649 = vadd.f32 %v5369, %v6648
      %v6650 = vpop.f32.mrf.mxu0
      %6651 = vmatprep.mubr.bf16.mxu0 %v5910
      %6652 = vmatmul.mubr.bf16.gmra.mxu0 %v5909
      %v6653 = vpop.f32.mrf.mxu0
      %v6654 = vadd.f32 %v5369, %v6653
      %v6655 = vpop.f32.mrf.mxu0
      %v6656 = vpop.f32.mrf.mxu0
      %v6657 = vadd.f32 %v5369, %v6656
      %v6658 = vpop.f32.mrf.mxu0
      %6659 = vmatprep.mubr.bf16.mxu0 %v5919
      %6660 = vmatmul.mubr.bf16.gmra.mxu0 %v5918
      %v6661 = vpop.f32.mrf.mxu0
      %v6662 = vadd.f32 %v5369, %v6661
      %v6663 = vpop.f32.mrf.mxu0
      %v6664 = vpop.f32.mrf.mxu0
      %v6665 = vadd.f32 %v5369, %v6664
      %v6666 = vpop.f32.mrf.mxu0
      %6667 = vmatprep.mubr.bf16.mxu0 %v5928
      %6668 = vmatmul.mubr.bf16.gmra.mxu0 %v5927
      %v6669 = vpop.f32.mrf.mxu0
      %v6670 = vadd.f32 %v5369, %v6669
      %v6671 = vpop.f32.mrf.mxu0
      %v6672 = vpop.f32.mrf.mxu0
      %v6673 = vadd.f32 %v5369, %v6672
      %v6674 = vpop.f32.mrf.mxu0
      %6675 = vmatprep.mubr.bf16.mxu0 %v5937
      %6676 = vmatmul.mubr.bf16.gmra.mxu0 %v5936
      %v6677 = vpop.f32.mrf.mxu0
      %v6678 = vadd.f32 %v5369, %v6677
      %v6679 = vpop.f32.mrf.mxu0
      %v6680 = vpop.f32.mrf.mxu0
      %v6681 = vadd.f32 %v5369, %v6680
      %v6682 = vpop.f32.mrf.mxu0
      %6683 = vmatprep.mubr.bf16.mxu0 %v5946
      %6684 = vmatmul.mubr.bf16.gmra.mxu0 %v5945
      %v6685 = vpop.f32.mrf.mxu0
      %v6686 = vadd.f32 %v5369, %v6685
      %v6687 = vpop.f32.mrf.mxu0
      %v6688 = vpop.f32.mrf.mxu0
      %v6689 = vadd.f32 %v5369, %v6688
      %v6690 = vpop.f32.mrf.mxu0
      %6691 = vmatprep.mubr.bf16.mxu0 %v5955
      %6692 = vmatmul.mubr.bf16.gmra.mxu0 %v5954
      %v6693 = vpop.f32.mrf.mxu0
      %v6694 = vadd.f32 %v5369, %v6693
      %v6695 = vpop.f32.mrf.mxu0
      %v6696 = vpop.f32.mrf.mxu0
      %v6697 = vadd.f32 %v5369, %v6696
      %v6698 = vpop.f32.mrf.mxu0
      %6699 = vdwg.mxu0
      %6700 = vmatprep.subr.bf16.mxu0 0
      %6701 = vmatpush1.bf16.msra.mxu0 %v6418
      %6702 = vmatprep.subr.bf16.mxu0 0
      %6703 = vmatpush1.bf16.msra.mxu0 %v6417
      %6704 = vmatprep.subr.bf16.mxu0 0
      %6705 = vmatpush1.bf16.msra.mxu0 %v6416
      %6706 = vmatprep.subr.bf16.mxu0 0
      %6707 = vmatpush1.bf16.msra.mxu0 %v6415
      %6708 = vmatprep.subr.bf16.mxu0 0
      %6709 = vmatpush1.bf16.msra.mxu0 %v6414
      %6710 = vmatprep.subr.bf16.mxu0 0
      %6711 = vmatpush1.bf16.msra.mxu0 %v6413
      %6712 = vmatprep.subr.bf16.mxu0 0
      %6713 = vmatpush1.bf16.msra.mxu0 %v6412
      %6714 = vmatprep.subr.bf16.mxu0 0
      %6715 = vmatpush1.bf16.msra.mxu0 %v6411
      %6716 = vmatprep.subr.bf16.mxu0 0
      %6717 = vmatpush2.bf16.msra.mxu0 %v6426
      %6718 = vmatprep.subr.bf16.mxu0 0
      %6719 = vmatpush2.bf16.msra.mxu0 %v6425
      %6720 = vmatprep.subr.bf16.mxu0 0
      %6721 = vmatpush2.bf16.msra.mxu0 %v6424
      %6722 = vmatprep.subr.bf16.mxu0 0
      %6723 = vmatpush2.bf16.msra.mxu0 %v6423
      %6724 = vmatprep.subr.bf16.mxu0 0
      %6725 = vmatpush2.bf16.msra.mxu0 %v6422
      %6726 = vmatprep.subr.bf16.mxu0 0
      %6727 = vmatpush2.bf16.msra.mxu0 %v6421
      %6728 = vmatprep.subr.bf16.mxu0 0
      %6729 = vmatpush2.bf16.msra.mxu0 %v6420
      %6730 = vmatprep.subr.bf16.mxu0 0
      %6731 = vmatpush2.bf16.msra.mxu0 %v6419
      %6732 = vmatprep.mubr.bf16.mxu0 %v5822
      %6733 = vmatmul.mubr.bf16.gmra.mxu0 %v5821
      %v6734 = vpop.f32.mrf.mxu0
      %v6735 = vadd.f32 %v6574, %v6734
      %v6736 = vpop.f32.mrf.mxu0
      %v6737 = vpop.f32.mrf.mxu0
      %v6738 = vadd.f32 %v6577, %v6737
      %v6739 = vpop.f32.mrf.mxu0
      %6740 = vmatprep.mubr.bf16.mxu0 %v5831
      %6741 = vmatmul.mubr.bf16.gmra.mxu0 %v5830
      %v6742 = vpop.f32.mrf.mxu0
      %v6743 = vadd.f32 %v6582, %v6742
      %v6744 = vpop.f32.mrf.mxu0
      %v6745 = vpop.f32.mrf.mxu0
      %v6746 = vadd.f32 %v6585, %v6745
      %v6747 = vpop.f32.mrf.mxu0
      %6748 = vmatprep.mubr.bf16.mxu0 %v5840
      %6749 = vmatmul.mubr.bf16.gmra.mxu0 %v5839
      %v6750 = vpop.f32.mrf.mxu0
      %v6751 = vadd.f32 %v6590, %v6750
      %v6752 = vpop.f32.mrf.mxu0
      %v6753 = vpop.f32.mrf.mxu0
      %v6754 = vadd.f32 %v6593, %v6753
      %v6755 = vpop.f32.mrf.mxu0
      %6756 = vmatprep.mubr.bf16.mxu0 %v5849
      %6757 = vmatmul.mubr.bf16.gmra.mxu0 %v5848
      %v6758 = vpop.f32.mrf.mxu0
      %v6759 = vadd.f32 %v6598, %v6758
      %v6760 = vpop.f32.mrf.mxu0
      %v6761 = vpop.f32.mrf.mxu0
      %v6762 = vadd.f32 %v6601, %v6761
      %v6763 = vpop.f32.mrf.mxu0
      %6764 = vmatprep.mubr.bf16.mxu0 %v5858
      %6765 = vmatmul.mubr.bf16.gmra.mxu0 %v5857
      %v6766 = vpop.f32.mrf.mxu0
      %v6767 = vadd.f32 %v6606, %v6766
      %v6768 = vpop.f32.mrf.mxu0
      %v6769 = vpop.f32.mrf.mxu0
      %v6770 = vadd.f32 %v6609, %v6769
      %v6771 = vpop.f32.mrf.mxu0
      %6772 = vmatprep.mubr.bf16.mxu0 %v5867
      %6773 = vmatmul.mubr.bf16.gmra.mxu0 %v5866
      %v6774 = vpop.f32.mrf.mxu0
      %v6775 = vadd.f32 %v6614, %v6774
      %v6776 = vpop.f32.mrf.mxu0
      %v6777 = vpop.f32.mrf.mxu0
      %v6778 = vadd.f32 %v6617, %v6777
      %v6779 = vpop.f32.mrf.mxu0
      %6780 = vmatprep.mubr.bf16.mxu0 %v5876
      %6781 = vmatmul.mubr.bf16.gmra.mxu0 %v5875
      %v6782 = vpop.f32.mrf.mxu0
      %v6783 = vadd.f32 %v6622, %v6782
      %v6784 = vpop.f32.mrf.mxu0
      %v6785 = vpop.f32.mrf.mxu0
      %v6786 = vadd.f32 %v6625, %v6785
      %v6787 = vpop.f32.mrf.mxu0
      %6788 = vmatprep.mubr.bf16.mxu0 %v5885
      %6789 = vmatmul.mubr.bf16.gmra.mxu0 %v5884
      %v6790 = vpop.f32.mrf.mxu0
      %v6791 = vadd.f32 %v6630, %v6790
      %v6792 = vpop.f32.mrf.mxu0
      %v6793 = vpop.f32.mrf.mxu0
      %v6794 = vadd.f32 %v6633, %v6793
      %v6795 = vpop.f32.mrf.mxu0
      %6796 = vmatprep.mubr.bf16.mxu0 %v5894
      %6797 = vmatmul.mubr.bf16.gmra.mxu0 %v5893
      %v6798 = vpop.f32.mrf.mxu0
      %v6799 = vadd.f32 %v6638, %v6798
      %v6800 = vpop.f32.mrf.mxu0
      %v6801 = vpop.f32.mrf.mxu0
      %v6802 = vadd.f32 %v6641, %v6801
      %v6803 = vpop.f32.mrf.mxu0
      %6804 = vmatprep.mubr.bf16.mxu0 %v5903
      %6805 = vmatmul.mubr.bf16.gmra.mxu0 %v5902
      %v6806 = vpop.f32.mrf.mxu0
      %v6807 = vadd.f32 %v6646, %v6806
      %v6808 = vpop.f32.mrf.mxu0
      %v6809 = vpop.f32.mrf.mxu0
      %v6810 = vadd.f32 %v6649, %v6809
      %v6811 = vpop.f32.mrf.mxu0
      %6812 = vmatprep.mubr.bf16.mxu0 %v5912
      %6813 = vmatmul.mubr.bf16.gmra.mxu0 %v5911
      %v6814 = vpop.f32.mrf.mxu0
      %v6815 = vadd.f32 %v6654, %v6814
      %v6816 = vpop.f32.mrf.mxu0
      %v6817 = vpop.f32.mrf.mxu0
      %v6818 = vadd.f32 %v6657, %v6817
      %v6819 = vpop.f32.mrf.mxu0
      %6820 = vmatprep.mubr.bf16.mxu0 %v5921
      %6821 = vmatmul.mubr.bf16.gmra.mxu0 %v5920
      %v6822 = vpop.f32.mrf.mxu0
      %v6823 = vadd.f32 %v6662, %v6822
      %v6824 = vpop.f32.mrf.mxu0
      %v6825 = vpop.f32.mrf.mxu0
      %v6826 = vadd.f32 %v6665, %v6825
      %v6827 = vpop.f32.mrf.mxu0
      %6828 = vmatprep.mubr.bf16.mxu0 %v5930
      %6829 = vmatmul.mubr.bf16.gmra.mxu0 %v5929
      %v6830 = vpop.f32.mrf.mxu0
      %v6831 = vadd.f32 %v6670, %v6830
      %v6832 = vpop.f32.mrf.mxu0
      %v6833 = vpop.f32.mrf.mxu0
      %v6834 = vadd.f32 %v6673, %v6833
      %v6835 = vpop.f32.mrf.mxu0
      %6836 = vmatprep.mubr.bf16.mxu0 %v5939
      %6837 = vmatmul.mubr.bf16.gmra.mxu0 %v5938
      %v6838 = vpop.f32.mrf.mxu0
      %v6839 = vadd.f32 %v6678, %v6838
      %v6840 = vpop.f32.mrf.mxu0
      %v6841 = vpop.f32.mrf.mxu0
      %v6842 = vadd.f32 %v6681, %v6841
      %v6843 = vpop.f32.mrf.mxu0
      %6844 = vmatprep.mubr.bf16.mxu0 %v5948
      %6845 = vmatmul.mubr.bf16.gmra.mxu0 %v5947
      %v6846 = vpop.f32.mrf.mxu0
      %v6847 = vadd.f32 %v6686, %v6846
      %v6848 = vpop.f32.mrf.mxu0
      %v6849 = vpop.f32.mrf.mxu0
      %v6850 = vadd.f32 %v6689, %v6849
      %v6851 = vpop.f32.mrf.mxu0
      %6852 = vmatprep.mubr.bf16.mxu0 %v5957
      %6853 = vmatmul.mubr.bf16.gmra.mxu0 %v5956
      %v6854 = vpop.f32.mrf.mxu0
      %v6855 = vadd.f32 %v6694, %v6854
      %v6856 = vpop.f32.mrf.mxu0
      %v6857 = vpop.f32.mrf.mxu0
      %v6858 = vadd.f32 %v6697, %v6857
      %v6859 = vpop.f32.mrf.mxu0
      %6860 = vdwg.mxu0
      %6861 = vmatprep.subr.bf16.mxu0 0
      %6862 = vmatpush1.bf16.msra.mxu0 %v6434
      %6863 = vmatprep.subr.bf16.mxu0 0
      %6864 = vmatpush1.bf16.msra.mxu0 %v6433
      %6865 = vmatprep.subr.bf16.mxu0 0
      %6866 = vmatpush1.bf16.msra.mxu0 %v6432
      %6867 = vmatprep.subr.bf16.mxu0 0
      %6868 = vmatpush1.bf16.msra.mxu0 %v6431
      %6869 = vmatprep.subr.bf16.mxu0 0
      %6870 = vmatpush1.bf16.msra.mxu0 %v6430
      %6871 = vmatprep.subr.bf16.mxu0 0
      %6872 = vmatpush1.bf16.msra.mxu0 %v6429
      %6873 = vmatprep.subr.bf16.mxu0 0
      %6874 = vmatpush1.bf16.msra.mxu0 %v6428
      %6875 = vmatprep.subr.bf16.mxu0 0
      %6876 = vmatpush1.bf16.msra.mxu0 %v6427
      %6877 = vmatprep.subr.bf16.mxu0 0
      %6878 = vmatpush2.bf16.msra.mxu0 %v6442
      %6879 = vmatprep.subr.bf16.mxu0 0
      %6880 = vmatpush2.bf16.msra.mxu0 %v6441
      %6881 = vmatprep.subr.bf16.mxu0 0
      %6882 = vmatpush2.bf16.msra.mxu0 %v6440
      %6883 = vmatprep.subr.bf16.mxu0 0
      %6884 = vmatpush2.bf16.msra.mxu0 %v6439
      %6885 = vmatprep.subr.bf16.mxu0 0
      %6886 = vmatpush2.bf16.msra.mxu0 %v6438
      %6887 = vmatprep.subr.bf16.mxu0 0
      %6888 = vmatpush2.bf16.msra.mxu0 %v6437
      %6889 = vmatprep.subr.bf16.mxu0 0
      %6890 = vmatpush2.bf16.msra.mxu0 %v6436
      %6891 = vmatprep.subr.bf16.mxu0 0
      %6892 = vmatpush2.bf16.msra.mxu0 %v6435
      %6893 = vmatprep.mubr.bf16.mxu0 %v5824
      %6894 = vmatmul.mubr.bf16.gmra.mxu0 %v5823
      %v6895 = vpop.f32.mrf.mxu0
      %v6896 = vadd.f32 %v6735, %v6895
      %v6897 = vpop.f32.mrf.mxu0
      %v6898 = vpop.f32.mrf.mxu0
      %v6899 = vadd.f32 %v6738, %v6898
      %v6900 = vpop.f32.mrf.mxu0
      %6901 = vmatprep.mubr.bf16.mxu0 %v5833
      %6902 = vmatmul.mubr.bf16.gmra.mxu0 %v5832
      %v6903 = vpop.f32.mrf.mxu0
      %v6904 = vadd.f32 %v6743, %v6903
      %v6905 = vpop.f32.mrf.mxu0
      %v6906 = vpop.f32.mrf.mxu0
      %v6907 = vadd.f32 %v6746, %v6906
      %v6908 = vpop.f32.mrf.mxu0
      %6909 = vmatprep.mubr.bf16.mxu0 %v5842
      %6910 = vmatmul.mubr.bf16.gmra.mxu0 %v5841
      %v6911 = vpop.f32.mrf.mxu0
      %v6912 = vadd.f32 %v6751, %v6911
      %v6913 = vpop.f32.mrf.mxu0
      %v6914 = vpop.f32.mrf.mxu0
      %v6915 = vadd.f32 %v6754, %v6914
      %v6916 = vpop.f32.mrf.mxu0
      %6917 = vmatprep.mubr.bf16.mxu0 %v5851
      %6918 = vmatmul.mubr.bf16.gmra.mxu0 %v5850
      %v6919 = vpop.f32.mrf.mxu0
      %v6920 = vadd.f32 %v6759, %v6919
      %v6921 = vpop.f32.mrf.mxu0
      %v6922 = vpop.f32.mrf.mxu0
      %v6923 = vadd.f32 %v6762, %v6922
      %v6924 = vpop.f32.mrf.mxu0
      %6925 = vmatprep.mubr.bf16.mxu0 %v5860
      %6926 = vmatmul.mubr.bf16.gmra.mxu0 %v5859
      %v6927 = vpop.f32.mrf.mxu0
      %v6928 = vadd.f32 %v6767, %v6927
      %v6929 = vpop.f32.mrf.mxu0
      %v6930 = vpop.f32.mrf.mxu0
      %v6931 = vadd.f32 %v6770, %v6930
      %v6932 = vpop.f32.mrf.mxu0
      %6933 = vmatprep.mubr.bf16.mxu0 %v5869
      %6934 = vmatmul.mubr.bf16.gmra.mxu0 %v5868
      %v6935 = vpop.f32.mrf.mxu0
      %v6936 = vadd.f32 %v6775, %v6935
      %v6937 = vpop.f32.mrf.mxu0
      %v6938 = vpop.f32.mrf.mxu0
      %v6939 = vadd.f32 %v6778, %v6938
      %v6940 = vpop.f32.mrf.mxu0
      %6941 = vmatprep.mubr.bf16.mxu0 %v5878
      %6942 = vmatmul.mubr.bf16.gmra.mxu0 %v5877
      %v6943 = vpop.f32.mrf.mxu0
      %v6944 = vadd.f32 %v6783, %v6943
      %v6945 = vpop.f32.mrf.mxu0
      %v6946 = vpop.f32.mrf.mxu0
      %v6947 = vadd.f32 %v6786, %v6946
      %v6948 = vpop.f32.mrf.mxu0
      %6949 = vmatprep.mubr.bf16.mxu0 %v5887
      %6950 = vmatmul.mubr.bf16.gmra.mxu0 %v5886
      %v6951 = vpop.f32.mrf.mxu0
      %v6952 = vadd.f32 %v6791, %v6951
      %v6953 = vpop.f32.mrf.mxu0
      %v6954 = vpop.f32.mrf.mxu0
      %v6955 = vadd.f32 %v6794, %v6954
      %v6956 = vpop.f32.mrf.mxu0
      %6957 = vmatprep.mubr.bf16.mxu0 %v5896
      %6958 = vmatmul.mubr.bf16.gmra.mxu0 %v5895
      %v6959 = vpop.f32.mrf.mxu0
      %v6960 = vadd.f32 %v6799, %v6959
      %v6961 = vpop.f32.mrf.mxu0
      %v6962 = vpop.f32.mrf.mxu0
      %v6963 = vadd.f32 %v6802, %v6962
      %v6964 = vpop.f32.mrf.mxu0
      %6965 = vmatprep.mubr.bf16.mxu0 %v5905
      %6966 = vmatmul.mubr.bf16.gmra.mxu0 %v5904
      %v6967 = vpop.f32.mrf.mxu0
      %v6968 = vadd.f32 %v6807, %v6967
      %v6969 = vpop.f32.mrf.mxu0
      %v6970 = vpop.f32.mrf.mxu0
      %v6971 = vadd.f32 %v6810, %v6970
      %v6972 = vpop.f32.mrf.mxu0
      %6973 = vmatprep.mubr.bf16.mxu0 %v5914
      %6974 = vmatmul.mubr.bf16.gmra.mxu0 %v5913
      %v6975 = vpop.f32.mrf.mxu0
      %v6976 = vadd.f32 %v6815, %v6975
      %v6977 = vpop.f32.mrf.mxu0
      %v6978 = vpop.f32.mrf.mxu0
      %v6979 = vadd.f32 %v6818, %v6978
      %v6980 = vpop.f32.mrf.mxu0
      %6981 = vmatprep.mubr.bf16.mxu0 %v5923
      %6982 = vmatmul.mubr.bf16.gmra.mxu0 %v5922
      %v6983 = vpop.f32.mrf.mxu0
      %v6984 = vadd.f32 %v6823, %v6983
      %v6985 = vpop.f32.mrf.mxu0
      %v6986 = vpop.f32.mrf.mxu0
      %v6987 = vadd.f32 %v6826, %v6986
      %v6988 = vpop.f32.mrf.mxu0
      %6989 = vmatprep.mubr.bf16.mxu0 %v5932
      %6990 = vmatmul.mubr.bf16.gmra.mxu0 %v5931
      %v6991 = vpop.f32.mrf.mxu0
      %v6992 = vadd.f32 %v6831, %v6991
      %v6993 = vpop.f32.mrf.mxu0
      %v6994 = vpop.f32.mrf.mxu0
      %v6995 = vadd.f32 %v6834, %v6994
      %v6996 = vpop.f32.mrf.mxu0
      %6997 = vmatprep.mubr.bf16.mxu0 %v5941
      %6998 = vmatmul.mubr.bf16.gmra.mxu0 %v5940
      %v6999 = vpop.f32.mrf.mxu0
      %v7000 = vadd.f32 %v6839, %v6999
      %v7001 = vpop.f32.mrf.mxu0
      %v7002 = vpop.f32.mrf.mxu0
      %v7003 = vadd.f32 %v6842, %v7002
      %v7004 = vpop.f32.mrf.mxu0
      %7005 = vmatprep.mubr.bf16.mxu0 %v5950
      %7006 = vmatmul.mubr.bf16.gmra.mxu0 %v5949
      %v7007 = vpop.f32.mrf.mxu0
      %v7008 = vadd.f32 %v6847, %v7007
      %v7009 = vpop.f32.mrf.mxu0
      %v7010 = vpop.f32.mrf.mxu0
      %v7011 = vadd.f32 %v6850, %v7010
      %v7012 = vpop.f32.mrf.mxu0
      %7013 = vmatprep.mubr.bf16.mxu0 %v5959
      %7014 = vmatmul.mubr.bf16.gmra.mxu0 %v5958
      %v7015 = vpop.f32.mrf.mxu0
      %v7016 = vadd.f32 %v6855, %v7015
      %v7017 = vpop.f32.mrf.mxu0
      %v7018 = vpop.f32.mrf.mxu0
      %v7019 = vadd.f32 %v6858, %v7018
      %v7020 = vpop.f32.mrf.mxu0
      %7021 = vdwg.mxu0
      %7022 = vmatprep.subr.bf16.mxu0 0
      %7023 = vmatpush1.bf16.msra.mxu0 %v6450
      %7024 = vmatprep.subr.bf16.mxu0 0
      %7025 = vmatpush1.bf16.msra.mxu0 %v6449
      %7026 = vmatprep.subr.bf16.mxu0 0
      %7027 = vmatpush1.bf16.msra.mxu0 %v6448
      %7028 = vmatprep.subr.bf16.mxu0 0
      %7029 = vmatpush1.bf16.msra.mxu0 %v6447
      %7030 = vmatprep.subr.bf16.mxu0 0
      %7031 = vmatpush1.bf16.msra.mxu0 %v6446
      %7032 = vmatprep.subr.bf16.mxu0 0
      %7033 = vmatpush1.bf16.msra.mxu0 %v6445
      %7034 = vmatprep.subr.bf16.mxu0 0
      %7035 = vmatpush1.bf16.msra.mxu0 %v6444
      %7036 = vmatprep.subr.bf16.mxu0 0
      %7037 = vmatpush1.bf16.msra.mxu0 %v6443
      %7038 = vmatprep.subr.bf16.mxu0 0
      %7039 = vmatpush2.bf16.msra.mxu0 %v6458
      %7040 = vmatprep.subr.bf16.mxu0 0
      %7041 = vmatpush2.bf16.msra.mxu0 %v6457
      %7042 = vmatprep.subr.bf16.mxu0 0
      %7043 = vmatpush2.bf16.msra.mxu0 %v6456
      %7044 = vmatprep.subr.bf16.mxu0 0
      %7045 = vmatpush2.bf16.msra.mxu0 %v6455
      %7046 = vmatprep.subr.bf16.mxu0 0
      %7047 = vmatpush2.bf16.msra.mxu0 %v6454
      %7048 = vmatprep.subr.bf16.mxu0 0
      %7049 = vmatpush2.bf16.msra.mxu0 %v6453
      %7050 = vmatprep.subr.bf16.mxu0 0
      %7051 = vmatpush2.bf16.msra.mxu0 %v6452
      %7052 = vmatprep.subr.bf16.mxu0 0
      %7053 = vmatpush2.bf16.msra.mxu0 %v6451
      %7054 = vmatprep.mubr.bf16.mxu0 %v5826
      %7055 = vmatmul.mubr.bf16.gmra.mxu0 %v5825
      %v7056 = vpop.f32.mrf.mxu0
      %v7057 = vadd.f32 %v6896, %v7056
      %v7058 = vpop.f32.mrf.mxu0
      %v7059 = vpop.f32.mrf.mxu0
      %v7060 = vadd.f32 %v6899, %v7059
      %v7061 = vpop.f32.mrf.mxu0
      %7062 = vmatprep.mubr.bf16.mxu0 %v5835
      %7063 = vmatmul.mubr.bf16.gmra.mxu0 %v5834
      %v7064 = vpop.f32.mrf.mxu0
      %v7065 = vadd.f32 %v6904, %v7064
      %v7066 = vpop.f32.mrf.mxu0
      %v7067 = vpop.f32.mrf.mxu0
      %v7068 = vadd.f32 %v6907, %v7067
      %v7069 = vpop.f32.mrf.mxu0
      %7070 = vmatprep.mubr.bf16.mxu0 %v5844
      %7071 = vmatmul.mubr.bf16.gmra.mxu0 %v5843
      %v7072 = vpop.f32.mrf.mxu0
      %v7073 = vadd.f32 %v6912, %v7072
      %v7074 = vpop.f32.mrf.mxu0
      %v7075 = vpop.f32.mrf.mxu0
      %v7076 = vadd.f32 %v6915, %v7075
      %v7077 = vpop.f32.mrf.mxu0
      %7078 = vmatprep.mubr.bf16.mxu0 %v5853
      %7079 = vmatmul.mubr.bf16.gmra.mxu0 %v5852
      %v7080 = vpop.f32.mrf.mxu0
      %v7081 = vadd.f32 %v6920, %v7080
      %v7082 = vpop.f32.mrf.mxu0
      %v7083 = vpop.f32.mrf.mxu0
      %v7084 = vadd.f32 %v6923, %v7083
      %v7085 = vpop.f32.mrf.mxu0
      %7086 = vmatprep.mubr.bf16.mxu0 %v5862
      %7087 = vmatmul.mubr.bf16.gmra.mxu0 %v5861
      %v7088 = vpop.f32.mrf.mxu0
      %v7089 = vadd.f32 %v6928, %v7088
      %v7090 = vpop.f32.mrf.mxu0
      %v7091 = vpop.f32.mrf.mxu0
      %v7092 = vadd.f32 %v6931, %v7091
      %v7093 = vpop.f32.mrf.mxu0
      %7094 = vmatprep.mubr.bf16.mxu0 %v5871
      %7095 = vmatmul.mubr.bf16.gmra.mxu0 %v5870
      %v7096 = vpop.f32.mrf.mxu0
      %v7097 = vadd.f32 %v6936, %v7096
      %v7098 = vpop.f32.mrf.mxu0
      %v7099 = vpop.f32.mrf.mxu0
      %v7100 = vadd.f32 %v6939, %v7099
      %v7101 = vpop.f32.mrf.mxu0
      %7102 = vmatprep.mubr.bf16.mxu0 %v5880
      %7103 = vmatmul.mubr.bf16.gmra.mxu0 %v5879
      %v7104 = vpop.f32.mrf.mxu0
      %v7105 = vadd.f32 %v6944, %v7104
      %v7106 = vpop.f32.mrf.mxu0
      %v7107 = vpop.f32.mrf.mxu0
      %v7108 = vadd.f32 %v6947, %v7107
      %v7109 = vpop.f32.mrf.mxu0
      %7110 = vmatprep.mubr.bf16.mxu0 %v5889
      %7111 = vmatmul.mubr.bf16.gmra.mxu0 %v5888
      %v7112 = vpop.f32.mrf.mxu0
      %v7113 = vadd.f32 %v6952, %v7112
      %v7114 = vpop.f32.mrf.mxu0
      %v7115 = vpop.f32.mrf.mxu0
      %v7116 = vadd.f32 %v6955, %v7115
      %v7117 = vpop.f32.mrf.mxu0
      %7118 = vmatprep.mubr.bf16.mxu0 %v5898
      %7119 = vmatmul.mubr.bf16.gmra.mxu0 %v5897
      %v7120 = vpop.f32.mrf.mxu0
      %v7121 = vadd.f32 %v6960, %v7120
      %v7122 = vpop.f32.mrf.mxu0
      %v7123 = vpop.f32.mrf.mxu0
      %v7124 = vadd.f32 %v6963, %v7123
      %v7125 = vpop.f32.mrf.mxu0
      %7126 = vmatprep.mubr.bf16.mxu0 %v5907
      %7127 = vmatmul.mubr.bf16.gmra.mxu0 %v5906
      %v7128 = vpop.f32.mrf.mxu0
      %v7129 = vadd.f32 %v6968, %v7128
      %v7130 = vpop.f32.mrf.mxu0
      %v7131 = vpop.f32.mrf.mxu0
      %v7132 = vadd.f32 %v6971, %v7131
      %v7133 = vpop.f32.mrf.mxu0
      %7134 = vmatprep.mubr.bf16.mxu0 %v5916
      %7135 = vmatmul.mubr.bf16.gmra.mxu0 %v5915
      %v7136 = vpop.f32.mrf.mxu0
      %v7137 = vadd.f32 %v6976, %v7136
      %v7138 = vpop.f32.mrf.mxu0
      %v7139 = vpop.f32.mrf.mxu0
      %v7140 = vadd.f32 %v6979, %v7139
      %v7141 = vpop.f32.mrf.mxu0
      %7142 = vmatprep.mubr.bf16.mxu0 %v5925
      %7143 = vmatmul.mubr.bf16.gmra.mxu0 %v5924
      %v7144 = vpop.f32.mrf.mxu0
      %v7145 = vadd.f32 %v6984, %v7144
      %v7146 = vpop.f32.mrf.mxu0
      %v7147 = vpop.f32.mrf.mxu0
      %v7148 = vadd.f32 %v6987, %v7147
      %v7149 = vpop.f32.mrf.mxu0
      %7150 = vmatprep.mubr.bf16.mxu0 %v5934
      %7151 = vmatmul.mubr.bf16.gmra.mxu0 %v5933
      %v7152 = vpop.f32.mrf.mxu0
      %v7153 = vadd.f32 %v6992, %v7152
      %v7154 = vpop.f32.mrf.mxu0
      %v7155 = vpop.f32.mrf.mxu0
      %v7156 = vadd.f32 %v6995, %v7155
      %v7157 = vpop.f32.mrf.mxu0
      %7158 = vmatprep.mubr.bf16.mxu0 %v5943
      %7159 = vmatmul.mubr.bf16.gmra.mxu0 %v5942
      %v7160 = vpop.f32.mrf.mxu0
      %v7161 = vadd.f32 %v7000, %v7160
      %v7162 = vpop.f32.mrf.mxu0
      %v7163 = vpop.f32.mrf.mxu0
      %v7164 = vadd.f32 %v7003, %v7163
      %v7165 = vpop.f32.mrf.mxu0
      %7166 = vmatprep.mubr.bf16.mxu0 %v5952
      %7167 = vmatmul.mubr.bf16.gmra.mxu0 %v5951
      %v7168 = vpop.f32.mrf.mxu0
      %v7169 = vadd.f32 %v7008, %v7168
      %v7170 = vpop.f32.mrf.mxu0
      %v7171 = vpop.f32.mrf.mxu0
      %v7172 = vadd.f32 %v7011, %v7171
      %v7173 = vpop.f32.mrf.mxu0
      %7174 = vmatprep.mubr.bf16.mxu0 %v5961
      %7175 = vmatmul.mubr.bf16.gmra.mxu0 %v5960
      %v7176 = vpop.f32.mrf.mxu0
      %v7177 = vadd.f32 %v7016, %v7176
      %v7178 = vpop.f32.mrf.mxu0
      %v7179 = vpop.f32.mrf.mxu0
      %v7180 = vadd.f32 %v7019, %v7179
      %v7181 = vpop.f32.mrf.mxu0
      %7182 = vdwg.mxu0
      %7183 = vmatprep.subr.bf16.mxu0 0
      %7184 = vmatpush1.bf16.msra.mxu0 %v6466
      %7185 = vmatprep.subr.bf16.mxu0 0
      %7186 = vmatpush1.bf16.msra.mxu0 %v6465
      %7187 = vmatprep.subr.bf16.mxu0 0
      %7188 = vmatpush1.bf16.msra.mxu0 %v6464
      %7189 = vmatprep.subr.bf16.mxu0 0
      %7190 = vmatpush1.bf16.msra.mxu0 %v6463
      %7191 = vmatprep.subr.bf16.mxu0 0
      %7192 = vmatpush1.bf16.msra.mxu0 %v6462
      %7193 = vmatprep.subr.bf16.mxu0 0
      %7194 = vmatpush1.bf16.msra.mxu0 %v6461
      %7195 = vmatprep.subr.bf16.mxu0 0
      %7196 = vmatpush1.bf16.msra.mxu0 %v6460
      %7197 = vmatprep.subr.bf16.mxu0 0
      %7198 = vmatpush1.bf16.msra.mxu0 %v6459
      %7199 = vmatprep.subr.bf16.mxu0 0
      %7200 = vmatpush2.bf16.msra.mxu0 0
      %7201 = vmatprep.subr.bf16.mxu0 0
      %7202 = vmatpush2.bf16.msra.mxu0 0
      %7203 = vmatprep.subr.bf16.mxu0 0
      %7204 = vmatpush2.bf16.msra.mxu0 0
      %7205 = vmatprep.subr.bf16.mxu0 0
      %7206 = vmatpush2.bf16.msra.mxu0 0
      %7207 = vmatprep.subr.bf16.mxu0 0
      %7208 = vmatpush2.bf16.msra.mxu0 0
      %7209 = vmatprep.subr.bf16.mxu0 0
      %7210 = vmatpush2.bf16.msra.mxu0 0
      %7211 = vmatprep.subr.bf16.mxu0 0
      %7212 = vmatpush2.bf16.msra.mxu0 0
      %7213 = vmatprep.subr.bf16.mxu0 0
      %7214 = vmatpush2.bf16.msra.mxu0 0
      %7215 = vmatprep.mubr.bf16.mxu0 0
      %7216 = vmatmul.mubr.bf16.gmra.mxu0 %v5827
      %v7217 = vpop.f32.mrf.mxu0
      %v7218 = vadd.f32 %v7057, %v7217
      %v7219 = vpop.f32.mrf.mxu0
      %v7220 = vpop.f32.mrf.mxu0
      %v7221 = vadd.f32 %v7060, %v7220
      %v7222 = vpop.f32.mrf.mxu0
      %7223 = vmatprep.mubr.bf16.mxu0 0
      %7224 = vmatmul.mubr.bf16.gmra.mxu0 %v5836
      %v7225 = vpop.f32.mrf.mxu0
      %v7226 = vadd.f32 %v7065, %v7225
      %v7227 = vpop.f32.mrf.mxu0
      %v7228 = vpop.f32.mrf.mxu0
      %v7229 = vadd.f32 %v7068, %v7228
      %v7230 = vpop.f32.mrf.mxu0
      %7231 = vmatprep.mubr.bf16.mxu0 0
      %7232 = vmatmul.mubr.bf16.gmra.mxu0 %v5845
      %v7233 = vpop.f32.mrf.mxu0
      %v7234 = vadd.f32 %v7073, %v7233
      %v7235 = vpop.f32.mrf.mxu0
      %v7236 = vpop.f32.mrf.mxu0
      %v7237 = vadd.f32 %v7076, %v7236
      %v7238 = vpop.f32.mrf.mxu0
      %7239 = vmatprep.mubr.bf16.mxu0 0
      %7240 = vmatmul.mubr.bf16.gmra.mxu0 %v5854
      %v7241 = vpop.f32.mrf.mxu0
      %v7242 = vadd.f32 %v7081, %v7241
      %v7243 = vpop.f32.mrf.mxu0
      %v7244 = vpop.f32.mrf.mxu0
      %v7245 = vadd.f32 %v7084, %v7244
      %v7246 = vpop.f32.mrf.mxu0
      %7247 = vmatprep.mubr.bf16.mxu0 0
      %7248 = vmatmul.mubr.bf16.gmra.mxu0 %v5863
      %v7249 = vpop.f32.mrf.mxu0
      %v7250 = vadd.f32 %v7089, %v7249
      %v7251 = vpop.f32.mrf.mxu0
      %v7252 = vpop.f32.mrf.mxu0
      %v7253 = vadd.f32 %v7092, %v7252
      %v7254 = vpop.f32.mrf.mxu0
      %7255 = vmatprep.mubr.bf16.mxu0 0
      %7256 = vmatmul.mubr.bf16.gmra.mxu0 %v5872
      %v7257 = vpop.f32.mrf.mxu0
      %v7258 = vadd.f32 %v7097, %v7257
      %v7259 = vpop.f32.mrf.mxu0
      %v7260 = vpop.f32.mrf.mxu0
      %v7261 = vadd.f32 %v7100, %v7260
      %v7262 = vpop.f32.mrf.mxu0
      %7263 = vmatprep.mubr.bf16.mxu0 0
      %7264 = vmatmul.mubr.bf16.gmra.mxu0 %v5881
      %v7265 = vpop.f32.mrf.mxu0
      %v7266 = vadd.f32 %v7105, %v7265
      %v7267 = vpop.f32.mrf.mxu0
      %v7268 = vpop.f32.mrf.mxu0
      %v7269 = vadd.f32 %v7108, %v7268
      %v7270 = vpop.f32.mrf.mxu0
      %7271 = vmatprep.mubr.bf16.mxu0 0
      %7272 = vmatmul.mubr.bf16.gmra.mxu0 %v5890
      %v7273 = vpop.f32.mrf.mxu0
      %v7274 = vadd.f32 %v7113, %v7273
      %v7275 = vpop.f32.mrf.mxu0
      %v7276 = vpop.f32.mrf.mxu0
      %v7277 = vadd.f32 %v7116, %v7276
      %v7278 = vpop.f32.mrf.mxu0
      %7279 = vmatprep.mubr.bf16.mxu0 0
      %7280 = vmatmul.mubr.bf16.gmra.mxu0 %v5899
      %v7281 = vpop.f32.mrf.mxu0
      %v7282 = vadd.f32 %v7121, %v7281
      %v7283 = vpop.f32.mrf.mxu0
      %v7284 = vpop.f32.mrf.mxu0
      %v7285 = vadd.f32 %v7124, %v7284
      %v7286 = vpop.f32.mrf.mxu0
      %7287 = vmatprep.mubr.bf16.mxu0 0
      %7288 = vmatmul.mubr.bf16.gmra.mxu0 %v5908
      %v7289 = vpop.f32.mrf.mxu0
      %v7290 = vadd.f32 %v7129, %v7289
      %v7291 = vpop.f32.mrf.mxu0
      %v7292 = vpop.f32.mrf.mxu0
      %v7293 = vadd.f32 %v7132, %v7292
      %v7294 = vpop.f32.mrf.mxu0
      %7295 = vmatprep.mubr.bf16.mxu0 0
      %7296 = vmatmul.mubr.bf16.gmra.mxu0 %v5917
      %v7297 = vpop.f32.mrf.mxu0
      %v7298 = vadd.f32 %v7137, %v7297
      %v7299 = vpop.f32.mrf.mxu0
      %v7300 = vpop.f32.mrf.mxu0
      %v7301 = vadd.f32 %v7140, %v7300
      %v7302 = vpop.f32.mrf.mxu0
      %7303 = vmatprep.mubr.bf16.mxu0 0
      %7304 = vmatmul.mubr.bf16.gmra.mxu0 %v5926
      %v7305 = vpop.f32.mrf.mxu0
      %v7306 = vadd.f32 %v7145, %v7305
      %v7307 = vpop.f32.mrf.mxu0
      %v7308 = vpop.f32.mrf.mxu0
      %v7309 = vadd.f32 %v7148, %v7308
      %v7310 = vpop.f32.mrf.mxu0
      %7311 = vmatprep.mubr.bf16.mxu0 0
      %7312 = vmatmul.mubr.bf16.gmra.mxu0 %v5935
      %v7313 = vpop.f32.mrf.mxu0
      %v7314 = vadd.f32 %v7153, %v7313
      %v7315 = vpop.f32.mrf.mxu0
      %v7316 = vpop.f32.mrf.mxu0
      %v7317 = vadd.f32 %v7156, %v7316
      %v7318 = vpop.f32.mrf.mxu0
      %7319 = vmatprep.mubr.bf16.mxu0 0
      %7320 = vmatmul.mubr.bf16.gmra.mxu0 %v5944
      %v7321 = vpop.f32.mrf.mxu0
      %v7322 = vadd.f32 %v7161, %v7321
      %v7323 = vpop.f32.mrf.mxu0
      %v7324 = vpop.f32.mrf.mxu0
      %v7325 = vadd.f32 %v7164, %v7324
      %v7326 = vpop.f32.mrf.mxu0
      %7327 = vmatprep.mubr.bf16.mxu0 0
      %7328 = vmatmul.mubr.bf16.gmra.mxu0 %v5953
      %v7329 = vpop.f32.mrf.mxu0
      %v7330 = vadd.f32 %v7169, %v7329
      %v7331 = vpop.f32.mrf.mxu0
      %v7332 = vpop.f32.mrf.mxu0
      %v7333 = vadd.f32 %v7172, %v7332
      %v7334 = vpop.f32.mrf.mxu0
      %7335 = vmatprep.mubr.bf16.mxu0 0
      %7336 = vmatmul.mubr.bf16.gmra.mxu0 %v5962
      %v7337 = vpop.f32.mrf.mxu0
      %v7338 = vadd.f32 %v7177, %v7337
      %v7339 = vpop.f32.mrf.mxu0
      %v7340 = vpop.f32.mrf.mxu0
      %v7341 = vadd.f32 %v7180, %v7340
      %v7342 = vpop.f32.mrf.mxu0
      %7343 = vdwg.mxu0
      %v7344 = vmax.f32 %v7218, 0.0
      %v7345 = vmax.f32 %v7221, 0.0
      %v7346 = vmax.f32 %v7226, 0.0
      %v7347 = vmax.f32 %v7229, 0.0
      %v7348 = vmax.f32 %v7234, 0.0
      %v7349 = vmax.f32 %v7237, 0.0
      %v7350 = vmax.f32 %v7242, 0.0
      %v7351 = vmax.f32 %v7245, 0.0
      %v7352 = vmax.f32 %v7250, 0.0
      %v7353 = vmax.f32 %v7253, 0.0
      %v7354 = vmax.f32 %v7258, 0.0
      %v7355 = vmax.f32 %v7261, 0.0
      %v7356 = vmax.f32 %v7266, 0.0
      %v7357 = vmax.f32 %v7269, 0.0
      %v7358 = vmax.f32 %v7274, 0.0
      %v7359 = vmax.f32 %v7277, 0.0
      %v7360 = vmax.f32 %v7282, 0.0
      %v7361 = vmax.f32 %v7285, 0.0
      %v7362 = vmax.f32 %v7290, 0.0
      %v7363 = vmax.f32 %v7293, 0.0
      %v7364 = vmax.f32 %v7298, 0.0
      %v7365 = vmax.f32 %v7301, 0.0
      %v7366 = vmax.f32 %v7306, 0.0
      %v7367 = vmax.f32 %v7309, 0.0
      %v7368 = vmax.f32 %v7314, 0.0
      %v7369 = vmax.f32 %v7317, 0.0
      %v7370 = vmax.f32 %v7322, 0.0
      %v7371 = vmax.f32 %v7325, 0.0
      %v7372 = vmax.f32 %v7330, 0.0
      %v7373 = vmax.f32 %v7333, 0.0
      %v7374 = vmax.f32 %v7338, 0.0
      %v7375 = vmax.f32 %v7341, 0.0
      %v7376 = vpack.c.bf16 %v7345, %v7344
      %v7377 = vpack.c.bf16 %v7347, %v7346
      %v7378 = vpack.c.bf16 %v7349, %v7348
      %v7379 = vpack.c.bf16 %v7351, %v7350
      %v7380 = vpack.c.bf16 %v7353, %v7352
      %v7381 = vpack.c.bf16 %v7355, %v7354
      %v7382 = vpack.c.bf16 %v7357, %v7356
      %v7383 = vpack.c.bf16 %v7359, %v7358
      %v7384 = vpack.c.bf16 %v7361, %v7360
      %v7385 = vpack.c.bf16 %v7363, %v7362
      %v7386 = vpack.c.bf16 %v7365, %v7364
      %v7387 = vpack.c.bf16 %v7367, %v7366
      %v7388 = vpack.c.bf16 %v7369, %v7368
      %v7389 = vpack.c.bf16 %v7371, %v7370
      %v7390 = vpack.c.bf16 %v7373, %v7372
      %v7391 = vpack.c.bf16 %v7375, %v7374
      %s7392 = smul.u32 %s305, 4
      %s7393 = smul.addr %s7392, 4
      %s7394 = scalar_lea.vmem %s292, %s7393
      %v7395 = vld [vmem:[%s7394] sm:$0xf]
      %v7396 = vld [vmem:[%s7394 + $0x4] sm:$0xf]
      %v7397 = vld [vmem:[%s7394 + $0x8] sm:$0xf]
      %v7398 = vld [vmem:[%s7394 + $0xc] sm:$0xf]
      %v7399 = vld [vmem:[%s7394 + $0x10] sm:$0xf]
      %v7400 = vld [vmem:[%s7394 + $0x14] sm:$0xf]
      %v7401 = vld [vmem:[%s7394 + $0x18] sm:$0xf]
      %v7402 = vld [vmem:[%s7394 + $0x1c] sm:$0xf]
      %v7403 = vld [vmem:[%s7394 + $0x20] sm:$0xf]
      %v7404 = vld [vmem:[%s7394 + $0x24] sm:$0xf]
      %v7405 = vld [vmem:[%s7394 + $0x28] sm:$0xf]
      %v7406 = vld [vmem:[%s7394 + $0x2c] sm:$0xf]
      %v7407 = vld [vmem:[%s7394 + $0x30] sm:$0xf]
      %v7408 = vld [vmem:[%s7394 + $0x34] sm:$0xf]
      %v7409 = vld [vmem:[%s7394 + $0x38] sm:$0xf]
      %v7410 = vld [vmem:[%s7394 + $0x3c] sm:$0xf]
      %v7411 = vld [vmem:[%s7394 + $0x40] sm:$0xf]
      %v7412 = vld [vmem:[%s7394 + $0x44] sm:$0xf]
      %v7413 = vld [vmem:[%s7394 + $0x48] sm:$0xf]
      %v7414 = vld [vmem:[%s7394 + $0x4c] sm:$0xf]
      %v7415 = vld [vmem:[%s7394 + $0x50] sm:$0xf]
      %v7416 = vld [vmem:[%s7394 + $0x54] sm:$0xf]
      %v7417 = vld [vmem:[%s7394 + $0x58] sm:$0xf]
      %v7418 = vld [vmem:[%s7394 + $0x5c] sm:$0xf]
      %v7419 = vld [vmem:[%s7394 + $0x60] sm:$0xf]
      %v7420 = vld [vmem:[%s7394 + $0x64] sm:$0xf]
      %v7421 = vld [vmem:[%s7394 + $0x68] sm:$0xf]
      %v7422 = vld [vmem:[%s7394 + $0x6c] sm:$0xf]
      %v7423 = vld [vmem:[%s7394 + $0x70] sm:$0xf]
      %v7424 = vld [vmem:[%s7394 + $0x74] sm:$0xf]
      %v7425 = vld [vmem:[%s7394 + $0x78] sm:$0xf]
      %v7426 = vld [vmem:[%s7394 + $0x7c] sm:$0xf]
      %v7459 = vunpack.c.l.b16 %v7395
      %v7460 = vunpack.c.l.b16 %v7396
      %v7461 = vunpack.c.l.b16 %v7397
      %v7462 = vunpack.c.l.b16 %v7398
      %v7463 = vunpack.c.l.b16 %v7399
      %v7464 = vunpack.c.l.b16 %v7400
      %v7465 = vunpack.c.l.b16 %v7401
      %v7466 = vunpack.c.l.b16 %v7402
      %v7467 = vunpack.c.l.b16 %v7403
      %v7468 = vunpack.c.l.b16 %v7404
      %v7469 = vunpack.c.l.b16 %v7405
      %v7470 = vunpack.c.l.b16 %v7406
      %v7471 = vunpack.c.l.b16 %v7407
      %v7472 = vunpack.c.l.b16 %v7408
      %v7473 = vunpack.c.l.b16 %v7409
      %v7474 = vunpack.c.l.b16 %v7410
      %v7475 = vunpack.c.l.b16 %v7411
      %v7476 = vunpack.c.l.b16 %v7412
      %v7477 = vunpack.c.l.b16 %v7413
      %v7478 = vunpack.c.l.b16 %v7414
      %v7479 = vunpack.c.l.b16 %v7415
      %v7480 = vunpack.c.l.b16 %v7416
      %v7481 = vunpack.c.l.b16 %v7417
      %v7482 = vunpack.c.l.b16 %v7418
      %v7483 = vunpack.c.l.b16 %v7419
      %v7484 = vunpack.c.l.b16 %v7420
      %v7485 = vunpack.c.l.b16 %v7421
      %v7486 = vunpack.c.l.b16 %v7422
      %v7487 = vunpack.c.l.b16 %v7423
      %v7488 = vunpack.c.l.b16 %v7424
      %v7489 = vunpack.c.l.b16 %v7425
      %v7490 = vunpack.c.l.b16 %v7426
      %v7491 = vpack.c.b16 %v7460, %v7459
      %v7492 = vpack.c.b16 %v7462, %v7461
      %v7493 = vpack.c.b16 %v7464, %v7463
      %v7494 = vpack.c.b16 %v7466, %v7465
      %v7495 = vpack.c.b16 %v7468, %v7467
      %v7496 = vpack.c.b16 %v7470, %v7469
      %v7497 = vpack.c.b16 %v7472, %v7471
      %v7498 = vpack.c.b16 %v7474, %v7473
      %v7499 = vpack.c.b16 %v7476, %v7475
      %v7500 = vpack.c.b16 %v7478, %v7477
      %v7501 = vpack.c.b16 %v7480, %v7479
      %v7502 = vpack.c.b16 %v7482, %v7481
      %v7503 = vpack.c.b16 %v7484, %v7483
      %v7504 = vpack.c.b16 %v7486, %v7485
      %v7505 = vpack.c.b16 %v7488, %v7487
      %v7506 = vpack.c.b16 %v7490, %v7489
      %7507 = vrot.lane.b32.xlu0 %v7491, 4
      %v7508 = vpop.permute.xlu0 %7507
      %7509 = vrot.lane.b32.xlu0 %v7492, 4
      %v7510 = vpop.permute.xlu0 %7509
      %7511 = vrot.lane.b32.xlu0 %v7493, 4
      %v7512 = vpop.permute.xlu0 %7511
      %7513 = vrot.lane.b32.xlu0 %v7494, 4
      %v7514 = vpop.permute.xlu0 %7513
      %7515 = vrot.lane.b32.xlu0 %v7495, 4
      %v7516 = vpop.permute.xlu0 %7515
      %7517 = vrot.lane.b32.xlu0 %v7496, 4
      %v7518 = vpop.permute.xlu0 %7517
      %7519 = vrot.lane.b32.xlu0 %v7497, 4
      %v7520 = vpop.permute.xlu0 %7519
      %7521 = vrot.lane.b32.xlu0 %v7498, 4
      %v7522 = vpop.permute.xlu0 %7521
      %7523 = vrot.lane.b32.xlu0 %v7499, 4
      %v7524 = vpop.permute.xlu0 %7523
      %7525 = vrot.lane.b32.xlu0 %v7500, 4
      %v7526 = vpop.permute.xlu0 %7525
      %7527 = vrot.lane.b32.xlu0 %v7501, 4
      %v7528 = vpop.permute.xlu0 %7527
      %7529 = vrot.lane.b32.xlu0 %v7502, 4
      %v7530 = vpop.permute.xlu0 %7529
      %7531 = vrot.lane.b32.xlu0 %v7503, 4
      %v7532 = vpop.permute.xlu0 %7531
      %7533 = vrot.lane.b32.xlu0 %v7504, 4
      %v7534 = vpop.permute.xlu0 %7533
      %7535 = vrot.lane.b32.xlu0 %v7505, 4
      %v7536 = vpop.permute.xlu0 %7535
      %7537 = vrot.lane.b32.xlu0 %v7506, 4
      %v7538 = vpop.permute.xlu0 %7537
      %vm7539 = vcmask 31744
      %v7542 = vsel %vm7539, %v7376, %v7508
      %v7545 = vsel %vm7539, %v7377, %v7510
      %v7548 = vsel %vm7539, %v7378, %v7512
      %v7551 = vsel %vm7539, %v7379, %v7514
      %v7554 = vsel %vm7539, %v7380, %v7516
      %v7557 = vsel %vm7539, %v7381, %v7518
      %v7560 = vsel %vm7539, %v7382, %v7520
      %v7563 = vsel %vm7539, %v7383, %v7522
      %v7566 = vsel %vm7539, %v7384, %v7524
      %v7569 = vsel %vm7539, %v7385, %v7526
      %v7572 = vsel %vm7539, %v7386, %v7528
      %v7575 = vsel %vm7539, %v7387, %v7530
      %v7578 = vsel %vm7539, %v7388, %v7532
      %v7581 = vsel %vm7539, %v7389, %v7534
      %v7584 = vsel %vm7539, %v7390, %v7536
      %v7587 = vsel %vm7539, %v7391, %v7538
      %v7588 = vld [vmem:[%s5] sm:$0xf]
      %v7589 = vld [vmem:[%s6] sm:$0x1]
      %v7591 = vlaneseq
      %v7592 = vshrl.u32 %v7591, 7
      %v7593 = vsub.s32 0, %v7592
      %v7594 = vrot.slane %v7589, %v7593
      %vm7596 = vcmask 64512
      %v7597 = vsel %vm7596, %v7542, 0
      %v7599 = vsel %vm7596, %v7545, 0
      %v7601 = vsel %vm7596, %v7548, 0
      %v7603 = vsel %vm7596, %v7551, 0
      %v7605 = vsel %vm7596, %v7554, 0
      %v7607 = vsel %vm7596, %v7557, 0
      %v7609 = vsel %vm7596, %v7560, 0
      %v7611 = vsel %vm7596, %v7563, 0
      %v7613 = vsel %vm7596, %v7566, 0
      %v7615 = vsel %vm7596, %v7569, 0
      %v7617 = vsel %vm7596, %v7572, 0
      %v7619 = vsel %vm7596, %v7575, 0
      %v7621 = vsel %vm7596, %v7578, 0
      %v7623 = vsel %vm7596, %v7581, 0
      %v7625 = vsel %vm7596, %v7584, 0
      %v7627 = vsel %vm7596, %v7587, 0
      %vm7629 = vcmask 1043456
      %v7631 = vsel %vm7629, %v7588, 0
      %7633 = vmatprep.subr.bf16.mxu0 0
      %7634 = vmatpush1.bf16.msra.mxu0 0
      %7635 = vmatprep.subr.bf16.mxu0 0
      %7636 = vmatpush1.bf16.msra.mxu0 0
      %7637 = vmatprep.subr.bf16.mxu0 0
      %7638 = vmatpush1.bf16.msra.mxu0 0
      %7639 = vmatprep.subr.bf16.mxu0 0
      %7640 = vmatpush1.bf16.msra.mxu0 0
      %7641 = vmatprep.subr.bf16.mxu0 0
      %7642 = vmatpush1.bf16.msra.mxu0 0
      %7643 = vmatprep.subr.bf16.mxu0 0
      %7644 = vmatpush1.bf16.msra.mxu0 0
      %7645 = vmatprep.subr.bf16.mxu0 0
      %7646 = vmatpush1.bf16.msra.mxu0 0
      %7647 = vmatprep.subr.bf16.mxu0 0
      %7648 = vmatpush1.bf16.msra.mxu0 %v7631
      %7649 = vmatprep.subr.bf16.mxu0 0
      %7650 = vmatpush2.bf16.msra.mxu0 0
      %7651 = vmatprep.subr.bf16.mxu0 0
      %7652 = vmatpush2.bf16.msra.mxu0 0
      %7653 = vmatprep.subr.bf16.mxu0 0
      %7654 = vmatpush2.bf16.msra.mxu0 0
      %7655 = vmatprep.subr.bf16.mxu0 0
      %7656 = vmatpush2.bf16.msra.mxu0 0
      %7657 = vmatprep.subr.bf16.mxu0 0
      %7658 = vmatpush2.bf16.msra.mxu0 0
      %7659 = vmatprep.subr.bf16.mxu0 0
      %7660 = vmatpush2.bf16.msra.mxu0 0
      %7661 = vmatprep.subr.bf16.mxu0 0
      %7662 = vmatpush2.bf16.msra.mxu0 0
      %7663 = vmatprep.subr.bf16.mxu0 0
      %7664 = vmatpush2.bf16.msra.mxu0 0
      %7665 = vmatprep.mubr.bf16.mxu0 0
      %7666 = vmatmul.mubr.bf16.gmra.mxu0 %v7597
      %v7667 = vpop.f32.mrf.mxu0
      %v7668 = vadd.f32 %v7594, %v7667
      %v7669 = vpop.f32.mrf.mxu0
      %v7670 = vpop.f32.mrf.mxu0
      %v7671 = vadd.f32 %v7594, %v7670
      %v7672 = vpop.f32.mrf.mxu0
      %7673 = vmatprep.mubr.bf16.mxu0 0
      %7674 = vmatmul.mubr.bf16.gmra.mxu0 %v7599
      %v7675 = vpop.f32.mrf.mxu0
      %v7676 = vadd.f32 %v7594, %v7675
      %v7677 = vpop.f32.mrf.mxu0
      %v7678 = vpop.f32.mrf.mxu0
      %v7679 = vadd.f32 %v7594, %v7678
      %v7680 = vpop.f32.mrf.mxu0
      %7681 = vmatprep.mubr.bf16.mxu0 0
      %7682 = vmatmul.mubr.bf16.gmra.mxu0 %v7601
      %v7683 = vpop.f32.mrf.mxu0
      %v7684 = vadd.f32 %v7594, %v7683
      %v7685 = vpop.f32.mrf.mxu0
      %v7686 = vpop.f32.mrf.mxu0
      %v7687 = vadd.f32 %v7594, %v7686
      %v7688 = vpop.f32.mrf.mxu0
      %7689 = vmatprep.mubr.bf16.mxu0 0
      %7690 = vmatmul.mubr.bf16.gmra.mxu0 %v7603
      %v7691 = vpop.f32.mrf.mxu0
      %v7692 = vadd.f32 %v7594, %v7691
      %v7693 = vpop.f32.mrf.mxu0
      %v7694 = vpop.f32.mrf.mxu0
      %v7695 = vadd.f32 %v7594, %v7694
      %v7696 = vpop.f32.mrf.mxu0
      %7697 = vmatprep.mubr.bf16.mxu0 0
      %7698 = vmatmul.mubr.bf16.gmra.mxu0 %v7605
      %v7699 = vpop.f32.mrf.mxu0
      %v7700 = vadd.f32 %v7594, %v7699
      %v7701 = vpop.f32.mrf.mxu0
      %v7702 = vpop.f32.mrf.mxu0
      %v7703 = vadd.f32 %v7594, %v7702
      %v7704 = vpop.f32.mrf.mxu0
      %7705 = vmatprep.mubr.bf16.mxu0 0
      %7706 = vmatmul.mubr.bf16.gmra.mxu0 %v7607
      %v7707 = vpop.f32.mrf.mxu0
      %v7708 = vadd.f32 %v7594, %v7707
      %v7709 = vpop.f32.mrf.mxu0
      %v7710 = vpop.f32.mrf.mxu0
      %v7711 = vadd.f32 %v7594, %v7710
      %v7712 = vpop.f32.mrf.mxu0
      %7713 = vmatprep.mubr.bf16.mxu0 0
      %7714 = vmatmul.mubr.bf16.gmra.mxu0 %v7609
      %v7715 = vpop.f32.mrf.mxu0
      %v7716 = vadd.f32 %v7594, %v7715
      %v7717 = vpop.f32.mrf.mxu0
      %v7718 = vpop.f32.mrf.mxu0
      %v7719 = vadd.f32 %v7594, %v7718
      %v7720 = vpop.f32.mrf.mxu0
      %7721 = vmatprep.mubr.bf16.mxu0 0
      %7722 = vmatmul.mubr.bf16.gmra.mxu0 %v7611
      %v7723 = vpop.f32.mrf.mxu0
      %v7724 = vadd.f32 %v7594, %v7723
      %v7725 = vpop.f32.mrf.mxu0
      %v7726 = vpop.f32.mrf.mxu0
      %v7727 = vadd.f32 %v7594, %v7726
      %v7728 = vpop.f32.mrf.mxu0
      %7729 = vmatprep.mubr.bf16.mxu0 0
      %7730 = vmatmul.mubr.bf16.gmra.mxu0 %v7613
      %v7731 = vpop.f32.mrf.mxu0
      %v7732 = vadd.f32 %v7594, %v7731
      %v7733 = vpop.f32.mrf.mxu0
      %v7734 = vpop.f32.mrf.mxu0
      %v7735 = vadd.f32 %v7594, %v7734
      %v7736 = vpop.f32.mrf.mxu0
      %7737 = vmatprep.mubr.bf16.mxu0 0
      %7738 = vmatmul.mubr.bf16.gmra.mxu0 %v7615
      %v7739 = vpop.f32.mrf.mxu0
      %v7740 = vadd.f32 %v7594, %v7739
      %v7741 = vpop.f32.mrf.mxu0
      %v7742 = vpop.f32.mrf.mxu0
      %v7743 = vadd.f32 %v7594, %v7742
      %v7744 = vpop.f32.mrf.mxu0
      %7745 = vmatprep.mubr.bf16.mxu0 0
      %7746 = vmatmul.mubr.bf16.gmra.mxu0 %v7617
      %v7747 = vpop.f32.mrf.mxu0
      %v7748 = vadd.f32 %v7594, %v7747
      %v7749 = vpop.f32.mrf.mxu0
      %v7750 = vpop.f32.mrf.mxu0
      %v7751 = vadd.f32 %v7594, %v7750
      %v7752 = vpop.f32.mrf.mxu0
      %7753 = vmatprep.mubr.bf16.mxu0 0
      %7754 = vmatmul.mubr.bf16.gmra.mxu0 %v7619
      %v7755 = vpop.f32.mrf.mxu0
      %v7756 = vadd.f32 %v7594, %v7755
      %v7757 = vpop.f32.mrf.mxu0
      %v7758 = vpop.f32.mrf.mxu0
      %v7759 = vadd.f32 %v7594, %v7758
      %v7760 = vpop.f32.mrf.mxu0
      %7761 = vmatprep.mubr.bf16.mxu0 0
      %7762 = vmatmul.mubr.bf16.gmra.mxu0 %v7621
      %v7763 = vpop.f32.mrf.mxu0
      %v7764 = vadd.f32 %v7594, %v7763
      %v7765 = vpop.f32.mrf.mxu0
      %v7766 = vpop.f32.mrf.mxu0
      %v7767 = vadd.f32 %v7594, %v7766
      %v7768 = vpop.f32.mrf.mxu0
      %7769 = vmatprep.mubr.bf16.mxu0 0
      %7770 = vmatmul.mubr.bf16.gmra.mxu0 %v7623
      %v7771 = vpop.f32.mrf.mxu0
      %v7772 = vadd.f32 %v7594, %v7771
      %v7773 = vpop.f32.mrf.mxu0
      %v7774 = vpop.f32.mrf.mxu0
      %v7775 = vadd.f32 %v7594, %v7774
      %v7776 = vpop.f32.mrf.mxu0
      %7777 = vmatprep.mubr.bf16.mxu0 0
      %7778 = vmatmul.mubr.bf16.gmra.mxu0 %v7625
      %v7779 = vpop.f32.mrf.mxu0
      %v7780 = vadd.f32 %v7594, %v7779
      %v7781 = vpop.f32.mrf.mxu0
      %v7782 = vpop.f32.mrf.mxu0
      %v7783 = vadd.f32 %v7594, %v7782
      %v7784 = vpop.f32.mrf.mxu0
      %7785 = vmatprep.mubr.bf16.mxu0 0
      %7786 = vmatmul.mubr.bf16.gmra.mxu0 %v7627
      %v7787 = vpop.f32.mrf.mxu0
      %v7788 = vadd.f32 %v7594, %v7787
      %v7789 = vpop.f32.mrf.mxu0
      %v7790 = vpop.f32.mrf.mxu0
      %v7791 = vadd.f32 %v7594, %v7790
      %v7792 = vpop.f32.mrf.mxu0
      %7793 = vdwg.mxu0
      %v7794 = vmax.f32 %v7668, 0.0
      %v7795 = vmax.f32 %v7671, 0.0
      %v7796 = vmax.f32 %v7676, 0.0
      %v7797 = vmax.f32 %v7679, 0.0
      %v7798 = vmax.f32 %v7684, 0.0
      %v7799 = vmax.f32 %v7687, 0.0
      %v7800 = vmax.f32 %v7692, 0.0
      %v7801 = vmax.f32 %v7695, 0.0
      %v7802 = vmax.f32 %v7700, 0.0
      %v7803 = vmax.f32 %v7703, 0.0
      %v7804 = vmax.f32 %v7708, 0.0
      %v7805 = vmax.f32 %v7711, 0.0
      %v7806 = vmax.f32 %v7716, 0.0
      %v7807 = vmax.f32 %v7719, 0.0
      %v7808 = vmax.f32 %v7724, 0.0
      %v7809 = vmax.f32 %v7727, 0.0
      %v7810 = vmax.f32 %v7732, 0.0
      %v7811 = vmax.f32 %v7735, 0.0
      %v7812 = vmax.f32 %v7740, 0.0
      %v7813 = vmax.f32 %v7743, 0.0
      %v7814 = vmax.f32 %v7748, 0.0
      %v7815 = vmax.f32 %v7751, 0.0
      %v7816 = vmax.f32 %v7756, 0.0
      %v7817 = vmax.f32 %v7759, 0.0
      %v7818 = vmax.f32 %v7764, 0.0
      %v7819 = vmax.f32 %v7767, 0.0
      %v7820 = vmax.f32 %v7772, 0.0
      %v7821 = vmax.f32 %v7775, 0.0
      %v7822 = vmax.f32 %v7780, 0.0
      %v7823 = vmax.f32 %v7783, 0.0
      %v7824 = vmax.f32 %v7788, 0.0
      %v7825 = vmax.f32 %v7791, 0.0
      %v7826 = vpack.c.bf16 %v7795, %v7794
      %v7827 = vpack.c.bf16 %v7797, %v7796
      %v7828 = vpack.c.bf16 %v7799, %v7798
      %v7829 = vpack.c.bf16 %v7801, %v7800
      %v7830 = vpack.c.bf16 %v7803, %v7802
      %v7831 = vpack.c.bf16 %v7805, %v7804
      %v7832 = vpack.c.bf16 %v7807, %v7806
      %v7833 = vpack.c.bf16 %v7809, %v7808
      %v7834 = vpack.c.bf16 %v7811, %v7810
      %v7835 = vpack.c.bf16 %v7813, %v7812
      %v7836 = vpack.c.bf16 %v7815, %v7814
      %v7837 = vpack.c.bf16 %v7817, %v7816
      %v7838 = vpack.c.bf16 %v7819, %v7818
      %v7839 = vpack.c.bf16 %v7821, %v7820
      %v7840 = vpack.c.bf16 %v7823, %v7822
      %v7841 = vpack.c.bf16 %v7825, %v7824
      %v7858 = vunpack.c.l.b16 %v7826
      %v7859 = vunpack.c.h.b16 %v7826
      %v7860 = vunpack.c.l.b16 %v7827
      %v7861 = vunpack.c.h.b16 %v7827
      %v7862 = vunpack.c.l.b16 %v7828
      %v7863 = vunpack.c.h.b16 %v7828
      %v7864 = vunpack.c.l.b16 %v7829
      %v7865 = vunpack.c.h.b16 %v7829
      %v7866 = vunpack.c.l.b16 %v7830
      %v7867 = vunpack.c.h.b16 %v7830
      %v7868 = vunpack.c.l.b16 %v7831
      %v7869 = vunpack.c.h.b16 %v7831
      %v7870 = vunpack.c.l.b16 %v7832
      %v7871 = vunpack.c.h.b16 %v7832
      %v7872 = vunpack.c.l.b16 %v7833
      %v7873 = vunpack.c.h.b16 %v7833
      %v7874 = vunpack.c.l.b16 %v7834
      %v7875 = vunpack.c.h.b16 %v7834
      %v7876 = vunpack.c.l.b16 %v7835
      %v7877 = vunpack.c.h.b16 %v7835
      %v7878 = vunpack.c.l.b16 %v7836
      %v7879 = vunpack.c.h.b16 %v7836
      %v7880 = vunpack.c.l.b16 %v7837
      %v7881 = vunpack.c.h.b16 %v7837
      %v7882 = vunpack.c.l.b16 %v7838
      %v7883 = vunpack.c.h.b16 %v7838
      %v7884 = vunpack.c.l.b16 %v7839
      %v7885 = vunpack.c.h.b16 %v7839
      %v7886 = vunpack.c.l.b16 %v7840
      %v7887 = vunpack.c.h.b16 %v7840
      %v7888 = vunpack.c.l.b16 %v7841
      %v7889 = vunpack.c.h.b16 %v7841
      %v7890 = vpack.c.b16 %v7858, %v7858
      %v7891 = vpack.c.b16 %v7859, %v7859
      %v7892 = vpack.c.b16 %v7860, %v7860
      %v7893 = vpack.c.b16 %v7861, %v7861
      %v7894 = vpack.c.b16 %v7862, %v7862
      %v7895 = vpack.c.b16 %v7863, %v7863
      %v7896 = vpack.c.b16 %v7864, %v7864
      %v7897 = vpack.c.b16 %v7865, %v7865
      %v7898 = vpack.c.b16 %v7866, %v7866
      %v7899 = vpack.c.b16 %v7867, %v7867
      %v7900 = vpack.c.b16 %v7868, %v7868
      %v7901 = vpack.c.b16 %v7869, %v7869
      %v7902 = vpack.c.b16 %v7870, %v7870
      %v7903 = vpack.c.b16 %v7871, %v7871
      %v7904 = vpack.c.b16 %v7872, %v7872
      %v7905 = vpack.c.b16 %v7873, %v7873
      %v7906 = vpack.c.b16 %v7874, %v7874
      %v7907 = vpack.c.b16 %v7875, %v7875
      %v7908 = vpack.c.b16 %v7876, %v7876
      %v7909 = vpack.c.b16 %v7877, %v7877
      %v7910 = vpack.c.b16 %v7878, %v7878
      %v7911 = vpack.c.b16 %v7879, %v7879
      %v7912 = vpack.c.b16 %v7880, %v7880
      %v7913 = vpack.c.b16 %v7881, %v7881
      %v7914 = vpack.c.b16 %v7882, %v7882
      %v7915 = vpack.c.b16 %v7883, %v7883
      %v7916 = vpack.c.b16 %v7884, %v7884
      %v7917 = vpack.c.b16 %v7885, %v7885
      %v7918 = vpack.c.b16 %v7886, %v7886
      %v7919 = vpack.c.b16 %v7887, %v7887
      %v7920 = vpack.c.b16 %v7888, %v7888
      %v7921 = vpack.c.b16 %v7889, %v7889
      %vm7954 = vcmask 125952
      %7955 = vst.msk [vmem:[%s302] sm:$0xf] %vm7954, %v7890
      %7956 = vst.msk [vmem:[%s302 + $0x4] sm:$0xf] %vm7954, %v7891
      %7957 = vst.msk [vmem:[%s302 + $0x8] sm:$0xf] %vm7954, %v7892
      %7958 = vst.msk [vmem:[%s302 + $0xc] sm:$0xf] %vm7954, %v7893
      %7959 = vst.msk [vmem:[%s302 + $0x10] sm:$0xf] %vm7954, %v7894
      %7960 = vst.msk [vmem:[%s302 + $0x14] sm:$0xf] %vm7954, %v7895
      %7961 = vst.msk [vmem:[%s302 + $0x18] sm:$0xf] %vm7954, %v7896
      %7962 = vst.msk [vmem:[%s302 + $0x1c] sm:$0xf] %vm7954, %v7897
      %7963 = vst.msk [vmem:[%s302 + $0x20] sm:$0xf] %vm7954, %v7898
      %7964 = vst.msk [vmem:[%s302 + $0x24] sm:$0xf] %vm7954, %v7899
      %7965 = vst.msk [vmem:[%s302 + $0x28] sm:$0xf] %vm7954, %v7900
      %7966 = vst.msk [vmem:[%s302 + $0x2c] sm:$0xf] %vm7954, %v7901
      %7967 = vst.msk [vmem:[%s302 + $0x30] sm:$0xf] %vm7954, %v7902
      %7968 = vst.msk [vmem:[%s302 + $0x34] sm:$0xf] %vm7954, %v7903
      %7969 = vst.msk [vmem:[%s302 + $0x38] sm:$0xf] %vm7954, %v7904
      %7970 = vst.msk [vmem:[%s302 + $0x3c] sm:$0xf] %vm7954, %v7905
      %7971 = vst.msk [vmem:[%s302 + $0x40] sm:$0xf] %vm7954, %v7906
      %7972 = vst.msk [vmem:[%s302 + $0x44] sm:$0xf] %vm7954, %v7907
      %7973 = vst.msk [vmem:[%s302 + $0x48] sm:$0xf] %vm7954, %v7908
      %7974 = vst.msk [vmem:[%s302 + $0x4c] sm:$0xf] %vm7954, %v7909
      %7975 = vst.msk [vmem:[%s302 + $0x50] sm:$0xf] %vm7954, %v7910
      %7976 = vst.msk [vmem:[%s302 + $0x54] sm:$0xf] %vm7954, %v7911
      %7977 = vst.msk [vmem:[%s302 + $0x58] sm:$0xf] %vm7954, %v7912
      %7978 = vst.msk [vmem:[%s302 + $0x5c] sm:$0xf] %vm7954, %v7913
      %7979 = vst.msk [vmem:[%s302 + $0x60] sm:$0xf] %vm7954, %v7914
      %7980 = vst.msk [vmem:[%s302 + $0x64] sm:$0xf] %vm7954, %v7915
      %7981 = vst.msk [vmem:[%s302 + $0x68] sm:$0xf] %vm7954, %v7916
      %7982 = vst.msk [vmem:[%s302 + $0x6c] sm:$0xf] %vm7954, %v7917
      %7983 = vst.msk [vmem:[%s302 + $0x70] sm:$0xf] %vm7954, %v7918
      %7984 = vst.msk [vmem:[%s302 + $0x74] sm:$0xf] %vm7954, %v7919
      %7985 = vst.msk [vmem:[%s302 + $0x78] sm:$0xf] %vm7954, %v7920
      %7986 = vst.msk [vmem:[%s302 + $0x7c] sm:$0xf] %vm7954, %v7921
      %s7987 = smul.u32 8, %s23
      %p7988 = scmp.lt.s32.totalorder %s22, 1
      %s7989 = scalar_select %p7988, %s22, 1
      %p7990 = scmp.lt.s32.totalorder %s7987, 31
      %s7991 = scalar_select %p7990, %s7987, 31
      %s7992 = smul.addr %s7991, 4
      %s7993 = smul.addr %s7989, 128
      %s7994 = sadd.s32 %s7992, %s7993
      %s7995 = smul.addr %s7994, 4
      %s7996 = scalar_lea.vmem %s7, %s7995
      // Predicated region
      $region61: #{tpu_custom_call.1} parent=47 // pred_check
        %p7997 = pneg %p202
      $region62: #{tpu_custom_call.1} parent=47 // pred_check_branch
        %7999 = sbr.rel (%p7997) target = $region64
      $region63: #{tpu_custom_call.1} parent=47 // pred_region
        %s8000 = smul.u32 8, %s23
      $region64: #{tpu_custom_call.1} parent=47 // pred_fallthru
        _
    $region48: #{tpu_custom_call.1} parent=5 // pred_fallthru
      _
    %p8001 = scmp.le.s32.totalorder 2, %s13
    // Predicated region
    $region65: #{tpu_custom_call.1} parent=5 // pred_check
      %p8002 = pneg %p8001
    $region66: #{tpu_custom_call.1} parent=5 // pred_check_branch
      %8004 = sbr.rel (%p8002) target = $region68
    $region67: #{tpu_custom_call.1} parent=5 // pred_region
      %s8005 = ssub.s32 %s13, 2
      // Predicated region
      $region69: #{tpu_custom_call.1} parent=67 // pred_check
        %p8006 = pneg %p208
      $region70: #{tpu_custom_call.1} parent=67 // pred_check_branch
        %8008 = sbr.rel (%p8006) target = $region72
      $region71: #{tpu_custom_call.1} parent=67 // pred_region
        %s8009 = smul.u32 8, %s25
        %p8010 = scmp.lt.s32.totalorder %s24, 1
        %s8011 = scalar_select %p8010, %s24, 1
        %p8012 = scmp.lt.s32.totalorder %s8009, 31
        %s8013 = scalar_select %p8012, %s8009, 31
        %s8014 = smul.addr %s8013, 4
        %s8015 = smul.addr %s8011, 128
        %s8016 = sadd.s32 %s8014, %s8015
        %s8017 = smul.addr %s8016, 4
        %s8018 = scalar_lea.vmem %s7, %s8017
      $region72: #{tpu_custom_call.1} parent=67 // pred_fallthru
        _
    $region68: #{tpu_custom_call.1} parent=5 // pred_fallthru
      _
  $region6: #{tpu_custom_call.1} parent=0 // loop_footer
    %s17 = sadd.s32 1, %s13
  $region7: #{tpu_custom_call.1} parent=0 // loop_footer_branch
    %12 = sbr.rel target = $region3
  $region8: #{tpu_custom_call.1} parent=0 // loop_exit
    _

</llo_original>
